<compile_context>
chip_gen: v7x
topology: tpu7x:2x2x1
jax: 0.10.0
libtpu: 0.0.40
codegen_flags: <defaults>
</compile_context>

<pallas_src>
import functools

import jax
import jax.numpy as jnp
from jax.experimental import pallas as pl
from jax.experimental.pallas import tpu as pltpu


def _round_up(a, m):
    return (a + m - 1) // m * m


def _vmem_limit_bytes():
    """Per-generation scoped-VMEM budget (BlockSpec double-buffers each tile)."""
    try:
        kind = jax.devices()[0].device_kind.lower()
    except Exception:
        kind = ""
    if "v7" in kind:
        return 48 * 1024 * 1024          # 64 MiB physical on v7x
    if "v4" in kind or "v5" in kind or "v6" in kind:
        return 96 * 1024 * 1024          # 128 MiB physical
    return 32 * 1024 * 1024              # conservative default for older gens


_TM_CAP = 1024      # flattened (batch*spatial) rows per matmul tile; sweep 512/1024/2048
_TCO_CAP = 512      # output-channel tile (full MXU width on v6e/v7x; v5e just iterates)


# ----------------------------------------------------------------------------
# Conv 3x3 (stride 1, pad 1) + bias + ReLU: in-kernel im2col via shifted matmuls
# ----------------------------------------------------------------------------
def _make_conv_kernel(Wp, tM, halo):
    """Kernel over one (row-block, cout-tile): 9 shifted MXU matmuls + bias + ReLU."""

    def kernel(x_ref, xh_ref, w_ref, b_ref, o_ref):
        # x_ref : (tM, Cin)      current block of flattened padded activations (bf16)
        # xh_ref: (halo, Cin)    halo rows immediately following the current block
        # w_ref : (9, Cin, tco)  one output-channel tile of the 3x3 weights (bf16)
        # b_ref : (1, tco)       f32 bias
        # o_ref : (tM, tco)      conv + bias + ReLU output rows (bf16)
        xw = jnp.concatenate([x_ref[...], xh_ref[...]], axis=0)     # (tM + halo, Cin)
        acc = jnp.dot(xw[0:tM, :], w_ref[0],
                      preferred_element_type=jnp.float32)           # tap (dy=0, dx=0)
        for t in range(1, 9):
            dy, dx = divmod(t, 3)
            off = dy * Wp + dx                                       # static row offset
            acc = acc + jnp.dot(xw[off:off + tM, :], w_ref[t],
                                preferred_element_type=jnp.float32)
        acc = acc + b_ref[...]
        o_ref[...] = jnp.maximum(acc, 0.0).astype(o_ref.dtype)

    return kernel


def conv3x3_relu(x_nhwc, w9, b2):
    """3x3 'same' conv + bias + ReLU.

    x_nhwc: (N, H, W, Cin) bf16
    w9:     (9, Cin, Cout) bf16   (tap order t = dy*3 + dx)
    b2:     (1, Cout)      f32
    returns (N, H, W, Cout) bf16
    """
    N, H, W, Cin = x_nhwc.shape
    _, _, Cout = w9.shape
    Hp, Wp = H + 3, W + 2              # pad: top 1 / bottom 2, left 1 / right 1
    Mp = Hp * Wp                       # flattened padded rows per image
    M_req = N * Mp                     # rows we must compute (incl. per-image tail garbage)
    off_max = 2 * Wp + 2               # largest tap offset (dy=2, dx=2)

    halo = _round_up(off_max, 16)                                     # bf16-sublane friendly
    tM = _round_up(min(_TM_CAP, _round_up(M_req, 16)), halo)          # multiple of halo
    n_m = pl.cdiv(M_req, tM)
    M_out = n_m * tM
    M_in = M_out + tM                  # one extra zero block -> halo fetch of last block in-bounds
    tco = min(Cout, _TCO_CAP)
    n_c = Cout // tco
    hr = tM // halo                    # halo blocks per row block

    # Light wrapper glue: 1-px spatial pad + flatten (no 9x im2col materialisation).
    xp = jnp.pad(x_nhwc, ((0, 0), (1, 2), (1, 1), (0, 0)))            # (N, Hp, Wp, Cin)
    xf = xp.reshape(N * Mp, Cin)
    xf = jnp.pad(xf, ((0, M_in - N * Mp), (0, 0)))                    # (M_in, Cin)

    kernel = _make_conv_kernel(Wp, tM, halo)

    out = pl.pallas_call(
        kernel,
        out_shape=jax.ShapeDtypeStruct((M_out, Cout), jnp.bfloat16),
        grid_spec=pltpu.PrefetchScalarGridSpec(
            num_scalar_prefetch=0,
            # cout-tile outer / row-block inner -> weight tile resident across all row blocks.
            grid=(n_c, n_m),
            in_specs=[
                pl.BlockSpec((tM, Cin), lambda c, m: (m, 0)),
                pl.BlockSpec((halo, Cin), lambda c, m: ((m + 1) * hr, 0)),
                pl.BlockSpec((9, Cin, tco), lambda c, m: (0, 0, c)),
                pl.BlockSpec((1, tco), lambda c, m: (0, c)),
            ],
            out_specs=pl.BlockSpec((tM, tco), lambda c, m: (m, c)),
        ),
        compiler_params=pltpu.CompilerParams(
            dimension_semantics=("parallel", "parallel"),
            vmem_limit_bytes=_vmem_limit_bytes(),
        ),
    )(xf, xf, w9, b2)

    out = out[:N * Mp].reshape(N, Hp, Wp, Cout)[:, :H, :W, :]
    return out


# ----------------------------------------------------------------------------
# MaxPool 2x2 stride 2 (row pair on its own axis, column pair folded into lanes)
# ----------------------------------------------------------------------------
def _maxpool2x2_kernel(x_ref, o_ref):
    # x_ref: (1, H/2, 2, W/2, 2*C) bf16;  o_ref: (1, H/2, W/2, C) bf16
    C = o_ref.shape[-1]
    x = x_ref[...]
    m = jnp.max(x, axis=2)                                 # max over the row pair
    o_ref[...] = jnp.maximum(m[..., :C], m[..., C:])       # max over the column pair (lanes)


def maxpool2x2(x_nhwc):
    N, H, W, C = x_nhwc.shape
    Hh, Wh = H // 2, W // 2
    xr = x_nhwc.reshape(N, Hh, 2, Wh, 2 * C)               # pure row-major reshape (free)
    return pl.pallas_call(
        _maxpool2x2_kernel,
        out_shape=jax.ShapeDtypeStruct((N, Hh, Wh, C), x_nhwc.dtype),
        grid_spec=pltpu.PrefetchScalarGridSpec(
            num_scalar_prefetch=0,
            grid=(N,),
            in_specs=[pl.BlockSpec((1, Hh, 2, Wh, 2 * C),
                                   lambda n: (n, 0, 0, 0, 0))],
            out_specs=pl.BlockSpec((1, Hh, Wh, C), lambda n: (n, 0, 0, 0)),
        ),
        compiler_params=pltpu.CompilerParams(
            dimension_semantics=("parallel",),
            vmem_limit_bytes=_vmem_limit_bytes(),
        ),
    )(xr)


# ----------------------------------------------------------------------------
# VGG19 feature extractor (torchvision layers 0..29) — slices 1..5
# ----------------------------------------------------------------------------
_VGG19_CONVS = [
    (0, 3, 64), (2, 64, 64),
    (5, 64, 128), (7, 128, 128),
    (10, 128, 256), (12, 256, 256), (14, 256, 256), (16, 256, 256),
    (19, 256, 512), (21, 512, 512), (23, 512, 512), (25, 512, 512),
    (28, 512, 512),
]


def init_vgg19_params(key):
    # TODO(synk): pretrained ImageNet weights unavailable in-script; He-style init stand-in.
    params = {}
    for idx, cin, cout in _VGG19_CONVS:
        kw, kb = jax.random.split(jax.random.fold_in(key, idx))
        scale = (2.0 / (9 * cin)) ** 0.5
        w = jax.random.normal(kw, (3, 3, cin, cout), jnp.float32) * scale
        b = jax.random.normal(kb, (cout,), jnp.float32) * 0.01
        params[idx] = (w.reshape(9, cin, cout).astype(jnp.bfloat16),
                       b.reshape(1, cout).astype(jnp.float32))
    return params


def vgg19_forward(params, x_nchw):
    """Returns [h_relu1, h_relu2, h_relu3, h_relu4, h_relu5] in NCHW float32."""
    x = jnp.transpose(x_nchw, (0, 2, 3, 1)).astype(jnp.bfloat16)   # NCHW -> NHWC
    cv = lambda t, i: conv3x3_relu(t, *params[i])

    h = cv(x, 0)
    h_relu1 = h
    h = cv(h, 2); h = maxpool2x2(h); h = cv(h, 5)
    h_relu2 = h
    h = cv(h, 7); h = maxpool2x2(h); h = cv(h, 10)
    h_relu3 = h
    h = cv(h, 12); h = cv(h, 14); h = cv(h, 16); h = maxpool2x2(h); h = cv(h, 19)
    h_relu4 = h
    h = cv(h, 21); h = cv(h, 23); h = cv(h, 25); h = maxpool2x2(h); h = cv(h, 28)
    h_relu5 = h

    outs = [h_relu1, h_relu2, h_relu3, h_relu4, h_relu5]
    return [jnp.transpose(o, (0, 3, 1, 2)).astype(jnp.float32) for o in outs]


if __name__ == "__main__":
    key = jax.random.PRNGKey(0)
    params = init_vgg19_params(key)
    x = jax.random.normal(jax.random.fold_in(key, 999), (2, 3, 16, 16), jnp.float32)

    # --- spot-check: conv kernel vs XLA conv on the first layer (bf16-quantised ref) ---
    x_nhwc = jnp.transpose(x, (0, 2, 3, 1)).astype(jnp.bfloat16)
    w9, b2 = params[0]
    got = jax.block_until_ready(conv3x3_relu(x_nhwc, w9, b2)).astype(jnp.float32)
    ref = jax.nn.relu(
        jax.lax.conv_general_dilated(
            x_nhwc.astype(jnp.float32),
            w9.reshape(3, 3, 3, 64).astype(jnp.float32),
            (1, 1), "SAME", dimension_numbers=("NHWC", "HWIO", "NHWC")) + b2)
    assert jnp.allclose(got, ref, atol=3e-2, rtol=3e-2), \
        float(jnp.max(jnp.abs(got - ref)))

    # --- spot-check: maxpool kernel vs reshape-max reference (exact in bf16) ---
    xpool = jax.random.normal(jax.random.fold_in(key, 7), (2, 16, 16, 64),
                              jnp.float32).astype(jnp.bfloat16)
    p_got = jax.block_until_ready(maxpool2x2(xpool))
    p_ref = jnp.max(xpool.reshape(2, 8, 2, 8, 2, 64), axis=(2, 4))
    assert jnp.array_equal(p_got, p_ref)

    # --- full VGG19 feature extractor ---
    fwd = jax.jit(functools.partial(vgg19_forward, params))
    outs = fwd(x)
    outs = [jax.block_until_ready(o) for o in outs]

    expected = [(2, 64, 16, 16), (2, 128, 8, 8), (2, 256, 4, 4),
                (2, 512, 2, 2), (2, 512, 1, 1)]
    got_shapes = [tuple(o.shape) for o in outs]
    assert got_shapes == expected, (got_shapes, expected)
    assert all(bool(jnp.isfinite(o).all()) for o in outs)
    print("KERNEL_OK")
</pallas_src>

<mosaic_0001>
module attributes {stable_mosaic.version = 11 : i64} {
  func.func @kernel(%arg0: i32, %arg1: i32, %arg2: memref<720x3xbf16, #tpu.memory_space<vmem>>, %arg3: memref<48x3xbf16, #tpu.memory_space<vmem>>, %arg4: memref<9x3x64xbf16, #tpu.memory_space<vmem>>, %arg5: memref<1x64xf32, #tpu.memory_space<vmem>>, %arg6: memref<720x64xbf16, #tpu.memory_space<vmem>>) attributes {dimension_semantics = [#tpu.dimension_semantics<parallel>, #tpu.dimension_semantics<parallel>], iteration_bounds = array<i64: 1, 1>, scalar_prefetch = 0 : i64, scratch_operands = 0 : i64, tpu.core_type = #tpu.core_type<tc>, window_params = [{transform_indices = @transform_0, window_bounds = array<i64: 720, 3>}, {transform_indices = @transform_1, window_bounds = array<i64: 48, 3>}, {transform_indices = @transform_2, window_bounds = array<i64: 9, 3, 64>}, {transform_indices = @transform_3, window_bounds = array<i64: 1, 64>}, {transform_indices = @transform_4, window_bounds = array<i64: 720, 64>}]} {
    %c0 = arith.constant 0 : index
    %c0_0 = arith.constant 0 : index
    %0 = vector.load %arg2[%c0, %c0_0] : memref<720x3xbf16, #tpu.memory_space<vmem>>, vector<720x3xbf16>
    %c0_1 = arith.constant 0 : index
    %c0_2 = arith.constant 0 : index
    %1 = vector.load %arg3[%c0_1, %c0_2] : memref<48x3xbf16, #tpu.memory_space<vmem>>, vector<48x3xbf16>
    %2 = tpu.concatenate %0, %1 in 0 : vector<720x3xbf16>, vector<48x3xbf16> -> vector<768x3xbf16>
    %3 = vector.extract_strided_slice %2 {offsets = [0, 0], sizes = [720, 3], strides = [1, 1]} : vector<768x3xbf16> to vector<720x3xbf16>
    %c0_3 = arith.constant 0 : index
    %c0_4 = arith.constant 0 : index
    %c0_5 = arith.constant 0 : index
    %4 = vector.load %arg4[%c0_3, %c0_4, %c0_5] : memref<9x3x64xbf16, #tpu.memory_space<vmem>>, vector<1x3x64xbf16>
    %5 = vector.shape_cast %4 : vector<1x3x64xbf16> to vector<3x64xbf16>
    %cst = arith.constant dense<0.000000e+00> : vector<720x64xf32>
    %6 = tpu.matmul %3, %5, %cst {dimension_numbers = #tpu.dot_dimension_numbers<[1], [0], [0], [1], [0, 0, 1, 1], [], []>} : vector<720x3xbf16>, vector<3x64xbf16>, vector<720x64xf32> -> vector<720x64xf32>
    %7 = vector.extract_strided_slice %2 {offsets = [1, 0], sizes = [720, 3], strides = [1, 1]} : vector<768x3xbf16> to vector<720x3xbf16>
    %c1 = arith.constant 1 : index
    %c0_6 = arith.constant 0 : index
    %c0_7 = arith.constant 0 : index
    %8 = vector.load %arg4[%c1, %c0_6, %c0_7] : memref<9x3x64xbf16, #tpu.memory_space<vmem>>, vector<1x3x64xbf16>
    %9 = vector.shape_cast %8 : vector<1x3x64xbf16> to vector<3x64xbf16>
    %cst_8 = arith.constant dense<0.000000e+00> : vector<720x64xf32>
    %10 = tpu.matmul %7, %9, %cst_8 {dimension_numbers = #tpu.dot_dimension_numbers<[1], [0], [0], [1], [0, 0, 1, 1], [], []>} : vector<720x3xbf16>, vector<3x64xbf16>, vector<720x64xf32> -> vector<720x64xf32>
    %11 = arith.addf %6, %10 : vector<720x64xf32>
    %12 = vector.extract_strided_slice %2 {offsets = [2, 0], sizes = [720, 3], strides = [1, 1]} : vector<768x3xbf16> to vector<720x3xbf16>
    %c2 = arith.constant 2 : index
    %c0_9 = arith.constant 0 : index
    %c0_10 = arith.constant 0 : index
    %13 = vector.load %arg4[%c2, %c0_9, %c0_10] : memref<9x3x64xbf16, #tpu.memory_space<vmem>>, vector<1x3x64xbf16>
    %14 = vector.shape_cast %13 : vector<1x3x64xbf16> to vector<3x64xbf16>
    %cst_11 = arith.constant dense<0.000000e+00> : vector<720x64xf32>
    %15 = tpu.matmul %12, %14, %cst_11 {dimension_numbers = #tpu.dot_dimension_numbers<[1], [0], [0], [1], [0, 0, 1, 1], [], []>} : vector<720x3xbf16>, vector<3x64xbf16>, vector<720x64xf32> -> vector<720x64xf32>
    %16 = arith.addf %11, %15 : vector<720x64xf32>
    %17 = vector.extract_strided_slice %2 {offsets = [18, 0], sizes = [720, 3], strides = [1, 1]} : vector<768x3xbf16> to vector<720x3xbf16>
    %c3 = arith.constant 3 : index
    %c0_12 = arith.constant 0 : index
    %c0_13 = arith.constant 0 : index
    %18 = vector.load %arg4[%c3, %c0_12, %c0_13] : memref<9x3x64xbf16, #tpu.memory_space<vmem>>, vector<1x3x64xbf16>
    %19 = vector.shape_cast %18 : vector<1x3x64xbf16> to vector<3x64xbf16>
    %cst_14 = arith.constant dense<0.000000e+00> : vector<720x64xf32>
    %20 = tpu.matmul %17, %19, %cst_14 {dimension_numbers = #tpu.dot_dimension_numbers<[1], [0], [0], [1], [0, 0, 1, 1], [], []>} : vector<720x3xbf16>, vector<3x64xbf16>, vector<720x64xf32> -> vector<720x64xf32>
    %21 = arith.addf %16, %20 : vector<720x64xf32>
    %22 = vector.extract_strided_slice %2 {offsets = [19, 0], sizes = [720, 3], strides = [1, 1]} : vector<768x3xbf16> to vector<720x3xbf16>
    %c4 = arith.constant 4 : index
    %c0_15 = arith.constant 0 : index
    %c0_16 = arith.constant 0 : index
    %23 = vector.load %arg4[%c4, %c0_15, %c0_16] : memref<9x3x64xbf16, #tpu.memory_space<vmem>>, vector<1x3x64xbf16>
    %24 = vector.shape_cast %23 : vector<1x3x64xbf16> to vector<3x64xbf16>
    %cst_17 = arith.constant dense<0.000000e+00> : vector<720x64xf32>
    %25 = tpu.matmul %22, %24, %cst_17 {dimension_numbers = #tpu.dot_dimension_numbers<[1], [0], [0], [1], [0, 0, 1, 1], [], []>} : vector<720x3xbf16>, vector<3x64xbf16>, vector<720x64xf32> -> vector<720x64xf32>
    %26 = arith.addf %21, %25 : vector<720x64xf32>
    %27 = vector.extract_strided_slice %2 {offsets = [20, 0], sizes = [720, 3], strides = [1, 1]} : vector<768x3xbf16> to vector<720x3xbf16>
    %c5 = arith.constant 5 : index
    %c0_18 = arith.constant 0 : index
    %c0_19 = arith.constant 0 : index
    %28 = vector.load %arg4[%c5, %c0_18, %c0_19] : memref<9x3x64xbf16, #tpu.memory_space<vmem>>, vector<1x3x64xbf16>
    %29 = vector.shape_cast %28 : vector<1x3x64xbf16> to vector<3x64xbf16>
    %cst_20 = arith.constant dense<0.000000e+00> : vector<720x64xf32>
    %30 = tpu.matmul %27, %29, %cst_20 {dimension_numbers = #tpu.dot_dimension_numbers<[1], [0], [0], [1], [0, 0, 1, 1], [], []>} : vector<720x3xbf16>, vector<3x64xbf16>, vector<720x64xf32> -> vector<720x64xf32>
    %31 = arith.addf %26, %30 : vector<720x64xf32>
    %32 = vector.extract_strided_slice %2 {offsets = [36, 0], sizes = [720, 3], strides = [1, 1]} : vector<768x3xbf16> to vector<720x3xbf16>
    %c6 = arith.constant 6 : index
    %c0_21 = arith.constant 0 : index
    %c0_22 = arith.constant 0 : index
    %33 = vector.load %arg4[%c6, %c0_21, %c0_22] : memref<9x3x64xbf16, #tpu.memory_space<vmem>>, vector<1x3x64xbf16>
    %34 = vector.shape_cast %33 : vector<1x3x64xbf16> to vector<3x64xbf16>
    %cst_23 = arith.constant dense<0.000000e+00> : vector<720x64xf32>
    %35 = tpu.matmul %32, %34, %cst_23 {dimension_numbers = #tpu.dot_dimension_numbers<[1], [0], [0], [1], [0, 0, 1, 1], [], []>} : vector<720x3xbf16>, vector<3x64xbf16>, vector<720x64xf32> -> vector<720x64xf32>
    %36 = arith.addf %31, %35 : vector<720x64xf32>
    %37 = vector.extract_strided_slice %2 {offsets = [37, 0], sizes = [720, 3], strides = [1, 1]} : vector<768x3xbf16> to vector<720x3xbf16>
    %c7 = arith.constant 7 : index
    %c0_24 = arith.constant 0 : index
    %c0_25 = arith.constant 0 : index
    %38 = vector.load %arg4[%c7, %c0_24, %c0_25] : memref<9x3x64xbf16, #tpu.memory_space<vmem>>, vector<1x3x64xbf16>
    %39 = vector.shape_cast %38 : vector<1x3x64xbf16> to vector<3x64xbf16>
    %cst_26 = arith.constant dense<0.000000e+00> : vector<720x64xf32>
    %40 = tpu.matmul %37, %39, %cst_26 {dimension_numbers = #tpu.dot_dimension_numbers<[1], [0], [0], [1], [0, 0, 1, 1], [], []>} : vector<720x3xbf16>, vector<3x64xbf16>, vector<720x64xf32> -> vector<720x64xf32>
    %41 = arith.addf %36, %40 : vector<720x64xf32>
    %42 = vector.extract_strided_slice %2 {offsets = [38, 0], sizes = [720, 3], strides = [1, 1]} : vector<768x3xbf16> to vector<720x3xbf16>
    %c8 = arith.constant 8 : index
    %c0_27 = arith.constant 0 : index
    %c0_28 = arith.constant 0 : index
    %43 = vector.load %arg4[%c8, %c0_27, %c0_28] : memref<9x3x64xbf16, #tpu.memory_space<vmem>>, vector<1x3x64xbf16>
    %44 = vector.shape_cast %43 : vector<1x3x64xbf16> to vector<3x64xbf16>
    %cst_29 = arith.constant dense<0.000000e+00> : vector<720x64xf32>
    %45 = tpu.matmul %42, %44, %cst_29 {dimension_numbers = #tpu.dot_dimension_numbers<[1], [0], [0], [1], [0, 0, 1, 1], [], []>} : vector<720x3xbf16>, vector<3x64xbf16>, vector<720x64xf32> -> vector<720x64xf32>
    %46 = arith.addf %41, %45 : vector<720x64xf32>
    %c0_30 = arith.constant 0 : index
    %c0_31 = arith.constant 0 : index
    %47 = vector.load %arg5[%c0_30, %c0_31] : memref<1x64xf32, #tpu.memory_space<vmem>>, vector<1x64xf32>
    %48 = vector.broadcast %47 : vector<1x64xf32> to vector<720x64xf32>
    %49 = arith.addf %46, %48 : vector<720x64xf32>
    %cst_32 = arith.constant 0.000000e+00 : f32
    %50 = vector.broadcast %cst_32 : f32 to vector<720x64xf32>
    %51 = arith.maximumf %49, %50 : vector<720x64xf32>
    %52 = arith.truncf %51 : vector<720x64xf32> to vector<720x64xbf16>
    %c0_33 = arith.constant 0 : index
    %c0_34 = arith.constant 0 : index
    %53 = vector.load %arg6[%c0_33, %c0_34] : memref<720x64xbf16, #tpu.memory_space<vmem>>, vector<720x64xbf16>
    tpu.vector_store %arg6[%c0_33, %c0_34], %52 {strides = array<i32>} : memref<720x64xbf16, #tpu.memory_space<vmem>>, vector<720x64xbf16>,
    return
  }
  func.func @transform_0(%arg0: i32, %arg1: i32) -> (i32, i32) {
    %c0_i32 = arith.constant 0 : i32
    %c0_i32_0 = arith.constant 0 : i32
    return %arg1, %c0_i32 : i32, i32
  }
  func.func @transform_1(%arg0: i32, %arg1: i32) -> (i32, i32) {
    %c1_i32 = arith.constant 1 : i32
    %0 = arith.addi %arg1, %c1_i32 : i32
    %c15_i32 = arith.constant 15 : i32
    %1 = arith.muli %0, %c15_i32 : i32
    %c0_i32 = arith.constant 0 : i32
    %c0_i32_0 = arith.constant 0 : i32
    return %1, %c0_i32 : i32, i32
  }
  func.func @transform_2(%arg0: i32, %arg1: i32) -> (i32, i32, i32) {
    %c0_i32 = arith.constant 0 : i32
    %c0_i32_0 = arith.constant 0 : i32
    %c0_i32_1 = arith.constant 0 : i32
    return %c0_i32, %c0_i32_0, %arg0 : i32, i32, i32
  }
  func.func @transform_3(%arg0: i32, %arg1: i32) -> (i32, i32) {
    %c0_i32 = arith.constant 0 : i32
    %c0_i32_0 = arith.constant 0 : i32
    return %c0_i32, %arg0 : i32, i32
  }
  func.func @transform_4(%arg0: i32, %arg1: i32) -> (i32, i32) {
    %c0_i32 = arith.constant 0 : i32
    return %arg1, %arg0 : i32, i32
  }
}

</mosaic_0001>

<llo_original>
// kernel: tpu_custom_call.1
$region0: #{tpu_custom_call.1}
  #allocation0 [shape = 'u32[]', space=smem, size = 0x4, offset = 0x4, fixed_abs, tag = 'smem constant byte address 0x4 - core index']
  #allocation1 [shape = 'u32[144,128]{1,0:T(1,128)}', space=vmem, size = 0x12000, scoped, tag = 'internal scratch']
  %s0 = inlined_call_operand.vmem [shape: bf16[1440,3], index: 0, kind: input, shape index: {}]
  %s1 = inlined_call_operand.vmem [shape: bf16[1440,3], index: 1, kind: input, shape index: {}]
  %s2 = inlined_call_operand.vmem [shape: bf16[9,3,64], index: 2, kind: input, shape index: {}]
  %s3 = inlined_call_operand.vmem [shape: f32[1,64], index: 3, kind: input, shape index: {}]
  %s4 = inlined_call_operand.vmem [shape: bf16[720,64], index: 4, kind: output, shape index: {}]
  %s5 = sld [smem:[#allocation0]]
  $region26: #{tpu_custom_call.1} parent=0
    _
  %s7 = ssub.s32 1, %s5
  %s8 = scalar_select 0, %s7, %s5
  // Predicated region
  $region2: #{tpu_custom_call.1} parent=0 // pred_check
    _
  $region3: #{tpu_custom_call.1} parent=0 // pred_check_branch
    %10 = sbr.rel (0) target = $region5
  $region4: #{tpu_custom_call.1} parent=0 // pred_region
    _
  $region5: #{tpu_custom_call.1} parent=0 // pred_fallthru
    _
  // Predicated region
  $region6: #{tpu_custom_call.1} parent=0 // pred_check
    _
  $region7: #{tpu_custom_call.1} parent=0 // pred_check_branch
    %12 = sbr.rel (0) target = $region9
  $region8: #{tpu_custom_call.1} parent=0 // pred_region
    %s13 = sadd.s32 0, 1
    %s14 = smul.u32 %s13, 15
    %s15 = smul.u32 6, %s14
    %p16 = scmp.lt.s32.totalorder %s15, 179
    %s17 = scalar_select %p16, %s15, 179
    %s18 = smul.addr %s17, 4
    %s19 = scalar_lea.vmem %s1, %s18
    %s20 = sadd.s32 0, 1
    %s21 = smul.u32 %s20, 15
    %s22 = smul.u32 6, %s21
  $region9: #{tpu_custom_call.1} parent=0 // pred_fallthru
    _
  // Predicated region
  $region10: #{tpu_custom_call.1} parent=0 // pred_check
    _
  $region11: #{tpu_custom_call.1} parent=0 // pred_check_branch
    %24 = sbr.rel (0) target = $region13
  $region12: #{tpu_custom_call.1} parent=0 // pred_region
    _
  $region13: #{tpu_custom_call.1} parent=0 // pred_fallthru
    _
  // Predicated region
  $region14: #{tpu_custom_call.1} parent=0 // pred_check
    _
  $region15: #{tpu_custom_call.1} parent=0 // pred_check_branch
    %26 = sbr.rel (0) target = $region17
  $region16: #{tpu_custom_call.1} parent=0 // pred_region
    _
  $region17: #{tpu_custom_call.1} parent=0 // pred_fallthru
    _
  %s27 = sadd.s32 0, 1
  %s28 = smul.u32 %s27, 15
  %s29 = smul.u32 6, %s28
  %p30 = scmp.lt.s32.totalorder %s29, 179
  %s31 = scalar_select %p30, %s29, 179
  %s32 = smul.addr %s31, 4
  %s33 = scalar_lea.vmem %s1, %s32
  %s34 = sadd.s32 0, 1
  %s35 = smul.u32 %s34, 15
  %s36 = smul.u32 6, %s35
  %p37 = scmp.lt.s32.totalorder %s36, 179
  %s38 = scalar_select %p37, %s36, 179
  %s39 = smul.addr %s38, 4
  %s40 = scalar_lea.vmem %s1, %s39
  %s41 = sadd.s32 0, 1
  %s42 = smul.u32 %s41, 15
  %s43 = smul.u32 6, %s42
  %v45 = vld [vmem:[%s0] sm:$0xf]
  %v46 = vld [vmem:[%s0 + $0x4] sm:$0xf]
  %v47 = vld [vmem:[%s0 + $0x8] sm:$0xf]
  %v48 = vld [vmem:[%s0 + $0xc] sm:$0xf]
  %v49 = vld [vmem:[%s0 + $0x10] sm:$0xf]
  %v50 = vld [vmem:[%s0 + $0x14] sm:$0xf]
  %v51 = vld [vmem:[%s0 + $0x18] sm:$0xf]
  %v52 = vld [vmem:[%s0 + $0x1c] sm:$0xf]
  %v53 = vld [vmem:[%s0 + $0x20] sm:$0xf]
  %v54 = vld [vmem:[%s0 + $0x24] sm:$0xf]
  %v55 = vld [vmem:[%s0 + $0x28] sm:$0xf]
  %v56 = vld [vmem:[%s0 + $0x2c] sm:$0xf]
  %v57 = vld [vmem:[%s0 + $0x30] sm:$0xf]
  %v58 = vld [vmem:[%s0 + $0x34] sm:$0xf]
  %v59 = vld [vmem:[%s0 + $0x38] sm:$0xf]
  %v60 = vld [vmem:[%s0 + $0x3c] sm:$0xf]
  %v61 = vld [vmem:[%s0 + $0x40] sm:$0xf]
  %v62 = vld [vmem:[%s0 + $0x44] sm:$0xf]
  %v63 = vld [vmem:[%s0 + $0x48] sm:$0xf]
  %v64 = vld [vmem:[%s0 + $0x4c] sm:$0xf]
  %v65 = vld [vmem:[%s0 + $0x50] sm:$0xf]
  %v66 = vld [vmem:[%s0 + $0x54] sm:$0xf]
  %v67 = vld [vmem:[%s0 + $0x58] sm:$0xf]
  %v68 = vld [vmem:[%s0 + $0x5c] sm:$0xf]
  %v69 = vld [vmem:[%s0 + $0x60] sm:$0xf]
  %v70 = vld [vmem:[%s0 + $0x64] sm:$0xf]
  %v71 = vld [vmem:[%s0 + $0x68] sm:$0xf]
  %v72 = vld [vmem:[%s0 + $0x6c] sm:$0xf]
  %v73 = vld [vmem:[%s0 + $0x70] sm:$0xf]
  %v74 = vld [vmem:[%s0 + $0x74] sm:$0xf]
  %v75 = vld [vmem:[%s0 + $0x78] sm:$0xf]
  %v76 = vld [vmem:[%s0 + $0x7c] sm:$0xf]
  %v77 = vld [vmem:[%s0 + $0x80] sm:$0xf]
  %v78 = vld [vmem:[%s0 + $0x84] sm:$0xf]
  %v79 = vld [vmem:[%s0 + $0x88] sm:$0xf]
  %v80 = vld [vmem:[%s0 + $0x8c] sm:$0xf]
  %v81 = vld [vmem:[%s0 + $0x90] sm:$0xf]
  %v82 = vld [vmem:[%s0 + $0x94] sm:$0xf]
  %v83 = vld [vmem:[%s0 + $0x98] sm:$0xf]
  %v84 = vld [vmem:[%s0 + $0x9c] sm:$0xf]
  %v85 = vld [vmem:[%s0 + $0xa0] sm:$0xf]
  %v86 = vld [vmem:[%s0 + $0xa4] sm:$0xf]
  %v87 = vld [vmem:[%s0 + $0xa8] sm:$0xf]
  %v88 = vld [vmem:[%s0 + $0xac] sm:$0xf]
  %v89 = vld [vmem:[%s0 + $0xb0] sm:$0xf]
  %v90 = vld [vmem:[%s0 + $0xb4] sm:$0xf]
  %v91 = vld [vmem:[%s0 + $0xb8] sm:$0xf]
  %v92 = vld [vmem:[%s0 + $0xbc] sm:$0xf]
  %v93 = vld [vmem:[%s0 + $0xc0] sm:$0xf]
  %v94 = vld [vmem:[%s0 + $0xc4] sm:$0xf]
  %v95 = vld [vmem:[%s0 + $0xc8] sm:$0xf]
  %v96 = vld [vmem:[%s0 + $0xcc] sm:$0xf]
  %v97 = vld [vmem:[%s0 + $0xd0] sm:$0xf]
  %v98 = vld [vmem:[%s0 + $0xd4] sm:$0xf]
  %v99 = vld [vmem:[%s0 + $0xd8] sm:$0xf]
  %v100 = vld [vmem:[%s0 + $0xdc] sm:$0xf]
  %v101 = vld [vmem:[%s0 + $0xe0] sm:$0xf]
  %v102 = vld [vmem:[%s0 + $0xe4] sm:$0xf]
  %v103 = vld [vmem:[%s0 + $0xe8] sm:$0xf]
  %v104 = vld [vmem:[%s0 + $0xec] sm:$0xf]
  %v105 = vld [vmem:[%s0 + $0xf0] sm:$0xf]
  %v106 = vld [vmem:[%s0 + $0xf4] sm:$0xf]
  %v107 = vld [vmem:[%s0 + $0xf8] sm:$0xf]
  %v108 = vld [vmem:[%s0 + $0xfc] sm:$0xf]
  %v109 = vld [vmem:[%s0 + $0x100] sm:$0xf]
  %v110 = vld [vmem:[%s0 + $0x104] sm:$0xf]
  %v111 = vld [vmem:[%s0 + $0x108] sm:$0xf]
  %v112 = vld [vmem:[%s0 + $0x10c] sm:$0xf]
  %v113 = vld [vmem:[%s0 + $0x110] sm:$0xf]
  %v114 = vld [vmem:[%s0 + $0x114] sm:$0xf]
  %v115 = vld [vmem:[%s0 + $0x118] sm:$0xf]
  %v116 = vld [vmem:[%s0 + $0x11c] sm:$0xf]
  %v117 = vld [vmem:[%s0 + $0x120] sm:$0xf]
  %v118 = vld [vmem:[%s0 + $0x124] sm:$0xf]
  %v119 = vld [vmem:[%s0 + $0x128] sm:$0xf]
  %v120 = vld [vmem:[%s0 + $0x12c] sm:$0xf]
  %v121 = vld [vmem:[%s0 + $0x130] sm:$0xf]
  %v122 = vld [vmem:[%s0 + $0x134] sm:$0xf]
  %v123 = vld [vmem:[%s0 + $0x138] sm:$0xf]
  %v124 = vld [vmem:[%s0 + $0x13c] sm:$0xf]
  %v125 = vld [vmem:[%s0 + $0x140] sm:$0xf]
  %v126 = vld [vmem:[%s0 + $0x144] sm:$0xf]
  %v127 = vld [vmem:[%s0 + $0x148] sm:$0xf]
  %v128 = vld [vmem:[%s0 + $0x14c] sm:$0xf]
  %v129 = vld [vmem:[%s0 + $0x150] sm:$0xf]
  %v130 = vld [vmem:[%s0 + $0x154] sm:$0xf]
  %v131 = vld [vmem:[%s0 + $0x158] sm:$0xf]
  %v132 = vld [vmem:[%s0 + $0x15c] sm:$0xf]
  %v133 = vld [vmem:[%s0 + $0x160] sm:$0xf]
  %v134 = vld [vmem:[%s0 + $0x164] sm:$0xf]
  %v135 = vld [vmem:[%s40] sm:$0xf]
  %v136 = vld [vmem:[%s40 + $0x4] sm:$0xf]
  %v137 = vld [vmem:[%s40 + $0x8] sm:$0xf]
  %v138 = vld [vmem:[%s40 + $0xc] sm:$0xf]
  %v139 = vld [vmem:[%s40 + $0x10] sm:$0xf]
  %v140 = vld [vmem:[%s40 + $0x14] sm:$0xf]
  %v231 = vunpack.c.l.b16 %v45
  %v232 = vunpack.c.l.b16 %v46
  %v233 = vunpack.c.l.b16 %v47
  %v234 = vunpack.c.l.b16 %v48
  %v235 = vunpack.c.l.b16 %v49
  %v236 = vunpack.c.l.b16 %v50
  %v237 = vunpack.c.l.b16 %v51
  %v238 = vunpack.c.l.b16 %v52
  %v239 = vunpack.c.l.b16 %v53
  %v240 = vunpack.c.l.b16 %v54
  %v241 = vunpack.c.l.b16 %v55
  %v242 = vunpack.c.l.b16 %v56
  %v243 = vunpack.c.l.b16 %v57
  %v244 = vunpack.c.l.b16 %v58
  %v245 = vunpack.c.l.b16 %v59
  %v246 = vunpack.c.l.b16 %v60
  %v247 = vunpack.c.l.b16 %v61
  %v248 = vunpack.c.l.b16 %v62
  %v249 = vunpack.c.l.b16 %v63
  %v250 = vunpack.c.l.b16 %v64
  %v251 = vunpack.c.l.b16 %v65
  %v252 = vunpack.c.l.b16 %v66
  %v253 = vunpack.c.l.b16 %v67
  %v254 = vunpack.c.l.b16 %v68
  %v255 = vunpack.c.l.b16 %v69
  %v256 = vunpack.c.l.b16 %v70
  %v257 = vunpack.c.l.b16 %v71
  %v258 = vunpack.c.l.b16 %v72
  %v259 = vunpack.c.l.b16 %v73
  %v260 = vunpack.c.l.b16 %v74
  %v261 = vunpack.c.l.b16 %v75
  %v262 = vunpack.c.l.b16 %v76
  %v263 = vunpack.c.l.b16 %v77
  %v264 = vunpack.c.l.b16 %v78
  %v265 = vunpack.c.l.b16 %v79
  %v266 = vunpack.c.l.b16 %v80
  %v267 = vunpack.c.l.b16 %v81
  %v268 = vunpack.c.l.b16 %v82
  %v269 = vunpack.c.l.b16 %v83
  %v270 = vunpack.c.l.b16 %v84
  %v271 = vunpack.c.l.b16 %v85
  %v272 = vunpack.c.l.b16 %v86
  %v273 = vunpack.c.l.b16 %v87
  %v274 = vunpack.c.l.b16 %v88
  %v275 = vunpack.c.l.b16 %v89
  %v276 = vunpack.c.l.b16 %v90
  %v277 = vunpack.c.l.b16 %v91
  %v278 = vunpack.c.l.b16 %v92
  %v279 = vunpack.c.l.b16 %v93
  %v280 = vunpack.c.l.b16 %v94
  %v281 = vunpack.c.l.b16 %v95
  %v282 = vunpack.c.l.b16 %v96
  %v283 = vunpack.c.l.b16 %v97
  %v284 = vunpack.c.l.b16 %v98
  %v285 = vunpack.c.l.b16 %v99
  %v286 = vunpack.c.l.b16 %v100
  %v287 = vunpack.c.l.b16 %v101
  %v288 = vunpack.c.l.b16 %v102
  %v289 = vunpack.c.l.b16 %v103
  %v290 = vunpack.c.l.b16 %v104
  %v291 = vunpack.c.l.b16 %v105
  %v292 = vunpack.c.l.b16 %v106
  %v293 = vunpack.c.l.b16 %v107
  %v294 = vunpack.c.l.b16 %v108
  %v295 = vunpack.c.l.b16 %v109
  %v296 = vunpack.c.l.b16 %v110
  %v297 = vunpack.c.l.b16 %v111
  %v298 = vunpack.c.l.b16 %v112
  %v299 = vunpack.c.l.b16 %v113
  %v300 = vunpack.c.l.b16 %v114
  %v301 = vunpack.c.l.b16 %v115
  %v302 = vunpack.c.l.b16 %v116
  %v303 = vunpack.c.l.b16 %v117
  %v304 = vunpack.c.l.b16 %v118
  %v305 = vunpack.c.l.b16 %v119
  %v306 = vunpack.c.l.b16 %v120
  %v307 = vunpack.c.l.b16 %v121
  %v308 = vunpack.c.l.b16 %v122
  %v309 = vunpack.c.l.b16 %v123
  %v310 = vunpack.c.l.b16 %v124
  %v311 = vunpack.c.l.b16 %v125
  %v312 = vunpack.c.l.b16 %v126
  %v313 = vunpack.c.l.b16 %v127
  %v314 = vunpack.c.l.b16 %v128
  %v315 = vunpack.c.l.b16 %v129
  %v316 = vunpack.c.l.b16 %v130
  %v317 = vunpack.c.l.b16 %v131
  %v318 = vunpack.c.l.b16 %v132
  %v319 = vunpack.c.l.b16 %v133
  %v320 = vunpack.c.l.b16 %v134
  %v321 = vpack.c.b16 %v232, %v231
  %v322 = vpack.c.b16 %v234, %v233
  %v323 = vpack.c.b16 %v236, %v235
  %v324 = vpack.c.b16 %v238, %v237
  %v325 = vpack.c.b16 %v240, %v239
  %v326 = vpack.c.b16 %v242, %v241
  %v327 = vpack.c.b16 %v244, %v243
  %v328 = vpack.c.b16 %v246, %v245
  %v329 = vpack.c.b16 %v248, %v247
  %v330 = vpack.c.b16 %v250, %v249
  %v331 = vpack.c.b16 %v252, %v251
  %v332 = vpack.c.b16 %v254, %v253
  %v333 = vpack.c.b16 %v256, %v255
  %v334 = vpack.c.b16 %v258, %v257
  %v335 = vpack.c.b16 %v260, %v259
  %v336 = vpack.c.b16 %v262, %v261
  %v337 = vpack.c.b16 %v264, %v263
  %v338 = vpack.c.b16 %v266, %v265
  %v339 = vpack.c.b16 %v268, %v267
  %v340 = vpack.c.b16 %v270, %v269
  %v341 = vpack.c.b16 %v272, %v271
  %v342 = vpack.c.b16 %v274, %v273
  %v343 = vpack.c.b16 %v276, %v275
  %v344 = vpack.c.b16 %v278, %v277
  %v345 = vpack.c.b16 %v280, %v279
  %v346 = vpack.c.b16 %v282, %v281
  %v347 = vpack.c.b16 %v284, %v283
  %v348 = vpack.c.b16 %v286, %v285
  %v349 = vpack.c.b16 %v288, %v287
  %v350 = vpack.c.b16 %v290, %v289
  %v351 = vpack.c.b16 %v292, %v291
  %v352 = vpack.c.b16 %v294, %v293
  %v353 = vpack.c.b16 %v296, %v295
  %v354 = vpack.c.b16 %v298, %v297
  %v355 = vpack.c.b16 %v300, %v299
  %v356 = vpack.c.b16 %v302, %v301
  %v357 = vpack.c.b16 %v304, %v303
  %v358 = vpack.c.b16 %v306, %v305
  %v359 = vpack.c.b16 %v308, %v307
  %v360 = vpack.c.b16 %v310, %v309
  %v361 = vpack.c.b16 %v312, %v311
  %v362 = vpack.c.b16 %v314, %v313
  %v363 = vpack.c.b16 %v316, %v315
  %v364 = vpack.c.b16 %v318, %v317
  %v365 = vpack.c.b16 %v320, %v319
  %v372 = vunpack.c.l.b16 %v135
  %v373 = vunpack.c.l.b16 %v136
  %v374 = vunpack.c.l.b16 %v137
  %v375 = vunpack.c.l.b16 %v138
  %v376 = vunpack.c.l.b16 %v139
  %v377 = vunpack.c.l.b16 %v140
  %v378 = vpack.c.b16 %v373, %v372
  %v379 = vpack.c.b16 %v375, %v374
  %v380 = vpack.c.b16 %v377, %v376
  %v381 = vld [vmem:[%s2] sm:$0x3]
  %s382 = scalar_lea.vmem %s2, 2
  %v383 = vld [vmem:[%s382] sm:$0x3]
  %vm384 = vsmask.f32 7424
  %v386 = vshrl.u32 %v321, 16
  %v388 = vshll.u32 %v321, 16
  %v390 = vrot.slane %v388, 1
  %v391 = vor.u32 %v386, %v390
  %v393 = vshll.u32 %v322, 16
  %v395 = vrot.slane %v393, 1
  %v396 = vsel %vm384, %v391, %v395
  %v397 = vshrl.u32 %v322, 16
  %v399 = vor.u32 %v397, %v395
  %v401 = vshll.u32 %v323, 16
  %v403 = vrot.slane %v401, 1
  %v404 = vsel %vm384, %v399, %v403
  %v405 = vshrl.u32 %v323, 16
  %v407 = vor.u32 %v405, %v403
  %v409 = vshll.u32 %v324, 16
  %v411 = vrot.slane %v409, 1
  %v412 = vsel %vm384, %v407, %v411
  %v413 = vshrl.u32 %v324, 16
  %v415 = vor.u32 %v413, %v411
  %v417 = vshll.u32 %v325, 16
  %v419 = vrot.slane %v417, 1
  %v420 = vsel %vm384, %v415, %v419
  %v421 = vshrl.u32 %v325, 16
  %v423 = vor.u32 %v421, %v419
  %v425 = vshll.u32 %v326, 16
  %v427 = vrot.slane %v425, 1
  %v428 = vsel %vm384, %v423, %v427
  %v429 = vshrl.u32 %v326, 16
  %v431 = vor.u32 %v429, %v427
  %v433 = vshll.u32 %v327, 16
  %v435 = vrot.slane %v433, 1
  %v436 = vsel %vm384, %v431, %v435
  %v437 = vshrl.u32 %v327, 16
  %v439 = vor.u32 %v437, %v435
  %v441 = vshll.u32 %v328, 16
  %v443 = vrot.slane %v441, 1
  %v444 = vsel %vm384, %v439, %v443
  %v445 = vshrl.u32 %v328, 16
  %v447 = vor.u32 %v445, %v443
  %v449 = vshll.u32 %v329, 16
  %v451 = vrot.slane %v449, 1
  %v452 = vsel %vm384, %v447, %v451
  %v453 = vshrl.u32 %v329, 16
  %v455 = vor.u32 %v453, %v451
  %v457 = vshll.u32 %v330, 16
  %v459 = vrot.slane %v457, 1
  %v460 = vsel %vm384, %v455, %v459
  %v461 = vshrl.u32 %v330, 16
  %v463 = vor.u32 %v461, %v459
  %v465 = vshll.u32 %v331, 16
  %v467 = vrot.slane %v465, 1
  %v468 = vsel %vm384, %v463, %v467
  %v469 = vshrl.u32 %v331, 16
  %v471 = vor.u32 %v469, %v467
  %v473 = vshll.u32 %v332, 16
  %v475 = vrot.slane %v473, 1
  %v476 = vsel %vm384, %v471, %v475
  %v477 = vshrl.u32 %v332, 16
  %v479 = vor.u32 %v477, %v475
  %v481 = vshll.u32 %v333, 16
  %v483 = vrot.slane %v481, 1
  %v484 = vsel %vm384, %v479, %v483
  %v485 = vshrl.u32 %v333, 16
  %v487 = vor.u32 %v485, %v483
  %v489 = vshll.u32 %v334, 16
  %v491 = vrot.slane %v489, 1
  %v492 = vsel %vm384, %v487, %v491
  %v493 = vshrl.u32 %v334, 16
  %v495 = vor.u32 %v493, %v491
  %v497 = vshll.u32 %v335, 16
  %v499 = vrot.slane %v497, 1
  %v500 = vsel %vm384, %v495, %v499
  %v501 = vshrl.u32 %v335, 16
  %v503 = vor.u32 %v501, %v499
  %v505 = vshll.u32 %v336, 16
  %v507 = vrot.slane %v505, 1
  %v508 = vsel %vm384, %v503, %v507
  %v509 = vshrl.u32 %v336, 16
  %v511 = vor.u32 %v509, %v507
  %v513 = vshll.u32 %v337, 16
  %v515 = vrot.slane %v513, 1
  %v516 = vsel %vm384, %v511, %v515
  %v517 = vshrl.u32 %v337, 16
  %v519 = vor.u32 %v517, %v515
  %v521 = vshll.u32 %v338, 16
  %v523 = vrot.slane %v521, 1
  %v524 = vsel %vm384, %v519, %v523
  %v525 = vshrl.u32 %v338, 16
  %v527 = vor.u32 %v525, %v523
  %v529 = vshll.u32 %v339, 16
  %v531 = vrot.slane %v529, 1
  %v532 = vsel %vm384, %v527, %v531
  %v533 = vshrl.u32 %v339, 16
  %v535 = vor.u32 %v533, %v531
  %v537 = vshll.u32 %v340, 16
  %v539 = vrot.slane %v537, 1
  %v540 = vsel %vm384, %v535, %v539
  %v541 = vshrl.u32 %v340, 16
  %v543 = vor.u32 %v541, %v539
  %v545 = vshll.u32 %v341, 16
  %v547 = vrot.slane %v545, 1
  %v548 = vsel %vm384, %v543, %v547
  %v549 = vshrl.u32 %v341, 16
  %v551 = vor.u32 %v549, %v547
  %v553 = vshll.u32 %v342, 16
  %v555 = vrot.slane %v553, 1
  %v556 = vsel %vm384, %v551, %v555
  %v557 = vshrl.u32 %v342, 16
  %v559 = vor.u32 %v557, %v555
  %v561 = vshll.u32 %v343, 16
  %v563 = vrot.slane %v561, 1
  %v564 = vsel %vm384, %v559, %v563
  %v565 = vshrl.u32 %v343, 16
  %v567 = vor.u32 %v565, %v563
  %v569 = vshll.u32 %v344, 16
  %v571 = vrot.slane %v569, 1
  %v572 = vsel %vm384, %v567, %v571
  %v573 = vshrl.u32 %v344, 16
  %v575 = vor.u32 %v573, %v571
  %v577 = vshll.u32 %v345, 16
  %v579 = vrot.slane %v577, 1
  %v580 = vsel %vm384, %v575, %v579
  %v581 = vshrl.u32 %v345, 16
  %v583 = vor.u32 %v581, %v579
  %v585 = vshll.u32 %v346, 16
  %v587 = vrot.slane %v585, 1
  %v588 = vsel %vm384, %v583, %v587
  %v589 = vshrl.u32 %v346, 16
  %v591 = vor.u32 %v589, %v587
  %v593 = vshll.u32 %v347, 16
  %v595 = vrot.slane %v593, 1
  %v596 = vsel %vm384, %v591, %v595
  %v597 = vshrl.u32 %v347, 16
  %v599 = vor.u32 %v597, %v595
  %v601 = vshll.u32 %v348, 16
  %v603 = vrot.slane %v601, 1
  %v604 = vsel %vm384, %v599, %v603
  %v605 = vshrl.u32 %v348, 16
  %v607 = vor.u32 %v605, %v603
  %v609 = vshll.u32 %v349, 16
  %v611 = vrot.slane %v609, 1
  %v612 = vsel %vm384, %v607, %v611
  %v613 = vshrl.u32 %v349, 16
  %v615 = vor.u32 %v613, %v611
  %v617 = vshll.u32 %v350, 16
  %v619 = vrot.slane %v617, 1
  %v620 = vsel %vm384, %v615, %v619
  %v621 = vshrl.u32 %v350, 16
  %v623 = vor.u32 %v621, %v619
  %v625 = vshll.u32 %v351, 16
  %v627 = vrot.slane %v625, 1
  %v628 = vsel %vm384, %v623, %v627
  %v629 = vshrl.u32 %v351, 16
  %v631 = vor.u32 %v629, %v627
  %v633 = vshll.u32 %v352, 16
  %v635 = vrot.slane %v633, 1
  %v636 = vsel %vm384, %v631, %v635
  %v637 = vshrl.u32 %v352, 16
  %v639 = vor.u32 %v637, %v635
  %v641 = vshll.u32 %v353, 16
  %v643 = vrot.slane %v641, 1
  %v644 = vsel %vm384, %v639, %v643
  %v645 = vshrl.u32 %v353, 16
  %v647 = vor.u32 %v645, %v643
  %v649 = vshll.u32 %v354, 16
  %v651 = vrot.slane %v649, 1
  %v652 = vsel %vm384, %v647, %v651
  %v653 = vshrl.u32 %v354, 16
  %v655 = vor.u32 %v653, %v651
  %v657 = vshll.u32 %v355, 16
  %v659 = vrot.slane %v657, 1
  %v660 = vsel %vm384, %v655, %v659
  %v661 = vshrl.u32 %v355, 16
  %v663 = vor.u32 %v661, %v659
  %v665 = vshll.u32 %v356, 16
  %v667 = vrot.slane %v665, 1
  %v668 = vsel %vm384, %v663, %v667
  %v669 = vshrl.u32 %v356, 16
  %v671 = vor.u32 %v669, %v667
  %v673 = vshll.u32 %v357, 16
  %v675 = vrot.slane %v673, 1
  %v676 = vsel %vm384, %v671, %v675
  %v677 = vshrl.u32 %v357, 16
  %v679 = vor.u32 %v677, %v675
  %v681 = vshll.u32 %v358, 16
  %v683 = vrot.slane %v681, 1
  %v684 = vsel %vm384, %v679, %v683
  %v685 = vshrl.u32 %v358, 16
  %v687 = vor.u32 %v685, %v683
  %v689 = vshll.u32 %v359, 16
  %v691 = vrot.slane %v689, 1
  %v692 = vsel %vm384, %v687, %v691
  %v693 = vshrl.u32 %v359, 16
  %v695 = vor.u32 %v693, %v691
  %v697 = vshll.u32 %v360, 16
  %v699 = vrot.slane %v697, 1
  %v700 = vsel %vm384, %v695, %v699
  %v701 = vshrl.u32 %v360, 16
  %v703 = vor.u32 %v701, %v699
  %v705 = vshll.u32 %v361, 16
  %v707 = vrot.slane %v705, 1
  %v708 = vsel %vm384, %v703, %v707
  %v709 = vshrl.u32 %v361, 16
  %v711 = vor.u32 %v709, %v707
  %v713 = vshll.u32 %v362, 16
  %v715 = vrot.slane %v713, 1
  %v716 = vsel %vm384, %v711, %v715
  %v717 = vshrl.u32 %v362, 16
  %v719 = vor.u32 %v717, %v715
  %v721 = vshll.u32 %v363, 16
  %v723 = vrot.slane %v721, 1
  %v724 = vsel %vm384, %v719, %v723
  %v725 = vshrl.u32 %v363, 16
  %v727 = vor.u32 %v725, %v723
  %v729 = vshll.u32 %v364, 16
  %v731 = vrot.slane %v729, 1
  %v732 = vsel %vm384, %v727, %v731
  %v733 = vshrl.u32 %v364, 16
  %v735 = vor.u32 %v733, %v731
  %v737 = vshll.u32 %v365, 16
  %v739 = vrot.slane %v737, 1
  %v740 = vsel %vm384, %v735, %v739
  %v741 = vshrl.u32 %v365, 16
  %v743 = vor.u32 %v741, %v739
  %v745 = vshll.u32 %v378, 16
  %v747 = vrot.slane %v745, 1
  %v748 = vsel %vm384, %v743, %v747
  %vm749 = vcmask 23552
  %v751 = vsel %vm749, %v396, 0
  %v754 = vsel %vm749, %v404, 0
  %v757 = vsel %vm749, %v412, 0
  %v760 = vsel %vm749, %v420, 0
  %v763 = vsel %vm749, %v428, 0
  %v766 = vsel %vm749, %v436, 0
  %v769 = vsel %vm749, %v444, 0
  %v772 = vsel %vm749, %v452, 0
  %v775 = vsel %vm749, %v460, 0
  %v778 = vsel %vm749, %v468, 0
  %v781 = vsel %vm749, %v476, 0
  %v784 = vsel %vm749, %v484, 0
  %v787 = vsel %vm749, %v492, 0
  %v790 = vsel %vm749, %v500, 0
  %v793 = vsel %vm749, %v508, 0
  %v796 = vsel %vm749, %v516, 0
  %v799 = vsel %vm749, %v524, 0
  %v802 = vsel %vm749, %v532, 0
  %v805 = vsel %vm749, %v540, 0
  %v808 = vsel %vm749, %v548, 0
  %v811 = vsel %vm749, %v556, 0
  %v814 = vsel %vm749, %v564, 0
  %v817 = vsel %vm749, %v572, 0
  %v820 = vsel %vm749, %v580, 0
  %v823 = vsel %vm749, %v588, 0
  %v826 = vsel %vm749, %v596, 0
  %v829 = vsel %vm749, %v604, 0
  %v832 = vsel %vm749, %v612, 0
  %v835 = vsel %vm749, %v620, 0
  %v838 = vsel %vm749, %v628, 0
  %v841 = vsel %vm749, %v636, 0
  %v844 = vsel %vm749, %v644, 0
  %v847 = vsel %vm749, %v652, 0
  %v850 = vsel %vm749, %v660, 0
  %v853 = vsel %vm749, %v668, 0
  %v856 = vsel %vm749, %v676, 0
  %v859 = vsel %vm749, %v684, 0
  %v862 = vsel %vm749, %v692, 0
  %v865 = vsel %vm749, %v700, 0
  %v868 = vsel %vm749, %v708, 0
  %v871 = vsel %vm749, %v716, 0
  %v874 = vsel %vm749, %v724, 0
  %v877 = vsel %vm749, %v732, 0
  %v880 = vsel %vm749, %v740, 0
  %v883 = vsel %vm749, %v748, 0
  %vm885 = vcmask 1040384
  %vm886 = vcmask 1041408
  %v887 = vsel %vm885, 4294967295, 65535
  %v888 = vsel %vm886, %v887, 0
  %v890 = vand.u32 %v383, %v888
  %892 = vmatprep.subr.bf16.mxu0 0
  %893 = vmatpush1.bf16.msra.mxu0 %v890
  %894 = vmatprep.subr.bf16.mxu0 0
  %895 = vmatpush1.bf16.msra.mxu0 0
  %896 = vmatprep.subr.bf16.mxu0 0
  %897 = vmatpush1.bf16.msra.mxu0 0
  %898 = vmatprep.subr.bf16.mxu0 0
  %899 = vmatpush1.bf16.msra.mxu0 0
  %900 = vmatprep.subr.bf16.mxu0 0
  %901 = vmatpush1.bf16.msra.mxu0 0
  %902 = vmatprep.subr.bf16.mxu0 0
  %903 = vmatpush1.bf16.msra.mxu0 0
  %904 = vmatprep.subr.bf16.mxu0 0
  %905 = vmatpush1.bf16.msra.mxu0 0
  %906 = vmatprep.subr.bf16.mxu0 0
  %907 = vmatpush1.bf16.msra.mxu0 0
  %908 = vmatprep.subr.bf16.mxu0 0
  %909 = vmatpush1.bf16.msra.mxu0 0
  %910 = vmatprep.subr.bf16.mxu0 0
  %911 = vmatpush1.bf16.msra.mxu0 0
  %912 = vmatprep.subr.bf16.mxu0 0
  %913 = vmatpush1.bf16.msra.mxu0 0
  %914 = vmatprep.subr.bf16.mxu0 0
  %915 = vmatpush1.bf16.msra.mxu0 0
  %916 = vmatprep.subr.bf16.mxu0 0
  %917 = vmatpush1.bf16.msra.mxu0 0
  %918 = vmatprep.subr.bf16.mxu0 0
  %919 = vmatpush1.bf16.msra.mxu0 0
  %920 = vmatprep.subr.bf16.mxu0 0
  %921 = vmatpush1.bf16.msra.mxu0 0
  %922 = vmatprep.subr.bf16.mxu0 0
  %923 = vmatpush1.bf16.msra.mxu0 0
  %924 = vmatprep.mubr.bf16.mxu0 0
  %925 = vmatmul.mubr.bf16.gmra.mrb[0].mxu0 %v751
  %v926 = vpop.f32.mrb[0].mxu0
  %v927 = vadd.f32 0.0, %v926
  %v928 = vpop.f32.mrb[0].mxu0
  %v929 = vpop.f32.mrb[0].mxu0
  %v930 = vadd.f32 0.0, %v929
  %v931 = vpop.f32.mrb[0].mxu0
  %932 = vmatprep.mubr.bf16.mxu0 0
  %933 = vmatmul.mubr.bf16.gmra.mrb[0].mxu0 %v754
  %v934 = vpop.f32.mrb[0].mxu0
  %v935 = vadd.f32 0.0, %v934
  %v936 = vpop.f32.mrb[0].mxu0
  %v937 = vpop.f32.mrb[0].mxu0
  %v938 = vadd.f32 0.0, %v937
  %v939 = vpop.f32.mrb[0].mxu0
  %940 = vmatprep.mubr.bf16.mxu0 0
  %941 = vmatmul.mubr.bf16.gmra.mrb[0].mxu0 %v757
  %v942 = vpop.f32.mrb[0].mxu0
  %v943 = vadd.f32 0.0, %v942
  %v944 = vpop.f32.mrb[0].mxu0
  %v945 = vpop.f32.mrb[0].mxu0
  %v946 = vadd.f32 0.0, %v945
  %v947 = vpop.f32.mrb[0].mxu0
  %948 = vmatprep.mubr.bf16.mxu0 0
  %949 = vmatmul.mubr.bf16.gmra.mrb[0].mxu0 %v760
  %v950 = vpop.f32.mrb[0].mxu0
  %v951 = vadd.f32 0.0, %v950
  %v952 = vpop.f32.mrb[0].mxu0
  %v953 = vpop.f32.mrb[0].mxu0
  %v954 = vadd.f32 0.0, %v953
  %v955 = vpop.f32.mrb[0].mxu0
  %956 = vmatprep.mubr.bf16.mxu0 0
  %957 = vmatmul.mubr.bf16.gmra.mrb[0].mxu0 %v763
  %v958 = vpop.f32.mrb[0].mxu0
  %v959 = vadd.f32 0.0, %v958
  %v960 = vpop.f32.mrb[0].mxu0
  %v961 = vpop.f32.mrb[0].mxu0
  %v962 = vadd.f32 0.0, %v961
  %v963 = vpop.f32.mrb[0].mxu0
  %964 = vmatprep.mubr.bf16.mxu0 0
  %965 = vmatmul.mubr.bf16.gmra.mrb[0].mxu0 %v766
  %v966 = vpop.f32.mrb[0].mxu0
  %v967 = vadd.f32 0.0, %v966
  %v968 = vpop.f32.mrb[0].mxu0
  %v969 = vpop.f32.mrb[0].mxu0
  %v970 = vadd.f32 0.0, %v969
  %v971 = vpop.f32.mrb[0].mxu0
  %972 = vmatprep.mubr.bf16.mxu0 0
  %973 = vmatmul.mubr.bf16.gmra.mrb[0].mxu0 %v769
  %v974 = vpop.f32.mrb[0].mxu0
  %v975 = vadd.f32 0.0, %v974
  %v976 = vpop.f32.mrb[0].mxu0
  %v977 = vpop.f32.mrb[0].mxu0
  %v978 = vadd.f32 0.0, %v977
  %v979 = vpop.f32.mrb[0].mxu0
  %980 = vmatprep.mubr.bf16.mxu0 0
  %981 = vmatmul.mubr.bf16.gmra.mrb[0].mxu0 %v772
  %v982 = vpop.f32.mrb[0].mxu0
  %v983 = vadd.f32 0.0, %v982
  %v984 = vpop.f32.mrb[0].mxu0
  %v985 = vpop.f32.mrb[0].mxu0
  %v986 = vadd.f32 0.0, %v985
  %v987 = vpop.f32.mrb[0].mxu0
  %988 = vmatprep.mubr.bf16.mxu0 0
  %989 = vmatmul.mubr.bf16.gmra.mrb[0].mxu0 %v775
  %v990 = vpop.f32.mrb[0].mxu0
  %v991 = vadd.f32 0.0, %v990
  %v992 = vpop.f32.mrb[0].mxu0
  %v993 = vpop.f32.mrb[0].mxu0
  %v994 = vadd.f32 0.0, %v993
  %v995 = vpop.f32.mrb[0].mxu0
  %996 = vmatprep.mubr.bf16.mxu0 0
  %997 = vmatmul.mubr.bf16.gmra.mrb[0].mxu0 %v778
  %v998 = vpop.f32.mrb[0].mxu0
  %v999 = vadd.f32 0.0, %v998
  %v1000 = vpop.f32.mrb[0].mxu0
  %v1001 = vpop.f32.mrb[0].mxu0
  %v1002 = vadd.f32 0.0, %v1001
  %v1003 = vpop.f32.mrb[0].mxu0
  %1004 = vmatprep.mubr.bf16.mxu0 0
  %1005 = vmatmul.mubr.bf16.gmra.mrb[0].mxu0 %v781
  %v1006 = vpop.f32.mrb[0].mxu0
  %v1007 = vadd.f32 0.0, %v1006
  %v1008 = vpop.f32.mrb[0].mxu0
  %v1009 = vpop.f32.mrb[0].mxu0
  %v1010 = vadd.f32 0.0, %v1009
  %v1011 = vpop.f32.mrb[0].mxu0
  %1012 = vmatprep.mubr.bf16.mxu0 0
  %1013 = vmatmul.mubr.bf16.gmra.mrb[0].mxu0 %v784
  %v1014 = vpop.f32.mrb[0].mxu0
  %v1015 = vadd.f32 0.0, %v1014
  %v1016 = vpop.f32.mrb[0].mxu0
  %v1017 = vpop.f32.mrb[0].mxu0
  %v1018 = vadd.f32 0.0, %v1017
  %v1019 = vpop.f32.mrb[0].mxu0
  %1020 = vmatprep.mubr.bf16.mxu0 0
  %1021 = vmatmul.mubr.bf16.gmra.mrb[0].mxu0 %v787
  %v1022 = vpop.f32.mrb[0].mxu0
  %v1023 = vadd.f32 0.0, %v1022
  %v1024 = vpop.f32.mrb[0].mxu0
  %v1025 = vpop.f32.mrb[0].mxu0
  %v1026 = vadd.f32 0.0, %v1025
  %v1027 = vpop.f32.mrb[0].mxu0
  %1028 = vmatprep.mubr.bf16.mxu0 0
  %1029 = vmatmul.mubr.bf16.gmra.mrb[0].mxu0 %v790
  %v1030 = vpop.f32.mrb[0].mxu0
  %v1031 = vadd.f32 0.0, %v1030
  %v1032 = vpop.f32.mrb[0].mxu0
  %v1033 = vpop.f32.mrb[0].mxu0
  %v1034 = vadd.f32 0.0, %v1033
  %v1035 = vpop.f32.mrb[0].mxu0
  %1036 = vmatprep.mubr.bf16.mxu0 0
  %1037 = vmatmul.mubr.bf16.gmra.mrb[0].mxu0 %v793
  %v1038 = vpop.f32.mrb[0].mxu0
  %v1039 = vadd.f32 0.0, %v1038
  %v1040 = vpop.f32.mrb[0].mxu0
  %v1041 = vpop.f32.mrb[0].mxu0
  %v1042 = vadd.f32 0.0, %v1041
  %v1043 = vpop.f32.mrb[0].mxu0
  %1044 = vmatprep.mubr.bf16.mxu0 0
  %1045 = vmatmul.mubr.bf16.gmra.mrb[0].mxu0 %v796
  %v1046 = vpop.f32.mrb[0].mxu0
  %v1047 = vadd.f32 0.0, %v1046
  %v1048 = vpop.f32.mrb[0].mxu0
  %v1049 = vpop.f32.mrb[0].mxu0
  %v1050 = vadd.f32 0.0, %v1049
  %v1051 = vpop.f32.mrb[0].mxu0
  %1052 = vmatprep.mubr.bf16.mxu0 0
  %1053 = vmatmul.mubr.bf16.gmra.mrb[0].mxu0 %v799
  %v1054 = vpop.f32.mrb[0].mxu0
  %v1055 = vadd.f32 0.0, %v1054
  %v1056 = vpop.f32.mrb[0].mxu0
  %v1057 = vpop.f32.mrb[0].mxu0
  %v1058 = vadd.f32 0.0, %v1057
  %v1059 = vpop.f32.mrb[0].mxu0
  %1060 = vmatprep.mubr.bf16.mxu0 0
  %1061 = vmatmul.mubr.bf16.gmra.mrb[0].mxu0 %v802
  %v1062 = vpop.f32.mrb[0].mxu0
  %v1063 = vadd.f32 0.0, %v1062
  %v1064 = vpop.f32.mrb[0].mxu0
  %v1065 = vpop.f32.mrb[0].mxu0
  %v1066 = vadd.f32 0.0, %v1065
  %v1067 = vpop.f32.mrb[0].mxu0
  %1068 = vmatprep.mubr.bf16.mxu0 0
  %1069 = vmatmul.mubr.bf16.gmra.mrb[0].mxu0 %v805
  %v1070 = vpop.f32.mrb[0].mxu0
  %v1071 = vadd.f32 0.0, %v1070
  %v1072 = vpop.f32.mrb[0].mxu0
  %v1073 = vpop.f32.mrb[0].mxu0
  %v1074 = vadd.f32 0.0, %v1073
  %v1075 = vpop.f32.mrb[0].mxu0
  %1076 = vmatprep.mubr.bf16.mxu0 0
  %1077 = vmatmul.mubr.bf16.gmra.mrb[0].mxu0 %v808
  %v1078 = vpop.f32.mrb[0].mxu0
  %v1079 = vadd.f32 0.0, %v1078
  %v1080 = vpop.f32.mrb[0].mxu0
  %v1081 = vpop.f32.mrb[0].mxu0
  %v1082 = vadd.f32 0.0, %v1081
  %v1083 = vpop.f32.mrb[0].mxu0
  %1084 = vmatprep.mubr.bf16.mxu0 0
  %1085 = vmatmul.mubr.bf16.gmra.mrb[0].mxu0 %v811
  %v1086 = vpop.f32.mrb[0].mxu0
  %v1087 = vadd.f32 0.0, %v1086
  %v1088 = vpop.f32.mrb[0].mxu0
  %v1089 = vpop.f32.mrb[0].mxu0
  %v1090 = vadd.f32 0.0, %v1089
  %v1091 = vpop.f32.mrb[0].mxu0
  %1092 = vmatprep.mubr.bf16.mxu0 0
  %1093 = vmatmul.mubr.bf16.gmra.mrb[0].mxu0 %v814
  %v1094 = vpop.f32.mrb[0].mxu0
  %v1095 = vadd.f32 0.0, %v1094
  %v1096 = vpop.f32.mrb[0].mxu0
  %v1097 = vpop.f32.mrb[0].mxu0
  %v1098 = vadd.f32 0.0, %v1097
  %v1099 = vpop.f32.mrb[0].mxu0
  %1100 = vmatprep.mubr.bf16.mxu0 0
  %1101 = vmatmul.mubr.bf16.gmra.mrb[0].mxu0 %v817
  %v1102 = vpop.f32.mrb[0].mxu0
  %v1103 = vadd.f32 0.0, %v1102
  %v1104 = vpop.f32.mrb[0].mxu0
  %v1105 = vpop.f32.mrb[0].mxu0
  %v1106 = vadd.f32 0.0, %v1105
  %v1107 = vpop.f32.mrb[0].mxu0
  %1108 = vmatprep.mubr.bf16.mxu0 0
  %1109 = vmatmul.mubr.bf16.gmra.mrb[0].mxu0 %v820
  %v1110 = vpop.f32.mrb[0].mxu0
  %v1111 = vadd.f32 0.0, %v1110
  %v1112 = vpop.f32.mrb[0].mxu0
  %v1113 = vpop.f32.mrb[0].mxu0
  %v1114 = vadd.f32 0.0, %v1113
  %v1115 = vpop.f32.mrb[0].mxu0
  %1116 = vmatprep.mubr.bf16.mxu0 0
  %1117 = vmatmul.mubr.bf16.gmra.mrb[0].mxu0 %v823
  %v1118 = vpop.f32.mrb[0].mxu0
  %v1119 = vadd.f32 0.0, %v1118
  %v1120 = vpop.f32.mrb[0].mxu0
  %v1121 = vpop.f32.mrb[0].mxu0
  %v1122 = vadd.f32 0.0, %v1121
  %v1123 = vpop.f32.mrb[0].mxu0
  %1124 = vmatprep.mubr.bf16.mxu0 0
  %1125 = vmatmul.mubr.bf16.gmra.mrb[0].mxu0 %v826
  %v1126 = vpop.f32.mrb[0].mxu0
  %v1127 = vadd.f32 0.0, %v1126
  %v1128 = vpop.f32.mrb[0].mxu0
  %v1129 = vpop.f32.mrb[0].mxu0
  %v1130 = vadd.f32 0.0, %v1129
  %v1131 = vpop.f32.mrb[0].mxu0
  %1132 = vmatprep.mubr.bf16.mxu0 0
  %1133 = vmatmul.mubr.bf16.gmra.mrb[0].mxu0 %v829
  %v1134 = vpop.f32.mrb[0].mxu0
  %v1135 = vadd.f32 0.0, %v1134
  %v1136 = vpop.f32.mrb[0].mxu0
  %v1137 = vpop.f32.mrb[0].mxu0
  %v1138 = vadd.f32 0.0, %v1137
  %v1139 = vpop.f32.mrb[0].mxu0
  %1140 = vmatprep.mubr.bf16.mxu0 0
  %1141 = vmatmul.mubr.bf16.gmra.mrb[0].mxu0 %v832
  %v1142 = vpop.f32.mrb[0].mxu0
  %v1143 = vadd.f32 0.0, %v1142
  %v1144 = vpop.f32.mrb[0].mxu0
  %v1145 = vpop.f32.mrb[0].mxu0
  %v1146 = vadd.f32 0.0, %v1145
  %v1147 = vpop.f32.mrb[0].mxu0
  %1148 = vmatprep.mubr.bf16.mxu0 0
  %1149 = vmatmul.mubr.bf16.gmra.mrb[0].mxu0 %v835
  %v1150 = vpop.f32.mrb[0].mxu0
  %v1151 = vadd.f32 0.0, %v1150
  %v1152 = vpop.f32.mrb[0].mxu0
  %v1153 = vpop.f32.mrb[0].mxu0
  %v1154 = vadd.f32 0.0, %v1153
  %v1155 = vpop.f32.mrb[0].mxu0
  %1156 = vmatprep.mubr.bf16.mxu0 0
  %1157 = vmatmul.mubr.bf16.gmra.mrb[0].mxu0 %v838
  %v1158 = vpop.f32.mrb[0].mxu0
  %v1159 = vadd.f32 0.0, %v1158
  %v1160 = vpop.f32.mrb[0].mxu0
  %v1161 = vpop.f32.mrb[0].mxu0
  %v1162 = vadd.f32 0.0, %v1161
  %v1163 = vpop.f32.mrb[0].mxu0
  %1164 = vmatprep.mubr.bf16.mxu0 0
  %1165 = vmatmul.mubr.bf16.gmra.mrb[0].mxu0 %v841
  %v1166 = vpop.f32.mrb[0].mxu0
  %v1167 = vadd.f32 0.0, %v1166
  %v1168 = vpop.f32.mrb[0].mxu0
  %v1169 = vpop.f32.mrb[0].mxu0
  %v1170 = vadd.f32 0.0, %v1169
  %v1171 = vpop.f32.mrb[0].mxu0
  %1172 = vmatprep.mubr.bf16.mxu0 0
  %1173 = vmatmul.mubr.bf16.gmra.mrb[0].mxu0 %v844
  %v1174 = vpop.f32.mrb[0].mxu0
  %v1175 = vadd.f32 0.0, %v1174
  %v1176 = vpop.f32.mrb[0].mxu0
  %v1177 = vpop.f32.mrb[0].mxu0
  %v1178 = vadd.f32 0.0, %v1177
  %v1179 = vpop.f32.mrb[0].mxu0
  %1180 = vmatprep.mubr.bf16.mxu0 0
  %1181 = vmatmul.mubr.bf16.gmra.mrb[0].mxu0 %v847
  %v1182 = vpop.f32.mrb[0].mxu0
  %v1183 = vadd.f32 0.0, %v1182
  %v1184 = vpop.f32.mrb[0].mxu0
  %v1185 = vpop.f32.mrb[0].mxu0
  %v1186 = vadd.f32 0.0, %v1185
  %v1187 = vpop.f32.mrb[0].mxu0
  %1188 = vmatprep.mubr.bf16.mxu0 0
  %1189 = vmatmul.mubr.bf16.gmra.mrb[0].mxu0 %v850
  %v1190 = vpop.f32.mrb[0].mxu0
  %v1191 = vadd.f32 0.0, %v1190
  %v1192 = vpop.f32.mrb[0].mxu0
  %v1193 = vpop.f32.mrb[0].mxu0
  %v1194 = vadd.f32 0.0, %v1193
  %v1195 = vpop.f32.mrb[0].mxu0
  %1196 = vmatprep.mubr.bf16.mxu0 0
  %1197 = vmatmul.mubr.bf16.gmra.mrb[0].mxu0 %v853
  %v1198 = vpop.f32.mrb[0].mxu0
  %v1199 = vadd.f32 0.0, %v1198
  %v1200 = vpop.f32.mrb[0].mxu0
  %v1201 = vpop.f32.mrb[0].mxu0
  %v1202 = vadd.f32 0.0, %v1201
  %v1203 = vpop.f32.mrb[0].mxu0
  %1204 = vmatprep.mubr.bf16.mxu0 0
  %1205 = vmatmul.mubr.bf16.gmra.mrb[0].mxu0 %v856
  %v1206 = vpop.f32.mrb[0].mxu0
  %v1207 = vadd.f32 0.0, %v1206
  %v1208 = vpop.f32.mrb[0].mxu0
  %v1209 = vpop.f32.mrb[0].mxu0
  %v1210 = vadd.f32 0.0, %v1209
  %v1211 = vpop.f32.mrb[0].mxu0
  %1212 = vmatprep.mubr.bf16.mxu0 0
  %1213 = vmatmul.mubr.bf16.gmra.mrb[0].mxu0 %v859
  %v1214 = vpop.f32.mrb[0].mxu0
  %v1215 = vadd.f32 0.0, %v1214
  %v1216 = vpop.f32.mrb[0].mxu0
  %v1217 = vpop.f32.mrb[0].mxu0
  %v1218 = vadd.f32 0.0, %v1217
  %v1219 = vpop.f32.mrb[0].mxu0
  %1220 = vmatprep.mubr.bf16.mxu0 0
  %1221 = vmatmul.mubr.bf16.gmra.mrb[0].mxu0 %v862
  %v1222 = vpop.f32.mrb[0].mxu0
  %v1223 = vadd.f32 0.0, %v1222
  %v1224 = vpop.f32.mrb[0].mxu0
  %v1225 = vpop.f32.mrb[0].mxu0
  %v1226 = vadd.f32 0.0, %v1225
  %v1227 = vpop.f32.mrb[0].mxu0
  %1228 = vmatprep.mubr.bf16.mxu0 0
  %1229 = vmatmul.mubr.bf16.gmra.mrb[0].mxu0 %v865
  %v1230 = vpop.f32.mrb[0].mxu0
  %v1231 = vadd.f32 0.0, %v1230
  %v1232 = vpop.f32.mrb[0].mxu0
  %v1233 = vpop.f32.mrb[0].mxu0
  %v1234 = vadd.f32 0.0, %v1233
  %v1235 = vpop.f32.mrb[0].mxu0
  %1236 = vmatprep.mubr.bf16.mxu0 0
  %1237 = vmatmul.mubr.bf16.gmra.mrb[0].mxu0 %v868
  %v1238 = vpop.f32.mrb[0].mxu0
  %v1239 = vadd.f32 0.0, %v1238
  %v1240 = vpop.f32.mrb[0].mxu0
  %v1241 = vpop.f32.mrb[0].mxu0
  %v1242 = vadd.f32 0.0, %v1241
  %v1243 = vpop.f32.mrb[0].mxu0
  %1244 = vmatprep.mubr.bf16.mxu0 0
  %1245 = vmatmul.mubr.bf16.gmra.mrb[0].mxu0 %v871
  %v1246 = vpop.f32.mrb[0].mxu0
  %v1247 = vadd.f32 0.0, %v1246
  %v1248 = vpop.f32.mrb[0].mxu0
  %v1249 = vpop.f32.mrb[0].mxu0
  %v1250 = vadd.f32 0.0, %v1249
  %v1251 = vpop.f32.mrb[0].mxu0
  %1252 = vmatprep.mubr.bf16.mxu0 0
  %1253 = vmatmul.mubr.bf16.gmra.mrb[0].mxu0 %v874
  %v1254 = vpop.f32.mrb[0].mxu0
  %v1255 = vadd.f32 0.0, %v1254
  %v1256 = vpop.f32.mrb[0].mxu0
  %v1257 = vpop.f32.mrb[0].mxu0
  %v1258 = vadd.f32 0.0, %v1257
  %v1259 = vpop.f32.mrb[0].mxu0
  %1260 = vmatprep.mubr.bf16.mxu0 0
  %1261 = vmatmul.mubr.bf16.gmra.mrb[0].mxu0 %v877
  %v1262 = vpop.f32.mrb[0].mxu0
  %v1263 = vadd.f32 0.0, %v1262
  %v1264 = vpop.f32.mrb[0].mxu0
  %v1265 = vpop.f32.mrb[0].mxu0
  %v1266 = vadd.f32 0.0, %v1265
  %v1267 = vpop.f32.mrb[0].mxu0
  %1268 = vmatprep.mubr.bf16.mxu0 0
  %1269 = vmatmul.mubr.bf16.gmra.mrb[0].mxu0 %v880
  %v1270 = vpop.f32.mrb[0].mxu0
  %v1271 = vadd.f32 0.0, %v1270
  %v1272 = vpop.f32.mrb[0].mxu0
  %v1273 = vpop.f32.mrb[0].mxu0
  %v1274 = vadd.f32 0.0, %v1273
  %v1275 = vpop.f32.mrb[0].mxu0
  %1276 = vmatprep.mubr.bf16.mxu0 0
  %1277 = vmatmul.mubr.bf16.gmra.mrb[0].mxu0 %v883
  %v1278 = vpop.f32.mrb[0].mxu0
  %v1279 = vadd.f32 0.0, %v1278
  %v1280 = vpop.f32.mrb[0].mxu0
  %v1281 = vpop.f32.mrb[0].mxu0
  %v1282 = vadd.f32 0.0, %v1281
  %v1283 = vpop.f32.mrb[0].mxu0
  %1284 = vdwg.mxu0
  %v1285 = vsel %vm749, %v321, 0
  %v1287 = vsel %vm749, %v322, 0
  %v1289 = vsel %vm749, %v323, 0
  %v1291 = vsel %vm749, %v324, 0
  %v1293 = vsel %vm749, %v325, 0
  %v1295 = vsel %vm749, %v326, 0
  %v1297 = vsel %vm749, %v327, 0
  %v1299 = vsel %vm749, %v328, 0
  %v1301 = vsel %vm749, %v329, 0
  %v1303 = vsel %vm749, %v330, 0
  %v1305 = vsel %vm749, %v331, 0
  %v1307 = vsel %vm749, %v332, 0
  %v1309 = vsel %vm749, %v333, 0
  %v1311 = vsel %vm749, %v334, 0
  %v1313 = vsel %vm749, %v335, 0
  %v1315 = vsel %vm749, %v336, 0
  %v1317 = vsel %vm749, %v337, 0
  %v1319 = vsel %vm749, %v338, 0
  %v1321 = vsel %vm749, %v339, 0
  %v1323 = vsel %vm749, %v340, 0
  %v1325 = vsel %vm749, %v341, 0
  %v1327 = vsel %vm749, %v342, 0
  %v1329 = vsel %vm749, %v343, 0
  %v1331 = vsel %vm749, %v344, 0
  %v1333 = vsel %vm749, %v345, 0
  %v1335 = vsel %vm749, %v346, 0
  %v1337 = vsel %vm749, %v347, 0
  %v1339 = vsel %vm749, %v348, 0
  %v1341 = vsel %vm749, %v349, 0
  %v1343 = vsel %vm749, %v350, 0
  %v1345 = vsel %vm749, %v351, 0
  %v1347 = vsel %vm749, %v352, 0
  %v1349 = vsel %vm749, %v353, 0
  %v1351 = vsel %vm749, %v354, 0
  %v1353 = vsel %vm749, %v355, 0
  %v1355 = vsel %vm749, %v356, 0
  %v1357 = vsel %vm749, %v357, 0
  %v1359 = vsel %vm749, %v358, 0
  %v1361 = vsel %vm749, %v359, 0
  %v1363 = vsel %vm749, %v360, 0
  %v1365 = vsel %vm749, %v361, 0
  %v1367 = vsel %vm749, %v362, 0
  %v1369 = vsel %vm749, %v363, 0
  %v1371 = vsel %vm749, %v364, 0
  %v1373 = vsel %vm749, %v365, 0
  %v1376 = vand.u32 %v381, %v888
  %1378 = vmatprep.subr.bf16.mxu0 0
  %1379 = vmatpush1.bf16.msra.mxu0 %v1376
  %1380 = vmatprep.subr.bf16.mxu0 0
  %1381 = vmatpush1.bf16.msra.mxu0 0
  %1382 = vmatprep.subr.bf16.mxu0 0
  %1383 = vmatpush1.bf16.msra.mxu0 0
  %1384 = vmatprep.subr.bf16.mxu0 0
  %1385 = vmatpush1.bf16.msra.mxu0 0
  %1386 = vmatprep.subr.bf16.mxu0 0
  %1387 = vmatpush1.bf16.msra.mxu0 0
  %1388 = vmatprep.subr.bf16.mxu0 0
  %1389 = vmatpush1.bf16.msra.mxu0 0
  %1390 = vmatprep.subr.bf16.mxu0 0
  %1391 = vmatpush1.bf16.msra.mxu0 0
  %1392 = vmatprep.subr.bf16.mxu0 0
  %1393 = vmatpush1.bf16.msra.mxu0 0
  %1394 = vmatprep.subr.bf16.mxu0 0
  %1395 = vmatpush1.bf16.msra.mxu0 0
  %1396 = vmatprep.subr.bf16.mxu0 0
  %1397 = vmatpush1.bf16.msra.mxu0 0
  %1398 = vmatprep.subr.bf16.mxu0 0
  %1399 = vmatpush1.bf16.msra.mxu0 0
  %1400 = vmatprep.subr.bf16.mxu0 0
  %1401 = vmatpush1.bf16.msra.mxu0 0
  %1402 = vmatprep.subr.bf16.mxu0 0
  %1403 = vmatpush1.bf16.msra.mxu0 0
  %1404 = vmatprep.subr.bf16.mxu0 0
  %1405 = vmatpush1.bf16.msra.mxu0 0
  %1406 = vmatprep.subr.bf16.mxu0 0
  %1407 = vmatpush1.bf16.msra.mxu0 0
  %1408 = vmatprep.subr.bf16.mxu0 0
  %1409 = vmatpush1.bf16.msra.mxu0 0
  %1410 = vmatprep.mubr.bf16.mxu0 0
  %1411 = vmatmul.mubr.bf16.gmra.mrb[0].mxu0 %v1285
  %v1412 = vpop.f32.mrb[0].mxu0
  %v1413 = vadd.f32 %v927, %v1412
  %v1414 = vpop.f32.mrb[0].mxu0
  %v1415 = vpop.f32.mrb[0].mxu0
  %v1416 = vadd.f32 %v930, %v1415
  %v1417 = vpop.f32.mrb[0].mxu0
  %1418 = vmatprep.mubr.bf16.mxu0 0
  %1419 = vmatmul.mubr.bf16.gmra.mrb[0].mxu0 %v1287
  %v1420 = vpop.f32.mrb[0].mxu0
  %v1421 = vadd.f32 %v935, %v1420
  %v1422 = vpop.f32.mrb[0].mxu0
  %v1423 = vpop.f32.mrb[0].mxu0
  %v1424 = vadd.f32 %v938, %v1423
  %v1425 = vpop.f32.mrb[0].mxu0
  %1426 = vmatprep.mubr.bf16.mxu0 0
  %1427 = vmatmul.mubr.bf16.gmra.mrb[0].mxu0 %v1289
  %v1428 = vpop.f32.mrb[0].mxu0
  %v1429 = vadd.f32 %v943, %v1428
  %v1430 = vpop.f32.mrb[0].mxu0
  %v1431 = vpop.f32.mrb[0].mxu0
  %v1432 = vadd.f32 %v946, %v1431
  %v1433 = vpop.f32.mrb[0].mxu0
  %1434 = vmatprep.mubr.bf16.mxu0 0
  %1435 = vmatmul.mubr.bf16.gmra.mrb[0].mxu0 %v1291
  %v1436 = vpop.f32.mrb[0].mxu0
  %v1437 = vadd.f32 %v951, %v1436
  %v1438 = vpop.f32.mrb[0].mxu0
  %v1439 = vpop.f32.mrb[0].mxu0
  %v1440 = vadd.f32 %v954, %v1439
  %v1441 = vpop.f32.mrb[0].mxu0
  %1442 = vmatprep.mubr.bf16.mxu0 0
  %1443 = vmatmul.mubr.bf16.gmra.mrb[0].mxu0 %v1293
  %v1444 = vpop.f32.mrb[0].mxu0
  %v1445 = vadd.f32 %v959, %v1444
  %v1446 = vpop.f32.mrb[0].mxu0
  %v1447 = vpop.f32.mrb[0].mxu0
  %v1448 = vadd.f32 %v962, %v1447
  %v1449 = vpop.f32.mrb[0].mxu0
  %1450 = vmatprep.mubr.bf16.mxu0 0
  %1451 = vmatmul.mubr.bf16.gmra.mrb[0].mxu0 %v1295
  %v1452 = vpop.f32.mrb[0].mxu0
  %v1453 = vadd.f32 %v967, %v1452
  %v1454 = vpop.f32.mrb[0].mxu0
  %v1455 = vpop.f32.mrb[0].mxu0
  %v1456 = vadd.f32 %v970, %v1455
  %v1457 = vpop.f32.mrb[0].mxu0
  %1458 = vmatprep.mubr.bf16.mxu0 0
  %1459 = vmatmul.mubr.bf16.gmra.mrb[0].mxu0 %v1297
  %v1460 = vpop.f32.mrb[0].mxu0
  %v1461 = vadd.f32 %v975, %v1460
  %v1462 = vpop.f32.mrb[0].mxu0
  %v1463 = vpop.f32.mrb[0].mxu0
  %v1464 = vadd.f32 %v978, %v1463
  %v1465 = vpop.f32.mrb[0].mxu0
  %1466 = vmatprep.mubr.bf16.mxu0 0
  %1467 = vmatmul.mubr.bf16.gmra.mrb[0].mxu0 %v1299
  %v1468 = vpop.f32.mrb[0].mxu0
  %v1469 = vadd.f32 %v983, %v1468
  %v1470 = vpop.f32.mrb[0].mxu0
  %v1471 = vpop.f32.mrb[0].mxu0
  %v1472 = vadd.f32 %v986, %v1471
  %v1473 = vpop.f32.mrb[0].mxu0
  %1474 = vmatprep.mubr.bf16.mxu0 0
  %1475 = vmatmul.mubr.bf16.gmra.mrb[0].mxu0 %v1301
  %v1476 = vpop.f32.mrb[0].mxu0
  %v1477 = vadd.f32 %v991, %v1476
  %v1478 = vpop.f32.mrb[0].mxu0
  %v1479 = vpop.f32.mrb[0].mxu0
  %v1480 = vadd.f32 %v994, %v1479
  %v1481 = vpop.f32.mrb[0].mxu0
  %1482 = vmatprep.mubr.bf16.mxu0 0
  %1483 = vmatmul.mubr.bf16.gmra.mrb[0].mxu0 %v1303
  %v1484 = vpop.f32.mrb[0].mxu0
  %v1485 = vadd.f32 %v999, %v1484
  %v1486 = vpop.f32.mrb[0].mxu0
  %v1487 = vpop.f32.mrb[0].mxu0
  %v1488 = vadd.f32 %v1002, %v1487
  %v1489 = vpop.f32.mrb[0].mxu0
  %1490 = vmatprep.mubr.bf16.mxu0 0
  %1491 = vmatmul.mubr.bf16.gmra.mrb[0].mxu0 %v1305
  %v1492 = vpop.f32.mrb[0].mxu0
  %v1493 = vadd.f32 %v1007, %v1492
  %v1494 = vpop.f32.mrb[0].mxu0
  %v1495 = vpop.f32.mrb[0].mxu0
  %v1496 = vadd.f32 %v1010, %v1495
  %v1497 = vpop.f32.mrb[0].mxu0
  %1498 = vmatprep.mubr.bf16.mxu0 0
  %1499 = vmatmul.mubr.bf16.gmra.mrb[0].mxu0 %v1307
  %v1500 = vpop.f32.mrb[0].mxu0
  %v1501 = vadd.f32 %v1015, %v1500
  %v1502 = vpop.f32.mrb[0].mxu0
  %v1503 = vpop.f32.mrb[0].mxu0
  %v1504 = vadd.f32 %v1018, %v1503
  %v1505 = vpop.f32.mrb[0].mxu0
  %1506 = vmatprep.mubr.bf16.mxu0 0
  %1507 = vmatmul.mubr.bf16.gmra.mrb[0].mxu0 %v1309
  %v1508 = vpop.f32.mrb[0].mxu0
  %v1509 = vadd.f32 %v1023, %v1508
  %v1510 = vpop.f32.mrb[0].mxu0
  %v1511 = vpop.f32.mrb[0].mxu0
  %v1512 = vadd.f32 %v1026, %v1511
  %v1513 = vpop.f32.mrb[0].mxu0
  %1514 = vmatprep.mubr.bf16.mxu0 0
  %1515 = vmatmul.mubr.bf16.gmra.mrb[0].mxu0 %v1311
  %v1516 = vpop.f32.mrb[0].mxu0
  %v1517 = vadd.f32 %v1031, %v1516
  %v1518 = vpop.f32.mrb[0].mxu0
  %v1519 = vpop.f32.mrb[0].mxu0
  %v1520 = vadd.f32 %v1034, %v1519
  %v1521 = vpop.f32.mrb[0].mxu0
  %1522 = vmatprep.mubr.bf16.mxu0 0
  %1523 = vmatmul.mubr.bf16.gmra.mrb[0].mxu0 %v1313
  %v1524 = vpop.f32.mrb[0].mxu0
  %v1525 = vadd.f32 %v1039, %v1524
  %v1526 = vpop.f32.mrb[0].mxu0
  %v1527 = vpop.f32.mrb[0].mxu0
  %v1528 = vadd.f32 %v1042, %v1527
  %v1529 = vpop.f32.mrb[0].mxu0
  %1530 = vmatprep.mubr.bf16.mxu0 0
  %1531 = vmatmul.mubr.bf16.gmra.mrb[0].mxu0 %v1315
  %v1532 = vpop.f32.mrb[0].mxu0
  %v1533 = vadd.f32 %v1047, %v1532
  %v1534 = vpop.f32.mrb[0].mxu0
  %v1535 = vpop.f32.mrb[0].mxu0
  %v1536 = vadd.f32 %v1050, %v1535
  %v1537 = vpop.f32.mrb[0].mxu0
  %1538 = vmatprep.mubr.bf16.mxu0 0
  %1539 = vmatmul.mubr.bf16.gmra.mrb[0].mxu0 %v1317
  %v1540 = vpop.f32.mrb[0].mxu0
  %v1541 = vadd.f32 %v1055, %v1540
  %v1542 = vpop.f32.mrb[0].mxu0
  %v1543 = vpop.f32.mrb[0].mxu0
  %v1544 = vadd.f32 %v1058, %v1543
  %v1545 = vpop.f32.mrb[0].mxu0
  %1546 = vmatprep.mubr.bf16.mxu0 0
  %1547 = vmatmul.mubr.bf16.gmra.mrb[0].mxu0 %v1319
  %v1548 = vpop.f32.mrb[0].mxu0
  %v1549 = vadd.f32 %v1063, %v1548
  %v1550 = vpop.f32.mrb[0].mxu0
  %v1551 = vpop.f32.mrb[0].mxu0
  %v1552 = vadd.f32 %v1066, %v1551
  %v1553 = vpop.f32.mrb[0].mxu0
  %1554 = vmatprep.mubr.bf16.mxu0 0
  %1555 = vmatmul.mubr.bf16.gmra.mrb[0].mxu0 %v1321
  %v1556 = vpop.f32.mrb[0].mxu0
  %v1557 = vadd.f32 %v1071, %v1556
  %v1558 = vpop.f32.mrb[0].mxu0
  %v1559 = vpop.f32.mrb[0].mxu0
  %v1560 = vadd.f32 %v1074, %v1559
  %v1561 = vpop.f32.mrb[0].mxu0
  %1562 = vmatprep.mubr.bf16.mxu0 0
  %1563 = vmatmul.mubr.bf16.gmra.mrb[0].mxu0 %v1323
  %v1564 = vpop.f32.mrb[0].mxu0
  %v1565 = vadd.f32 %v1079, %v1564
  %v1566 = vpop.f32.mrb[0].mxu0
  %v1567 = vpop.f32.mrb[0].mxu0
  %v1568 = vadd.f32 %v1082, %v1567
  %v1569 = vpop.f32.mrb[0].mxu0
  %1570 = vmatprep.mubr.bf16.mxu0 0
  %1571 = vmatmul.mubr.bf16.gmra.mrb[0].mxu0 %v1325
  %v1572 = vpop.f32.mrb[0].mxu0
  %v1573 = vadd.f32 %v1087, %v1572
  %v1574 = vpop.f32.mrb[0].mxu0
  %v1575 = vpop.f32.mrb[0].mxu0
  %v1576 = vadd.f32 %v1090, %v1575
  %v1577 = vpop.f32.mrb[0].mxu0
  %1578 = vmatprep.mubr.bf16.mxu0 0
  %1579 = vmatmul.mubr.bf16.gmra.mrb[0].mxu0 %v1327
  %v1580 = vpop.f32.mrb[0].mxu0
  %v1581 = vadd.f32 %v1095, %v1580
  %v1582 = vpop.f32.mrb[0].mxu0
  %v1583 = vpop.f32.mrb[0].mxu0
  %v1584 = vadd.f32 %v1098, %v1583
  %v1585 = vpop.f32.mrb[0].mxu0
  %1586 = vmatprep.mubr.bf16.mxu0 0
  %1587 = vmatmul.mubr.bf16.gmra.mrb[0].mxu0 %v1329
  %v1588 = vpop.f32.mrb[0].mxu0
  %v1589 = vadd.f32 %v1103, %v1588
  %v1590 = vpop.f32.mrb[0].mxu0
  %v1591 = vpop.f32.mrb[0].mxu0
  %v1592 = vadd.f32 %v1106, %v1591
  %v1593 = vpop.f32.mrb[0].mxu0
  %1594 = vmatprep.mubr.bf16.mxu0 0
  %1595 = vmatmul.mubr.bf16.gmra.mrb[0].mxu0 %v1331
  %v1596 = vpop.f32.mrb[0].mxu0
  %v1597 = vadd.f32 %v1111, %v1596
  %v1598 = vpop.f32.mrb[0].mxu0
  %v1599 = vpop.f32.mrb[0].mxu0
  %v1600 = vadd.f32 %v1114, %v1599
  %v1601 = vpop.f32.mrb[0].mxu0
  %1602 = vmatprep.mubr.bf16.mxu0 0
  %1603 = vmatmul.mubr.bf16.gmra.mrb[0].mxu0 %v1333
  %v1604 = vpop.f32.mrb[0].mxu0
  %v1605 = vadd.f32 %v1119, %v1604
  %v1606 = vpop.f32.mrb[0].mxu0
  %v1607 = vpop.f32.mrb[0].mxu0
  %v1608 = vadd.f32 %v1122, %v1607
  %v1609 = vpop.f32.mrb[0].mxu0
  %1610 = vmatprep.mubr.bf16.mxu0 0
  %1611 = vmatmul.mubr.bf16.gmra.mrb[0].mxu0 %v1335
  %v1612 = vpop.f32.mrb[0].mxu0
  %v1613 = vadd.f32 %v1127, %v1612
  %v1614 = vpop.f32.mrb[0].mxu0
  %v1615 = vpop.f32.mrb[0].mxu0
  %v1616 = vadd.f32 %v1130, %v1615
  %v1617 = vpop.f32.mrb[0].mxu0
  %1618 = vmatprep.mubr.bf16.mxu0 0
  %1619 = vmatmul.mubr.bf16.gmra.mrb[0].mxu0 %v1337
  %v1620 = vpop.f32.mrb[0].mxu0
  %v1621 = vadd.f32 %v1135, %v1620
  %v1622 = vpop.f32.mrb[0].mxu0
  %v1623 = vpop.f32.mrb[0].mxu0
  %v1624 = vadd.f32 %v1138, %v1623
  %v1625 = vpop.f32.mrb[0].mxu0
  %1626 = vmatprep.mubr.bf16.mxu0 0
  %1627 = vmatmul.mubr.bf16.gmra.mrb[0].mxu0 %v1339
  %v1628 = vpop.f32.mrb[0].mxu0
  %v1629 = vadd.f32 %v1143, %v1628
  %v1630 = vpop.f32.mrb[0].mxu0
  %v1631 = vpop.f32.mrb[0].mxu0
  %v1632 = vadd.f32 %v1146, %v1631
  %v1633 = vpop.f32.mrb[0].mxu0
  %1634 = vmatprep.mubr.bf16.mxu0 0
  %1635 = vmatmul.mubr.bf16.gmra.mrb[0].mxu0 %v1341
  %v1636 = vpop.f32.mrb[0].mxu0
  %v1637 = vadd.f32 %v1151, %v1636
  %v1638 = vpop.f32.mrb[0].mxu0
  %v1639 = vpop.f32.mrb[0].mxu0
  %v1640 = vadd.f32 %v1154, %v1639
  %v1641 = vpop.f32.mrb[0].mxu0
  %1642 = vmatprep.mubr.bf16.mxu0 0
  %1643 = vmatmul.mubr.bf16.gmra.mrb[0].mxu0 %v1343
  %v1644 = vpop.f32.mrb[0].mxu0
  %v1645 = vadd.f32 %v1159, %v1644
  %v1646 = vpop.f32.mrb[0].mxu0
  %v1647 = vpop.f32.mrb[0].mxu0
  %v1648 = vadd.f32 %v1162, %v1647
  %v1649 = vpop.f32.mrb[0].mxu0
  %1650 = vmatprep.mubr.bf16.mxu0 0
  %1651 = vmatmul.mubr.bf16.gmra.mrb[0].mxu0 %v1345
  %v1652 = vpop.f32.mrb[0].mxu0
  %v1653 = vadd.f32 %v1167, %v1652
  %v1654 = vpop.f32.mrb[0].mxu0
  %v1655 = vpop.f32.mrb[0].mxu0
  %v1656 = vadd.f32 %v1170, %v1655
  %v1657 = vpop.f32.mrb[0].mxu0
  %1658 = vmatprep.mubr.bf16.mxu0 0
  %1659 = vmatmul.mubr.bf16.gmra.mrb[0].mxu0 %v1347
  %v1660 = vpop.f32.mrb[0].mxu0
  %v1661 = vadd.f32 %v1175, %v1660
  %v1662 = vpop.f32.mrb[0].mxu0
  %v1663 = vpop.f32.mrb[0].mxu0
  %v1664 = vadd.f32 %v1178, %v1663
  %v1665 = vpop.f32.mrb[0].mxu0
  %1666 = vmatprep.mubr.bf16.mxu0 0
  %1667 = vmatmul.mubr.bf16.gmra.mrb[0].mxu0 %v1349
  %v1668 = vpop.f32.mrb[0].mxu0
  %v1669 = vadd.f32 %v1183, %v1668
  %v1670 = vpop.f32.mrb[0].mxu0
  %v1671 = vpop.f32.mrb[0].mxu0
  %v1672 = vadd.f32 %v1186, %v1671
  %v1673 = vpop.f32.mrb[0].mxu0
  %1674 = vmatprep.mubr.bf16.mxu0 0
  %1675 = vmatmul.mubr.bf16.gmra.mrb[0].mxu0 %v1351
  %v1676 = vpop.f32.mrb[0].mxu0
  %v1677 = vadd.f32 %v1191, %v1676
  %v1678 = vpop.f32.mrb[0].mxu0
  %v1679 = vpop.f32.mrb[0].mxu0
  %v1680 = vadd.f32 %v1194, %v1679
  %v1681 = vpop.f32.mrb[0].mxu0
  %1682 = vmatprep.mubr.bf16.mxu0 0
  %1683 = vmatmul.mubr.bf16.gmra.mrb[0].mxu0 %v1353
  %v1684 = vpop.f32.mrb[0].mxu0
  %v1685 = vadd.f32 %v1199, %v1684
  %v1686 = vpop.f32.mrb[0].mxu0
  %v1687 = vpop.f32.mrb[0].mxu0
  %v1688 = vadd.f32 %v1202, %v1687
  %v1689 = vpop.f32.mrb[0].mxu0
  %1690 = vmatprep.mubr.bf16.mxu0 0
  %1691 = vmatmul.mubr.bf16.gmra.mrb[0].mxu0 %v1355
  %v1692 = vpop.f32.mrb[0].mxu0
  %v1693 = vadd.f32 %v1207, %v1692
  %v1694 = vpop.f32.mrb[0].mxu0
  %v1695 = vpop.f32.mrb[0].mxu0
  %v1696 = vadd.f32 %v1210, %v1695
  %v1697 = vpop.f32.mrb[0].mxu0
  %1698 = vmatprep.mubr.bf16.mxu0 0
  %1699 = vmatmul.mubr.bf16.gmra.mrb[0].mxu0 %v1357
  %v1700 = vpop.f32.mrb[0].mxu0
  %v1701 = vadd.f32 %v1215, %v1700
  %v1702 = vpop.f32.mrb[0].mxu0
  %v1703 = vpop.f32.mrb[0].mxu0
  %v1704 = vadd.f32 %v1218, %v1703
  %v1705 = vpop.f32.mrb[0].mxu0
  %1706 = vmatprep.mubr.bf16.mxu0 0
  %1707 = vmatmul.mubr.bf16.gmra.mrb[0].mxu0 %v1359
  %v1708 = vpop.f32.mrb[0].mxu0
  %v1709 = vadd.f32 %v1223, %v1708
  %v1710 = vpop.f32.mrb[0].mxu0
  %v1711 = vpop.f32.mrb[0].mxu0
  %v1712 = vadd.f32 %v1226, %v1711
  %v1713 = vpop.f32.mrb[0].mxu0
  %1714 = vmatprep.mubr.bf16.mxu0 0
  %1715 = vmatmul.mubr.bf16.gmra.mrb[0].mxu0 %v1361
  %v1716 = vpop.f32.mrb[0].mxu0
  %v1717 = vadd.f32 %v1231, %v1716
  %v1718 = vpop.f32.mrb[0].mxu0
  %v1719 = vpop.f32.mrb[0].mxu0
  %v1720 = vadd.f32 %v1234, %v1719
  %v1721 = vpop.f32.mrb[0].mxu0
  %1722 = vmatprep.mubr.bf16.mxu0 0
  %1723 = vmatmul.mubr.bf16.gmra.mrb[0].mxu0 %v1363
  %v1724 = vpop.f32.mrb[0].mxu0
  %v1725 = vadd.f32 %v1239, %v1724
  %v1726 = vpop.f32.mrb[0].mxu0
  %v1727 = vpop.f32.mrb[0].mxu0
  %v1728 = vadd.f32 %v1242, %v1727
  %v1729 = vpop.f32.mrb[0].mxu0
  %1730 = vmatprep.mubr.bf16.mxu0 0
  %1731 = vmatmul.mubr.bf16.gmra.mrb[0].mxu0 %v1365
  %v1732 = vpop.f32.mrb[0].mxu0
  %v1733 = vadd.f32 %v1247, %v1732
  %v1734 = vpop.f32.mrb[0].mxu0
  %v1735 = vpop.f32.mrb[0].mxu0
  %v1736 = vadd.f32 %v1250, %v1735
  %v1737 = vpop.f32.mrb[0].mxu0
  %1738 = vmatprep.mubr.bf16.mxu0 0
  %1739 = vmatmul.mubr.bf16.gmra.mrb[0].mxu0 %v1367
  %v1740 = vpop.f32.mrb[0].mxu0
  %v1741 = vadd.f32 %v1255, %v1740
  %v1742 = vpop.f32.mrb[0].mxu0
  %v1743 = vpop.f32.mrb[0].mxu0
  %v1744 = vadd.f32 %v1258, %v1743
  %v1745 = vpop.f32.mrb[0].mxu0
  %1746 = vmatprep.mubr.bf16.mxu0 0
  %1747 = vmatmul.mubr.bf16.gmra.mrb[0].mxu0 %v1369
  %v1748 = vpop.f32.mrb[0].mxu0
  %v1749 = vadd.f32 %v1263, %v1748
  %v1750 = vpop.f32.mrb[0].mxu0
  %v1751 = vpop.f32.mrb[0].mxu0
  %v1752 = vadd.f32 %v1266, %v1751
  %v1753 = vpop.f32.mrb[0].mxu0
  %1754 = vmatprep.mubr.bf16.mxu0 0
  %1755 = vmatmul.mubr.bf16.gmra.mrb[0].mxu0 %v1371
  %v1756 = vpop.f32.mrb[0].mxu0
  %v1757 = vadd.f32 %v1271, %v1756
  %v1758 = vpop.f32.mrb[0].mxu0
  %v1759 = vpop.f32.mrb[0].mxu0
  %v1760 = vadd.f32 %v1274, %v1759
  %v1761 = vpop.f32.mrb[0].mxu0
  %1762 = vmatprep.mubr.bf16.mxu0 0
  %1763 = vmatmul.mubr.bf16.gmra.mrb[0].mxu0 %v1373
  %v1764 = vpop.f32.mrb[0].mxu0
  %v1765 = vadd.f32 %v1279, %v1764
  %v1766 = vpop.f32.mrb[0].mxu0
  %v1767 = vpop.f32.mrb[0].mxu0
  %v1768 = vadd.f32 %v1282, %v1767
  %v1769 = vpop.f32.mrb[0].mxu0
  %1770 = vdwg.mxu0
  %s1771 = scalar_lea.vmem %s2, 4
  %v1772 = vld [vmem:[%s1771] sm:$0x3]
  %vm1773 = vcmask 1046528
  %v1774 = vrot.slane %v321, 1
  %v1775 = vrot.slane %v322, 1
  %v1776 = vsel %vm1773, %v1774, %v1775
  %v1777 = vrot.slane %v323, 1
  %v1778 = vsel %vm1773, %v1775, %v1777
  %v1779 = vrot.slane %v324, 1
  %v1780 = vsel %vm1773, %v1777, %v1779
  %v1781 = vrot.slane %v325, 1
  %v1782 = vsel %vm1773, %v1779, %v1781
  %v1783 = vrot.slane %v326, 1
  %v1784 = vsel %vm1773, %v1781, %v1783
  %v1785 = vrot.slane %v327, 1
  %v1786 = vsel %vm1773, %v1783, %v1785
  %v1787 = vrot.slane %v328, 1
  %v1788 = vsel %vm1773, %v1785, %v1787
  %v1789 = vrot.slane %v329, 1
  %v1790 = vsel %vm1773, %v1787, %v1789
  %v1791 = vrot.slane %v330, 1
  %v1792 = vsel %vm1773, %v1789, %v1791
  %v1793 = vrot.slane %v331, 1
  %v1794 = vsel %vm1773, %v1791, %v1793
  %v1795 = vrot.slane %v332, 1
  %v1796 = vsel %vm1773, %v1793, %v1795
  %v1797 = vrot.slane %v333, 1
  %v1798 = vsel %vm1773, %v1795, %v1797
  %v1799 = vrot.slane %v334, 1
  %v1800 = vsel %vm1773, %v1797, %v1799
  %v1801 = vrot.slane %v335, 1
  %v1802 = vsel %vm1773, %v1799, %v1801
  %v1803 = vrot.slane %v336, 1
  %v1804 = vsel %vm1773, %v1801, %v1803
  %v1805 = vrot.slane %v337, 1
  %v1806 = vsel %vm1773, %v1803, %v1805
  %v1807 = vrot.slane %v338, 1
  %v1808 = vsel %vm1773, %v1805, %v1807
  %v1809 = vrot.slane %v339, 1
  %v1810 = vsel %vm1773, %v1807, %v1809
  %v1811 = vrot.slane %v340, 1
  %v1812 = vsel %vm1773, %v1809, %v1811
  %v1813 = vrot.slane %v341, 1
  %v1814 = vsel %vm1773, %v1811, %v1813
  %v1815 = vrot.slane %v342, 1
  %v1816 = vsel %vm1773, %v1813, %v1815
  %v1817 = vrot.slane %v343, 1
  %v1818 = vsel %vm1773, %v1815, %v1817
  %v1819 = vrot.slane %v344, 1
  %v1820 = vsel %vm1773, %v1817, %v1819
  %v1821 = vrot.slane %v345, 1
  %v1822 = vsel %vm1773, %v1819, %v1821
  %v1823 = vrot.slane %v346, 1
  %v1824 = vsel %vm1773, %v1821, %v1823
  %v1825 = vrot.slane %v347, 1
  %v1826 = vsel %vm1773, %v1823, %v1825
  %v1827 = vrot.slane %v348, 1
  %v1828 = vsel %vm1773, %v1825, %v1827
  %v1829 = vrot.slane %v349, 1
  %v1830 = vsel %vm1773, %v1827, %v1829
  %v1831 = vrot.slane %v350, 1
  %v1832 = vsel %vm1773, %v1829, %v1831
  %v1833 = vrot.slane %v351, 1
  %v1834 = vsel %vm1773, %v1831, %v1833
  %v1835 = vrot.slane %v352, 1
  %v1836 = vsel %vm1773, %v1833, %v1835
  %v1837 = vrot.slane %v353, 1
  %v1838 = vsel %vm1773, %v1835, %v1837
  %v1839 = vrot.slane %v354, 1
  %v1840 = vsel %vm1773, %v1837, %v1839
  %v1841 = vrot.slane %v355, 1
  %v1842 = vsel %vm1773, %v1839, %v1841
  %v1843 = vrot.slane %v356, 1
  %v1844 = vsel %vm1773, %v1841, %v1843
  %v1845 = vrot.slane %v357, 1
  %v1846 = vsel %vm1773, %v1843, %v1845
  %v1847 = vrot.slane %v358, 1
  %v1848 = vsel %vm1773, %v1845, %v1847
  %v1849 = vrot.slane %v359, 1
  %v1850 = vsel %vm1773, %v1847, %v1849
  %v1851 = vrot.slane %v360, 1
  %v1852 = vsel %vm1773, %v1849, %v1851
  %v1853 = vrot.slane %v361, 1
  %v1854 = vsel %vm1773, %v1851, %v1853
  %v1855 = vrot.slane %v362, 1
  %v1856 = vsel %vm1773, %v1853, %v1855
  %v1857 = vrot.slane %v363, 1
  %v1858 = vsel %vm1773, %v1855, %v1857
  %v1859 = vrot.slane %v364, 1
  %v1860 = vsel %vm1773, %v1857, %v1859
  %v1861 = vrot.slane %v365, 1
  %v1862 = vsel %vm1773, %v1859, %v1861
  %v1863 = vrot.slane %v378, 1
  %v1864 = vsel %vm1773, %v1861, %v1863
  %v1866 = vsel %vm749, %v1776, 0
  %v1869 = vsel %vm749, %v1778, 0
  %v1872 = vsel %vm749, %v1780, 0
  %v1875 = vsel %vm749, %v1782, 0
  %v1878 = vsel %vm749, %v1784, 0
  %v1881 = vsel %vm749, %v1786, 0
  %v1884 = vsel %vm749, %v1788, 0
  %v1887 = vsel %vm749, %v1790, 0
  %v1890 = vsel %vm749, %v1792, 0
  %v1893 = vsel %vm749, %v1794, 0
  %v1896 = vsel %vm749, %v1796, 0
  %v1899 = vsel %vm749, %v1798, 0
  %v1902 = vsel %vm749, %v1800, 0
  %v1905 = vsel %vm749, %v1802, 0
  %v1908 = vsel %vm749, %v1804, 0
  %v1911 = vsel %vm749, %v1806, 0
  %v1914 = vsel %vm749, %v1808, 0
  %v1917 = vsel %vm749, %v1810, 0
  %v1920 = vsel %vm749, %v1812, 0
  %v1923 = vsel %vm749, %v1814, 0
  %v1926 = vsel %vm749, %v1816, 0
  %v1929 = vsel %vm749, %v1818, 0
  %v1932 = vsel %vm749, %v1820, 0
  %v1935 = vsel %vm749, %v1822, 0
  %v1938 = vsel %vm749, %v1824, 0
  %v1941 = vsel %vm749, %v1826, 0
  %v1944 = vsel %vm749, %v1828, 0
  %v1947 = vsel %vm749, %v1830, 0
  %v1950 = vsel %vm749, %v1832, 0
  %v1953 = vsel %vm749, %v1834, 0
  %v1956 = vsel %vm749, %v1836, 0
  %v1959 = vsel %vm749, %v1838, 0
  %v1962 = vsel %vm749, %v1840, 0
  %v1965 = vsel %vm749, %v1842, 0
  %v1968 = vsel %vm749, %v1844, 0
  %v1971 = vsel %vm749, %v1846, 0
  %v1974 = vsel %vm749, %v1848, 0
  %v1977 = vsel %vm749, %v1850, 0
  %v1980 = vsel %vm749, %v1852, 0
  %v1983 = vsel %vm749, %v1854, 0
  %v1986 = vsel %vm749, %v1856, 0
  %v1989 = vsel %vm749, %v1858, 0
  %v1992 = vsel %vm749, %v1860, 0
  %v1995 = vsel %vm749, %v1862, 0
  %v1998 = vsel %vm749, %v1864, 0
  %v2001 = vand.u32 %v1772, %v888
  %2003 = vmatprep.subr.bf16.mxu0 0
  %2004 = vmatpush1.bf16.msra.mxu0 %v2001
  %2005 = vmatprep.subr.bf16.mxu0 0
  %2006 = vmatpush1.bf16.msra.mxu0 0
  %2007 = vmatprep.subr.bf16.mxu0 0
  %2008 = vmatpush1.bf16.msra.mxu0 0
  %2009 = vmatprep.subr.bf16.mxu0 0
  %2010 = vmatpush1.bf16.msra.mxu0 0
  %2011 = vmatprep.subr.bf16.mxu0 0
  %2012 = vmatpush1.bf16.msra.mxu0 0
  %2013 = vmatprep.subr.bf16.mxu0 0
  %2014 = vmatpush1.bf16.msra.mxu0 0
  %2015 = vmatprep.subr.bf16.mxu0 0
  %2016 = vmatpush1.bf16.msra.mxu0 0
  %2017 = vmatprep.subr.bf16.mxu0 0
  %2018 = vmatpush1.bf16.msra.mxu0 0
  %2019 = vmatprep.subr.bf16.mxu0 0
  %2020 = vmatpush1.bf16.msra.mxu0 0
  %2021 = vmatprep.subr.bf16.mxu0 0
  %2022 = vmatpush1.bf16.msra.mxu0 0
  %2023 = vmatprep.subr.bf16.mxu0 0
  %2024 = vmatpush1.bf16.msra.mxu0 0
  %2025 = vmatprep.subr.bf16.mxu0 0
  %2026 = vmatpush1.bf16.msra.mxu0 0
  %2027 = vmatprep.subr.bf16.mxu0 0
  %2028 = vmatpush1.bf16.msra.mxu0 0
  %2029 = vmatprep.subr.bf16.mxu0 0
  %2030 = vmatpush1.bf16.msra.mxu0 0
  %2031 = vmatprep.subr.bf16.mxu0 0
  %2032 = vmatpush1.bf16.msra.mxu0 0
  %2033 = vmatprep.subr.bf16.mxu0 0
  %2034 = vmatpush1.bf16.msra.mxu0 0
  %2035 = vmatprep.mubr.bf16.mxu0 0
  %2036 = vmatmul.mubr.bf16.gmra.mrb[0].mxu0 %v1866
  %v2037 = vpop.f32.mrb[0].mxu0
  %v2038 = vadd.f32 0.0, %v2037
  %v2039 = vpop.f32.mrb[0].mxu0
  %v2040 = vpop.f32.mrb[0].mxu0
  %v2041 = vadd.f32 0.0, %v2040
  %v2042 = vpop.f32.mrb[0].mxu0
  %2043 = vmatprep.mubr.bf16.mxu0 0
  %2044 = vmatmul.mubr.bf16.gmra.mrb[0].mxu0 %v1869
  %v2045 = vpop.f32.mrb[0].mxu0
  %v2046 = vadd.f32 0.0, %v2045
  %v2047 = vpop.f32.mrb[0].mxu0
  %v2048 = vpop.f32.mrb[0].mxu0
  %v2049 = vadd.f32 0.0, %v2048
  %v2050 = vpop.f32.mrb[0].mxu0
  %2051 = vmatprep.mubr.bf16.mxu0 0
  %2052 = vmatmul.mubr.bf16.gmra.mrb[0].mxu0 %v1872
  %v2053 = vpop.f32.mrb[0].mxu0
  %v2054 = vadd.f32 0.0, %v2053
  %v2055 = vpop.f32.mrb[0].mxu0
  %v2056 = vpop.f32.mrb[0].mxu0
  %v2057 = vadd.f32 0.0, %v2056
  %v2058 = vpop.f32.mrb[0].mxu0
  %2059 = vmatprep.mubr.bf16.mxu0 0
  %2060 = vmatmul.mubr.bf16.gmra.mrb[0].mxu0 %v1875
  %v2061 = vpop.f32.mrb[0].mxu0
  %v2062 = vadd.f32 0.0, %v2061
  %v2063 = vpop.f32.mrb[0].mxu0
  %v2064 = vpop.f32.mrb[0].mxu0
  %v2065 = vadd.f32 0.0, %v2064
  %v2066 = vpop.f32.mrb[0].mxu0
  %2067 = vmatprep.mubr.bf16.mxu0 0
  %2068 = vmatmul.mubr.bf16.gmra.mrb[0].mxu0 %v1878
  %v2069 = vpop.f32.mrb[0].mxu0
  %v2070 = vadd.f32 0.0, %v2069
  %v2071 = vpop.f32.mrb[0].mxu0
  %v2072 = vpop.f32.mrb[0].mxu0
  %v2073 = vadd.f32 0.0, %v2072
  %v2074 = vpop.f32.mrb[0].mxu0
  %2075 = vmatprep.mubr.bf16.mxu0 0
  %2076 = vmatmul.mubr.bf16.gmra.mrb[0].mxu0 %v1881
  %v2077 = vpop.f32.mrb[0].mxu0
  %v2078 = vadd.f32 0.0, %v2077
  %v2079 = vpop.f32.mrb[0].mxu0
  %v2080 = vpop.f32.mrb[0].mxu0
  %v2081 = vadd.f32 0.0, %v2080
  %v2082 = vpop.f32.mrb[0].mxu0
  %2083 = vmatprep.mubr.bf16.mxu0 0
  %2084 = vmatmul.mubr.bf16.gmra.mrb[0].mxu0 %v1884
  %v2085 = vpop.f32.mrb[0].mxu0
  %v2086 = vadd.f32 0.0, %v2085
  %v2087 = vpop.f32.mrb[0].mxu0
  %v2088 = vpop.f32.mrb[0].mxu0
  %v2089 = vadd.f32 0.0, %v2088
  %v2090 = vpop.f32.mrb[0].mxu0
  %2091 = vmatprep.mubr.bf16.mxu0 0
  %2092 = vmatmul.mubr.bf16.gmra.mrb[0].mxu0 %v1887
  %v2093 = vpop.f32.mrb[0].mxu0
  %v2094 = vadd.f32 0.0, %v2093
  %v2095 = vpop.f32.mrb[0].mxu0
  %v2096 = vpop.f32.mrb[0].mxu0
  %v2097 = vadd.f32 0.0, %v2096
  %v2098 = vpop.f32.mrb[0].mxu0
  %2099 = vmatprep.mubr.bf16.mxu0 0
  %2100 = vmatmul.mubr.bf16.gmra.mrb[0].mxu0 %v1890
  %v2101 = vpop.f32.mrb[0].mxu0
  %v2102 = vadd.f32 0.0, %v2101
  %v2103 = vpop.f32.mrb[0].mxu0
  %v2104 = vpop.f32.mrb[0].mxu0
  %v2105 = vadd.f32 0.0, %v2104
  %v2106 = vpop.f32.mrb[0].mxu0
  %2107 = vmatprep.mubr.bf16.mxu0 0
  %2108 = vmatmul.mubr.bf16.gmra.mrb[0].mxu0 %v1893
  %v2109 = vpop.f32.mrb[0].mxu0
  %v2110 = vadd.f32 0.0, %v2109
  %v2111 = vpop.f32.mrb[0].mxu0
  %v2112 = vpop.f32.mrb[0].mxu0
  %v2113 = vadd.f32 0.0, %v2112
  %v2114 = vpop.f32.mrb[0].mxu0
  %2115 = vmatprep.mubr.bf16.mxu0 0
  %2116 = vmatmul.mubr.bf16.gmra.mrb[0].mxu0 %v1896
  %v2117 = vpop.f32.mrb[0].mxu0
  %v2118 = vadd.f32 0.0, %v2117
  %v2119 = vpop.f32.mrb[0].mxu0
  %v2120 = vpop.f32.mrb[0].mxu0
  %v2121 = vadd.f32 0.0, %v2120
  %v2122 = vpop.f32.mrb[0].mxu0
  %2123 = vmatprep.mubr.bf16.mxu0 0
  %2124 = vmatmul.mubr.bf16.gmra.mrb[0].mxu0 %v1899
  %v2125 = vpop.f32.mrb[0].mxu0
  %v2126 = vadd.f32 0.0, %v2125
  %v2127 = vpop.f32.mrb[0].mxu0
  %v2128 = vpop.f32.mrb[0].mxu0
  %v2129 = vadd.f32 0.0, %v2128
  %v2130 = vpop.f32.mrb[0].mxu0
  %2131 = vmatprep.mubr.bf16.mxu0 0
  %2132 = vmatmul.mubr.bf16.gmra.mrb[0].mxu0 %v1902
  %v2133 = vpop.f32.mrb[0].mxu0
  %v2134 = vadd.f32 0.0, %v2133
  %v2135 = vpop.f32.mrb[0].mxu0
  %v2136 = vpop.f32.mrb[0].mxu0
  %v2137 = vadd.f32 0.0, %v2136
  %v2138 = vpop.f32.mrb[0].mxu0
  %2139 = vmatprep.mubr.bf16.mxu0 0
  %2140 = vmatmul.mubr.bf16.gmra.mrb[0].mxu0 %v1905
  %v2141 = vpop.f32.mrb[0].mxu0
  %v2142 = vadd.f32 0.0, %v2141
  %v2143 = vpop.f32.mrb[0].mxu0
  %v2144 = vpop.f32.mrb[0].mxu0
  %v2145 = vadd.f32 0.0, %v2144
  %v2146 = vpop.f32.mrb[0].mxu0
  %2147 = vmatprep.mubr.bf16.mxu0 0
  %2148 = vmatmul.mubr.bf16.gmra.mrb[0].mxu0 %v1908
  %v2149 = vpop.f32.mrb[0].mxu0
  %v2150 = vadd.f32 0.0, %v2149
  %v2151 = vpop.f32.mrb[0].mxu0
  %v2152 = vpop.f32.mrb[0].mxu0
  %v2153 = vadd.f32 0.0, %v2152
  %v2154 = vpop.f32.mrb[0].mxu0
  %2155 = vmatprep.mubr.bf16.mxu0 0
  %2156 = vmatmul.mubr.bf16.gmra.mrb[0].mxu0 %v1911
  %v2157 = vpop.f32.mrb[0].mxu0
  %v2158 = vadd.f32 0.0, %v2157
  %v2159 = vpop.f32.mrb[0].mxu0
  %v2160 = vpop.f32.mrb[0].mxu0
  %v2161 = vadd.f32 0.0, %v2160
  %v2162 = vpop.f32.mrb[0].mxu0
  %2163 = vmatprep.mubr.bf16.mxu0 0
  %2164 = vmatmul.mubr.bf16.gmra.mrb[0].mxu0 %v1914
  %v2165 = vpop.f32.mrb[0].mxu0
  %v2166 = vadd.f32 0.0, %v2165
  %v2167 = vpop.f32.mrb[0].mxu0
  %v2168 = vpop.f32.mrb[0].mxu0
  %v2169 = vadd.f32 0.0, %v2168
  %v2170 = vpop.f32.mrb[0].mxu0
  %2171 = vmatprep.mubr.bf16.mxu0 0
  %2172 = vmatmul.mubr.bf16.gmra.mrb[0].mxu0 %v1917
  %v2173 = vpop.f32.mrb[0].mxu0
  %v2174 = vadd.f32 0.0, %v2173
  %v2175 = vpop.f32.mrb[0].mxu0
  %v2176 = vpop.f32.mrb[0].mxu0
  %v2177 = vadd.f32 0.0, %v2176
  %v2178 = vpop.f32.mrb[0].mxu0
  %2179 = vmatprep.mubr.bf16.mxu0 0
  %2180 = vmatmul.mubr.bf16.gmra.mrb[0].mxu0 %v1920
  %v2181 = vpop.f32.mrb[0].mxu0
  %v2182 = vadd.f32 0.0, %v2181
  %v2183 = vpop.f32.mrb[0].mxu0
  %v2184 = vpop.f32.mrb[0].mxu0
  %v2185 = vadd.f32 0.0, %v2184
  %v2186 = vpop.f32.mrb[0].mxu0
  %2187 = vmatprep.mubr.bf16.mxu0 0
  %2188 = vmatmul.mubr.bf16.gmra.mrb[0].mxu0 %v1923
  %v2189 = vpop.f32.mrb[0].mxu0
  %v2190 = vadd.f32 0.0, %v2189
  %v2191 = vpop.f32.mrb[0].mxu0
  %v2192 = vpop.f32.mrb[0].mxu0
  %v2193 = vadd.f32 0.0, %v2192
  %v2194 = vpop.f32.mrb[0].mxu0
  %2195 = vmatprep.mubr.bf16.mxu0 0
  %2196 = vmatmul.mubr.bf16.gmra.mrb[0].mxu0 %v1926
  %v2197 = vpop.f32.mrb[0].mxu0
  %v2198 = vadd.f32 0.0, %v2197
  %v2199 = vpop.f32.mrb[0].mxu0
  %v2200 = vpop.f32.mrb[0].mxu0
  %v2201 = vadd.f32 0.0, %v2200
  %v2202 = vpop.f32.mrb[0].mxu0
  %2203 = vmatprep.mubr.bf16.mxu0 0
  %2204 = vmatmul.mubr.bf16.gmra.mrb[0].mxu0 %v1929
  %v2205 = vpop.f32.mrb[0].mxu0
  %v2206 = vadd.f32 0.0, %v2205
  %v2207 = vpop.f32.mrb[0].mxu0
  %v2208 = vpop.f32.mrb[0].mxu0
  %v2209 = vadd.f32 0.0, %v2208
  %v2210 = vpop.f32.mrb[0].mxu0
  %2211 = vmatprep.mubr.bf16.mxu0 0
  %2212 = vmatmul.mubr.bf16.gmra.mrb[0].mxu0 %v1932
  %v2213 = vpop.f32.mrb[0].mxu0
  %v2214 = vadd.f32 0.0, %v2213
  %v2215 = vpop.f32.mrb[0].mxu0
  %v2216 = vpop.f32.mrb[0].mxu0
  %v2217 = vadd.f32 0.0, %v2216
  %v2218 = vpop.f32.mrb[0].mxu0
  %2219 = vmatprep.mubr.bf16.mxu0 0
  %2220 = vmatmul.mubr.bf16.gmra.mrb[0].mxu0 %v1935
  %v2221 = vpop.f32.mrb[0].mxu0
  %v2222 = vadd.f32 0.0, %v2221
  %v2223 = vpop.f32.mrb[0].mxu0
  %v2224 = vpop.f32.mrb[0].mxu0
  %v2225 = vadd.f32 0.0, %v2224
  %v2226 = vpop.f32.mrb[0].mxu0
  %2227 = vmatprep.mubr.bf16.mxu0 0
  %2228 = vmatmul.mubr.bf16.gmra.mrb[0].mxu0 %v1938
  %v2229 = vpop.f32.mrb[0].mxu0
  %v2230 = vadd.f32 0.0, %v2229
  %v2231 = vpop.f32.mrb[0].mxu0
  %v2232 = vpop.f32.mrb[0].mxu0
  %v2233 = vadd.f32 0.0, %v2232
  %v2234 = vpop.f32.mrb[0].mxu0
  %2235 = vmatprep.mubr.bf16.mxu0 0
  %2236 = vmatmul.mubr.bf16.gmra.mrb[0].mxu0 %v1941
  %v2237 = vpop.f32.mrb[0].mxu0
  %v2238 = vadd.f32 0.0, %v2237
  %v2239 = vpop.f32.mrb[0].mxu0
  %v2240 = vpop.f32.mrb[0].mxu0
  %v2241 = vadd.f32 0.0, %v2240
  %v2242 = vpop.f32.mrb[0].mxu0
  %2243 = vmatprep.mubr.bf16.mxu0 0
  %2244 = vmatmul.mubr.bf16.gmra.mrb[0].mxu0 %v1944
  %v2245 = vpop.f32.mrb[0].mxu0
  %v2246 = vadd.f32 0.0, %v2245
  %v2247 = vpop.f32.mrb[0].mxu0
  %v2248 = vpop.f32.mrb[0].mxu0
  %v2249 = vadd.f32 0.0, %v2248
  %v2250 = vpop.f32.mrb[0].mxu0
  %2251 = vmatprep.mubr.bf16.mxu0 0
  %2252 = vmatmul.mubr.bf16.gmra.mrb[0].mxu0 %v1947
  %v2253 = vpop.f32.mrb[0].mxu0
  %v2254 = vadd.f32 0.0, %v2253
  %v2255 = vpop.f32.mrb[0].mxu0
  %v2256 = vpop.f32.mrb[0].mxu0
  %v2257 = vadd.f32 0.0, %v2256
  %v2258 = vpop.f32.mrb[0].mxu0
  %2259 = vmatprep.mubr.bf16.mxu0 0
  %2260 = vmatmul.mubr.bf16.gmra.mrb[0].mxu0 %v1950
  %v2261 = vpop.f32.mrb[0].mxu0
  %v2262 = vadd.f32 0.0, %v2261
  %v2263 = vpop.f32.mrb[0].mxu0
  %v2264 = vpop.f32.mrb[0].mxu0
  %v2265 = vadd.f32 0.0, %v2264
  %v2266 = vpop.f32.mrb[0].mxu0
  %2267 = vmatprep.mubr.bf16.mxu0 0
  %2268 = vmatmul.mubr.bf16.gmra.mrb[0].mxu0 %v1953
  %v2269 = vpop.f32.mrb[0].mxu0
  %v2270 = vadd.f32 0.0, %v2269
  %v2271 = vpop.f32.mrb[0].mxu0
  %v2272 = vpop.f32.mrb[0].mxu0
  %v2273 = vadd.f32 0.0, %v2272
  %v2274 = vpop.f32.mrb[0].mxu0
  %2275 = vmatprep.mubr.bf16.mxu0 0
  %2276 = vmatmul.mubr.bf16.gmra.mrb[0].mxu0 %v1956
  %v2277 = vpop.f32.mrb[0].mxu0
  %v2278 = vadd.f32 0.0, %v2277
  %v2279 = vpop.f32.mrb[0].mxu0
  %v2280 = vpop.f32.mrb[0].mxu0
  %v2281 = vadd.f32 0.0, %v2280
  %v2282 = vpop.f32.mrb[0].mxu0
  %2283 = vmatprep.mubr.bf16.mxu0 0
  %2284 = vmatmul.mubr.bf16.gmra.mrb[0].mxu0 %v1959
  %v2285 = vpop.f32.mrb[0].mxu0
  %v2286 = vadd.f32 0.0, %v2285
  %v2287 = vpop.f32.mrb[0].mxu0
  %v2288 = vpop.f32.mrb[0].mxu0
  %v2289 = vadd.f32 0.0, %v2288
  %v2290 = vpop.f32.mrb[0].mxu0
  %2291 = vmatprep.mubr.bf16.mxu0 0
  %2292 = vmatmul.mubr.bf16.gmra.mrb[0].mxu0 %v1962
  %v2293 = vpop.f32.mrb[0].mxu0
  %v2294 = vadd.f32 0.0, %v2293
  %v2295 = vpop.f32.mrb[0].mxu0
  %v2296 = vpop.f32.mrb[0].mxu0
  %v2297 = vadd.f32 0.0, %v2296
  %v2298 = vpop.f32.mrb[0].mxu0
  %2299 = vmatprep.mubr.bf16.mxu0 0
  %2300 = vmatmul.mubr.bf16.gmra.mrb[0].mxu0 %v1965
  %v2301 = vpop.f32.mrb[0].mxu0
  %v2302 = vadd.f32 0.0, %v2301
  %v2303 = vpop.f32.mrb[0].mxu0
  %v2304 = vpop.f32.mrb[0].mxu0
  %v2305 = vadd.f32 0.0, %v2304
  %v2306 = vpop.f32.mrb[0].mxu0
  %2307 = vmatprep.mubr.bf16.mxu0 0
  %2308 = vmatmul.mubr.bf16.gmra.mrb[0].mxu0 %v1968
  %v2309 = vpop.f32.mrb[0].mxu0
  %v2310 = vadd.f32 0.0, %v2309
  %v2311 = vpop.f32.mrb[0].mxu0
  %v2312 = vpop.f32.mrb[0].mxu0
  %v2313 = vadd.f32 0.0, %v2312
  %v2314 = vpop.f32.mrb[0].mxu0
  %2315 = vmatprep.mubr.bf16.mxu0 0
  %2316 = vmatmul.mubr.bf16.gmra.mrb[0].mxu0 %v1971
  %v2317 = vpop.f32.mrb[0].mxu0
  %v2318 = vadd.f32 0.0, %v2317
  %v2319 = vpop.f32.mrb[0].mxu0
  %v2320 = vpop.f32.mrb[0].mxu0
  %v2321 = vadd.f32 0.0, %v2320
  %v2322 = vpop.f32.mrb[0].mxu0
  %2323 = vmatprep.mubr.bf16.mxu0 0
  %2324 = vmatmul.mubr.bf16.gmra.mrb[0].mxu0 %v1974
  %v2325 = vpop.f32.mrb[0].mxu0
  %v2326 = vadd.f32 0.0, %v2325
  %v2327 = vpop.f32.mrb[0].mxu0
  %v2328 = vpop.f32.mrb[0].mxu0
  %v2329 = vadd.f32 0.0, %v2328
  %v2330 = vpop.f32.mrb[0].mxu0
  %2331 = vmatprep.mubr.bf16.mxu0 0
  %2332 = vmatmul.mubr.bf16.gmra.mrb[0].mxu0 %v1977
  %v2333 = vpop.f32.mrb[0].mxu0
  %v2334 = vadd.f32 0.0, %v2333
  %v2335 = vpop.f32.mrb[0].mxu0
  %v2336 = vpop.f32.mrb[0].mxu0
  %v2337 = vadd.f32 0.0, %v2336
  %v2338 = vpop.f32.mrb[0].mxu0
  %2339 = vmatprep.mubr.bf16.mxu0 0
  %2340 = vmatmul.mubr.bf16.gmra.mrb[0].mxu0 %v1980
  %v2341 = vpop.f32.mrb[0].mxu0
  %v2342 = vadd.f32 0.0, %v2341
  %v2343 = vpop.f32.mrb[0].mxu0
  %v2344 = vpop.f32.mrb[0].mxu0
  %v2345 = vadd.f32 0.0, %v2344
  %v2346 = vpop.f32.mrb[0].mxu0
  %2347 = vmatprep.mubr.bf16.mxu0 0
  %2348 = vmatmul.mubr.bf16.gmra.mrb[0].mxu0 %v1983
  %v2349 = vpop.f32.mrb[0].mxu0
  %v2350 = vadd.f32 0.0, %v2349
  %v2351 = vpop.f32.mrb[0].mxu0
  %v2352 = vpop.f32.mrb[0].mxu0
  %v2353 = vadd.f32 0.0, %v2352
  %v2354 = vpop.f32.mrb[0].mxu0
  %2355 = vmatprep.mubr.bf16.mxu0 0
  %2356 = vmatmul.mubr.bf16.gmra.mrb[0].mxu0 %v1986
  %v2357 = vpop.f32.mrb[0].mxu0
  %v2358 = vadd.f32 0.0, %v2357
  %v2359 = vpop.f32.mrb[0].mxu0
  %v2360 = vpop.f32.mrb[0].mxu0
  %v2361 = vadd.f32 0.0, %v2360
  %v2362 = vpop.f32.mrb[0].mxu0
  %2363 = vmatprep.mubr.bf16.mxu0 0
  %2364 = vmatmul.mubr.bf16.gmra.mrb[0].mxu0 %v1989
  %v2365 = vpop.f32.mrb[0].mxu0
  %v2366 = vadd.f32 0.0, %v2365
  %v2367 = vpop.f32.mrb[0].mxu0
  %v2368 = vpop.f32.mrb[0].mxu0
  %v2369 = vadd.f32 0.0, %v2368
  %v2370 = vpop.f32.mrb[0].mxu0
  %2371 = vmatprep.mubr.bf16.mxu0 0
  %2372 = vmatmul.mubr.bf16.gmra.mrb[0].mxu0 %v1992
  %v2373 = vpop.f32.mrb[0].mxu0
  %v2374 = vadd.f32 0.0, %v2373
  %v2375 = vpop.f32.mrb[0].mxu0
  %v2376 = vpop.f32.mrb[0].mxu0
  %v2377 = vadd.f32 0.0, %v2376
  %v2378 = vpop.f32.mrb[0].mxu0
  %2379 = vmatprep.mubr.bf16.mxu0 0
  %2380 = vmatmul.mubr.bf16.gmra.mrb[0].mxu0 %v1995
  %v2381 = vpop.f32.mrb[0].mxu0
  %v2382 = vadd.f32 0.0, %v2381
  %v2383 = vpop.f32.mrb[0].mxu0
  %v2384 = vpop.f32.mrb[0].mxu0
  %v2385 = vadd.f32 0.0, %v2384
  %v2386 = vpop.f32.mrb[0].mxu0
  %2387 = vmatprep.mubr.bf16.mxu0 0
  %2388 = vmatmul.mubr.bf16.gmra.mrb[0].mxu0 %v1998
  %v2389 = vpop.f32.mrb[0].mxu0
  %v2390 = vadd.f32 0.0, %v2389
  %v2391 = vpop.f32.mrb[0].mxu0
  %v2392 = vpop.f32.mrb[0].mxu0
  %v2393 = vadd.f32 0.0, %v2392
  %v2394 = vpop.f32.mrb[0].mxu0
  %2395 = vdwg.mxu0
  %v2396 = vadd.f32 %v1413, %v2038
  %v2397 = vadd.f32 %v1416, %v2041
  %v2398 = vadd.f32 %v1421, %v2046
  %v2399 = vadd.f32 %v1424, %v2049
  %v2400 = vadd.f32 %v1429, %v2054
  %v2401 = vadd.f32 %v1432, %v2057
  %v2402 = vadd.f32 %v1437, %v2062
  %v2403 = vadd.f32 %v1440, %v2065
  %v2404 = vadd.f32 %v1445, %v2070
  %v2405 = vadd.f32 %v1448, %v2073
  %v2406 = vadd.f32 %v1453, %v2078
  %v2407 = vadd.f32 %v1456, %v2081
  %v2408 = vadd.f32 %v1461, %v2086
  %v2409 = vadd.f32 %v1464, %v2089
  %v2410 = vadd.f32 %v1469, %v2094
  %v2411 = vadd.f32 %v1472, %v2097
  %v2412 = vadd.f32 %v1477, %v2102
  %v2413 = vadd.f32 %v1480, %v2105
  %v2414 = vadd.f32 %v1485, %v2110
  %v2415 = vadd.f32 %v1488, %v2113
  %v2416 = vadd.f32 %v1493, %v2118
  %v2417 = vadd.f32 %v1496, %v2121
  %v2418 = vadd.f32 %v1501, %v2126
  %v2419 = vadd.f32 %v1504, %v2129
  %v2420 = vadd.f32 %v1509, %v2134
  %v2421 = vadd.f32 %v1512, %v2137
  %v2422 = vadd.f32 %v1517, %v2142
  %v2423 = vadd.f32 %v1520, %v2145
  %v2424 = vadd.f32 %v1525, %v2150
  %v2425 = vadd.f32 %v1528, %v2153
  %v2426 = vadd.f32 %v1533, %v2158
  %v2427 = vadd.f32 %v1536, %v2161
  %v2428 = vadd.f32 %v1541, %v2166
  %v2429 = vadd.f32 %v1544, %v2169
  %v2430 = vadd.f32 %v1549, %v2174
  %v2431 = vadd.f32 %v1552, %v2177
  %v2432 = vadd.f32 %v1557, %v2182
  %v2433 = vadd.f32 %v1560, %v2185
  %v2434 = vadd.f32 %v1565, %v2190
  %v2435 = vadd.f32 %v1568, %v2193
  %v2436 = vadd.f32 %v1573, %v2198
  %v2437 = vadd.f32 %v1576, %v2201
  %v2438 = vadd.f32 %v1581, %v2206
  %v2439 = vadd.f32 %v1584, %v2209
  %v2440 = vadd.f32 %v1589, %v2214
  %v2441 = vadd.f32 %v1592, %v2217
  %v2442 = vadd.f32 %v1597, %v2222
  %v2443 = vadd.f32 %v1600, %v2225
  %v2444 = vadd.f32 %v1605, %v2230
  %v2445 = vadd.f32 %v1608, %v2233
  %v2446 = vadd.f32 %v1613, %v2238
  %v2447 = vadd.f32 %v1616, %v2241
  %v2448 = vadd.f32 %v1621, %v2246
  %v2449 = vadd.f32 %v1624, %v2249
  %v2450 = vadd.f32 %v1629, %v2254
  %v2451 = vadd.f32 %v1632, %v2257
  %v2452 = vadd.f32 %v1637, %v2262
  %v2453 = vadd.f32 %v1640, %v2265
  %v2454 = vadd.f32 %v1645, %v2270
  %v2455 = vadd.f32 %v1648, %v2273
  %v2456 = vadd.f32 %v1653, %v2278
  %v2457 = vadd.f32 %v1656, %v2281
  %v2458 = vadd.f32 %v1661, %v2286
  %v2459 = vadd.f32 %v1664, %v2289
  %v2460 = vadd.f32 %v1669, %v2294
  %v2461 = vadd.f32 %v1672, %v2297
  %v2462 = vadd.f32 %v1677, %v2302
  %v2463 = vadd.f32 %v1680, %v2305
  %v2464 = vadd.f32 %v1685, %v2310
  %v2465 = vadd.f32 %v1688, %v2313
  %v2466 = vadd.f32 %v1693, %v2318
  %v2467 = vadd.f32 %v1696, %v2321
  %v2468 = vadd.f32 %v1701, %v2326
  %v2469 = vadd.f32 %v1704, %v2329
  %v2470 = vadd.f32 %v1709, %v2334
  %v2471 = vadd.f32 %v1712, %v2337
  %v2472 = vadd.f32 %v1717, %v2342
  %v2473 = vadd.f32 %v1720, %v2345
  %v2474 = vadd.f32 %v1725, %v2350
  %v2475 = vadd.f32 %v1728, %v2353
  %v2476 = vadd.f32 %v1733, %v2358
  %v2477 = vadd.f32 %v1736, %v2361
  %v2478 = vadd.f32 %v1741, %v2366
  %v2479 = vadd.f32 %v1744, %v2369
  %v2480 = vadd.f32 %v1749, %v2374
  %v2481 = vadd.f32 %v1752, %v2377
  %v2482 = vadd.f32 %v1757, %v2382
  %v2483 = vadd.f32 %v1760, %v2385
  %v2484 = vadd.f32 %v1765, %v2390
  %v2485 = vadd.f32 %v1768, %v2393
  %s2486 = scalar_lea.vmem %s2, 6
  %v2487 = vld [vmem:[%s2486] sm:$0x3]
  %v2488 = vrot.slane %v379, 1
  %v2489 = vsel %vm1773, %v1863, %v2488
  %v2491 = vsel %vm749, %v2489, 0
  %v2494 = vand.u32 %v2487, %v888
  %2496 = vmatprep.subr.bf16.mxu0 0
  %2497 = vmatpush1.bf16.msra.mxu0 %v2494
  %2498 = vmatprep.subr.bf16.mxu0 0
  %2499 = vmatpush1.bf16.msra.mxu0 0
  %2500 = vmatprep.subr.bf16.mxu0 0
  %2501 = vmatpush1.bf16.msra.mxu0 0
  %2502 = vmatprep.subr.bf16.mxu0 0
  %2503 = vmatpush1.bf16.msra.mxu0 0
  %2504 = vmatprep.subr.bf16.mxu0 0
  %2505 = vmatpush1.bf16.msra.mxu0 0
  %2506 = vmatprep.subr.bf16.mxu0 0
  %2507 = vmatpush1.bf16.msra.mxu0 0
  %2508 = vmatprep.subr.bf16.mxu0 0
  %2509 = vmatpush1.bf16.msra.mxu0 0
  %2510 = vmatprep.subr.bf16.mxu0 0
  %2511 = vmatpush1.bf16.msra.mxu0 0
  %2512 = vmatprep.subr.bf16.mxu0 0
  %2513 = vmatpush1.bf16.msra.mxu0 0
  %2514 = vmatprep.subr.bf16.mxu0 0
  %2515 = vmatpush1.bf16.msra.mxu0 0
  %2516 = vmatprep.subr.bf16.mxu0 0
  %2517 = vmatpush1.bf16.msra.mxu0 0
  %2518 = vmatprep.subr.bf16.mxu0 0
  %2519 = vmatpush1.bf16.msra.mxu0 0
  %2520 = vmatprep.subr.bf16.mxu0 0
  %2521 = vmatpush1.bf16.msra.mxu0 0
  %2522 = vmatprep.subr.bf16.mxu0 0
  %2523 = vmatpush1.bf16.msra.mxu0 0
  %2524 = vmatprep.subr.bf16.mxu0 0
  %2525 = vmatpush1.bf16.msra.mxu0 0
  %2526 = vmatprep.subr.bf16.mxu0 0
  %2527 = vmatpush1.bf16.msra.mxu0 0
  %2528 = vmatprep.mubr.bf16.mxu0 0
  %2529 = vmatmul.mubr.bf16.gmra.mrb[0].mxu0 %v1869
  %v2530 = vpop.f32.mrb[0].mxu0
  %v2531 = vadd.f32 0.0, %v2530
  %v2532 = vpop.f32.mrb[0].mxu0
  %v2533 = vpop.f32.mrb[0].mxu0
  %v2534 = vadd.f32 0.0, %v2533
  %v2535 = vpop.f32.mrb[0].mxu0
  %2536 = vmatprep.mubr.bf16.mxu0 0
  %2537 = vmatmul.mubr.bf16.gmra.mrb[0].mxu0 %v1872
  %v2538 = vpop.f32.mrb[0].mxu0
  %v2539 = vadd.f32 0.0, %v2538
  %v2540 = vpop.f32.mrb[0].mxu0
  %v2541 = vpop.f32.mrb[0].mxu0
  %v2542 = vadd.f32 0.0, %v2541
  %v2543 = vpop.f32.mrb[0].mxu0
  %2544 = vmatprep.mubr.bf16.mxu0 0
  %2545 = vmatmul.mubr.bf16.gmra.mrb[0].mxu0 %v1875
  %v2546 = vpop.f32.mrb[0].mxu0
  %v2547 = vadd.f32 0.0, %v2546
  %v2548 = vpop.f32.mrb[0].mxu0
  %v2549 = vpop.f32.mrb[0].mxu0
  %v2550 = vadd.f32 0.0, %v2549
  %v2551 = vpop.f32.mrb[0].mxu0
  %2552 = vmatprep.mubr.bf16.mxu0 0
  %2553 = vmatmul.mubr.bf16.gmra.mrb[0].mxu0 %v1878
  %v2554 = vpop.f32.mrb[0].mxu0
  %v2555 = vadd.f32 0.0, %v2554
  %v2556 = vpop.f32.mrb[0].mxu0
  %v2557 = vpop.f32.mrb[0].mxu0
  %v2558 = vadd.f32 0.0, %v2557
  %v2559 = vpop.f32.mrb[0].mxu0
  %2560 = vmatprep.mubr.bf16.mxu0 0
  %2561 = vmatmul.mubr.bf16.gmra.mrb[0].mxu0 %v1881
  %v2562 = vpop.f32.mrb[0].mxu0
  %v2563 = vadd.f32 0.0, %v2562
  %v2564 = vpop.f32.mrb[0].mxu0
  %v2565 = vpop.f32.mrb[0].mxu0
  %v2566 = vadd.f32 0.0, %v2565
  %v2567 = vpop.f32.mrb[0].mxu0
  %2568 = vmatprep.mubr.bf16.mxu0 0
  %2569 = vmatmul.mubr.bf16.gmra.mrb[0].mxu0 %v1884
  %v2570 = vpop.f32.mrb[0].mxu0
  %v2571 = vadd.f32 0.0, %v2570
  %v2572 = vpop.f32.mrb[0].mxu0
  %v2573 = vpop.f32.mrb[0].mxu0
  %v2574 = vadd.f32 0.0, %v2573
  %v2575 = vpop.f32.mrb[0].mxu0
  %2576 = vmatprep.mubr.bf16.mxu0 0
  %2577 = vmatmul.mubr.bf16.gmra.mrb[0].mxu0 %v1887
  %v2578 = vpop.f32.mrb[0].mxu0
  %v2579 = vadd.f32 0.0, %v2578
  %v2580 = vpop.f32.mrb[0].mxu0
  %v2581 = vpop.f32.mrb[0].mxu0
  %v2582 = vadd.f32 0.0, %v2581
  %v2583 = vpop.f32.mrb[0].mxu0
  %2584 = vmatprep.mubr.bf16.mxu0 0
  %2585 = vmatmul.mubr.bf16.gmra.mrb[0].mxu0 %v1890
  %v2586 = vpop.f32.mrb[0].mxu0
  %v2587 = vadd.f32 0.0, %v2586
  %v2588 = vpop.f32.mrb[0].mxu0
  %v2589 = vpop.f32.mrb[0].mxu0
  %v2590 = vadd.f32 0.0, %v2589
  %v2591 = vpop.f32.mrb[0].mxu0
  %2592 = vmatprep.mubr.bf16.mxu0 0
  %2593 = vmatmul.mubr.bf16.gmra.mrb[0].mxu0 %v1893
  %v2594 = vpop.f32.mrb[0].mxu0
  %v2595 = vadd.f32 0.0, %v2594
  %v2596 = vpop.f32.mrb[0].mxu0
  %v2597 = vpop.f32.mrb[0].mxu0
  %v2598 = vadd.f32 0.0, %v2597
  %v2599 = vpop.f32.mrb[0].mxu0
  %2600 = vmatprep.mubr.bf16.mxu0 0
  %2601 = vmatmul.mubr.bf16.gmra.mrb[0].mxu0 %v1896
  %v2602 = vpop.f32.mrb[0].mxu0
  %v2603 = vadd.f32 0.0, %v2602
  %v2604 = vpop.f32.mrb[0].mxu0
  %v2605 = vpop.f32.mrb[0].mxu0
  %v2606 = vadd.f32 0.0, %v2605
  %v2607 = vpop.f32.mrb[0].mxu0
  %2608 = vmatprep.mubr.bf16.mxu0 0
  %2609 = vmatmul.mubr.bf16.gmra.mrb[0].mxu0 %v1899
  %v2610 = vpop.f32.mrb[0].mxu0
  %v2611 = vadd.f32 0.0, %v2610
  %v2612 = vpop.f32.mrb[0].mxu0
  %v2613 = vpop.f32.mrb[0].mxu0
  %v2614 = vadd.f32 0.0, %v2613
  %v2615 = vpop.f32.mrb[0].mxu0
  %2616 = vmatprep.mubr.bf16.mxu0 0
  %2617 = vmatmul.mubr.bf16.gmra.mrb[0].mxu0 %v1902
  %v2618 = vpop.f32.mrb[0].mxu0
  %v2619 = vadd.f32 0.0, %v2618
  %v2620 = vpop.f32.mrb[0].mxu0
  %v2621 = vpop.f32.mrb[0].mxu0
  %v2622 = vadd.f32 0.0, %v2621
  %v2623 = vpop.f32.mrb[0].mxu0
  %2624 = vmatprep.mubr.bf16.mxu0 0
  %2625 = vmatmul.mubr.bf16.gmra.mrb[0].mxu0 %v1905
  %v2626 = vpop.f32.mrb[0].mxu0
  %v2627 = vadd.f32 0.0, %v2626
  %v2628 = vpop.f32.mrb[0].mxu0
  %v2629 = vpop.f32.mrb[0].mxu0
  %v2630 = vadd.f32 0.0, %v2629
  %v2631 = vpop.f32.mrb[0].mxu0
  %2632 = vmatprep.mubr.bf16.mxu0 0
  %2633 = vmatmul.mubr.bf16.gmra.mrb[0].mxu0 %v1908
  %v2634 = vpop.f32.mrb[0].mxu0
  %v2635 = vadd.f32 0.0, %v2634
  %v2636 = vpop.f32.mrb[0].mxu0
  %v2637 = vpop.f32.mrb[0].mxu0
  %v2638 = vadd.f32 0.0, %v2637
  %v2639 = vpop.f32.mrb[0].mxu0
  %2640 = vmatprep.mubr.bf16.mxu0 0
  %2641 = vmatmul.mubr.bf16.gmra.mrb[0].mxu0 %v1911
  %v2642 = vpop.f32.mrb[0].mxu0
  %v2643 = vadd.f32 0.0, %v2642
  %v2644 = vpop.f32.mrb[0].mxu0
  %v2645 = vpop.f32.mrb[0].mxu0
  %v2646 = vadd.f32 0.0, %v2645
  %v2647 = vpop.f32.mrb[0].mxu0
  %2648 = vmatprep.mubr.bf16.mxu0 0
  %2649 = vmatmul.mubr.bf16.gmra.mrb[0].mxu0 %v1914
  %v2650 = vpop.f32.mrb[0].mxu0
  %v2651 = vadd.f32 0.0, %v2650
  %v2652 = vpop.f32.mrb[0].mxu0
  %v2653 = vpop.f32.mrb[0].mxu0
  %v2654 = vadd.f32 0.0, %v2653
  %v2655 = vpop.f32.mrb[0].mxu0
  %2656 = vmatprep.mubr.bf16.mxu0 0
  %2657 = vmatmul.mubr.bf16.gmra.mrb[0].mxu0 %v1917
  %v2658 = vpop.f32.mrb[0].mxu0
  %v2659 = vadd.f32 0.0, %v2658
  %v2660 = vpop.f32.mrb[0].mxu0
  %v2661 = vpop.f32.mrb[0].mxu0
  %v2662 = vadd.f32 0.0, %v2661
  %v2663 = vpop.f32.mrb[0].mxu0
  %2664 = vmatprep.mubr.bf16.mxu0 0
  %2665 = vmatmul.mubr.bf16.gmra.mrb[0].mxu0 %v1920
  %v2666 = vpop.f32.mrb[0].mxu0
  %v2667 = vadd.f32 0.0, %v2666
  %v2668 = vpop.f32.mrb[0].mxu0
  %v2669 = vpop.f32.mrb[0].mxu0
  %v2670 = vadd.f32 0.0, %v2669
  %v2671 = vpop.f32.mrb[0].mxu0
  %2672 = vmatprep.mubr.bf16.mxu0 0
  %2673 = vmatmul.mubr.bf16.gmra.mrb[0].mxu0 %v1923
  %v2674 = vpop.f32.mrb[0].mxu0
  %v2675 = vadd.f32 0.0, %v2674
  %v2676 = vpop.f32.mrb[0].mxu0
  %v2677 = vpop.f32.mrb[0].mxu0
  %v2678 = vadd.f32 0.0, %v2677
  %v2679 = vpop.f32.mrb[0].mxu0
  %2680 = vmatprep.mubr.bf16.mxu0 0
  %2681 = vmatmul.mubr.bf16.gmra.mrb[0].mxu0 %v1926
  %v2682 = vpop.f32.mrb[0].mxu0
  %v2683 = vadd.f32 0.0, %v2682
  %v2684 = vpop.f32.mrb[0].mxu0
  %v2685 = vpop.f32.mrb[0].mxu0
  %v2686 = vadd.f32 0.0, %v2685
  %v2687 = vpop.f32.mrb[0].mxu0
  %2688 = vmatprep.mubr.bf16.mxu0 0
  %2689 = vmatmul.mubr.bf16.gmra.mrb[0].mxu0 %v1929
  %v2690 = vpop.f32.mrb[0].mxu0
  %v2691 = vadd.f32 0.0, %v2690
  %v2692 = vpop.f32.mrb[0].mxu0
  %v2693 = vpop.f32.mrb[0].mxu0
  %v2694 = vadd.f32 0.0, %v2693
  %v2695 = vpop.f32.mrb[0].mxu0
  %2696 = vmatprep.mubr.bf16.mxu0 0
  %2697 = vmatmul.mubr.bf16.gmra.mrb[0].mxu0 %v1932
  %v2698 = vpop.f32.mrb[0].mxu0
  %v2699 = vadd.f32 0.0, %v2698
  %v2700 = vpop.f32.mrb[0].mxu0
  %v2701 = vpop.f32.mrb[0].mxu0
  %v2702 = vadd.f32 0.0, %v2701
  %v2703 = vpop.f32.mrb[0].mxu0
  %2704 = vmatprep.mubr.bf16.mxu0 0
  %2705 = vmatmul.mubr.bf16.gmra.mrb[0].mxu0 %v1935
  %v2706 = vpop.f32.mrb[0].mxu0
  %v2707 = vadd.f32 0.0, %v2706
  %v2708 = vpop.f32.mrb[0].mxu0
  %v2709 = vpop.f32.mrb[0].mxu0
  %v2710 = vadd.f32 0.0, %v2709
  %v2711 = vpop.f32.mrb[0].mxu0
  %2712 = vmatprep.mubr.bf16.mxu0 0
  %2713 = vmatmul.mubr.bf16.gmra.mrb[0].mxu0 %v1938
  %v2714 = vpop.f32.mrb[0].mxu0
  %v2715 = vadd.f32 0.0, %v2714
  %v2716 = vpop.f32.mrb[0].mxu0
  %v2717 = vpop.f32.mrb[0].mxu0
  %v2718 = vadd.f32 0.0, %v2717
  %v2719 = vpop.f32.mrb[0].mxu0
  %2720 = vmatprep.mubr.bf16.mxu0 0
  %2721 = vmatmul.mubr.bf16.gmra.mrb[0].mxu0 %v1941
  %v2722 = vpop.f32.mrb[0].mxu0
  %v2723 = vadd.f32 0.0, %v2722
  %v2724 = vpop.f32.mrb[0].mxu0
  %v2725 = vpop.f32.mrb[0].mxu0
  %v2726 = vadd.f32 0.0, %v2725
  %v2727 = vpop.f32.mrb[0].mxu0
  %2728 = vmatprep.mubr.bf16.mxu0 0
  %2729 = vmatmul.mubr.bf16.gmra.mrb[0].mxu0 %v1944
  %v2730 = vpop.f32.mrb[0].mxu0
  %v2731 = vadd.f32 0.0, %v2730
  %v2732 = vpop.f32.mrb[0].mxu0
  %v2733 = vpop.f32.mrb[0].mxu0
  %v2734 = vadd.f32 0.0, %v2733
  %v2735 = vpop.f32.mrb[0].mxu0
  %2736 = vmatprep.mubr.bf16.mxu0 0
  %2737 = vmatmul.mubr.bf16.gmra.mrb[0].mxu0 %v1947
  %v2738 = vpop.f32.mrb[0].mxu0
  %v2739 = vadd.f32 0.0, %v2738
  %v2740 = vpop.f32.mrb[0].mxu0
  %v2741 = vpop.f32.mrb[0].mxu0
  %v2742 = vadd.f32 0.0, %v2741
  %v2743 = vpop.f32.mrb[0].mxu0
  %2744 = vmatprep.mubr.bf16.mxu0 0
  %2745 = vmatmul.mubr.bf16.gmra.mrb[0].mxu0 %v1950
  %v2746 = vpop.f32.mrb[0].mxu0
  %v2747 = vadd.f32 0.0, %v2746
  %v2748 = vpop.f32.mrb[0].mxu0
  %v2749 = vpop.f32.mrb[0].mxu0
  %v2750 = vadd.f32 0.0, %v2749
  %v2751 = vpop.f32.mrb[0].mxu0
  %2752 = vmatprep.mubr.bf16.mxu0 0
  %2753 = vmatmul.mubr.bf16.gmra.mrb[0].mxu0 %v1953
  %v2754 = vpop.f32.mrb[0].mxu0
  %v2755 = vadd.f32 0.0, %v2754
  %v2756 = vpop.f32.mrb[0].mxu0
  %v2757 = vpop.f32.mrb[0].mxu0
  %v2758 = vadd.f32 0.0, %v2757
  %v2759 = vpop.f32.mrb[0].mxu0
  %2760 = vmatprep.mubr.bf16.mxu0 0
  %2761 = vmatmul.mubr.bf16.gmra.mrb[0].mxu0 %v1956
  %v2762 = vpop.f32.mrb[0].mxu0
  %v2763 = vadd.f32 0.0, %v2762
  %v2764 = vpop.f32.mrb[0].mxu0
  %v2765 = vpop.f32.mrb[0].mxu0
  %v2766 = vadd.f32 0.0, %v2765
  %v2767 = vpop.f32.mrb[0].mxu0
  %2768 = vmatprep.mubr.bf16.mxu0 0
  %2769 = vmatmul.mubr.bf16.gmra.mrb[0].mxu0 %v1959
  %v2770 = vpop.f32.mrb[0].mxu0
  %v2771 = vadd.f32 0.0, %v2770
  %v2772 = vpop.f32.mrb[0].mxu0
  %v2773 = vpop.f32.mrb[0].mxu0
  %v2774 = vadd.f32 0.0, %v2773
  %v2775 = vpop.f32.mrb[0].mxu0
  %2776 = vmatprep.mubr.bf16.mxu0 0
  %2777 = vmatmul.mubr.bf16.gmra.mrb[0].mxu0 %v1962
  %v2778 = vpop.f32.mrb[0].mxu0
  %v2779 = vadd.f32 0.0, %v2778
  %v2780 = vpop.f32.mrb[0].mxu0
  %v2781 = vpop.f32.mrb[0].mxu0
  %v2782 = vadd.f32 0.0, %v2781
  %v2783 = vpop.f32.mrb[0].mxu0
  %2784 = vmatprep.mubr.bf16.mxu0 0
  %2785 = vmatmul.mubr.bf16.gmra.mrb[0].mxu0 %v1965
  %v2786 = vpop.f32.mrb[0].mxu0
  %v2787 = vadd.f32 0.0, %v2786
  %v2788 = vpop.f32.mrb[0].mxu0
  %v2789 = vpop.f32.mrb[0].mxu0
  %v2790 = vadd.f32 0.0, %v2789
  %v2791 = vpop.f32.mrb[0].mxu0
  %2792 = vmatprep.mubr.bf16.mxu0 0
  %2793 = vmatmul.mubr.bf16.gmra.mrb[0].mxu0 %v1968
  %v2794 = vpop.f32.mrb[0].mxu0
  %v2795 = vadd.f32 0.0, %v2794
  %v2796 = vpop.f32.mrb[0].mxu0
  %v2797 = vpop.f32.mrb[0].mxu0
  %v2798 = vadd.f32 0.0, %v2797
  %v2799 = vpop.f32.mrb[0].mxu0
  %2800 = vmatprep.mubr.bf16.mxu0 0
  %2801 = vmatmul.mubr.bf16.gmra.mrb[0].mxu0 %v1971
  %v2802 = vpop.f32.mrb[0].mxu0
  %v2803 = vadd.f32 0.0, %v2802
  %v2804 = vpop.f32.mrb[0].mxu0
  %v2805 = vpop.f32.mrb[0].mxu0
  %v2806 = vadd.f32 0.0, %v2805
  %v2807 = vpop.f32.mrb[0].mxu0
  %2808 = vmatprep.mubr.bf16.mxu0 0
  %2809 = vmatmul.mubr.bf16.gmra.mrb[0].mxu0 %v1974
  %v2810 = vpop.f32.mrb[0].mxu0
  %v2811 = vadd.f32 0.0, %v2810
  %v2812 = vpop.f32.mrb[0].mxu0
  %v2813 = vpop.f32.mrb[0].mxu0
  %v2814 = vadd.f32 0.0, %v2813
  %v2815 = vpop.f32.mrb[0].mxu0
  %2816 = vmatprep.mubr.bf16.mxu0 0
  %2817 = vmatmul.mubr.bf16.gmra.mrb[0].mxu0 %v1977
  %v2818 = vpop.f32.mrb[0].mxu0
  %v2819 = vadd.f32 0.0, %v2818
  %v2820 = vpop.f32.mrb[0].mxu0
  %v2821 = vpop.f32.mrb[0].mxu0
  %v2822 = vadd.f32 0.0, %v2821
  %v2823 = vpop.f32.mrb[0].mxu0
  %2824 = vmatprep.mubr.bf16.mxu0 0
  %2825 = vmatmul.mubr.bf16.gmra.mrb[0].mxu0 %v1980
  %v2826 = vpop.f32.mrb[0].mxu0
  %v2827 = vadd.f32 0.0, %v2826
  %v2828 = vpop.f32.mrb[0].mxu0
  %v2829 = vpop.f32.mrb[0].mxu0
  %v2830 = vadd.f32 0.0, %v2829
  %v2831 = vpop.f32.mrb[0].mxu0
  %2832 = vmatprep.mubr.bf16.mxu0 0
  %2833 = vmatmul.mubr.bf16.gmra.mrb[0].mxu0 %v1983
  %v2834 = vpop.f32.mrb[0].mxu0
  %v2835 = vadd.f32 0.0, %v2834
  %v2836 = vpop.f32.mrb[0].mxu0
  %v2837 = vpop.f32.mrb[0].mxu0
  %v2838 = vadd.f32 0.0, %v2837
  %v2839 = vpop.f32.mrb[0].mxu0
  %2840 = vmatprep.mubr.bf16.mxu0 0
  %2841 = vmatmul.mubr.bf16.gmra.mrb[0].mxu0 %v1986
  %v2842 = vpop.f32.mrb[0].mxu0
  %v2843 = vadd.f32 0.0, %v2842
  %v2844 = vpop.f32.mrb[0].mxu0
  %v2845 = vpop.f32.mrb[0].mxu0
  %v2846 = vadd.f32 0.0, %v2845
  %v2847 = vpop.f32.mrb[0].mxu0
  %2848 = vmatprep.mubr.bf16.mxu0 0
  %2849 = vmatmul.mubr.bf16.gmra.mrb[0].mxu0 %v1989
  %v2850 = vpop.f32.mrb[0].mxu0
  %v2851 = vadd.f32 0.0, %v2850
  %v2852 = vpop.f32.mrb[0].mxu0
  %v2853 = vpop.f32.mrb[0].mxu0
  %v2854 = vadd.f32 0.0, %v2853
  %v2855 = vpop.f32.mrb[0].mxu0
  %2856 = vmatprep.mubr.bf16.mxu0 0
  %2857 = vmatmul.mubr.bf16.gmra.mrb[0].mxu0 %v1992
  %v2858 = vpop.f32.mrb[0].mxu0
  %v2859 = vadd.f32 0.0, %v2858
  %v2860 = vpop.f32.mrb[0].mxu0
  %v2861 = vpop.f32.mrb[0].mxu0
  %v2862 = vadd.f32 0.0, %v2861
  %v2863 = vpop.f32.mrb[0].mxu0
  %2864 = vmatprep.mubr.bf16.mxu0 0
  %2865 = vmatmul.mubr.bf16.gmra.mrb[0].mxu0 %v1995
  %v2866 = vpop.f32.mrb[0].mxu0
  %v2867 = vadd.f32 0.0, %v2866
  %v2868 = vpop.f32.mrb[0].mxu0
  %v2869 = vpop.f32.mrb[0].mxu0
  %v2870 = vadd.f32 0.0, %v2869
  %v2871 = vpop.f32.mrb[0].mxu0
  %2872 = vmatprep.mubr.bf16.mxu0 0
  %2873 = vmatmul.mubr.bf16.gmra.mrb[0].mxu0 %v1998
  %v2874 = vpop.f32.mrb[0].mxu0
  %v2875 = vadd.f32 0.0, %v2874
  %v2876 = vpop.f32.mrb[0].mxu0
  %v2877 = vpop.f32.mrb[0].mxu0
  %v2878 = vadd.f32 0.0, %v2877
  %v2879 = vpop.f32.mrb[0].mxu0
  %2880 = vmatprep.mubr.bf16.mxu0 0
  %2881 = vmatmul.mubr.bf16.gmra.mrb[0].mxu0 %v2491
  %v2882 = vpop.f32.mrb[0].mxu0
  %v2883 = vadd.f32 0.0, %v2882
  %v2884 = vpop.f32.mrb[0].mxu0
  %v2885 = vpop.f32.mrb[0].mxu0
  %v2886 = vadd.f32 0.0, %v2885
  %v2887 = vpop.f32.mrb[0].mxu0
  %2888 = vdwg.mxu0
  %v2889 = vadd.f32 %v2396, %v2531
  %v2890 = vadd.f32 %v2397, %v2534
  %v2891 = vadd.f32 %v2398, %v2539
  %v2892 = vadd.f32 %v2399, %v2542
  %v2893 = vadd.f32 %v2400, %v2547
  %v2894 = vadd.f32 %v2401, %v2550
  %v2895 = vadd.f32 %v2402, %v2555
  %v2896 = vadd.f32 %v2403, %v2558
  %v2897 = vadd.f32 %v2404, %v2563
  %v2898 = vadd.f32 %v2405, %v2566
  %v2899 = vadd.f32 %v2406, %v2571
  %v2900 = vadd.f32 %v2407, %v2574
  %v2901 = vadd.f32 %v2408, %v2579
  %v2902 = vadd.f32 %v2409, %v2582
  %v2903 = vadd.f32 %v2410, %v2587
  %v2904 = vadd.f32 %v2411, %v2590
  %v2905 = vadd.f32 %v2412, %v2595
  %v2906 = vadd.f32 %v2413, %v2598
  %v2907 = vadd.f32 %v2414, %v2603
  %v2908 = vadd.f32 %v2415, %v2606
  %v2909 = vadd.f32 %v2416, %v2611
  %v2910 = vadd.f32 %v2417, %v2614
  %v2911 = vadd.f32 %v2418, %v2619
  %v2912 = vadd.f32 %v2419, %v2622
  %v2913 = vadd.f32 %v2420, %v2627
  %v2914 = vadd.f32 %v2421, %v2630
  %v2915 = vadd.f32 %v2422, %v2635
  %v2916 = vadd.f32 %v2423, %v2638
  %v2917 = vadd.f32 %v2424, %v2643
  %v2918 = vadd.f32 %v2425, %v2646
  %v2919 = vadd.f32 %v2426, %v2651
  %v2920 = vadd.f32 %v2427, %v2654
  %v2921 = vadd.f32 %v2428, %v2659
  %v2922 = vadd.f32 %v2429, %v2662
  %v2923 = vadd.f32 %v2430, %v2667
  %v2924 = vadd.f32 %v2431, %v2670
  %v2925 = vadd.f32 %v2432, %v2675
  %v2926 = vadd.f32 %v2433, %v2678
  %v2927 = vadd.f32 %v2434, %v2683
  %v2928 = vadd.f32 %v2435, %v2686
  %v2929 = vadd.f32 %v2436, %v2691
  %v2930 = vadd.f32 %v2437, %v2694
  %v2931 = vadd.f32 %v2438, %v2699
  %v2932 = vadd.f32 %v2439, %v2702
  %v2933 = vadd.f32 %v2440, %v2707
  %v2934 = vadd.f32 %v2441, %v2710
  %v2935 = vadd.f32 %v2442, %v2715
  %v2936 = vadd.f32 %v2443, %v2718
  %v2937 = vadd.f32 %v2444, %v2723
  %v2938 = vadd.f32 %v2445, %v2726
  %v2939 = vadd.f32 %v2446, %v2731
  %v2940 = vadd.f32 %v2447, %v2734
  %v2941 = vadd.f32 %v2448, %v2739
  %v2942 = vadd.f32 %v2449, %v2742
  %v2943 = vadd.f32 %v2450, %v2747
  %v2944 = vadd.f32 %v2451, %v2750
  %v2945 = vadd.f32 %v2452, %v2755
  %v2946 = vadd.f32 %v2453, %v2758
  %v2947 = vadd.f32 %v2454, %v2763
  %v2948 = vadd.f32 %v2455, %v2766
  %v2949 = vadd.f32 %v2456, %v2771
  %v2950 = vadd.f32 %v2457, %v2774
  %v2951 = vadd.f32 %v2458, %v2779
  %v2952 = vadd.f32 %v2459, %v2782
  %v2953 = vadd.f32 %v2460, %v2787
  %v2954 = vadd.f32 %v2461, %v2790
  %v2955 = vadd.f32 %v2462, %v2795
  %v2956 = vadd.f32 %v2463, %v2798
  %v2957 = vadd.f32 %v2464, %v2803
  %v2958 = vadd.f32 %v2465, %v2806
  %v2959 = vadd.f32 %v2466, %v2811
  %v2960 = vadd.f32 %v2467, %v2814
  %v2961 = vadd.f32 %v2468, %v2819
  %v2962 = vadd.f32 %v2469, %v2822
  %v2963 = vadd.f32 %v2470, %v2827
  %v2964 = vadd.f32 %v2471, %v2830
  %v2965 = vadd.f32 %v2472, %v2835
  %v2966 = vadd.f32 %v2473, %v2838
  %v2967 = vadd.f32 %v2474, %v2843
  %v2968 = vadd.f32 %v2475, %v2846
  %v2969 = vadd.f32 %v2476, %v2851
  %v2970 = vadd.f32 %v2477, %v2854
  %v2971 = vadd.f32 %v2478, %v2859
  %v2972 = vadd.f32 %v2479, %v2862
  %v2973 = vadd.f32 %v2480, %v2867
  %v2974 = vadd.f32 %v2481, %v2870
  %v2975 = vadd.f32 %v2482, %v2875
  %v2976 = vadd.f32 %v2483, %v2878
  %v2977 = vadd.f32 %v2484, %v2883
  %v2978 = vadd.f32 %v2485, %v2886
  %s2979 = scalar_lea.vmem %s2, 8
  %v2980 = vld [vmem:[%s2979] sm:$0x3]
  %vm2981 = vsmask.f32 6400
  %v2982 = vrot.slane %v397, 1
  %v2983 = vrot.slane %v393, 2
  %v2984 = vor.u32 %v2982, %v2983
  %v2985 = vrot.slane %v405, 1
  %v2986 = vrot.slane %v401, 2
  %v2987 = vor.u32 %v2985, %v2986
  %v2988 = vsel %vm2981, %v2984, %v2987
  %v2989 = vrot.slane %v413, 1
  %v2990 = vrot.slane %v409, 2
  %v2991 = vor.u32 %v2989, %v2990
  %v2992 = vsel %vm2981, %v2987, %v2991
  %v2993 = vrot.slane %v421, 1
  %v2994 = vrot.slane %v417, 2
  %v2995 = vor.u32 %v2993, %v2994
  %v2996 = vsel %vm2981, %v2991, %v2995
  %v2997 = vrot.slane %v429, 1
  %v2998 = vrot.slane %v425, 2
  %v2999 = vor.u32 %v2997, %v2998
  %v3000 = vsel %vm2981, %v2995, %v2999
  %v3001 = vrot.slane %v437, 1
  %v3002 = vrot.slane %v433, 2
  %v3003 = vor.u32 %v3001, %v3002
  %v3004 = vsel %vm2981, %v2999, %v3003
  %v3005 = vrot.slane %v445, 1
  %v3006 = vrot.slane %v441, 2
  %v3007 = vor.u32 %v3005, %v3006
  %v3008 = vsel %vm2981, %v3003, %v3007
  %v3009 = vrot.slane %v453, 1
  %v3010 = vrot.slane %v449, 2
  %v3011 = vor.u32 %v3009, %v3010
  %v3012 = vsel %vm2981, %v3007, %v3011
  %v3013 = vrot.slane %v461, 1
  %v3014 = vrot.slane %v457, 2
  %v3015 = vor.u32 %v3013, %v3014
  %v3016 = vsel %vm2981, %v3011, %v3015
  %v3017 = vrot.slane %v469, 1
  %v3018 = vrot.slane %v465, 2
  %v3019 = vor.u32 %v3017, %v3018
  %v3020 = vsel %vm2981, %v3015, %v3019
  %v3021 = vrot.slane %v477, 1
  %v3022 = vrot.slane %v473, 2
  %v3023 = vor.u32 %v3021, %v3022
  %v3024 = vsel %vm2981, %v3019, %v3023
  %v3025 = vrot.slane %v485, 1
  %v3026 = vrot.slane %v481, 2
  %v3027 = vor.u32 %v3025, %v3026
  %v3028 = vsel %vm2981, %v3023, %v3027
  %v3029 = vrot.slane %v493, 1
  %v3030 = vrot.slane %v489, 2
  %v3031 = vor.u32 %v3029, %v3030
  %v3032 = vsel %vm2981, %v3027, %v3031
  %v3033 = vrot.slane %v501, 1
  %v3034 = vrot.slane %v497, 2
  %v3035 = vor.u32 %v3033, %v3034
  %v3036 = vsel %vm2981, %v3031, %v3035
  %v3037 = vrot.slane %v509, 1
  %v3038 = vrot.slane %v505, 2
  %v3039 = vor.u32 %v3037, %v3038
  %v3040 = vsel %vm2981, %v3035, %v3039
  %v3041 = vrot.slane %v517, 1
  %v3042 = vrot.slane %v513, 2
  %v3043 = vor.u32 %v3041, %v3042
  %v3044 = vsel %vm2981, %v3039, %v3043
  %v3045 = vrot.slane %v525, 1
  %v3046 = vrot.slane %v521, 2
  %v3047 = vor.u32 %v3045, %v3046
  %v3048 = vsel %vm2981, %v3043, %v3047
  %v3049 = vrot.slane %v533, 1
  %v3050 = vrot.slane %v529, 2
  %v3051 = vor.u32 %v3049, %v3050
  %v3052 = vsel %vm2981, %v3047, %v3051
  %v3053 = vrot.slane %v541, 1
  %v3054 = vrot.slane %v537, 2
  %v3055 = vor.u32 %v3053, %v3054
  %v3056 = vsel %vm2981, %v3051, %v3055
  %v3057 = vrot.slane %v549, 1
  %v3058 = vrot.slane %v545, 2
  %v3059 = vor.u32 %v3057, %v3058
  %v3060 = vsel %vm2981, %v3055, %v3059
  %v3061 = vrot.slane %v557, 1
  %v3062 = vrot.slane %v553, 2
  %v3063 = vor.u32 %v3061, %v3062
  %v3064 = vsel %vm2981, %v3059, %v3063
  %v3065 = vrot.slane %v565, 1
  %v3066 = vrot.slane %v561, 2
  %v3067 = vor.u32 %v3065, %v3066
  %v3068 = vsel %vm2981, %v3063, %v3067
  %v3069 = vrot.slane %v573, 1
  %v3070 = vrot.slane %v569, 2
  %v3071 = vor.u32 %v3069, %v3070
  %v3072 = vsel %vm2981, %v3067, %v3071
  %v3073 = vrot.slane %v581, 1
  %v3074 = vrot.slane %v577, 2
  %v3075 = vor.u32 %v3073, %v3074
  %v3076 = vsel %vm2981, %v3071, %v3075
  %v3077 = vrot.slane %v589, 1
  %v3078 = vrot.slane %v585, 2
  %v3079 = vor.u32 %v3077, %v3078
  %v3080 = vsel %vm2981, %v3075, %v3079
  %v3081 = vrot.slane %v597, 1
  %v3082 = vrot.slane %v593, 2
  %v3083 = vor.u32 %v3081, %v3082
  %v3084 = vsel %vm2981, %v3079, %v3083
  %v3085 = vrot.slane %v605, 1
  %v3086 = vrot.slane %v601, 2
  %v3087 = vor.u32 %v3085, %v3086
  %v3088 = vsel %vm2981, %v3083, %v3087
  %v3089 = vrot.slane %v613, 1
  %v3090 = vrot.slane %v609, 2
  %v3091 = vor.u32 %v3089, %v3090
  %v3092 = vsel %vm2981, %v3087, %v3091
  %v3093 = vrot.slane %v621, 1
  %v3094 = vrot.slane %v617, 2
  %v3095 = vor.u32 %v3093, %v3094
  %v3096 = vsel %vm2981, %v3091, %v3095
  %v3097 = vrot.slane %v629, 1
  %v3098 = vrot.slane %v625, 2
  %v3099 = vor.u32 %v3097, %v3098
  %v3100 = vsel %vm2981, %v3095, %v3099
  %v3101 = vrot.slane %v637, 1
  %v3102 = vrot.slane %v633, 2
  %v3103 = vor.u32 %v3101, %v3102
  %v3104 = vsel %vm2981, %v3099, %v3103
  %v3105 = vrot.slane %v645, 1
  %v3106 = vrot.slane %v641, 2
  %v3107 = vor.u32 %v3105, %v3106
  %v3108 = vsel %vm2981, %v3103, %v3107
  %v3109 = vrot.slane %v653, 1
  %v3110 = vrot.slane %v649, 2
  %v3111 = vor.u32 %v3109, %v3110
  %v3112 = vsel %vm2981, %v3107, %v3111
  %v3113 = vrot.slane %v661, 1
  %v3114 = vrot.slane %v657, 2
  %v3115 = vor.u32 %v3113, %v3114
  %v3116 = vsel %vm2981, %v3111, %v3115
  %v3117 = vrot.slane %v669, 1
  %v3118 = vrot.slane %v665, 2
  %v3119 = vor.u32 %v3117, %v3118
  %v3120 = vsel %vm2981, %v3115, %v3119
  %v3121 = vrot.slane %v677, 1
  %v3122 = vrot.slane %v673, 2
  %v3123 = vor.u32 %v3121, %v3122
  %v3124 = vsel %vm2981, %v3119, %v3123
  %v3125 = vrot.slane %v685, 1
  %v3126 = vrot.slane %v681, 2
  %v3127 = vor.u32 %v3125, %v3126
  %v3128 = vsel %vm2981, %v3123, %v3127
  %v3129 = vrot.slane %v693, 1
  %v3130 = vrot.slane %v689, 2
  %v3131 = vor.u32 %v3129, %v3130
  %v3132 = vsel %vm2981, %v3127, %v3131
  %v3133 = vrot.slane %v701, 1
  %v3134 = vrot.slane %v697, 2
  %v3135 = vor.u32 %v3133, %v3134
  %v3136 = vsel %vm2981, %v3131, %v3135
  %v3137 = vrot.slane %v709, 1
  %v3138 = vrot.slane %v705, 2
  %v3139 = vor.u32 %v3137, %v3138
  %v3140 = vsel %vm2981, %v3135, %v3139
  %v3141 = vrot.slane %v717, 1
  %v3142 = vrot.slane %v713, 2
  %v3143 = vor.u32 %v3141, %v3142
  %v3144 = vsel %vm2981, %v3139, %v3143
  %v3145 = vrot.slane %v725, 1
  %v3146 = vrot.slane %v721, 2
  %v3147 = vor.u32 %v3145, %v3146
  %v3148 = vsel %vm2981, %v3143, %v3147
  %v3149 = vrot.slane %v733, 1
  %v3150 = vrot.slane %v729, 2
  %v3151 = vor.u32 %v3149, %v3150
  %v3152 = vsel %vm2981, %v3147, %v3151
  %v3153 = vrot.slane %v741, 1
  %v3154 = vrot.slane %v737, 2
  %v3155 = vor.u32 %v3153, %v3154
  %v3156 = vsel %vm2981, %v3151, %v3155
  %v3157 = vshrl.u32 %v378, 16
  %v3159 = vrot.slane %v3157, 1
  %v3160 = vrot.slane %v745, 2
  %v3161 = vor.u32 %v3159, %v3160
  %v3162 = vsel %vm2981, %v3155, %v3161
  %v3164 = vshrl.u32 %v379, 16
  %v3166 = vrot.slane %v3164, 1
  %v3167 = vshll.u32 %v379, 16
  %v3169 = vrot.slane %v3167, 2
  %v3170 = vor.u32 %v3166, %v3169
  %v3171 = vsel %vm2981, %v3161, %v3170
  %v3173 = vsel %vm749, %v2988, 0
  %v3176 = vsel %vm749, %v2992, 0
  %v3179 = vsel %vm749, %v2996, 0
  %v3182 = vsel %vm749, %v3000, 0
  %v3185 = vsel %vm749, %v3004, 0
  %v3188 = vsel %vm749, %v3008, 0
  %v3191 = vsel %vm749, %v3012, 0
  %v3194 = vsel %vm749, %v3016, 0
  %v3197 = vsel %vm749, %v3020, 0
  %v3200 = vsel %vm749, %v3024, 0
  %v3203 = vsel %vm749, %v3028, 0
  %v3206 = vsel %vm749, %v3032, 0
  %v3209 = vsel %vm749, %v3036, 0
  %v3212 = vsel %vm749, %v3040, 0
  %v3215 = vsel %vm749, %v3044, 0
  %v3218 = vsel %vm749, %v3048, 0
  %v3221 = vsel %vm749, %v3052, 0
  %v3224 = vsel %vm749, %v3056, 0
  %v3227 = vsel %vm749, %v3060, 0
  %v3230 = vsel %vm749, %v3064, 0
  %v3233 = vsel %vm749, %v3068, 0
  %v3236 = vsel %vm749, %v3072, 0
  %v3239 = vsel %vm749, %v3076, 0
  %v3242 = vsel %vm749, %v3080, 0
  %v3245 = vsel %vm749, %v3084, 0
  %v3248 = vsel %vm749, %v3088, 0
  %v3251 = vsel %vm749, %v3092, 0
  %v3254 = vsel %vm749, %v3096, 0
  %v3257 = vsel %vm749, %v3100, 0
  %v3260 = vsel %vm749, %v3104, 0
  %v3263 = vsel %vm749, %v3108, 0
  %v3266 = vsel %vm749, %v3112, 0
  %v3269 = vsel %vm749, %v3116, 0
  %v3272 = vsel %vm749, %v3120, 0
  %v3275 = vsel %vm749, %v3124, 0
  %v3278 = vsel %vm749, %v3128, 0
  %v3281 = vsel %vm749, %v3132, 0
  %v3284 = vsel %vm749, %v3136, 0
  %v3287 = vsel %vm749, %v3140, 0
  %v3290 = vsel %vm749, %v3144, 0
  %v3293 = vsel %vm749, %v3148, 0
  %v3296 = vsel %vm749, %v3152, 0
  %v3299 = vsel %vm749, %v3156, 0
  %v3302 = vsel %vm749, %v3162, 0
  %v3305 = vsel %vm749, %v3171, 0
  %v3308 = vand.u32 %v2980, %v888
  %3310 = vmatprep.subr.bf16.mxu0 0
  %3311 = vmatpush1.bf16.msra.mxu0 %v3308
  %3312 = vmatprep.subr.bf16.mxu0 0
  %3313 = vmatpush1.bf16.msra.mxu0 0
  %3314 = vmatprep.subr.bf16.mxu0 0
  %3315 = vmatpush1.bf16.msra.mxu0 0
  %3316 = vmatprep.subr.bf16.mxu0 0
  %3317 = vmatpush1.bf16.msra.mxu0 0
  %3318 = vmatprep.subr.bf16.mxu0 0
  %3319 = vmatpush1.bf16.msra.mxu0 0
  %3320 = vmatprep.subr.bf16.mxu0 0
  %3321 = vmatpush1.bf16.msra.mxu0 0
  %3322 = vmatprep.subr.bf16.mxu0 0
  %3323 = vmatpush1.bf16.msra.mxu0 0
  %3324 = vmatprep.subr.bf16.mxu0 0
  %3325 = vmatpush1.bf16.msra.mxu0 0
  %3326 = vmatprep.subr.bf16.mxu0 0
  %3327 = vmatpush1.bf16.msra.mxu0 0
  %3328 = vmatprep.subr.bf16.mxu0 0
  %3329 = vmatpush1.bf16.msra.mxu0 0
  %3330 = vmatprep.subr.bf16.mxu0 0
  %3331 = vmatpush1.bf16.msra.mxu0 0
  %3332 = vmatprep.subr.bf16.mxu0 0
  %3333 = vmatpush1.bf16.msra.mxu0 0
  %3334 = vmatprep.subr.bf16.mxu0 0
  %3335 = vmatpush1.bf16.msra.mxu0 0
  %3336 = vmatprep.subr.bf16.mxu0 0
  %3337 = vmatpush1.bf16.msra.mxu0 0
  %3338 = vmatprep.subr.bf16.mxu0 0
  %3339 = vmatpush1.bf16.msra.mxu0 0
  %3340 = vmatprep.subr.bf16.mxu0 0
  %3341 = vmatpush1.bf16.msra.mxu0 0
  %3342 = vmatprep.mubr.bf16.mxu0 0
  %3343 = vmatmul.mubr.bf16.gmra.mrb[0].mxu0 %v3173
  %v3344 = vpop.f32.mrb[0].mxu0
  %v3345 = vadd.f32 0.0, %v3344
  %v3346 = vpop.f32.mrb[0].mxu0
  %v3347 = vpop.f32.mrb[0].mxu0
  %v3348 = vadd.f32 0.0, %v3347
  %v3349 = vpop.f32.mrb[0].mxu0
  %3350 = vmatprep.mubr.bf16.mxu0 0
  %3351 = vmatmul.mubr.bf16.gmra.mrb[0].mxu0 %v3176
  %v3352 = vpop.f32.mrb[0].mxu0
  %v3353 = vadd.f32 0.0, %v3352
  %v3354 = vpop.f32.mrb[0].mxu0
  %v3355 = vpop.f32.mrb[0].mxu0
  %v3356 = vadd.f32 0.0, %v3355
  %v3357 = vpop.f32.mrb[0].mxu0
  %3358 = vmatprep.mubr.bf16.mxu0 0
  %3359 = vmatmul.mubr.bf16.gmra.mrb[0].mxu0 %v3179
  %v3360 = vpop.f32.mrb[0].mxu0
  %v3361 = vadd.f32 0.0, %v3360
  %v3362 = vpop.f32.mrb[0].mxu0
  %v3363 = vpop.f32.mrb[0].mxu0
  %v3364 = vadd.f32 0.0, %v3363
  %v3365 = vpop.f32.mrb[0].mxu0
  %3366 = vmatprep.mubr.bf16.mxu0 0
  %3367 = vmatmul.mubr.bf16.gmra.mrb[0].mxu0 %v3182
  %v3368 = vpop.f32.mrb[0].mxu0
  %v3369 = vadd.f32 0.0, %v3368
  %v3370 = vpop.f32.mrb[0].mxu0
  %v3371 = vpop.f32.mrb[0].mxu0
  %v3372 = vadd.f32 0.0, %v3371
  %v3373 = vpop.f32.mrb[0].mxu0
  %3374 = vmatprep.mubr.bf16.mxu0 0
  %3375 = vmatmul.mubr.bf16.gmra.mrb[0].mxu0 %v3185
  %v3376 = vpop.f32.mrb[0].mxu0
  %v3377 = vadd.f32 0.0, %v3376
  %v3378 = vpop.f32.mrb[0].mxu0
  %v3379 = vpop.f32.mrb[0].mxu0
  %v3380 = vadd.f32 0.0, %v3379
  %v3381 = vpop.f32.mrb[0].mxu0
  %3382 = vmatprep.mubr.bf16.mxu0 0
  %3383 = vmatmul.mubr.bf16.gmra.mrb[0].mxu0 %v3188
  %v3384 = vpop.f32.mrb[0].mxu0
  %v3385 = vadd.f32 0.0, %v3384
  %v3386 = vpop.f32.mrb[0].mxu0
  %v3387 = vpop.f32.mrb[0].mxu0
  %v3388 = vadd.f32 0.0, %v3387
  %v3389 = vpop.f32.mrb[0].mxu0
  %3390 = vmatprep.mubr.bf16.mxu0 0
  %3391 = vmatmul.mubr.bf16.gmra.mrb[0].mxu0 %v3191
  %v3392 = vpop.f32.mrb[0].mxu0
  %v3393 = vadd.f32 0.0, %v3392
  %v3394 = vpop.f32.mrb[0].mxu0
  %v3395 = vpop.f32.mrb[0].mxu0
  %v3396 = vadd.f32 0.0, %v3395
  %v3397 = vpop.f32.mrb[0].mxu0
  %3398 = vmatprep.mubr.bf16.mxu0 0
  %3399 = vmatmul.mubr.bf16.gmra.mrb[0].mxu0 %v3194
  %v3400 = vpop.f32.mrb[0].mxu0
  %v3401 = vadd.f32 0.0, %v3400
  %v3402 = vpop.f32.mrb[0].mxu0
  %v3403 = vpop.f32.mrb[0].mxu0
  %v3404 = vadd.f32 0.0, %v3403
  %v3405 = vpop.f32.mrb[0].mxu0
  %3406 = vmatprep.mubr.bf16.mxu0 0
  %3407 = vmatmul.mubr.bf16.gmra.mrb[0].mxu0 %v3197
  %v3408 = vpop.f32.mrb[0].mxu0
  %v3409 = vadd.f32 0.0, %v3408
  %v3410 = vpop.f32.mrb[0].mxu0
  %v3411 = vpop.f32.mrb[0].mxu0
  %v3412 = vadd.f32 0.0, %v3411
  %v3413 = vpop.f32.mrb[0].mxu0
  %3414 = vmatprep.mubr.bf16.mxu0 0
  %3415 = vmatmul.mubr.bf16.gmra.mrb[0].mxu0 %v3200
  %v3416 = vpop.f32.mrb[0].mxu0
  %v3417 = vadd.f32 0.0, %v3416
  %v3418 = vpop.f32.mrb[0].mxu0
  %v3419 = vpop.f32.mrb[0].mxu0
  %v3420 = vadd.f32 0.0, %v3419
  %v3421 = vpop.f32.mrb[0].mxu0
  %3422 = vmatprep.mubr.bf16.mxu0 0
  %3423 = vmatmul.mubr.bf16.gmra.mrb[0].mxu0 %v3203
  %v3424 = vpop.f32.mrb[0].mxu0
  %v3425 = vadd.f32 0.0, %v3424
  %v3426 = vpop.f32.mrb[0].mxu0
  %v3427 = vpop.f32.mrb[0].mxu0
  %v3428 = vadd.f32 0.0, %v3427
  %v3429 = vpop.f32.mrb[0].mxu0
  %3430 = vmatprep.mubr.bf16.mxu0 0
  %3431 = vmatmul.mubr.bf16.gmra.mrb[0].mxu0 %v3206
  %v3432 = vpop.f32.mrb[0].mxu0
  %v3433 = vadd.f32 0.0, %v3432
  %v3434 = vpop.f32.mrb[0].mxu0
  %v3435 = vpop.f32.mrb[0].mxu0
  %v3436 = vadd.f32 0.0, %v3435
  %v3437 = vpop.f32.mrb[0].mxu0
  %3438 = vmatprep.mubr.bf16.mxu0 0
  %3439 = vmatmul.mubr.bf16.gmra.mrb[0].mxu0 %v3209
  %v3440 = vpop.f32.mrb[0].mxu0
  %v3441 = vadd.f32 0.0, %v3440
  %v3442 = vpop.f32.mrb[0].mxu0
  %v3443 = vpop.f32.mrb[0].mxu0
  %v3444 = vadd.f32 0.0, %v3443
  %v3445 = vpop.f32.mrb[0].mxu0
  %3446 = vmatprep.mubr.bf16.mxu0 0
  %3447 = vmatmul.mubr.bf16.gmra.mrb[0].mxu0 %v3212
  %v3448 = vpop.f32.mrb[0].mxu0
  %v3449 = vadd.f32 0.0, %v3448
  %v3450 = vpop.f32.mrb[0].mxu0
  %v3451 = vpop.f32.mrb[0].mxu0
  %v3452 = vadd.f32 0.0, %v3451
  %v3453 = vpop.f32.mrb[0].mxu0
  %3454 = vmatprep.mubr.bf16.mxu0 0
  %3455 = vmatmul.mubr.bf16.gmra.mrb[0].mxu0 %v3215
  %v3456 = vpop.f32.mrb[0].mxu0
  %v3457 = vadd.f32 0.0, %v3456
  %v3458 = vpop.f32.mrb[0].mxu0
  %v3459 = vpop.f32.mrb[0].mxu0
  %v3460 = vadd.f32 0.0, %v3459
  %v3461 = vpop.f32.mrb[0].mxu0
  %3462 = vmatprep.mubr.bf16.mxu0 0
  %3463 = vmatmul.mubr.bf16.gmra.mrb[0].mxu0 %v3218
  %v3464 = vpop.f32.mrb[0].mxu0
  %v3465 = vadd.f32 0.0, %v3464
  %v3466 = vpop.f32.mrb[0].mxu0
  %v3467 = vpop.f32.mrb[0].mxu0
  %v3468 = vadd.f32 0.0, %v3467
  %v3469 = vpop.f32.mrb[0].mxu0
  %3470 = vmatprep.mubr.bf16.mxu0 0
  %3471 = vmatmul.mubr.bf16.gmra.mrb[0].mxu0 %v3221
  %v3472 = vpop.f32.mrb[0].mxu0
  %v3473 = vadd.f32 0.0, %v3472
  %v3474 = vpop.f32.mrb[0].mxu0
  %v3475 = vpop.f32.mrb[0].mxu0
  %v3476 = vadd.f32 0.0, %v3475
  %v3477 = vpop.f32.mrb[0].mxu0
  %3478 = vmatprep.mubr.bf16.mxu0 0
  %3479 = vmatmul.mubr.bf16.gmra.mrb[0].mxu0 %v3224
  %v3480 = vpop.f32.mrb[0].mxu0
  %v3481 = vadd.f32 0.0, %v3480
  %v3482 = vpop.f32.mrb[0].mxu0
  %v3483 = vpop.f32.mrb[0].mxu0
  %v3484 = vadd.f32 0.0, %v3483
  %v3485 = vpop.f32.mrb[0].mxu0
  %3486 = vmatprep.mubr.bf16.mxu0 0
  %3487 = vmatmul.mubr.bf16.gmra.mrb[0].mxu0 %v3227
  %v3488 = vpop.f32.mrb[0].mxu0
  %v3489 = vadd.f32 0.0, %v3488
  %v3490 = vpop.f32.mrb[0].mxu0
  %v3491 = vpop.f32.mrb[0].mxu0
  %v3492 = vadd.f32 0.0, %v3491
  %v3493 = vpop.f32.mrb[0].mxu0
  %3494 = vmatprep.mubr.bf16.mxu0 0
  %3495 = vmatmul.mubr.bf16.gmra.mrb[0].mxu0 %v3230
  %v3496 = vpop.f32.mrb[0].mxu0
  %v3497 = vadd.f32 0.0, %v3496
  %v3498 = vpop.f32.mrb[0].mxu0
  %v3499 = vpop.f32.mrb[0].mxu0
  %v3500 = vadd.f32 0.0, %v3499
  %v3501 = vpop.f32.mrb[0].mxu0
  %3502 = vmatprep.mubr.bf16.mxu0 0
  %3503 = vmatmul.mubr.bf16.gmra.mrb[0].mxu0 %v3233
  %v3504 = vpop.f32.mrb[0].mxu0
  %v3505 = vadd.f32 0.0, %v3504
  %v3506 = vpop.f32.mrb[0].mxu0
  %v3507 = vpop.f32.mrb[0].mxu0
  %v3508 = vadd.f32 0.0, %v3507
  %v3509 = vpop.f32.mrb[0].mxu0
  %3510 = vmatprep.mubr.bf16.mxu0 0
  %3511 = vmatmul.mubr.bf16.gmra.mrb[0].mxu0 %v3236
  %v3512 = vpop.f32.mrb[0].mxu0
  %v3513 = vadd.f32 0.0, %v3512
  %v3514 = vpop.f32.mrb[0].mxu0
  %v3515 = vpop.f32.mrb[0].mxu0
  %v3516 = vadd.f32 0.0, %v3515
  %v3517 = vpop.f32.mrb[0].mxu0
  %3518 = vmatprep.mubr.bf16.mxu0 0
  %3519 = vmatmul.mubr.bf16.gmra.mrb[0].mxu0 %v3239
  %v3520 = vpop.f32.mrb[0].mxu0
  %v3521 = vadd.f32 0.0, %v3520
  %v3522 = vpop.f32.mrb[0].mxu0
  %v3523 = vpop.f32.mrb[0].mxu0
  %v3524 = vadd.f32 0.0, %v3523
  %v3525 = vpop.f32.mrb[0].mxu0
  %3526 = vmatprep.mubr.bf16.mxu0 0
  %3527 = vmatmul.mubr.bf16.gmra.mrb[0].mxu0 %v3242
  %v3528 = vpop.f32.mrb[0].mxu0
  %v3529 = vadd.f32 0.0, %v3528
  %v3530 = vpop.f32.mrb[0].mxu0
  %v3531 = vpop.f32.mrb[0].mxu0
  %v3532 = vadd.f32 0.0, %v3531
  %v3533 = vpop.f32.mrb[0].mxu0
  %3534 = vmatprep.mubr.bf16.mxu0 0
  %3535 = vmatmul.mubr.bf16.gmra.mrb[0].mxu0 %v3245
  %v3536 = vpop.f32.mrb[0].mxu0
  %v3537 = vadd.f32 0.0, %v3536
  %v3538 = vpop.f32.mrb[0].mxu0
  %v3539 = vpop.f32.mrb[0].mxu0
  %v3540 = vadd.f32 0.0, %v3539
  %v3541 = vpop.f32.mrb[0].mxu0
  %3542 = vmatprep.mubr.bf16.mxu0 0
  %3543 = vmatmul.mubr.bf16.gmra.mrb[0].mxu0 %v3248
  %v3544 = vpop.f32.mrb[0].mxu0
  %v3545 = vadd.f32 0.0, %v3544
  %v3546 = vpop.f32.mrb[0].mxu0
  %v3547 = vpop.f32.mrb[0].mxu0
  %v3548 = vadd.f32 0.0, %v3547
  %v3549 = vpop.f32.mrb[0].mxu0
  %3550 = vmatprep.mubr.bf16.mxu0 0
  %3551 = vmatmul.mubr.bf16.gmra.mrb[0].mxu0 %v3251
  %v3552 = vpop.f32.mrb[0].mxu0
  %v3553 = vadd.f32 0.0, %v3552
  %v3554 = vpop.f32.mrb[0].mxu0
  %v3555 = vpop.f32.mrb[0].mxu0
  %v3556 = vadd.f32 0.0, %v3555
  %v3557 = vpop.f32.mrb[0].mxu0
  %3558 = vmatprep.mubr.bf16.mxu0 0
  %3559 = vmatmul.mubr.bf16.gmra.mrb[0].mxu0 %v3254
  %v3560 = vpop.f32.mrb[0].mxu0
  %v3561 = vadd.f32 0.0, %v3560
  %v3562 = vpop.f32.mrb[0].mxu0
  %v3563 = vpop.f32.mrb[0].mxu0
  %v3564 = vadd.f32 0.0, %v3563
  %v3565 = vpop.f32.mrb[0].mxu0
  %3566 = vmatprep.mubr.bf16.mxu0 0
  %3567 = vmatmul.mubr.bf16.gmra.mrb[0].mxu0 %v3257
  %v3568 = vpop.f32.mrb[0].mxu0
  %v3569 = vadd.f32 0.0, %v3568
  %v3570 = vpop.f32.mrb[0].mxu0
  %v3571 = vpop.f32.mrb[0].mxu0
  %v3572 = vadd.f32 0.0, %v3571
  %v3573 = vpop.f32.mrb[0].mxu0
  %3574 = vmatprep.mubr.bf16.mxu0 0
  %3575 = vmatmul.mubr.bf16.gmra.mrb[0].mxu0 %v3260
  %v3576 = vpop.f32.mrb[0].mxu0
  %v3577 = vadd.f32 0.0, %v3576
  %v3578 = vpop.f32.mrb[0].mxu0
  %v3579 = vpop.f32.mrb[0].mxu0
  %v3580 = vadd.f32 0.0, %v3579
  %v3581 = vpop.f32.mrb[0].mxu0
  %3582 = vmatprep.mubr.bf16.mxu0 0
  %3583 = vmatmul.mubr.bf16.gmra.mrb[0].mxu0 %v3263
  %v3584 = vpop.f32.mrb[0].mxu0
  %v3585 = vadd.f32 0.0, %v3584
  %v3586 = vpop.f32.mrb[0].mxu0
  %v3587 = vpop.f32.mrb[0].mxu0
  %v3588 = vadd.f32 0.0, %v3587
  %v3589 = vpop.f32.mrb[0].mxu0
  %3590 = vmatprep.mubr.bf16.mxu0 0
  %3591 = vmatmul.mubr.bf16.gmra.mrb[0].mxu0 %v3266
  %v3592 = vpop.f32.mrb[0].mxu0
  %v3593 = vadd.f32 0.0, %v3592
  %v3594 = vpop.f32.mrb[0].mxu0
  %v3595 = vpop.f32.mrb[0].mxu0
  %v3596 = vadd.f32 0.0, %v3595
  %v3597 = vpop.f32.mrb[0].mxu0
  %3598 = vmatprep.mubr.bf16.mxu0 0
  %3599 = vmatmul.mubr.bf16.gmra.mrb[0].mxu0 %v3269
  %v3600 = vpop.f32.mrb[0].mxu0
  %v3601 = vadd.f32 0.0, %v3600
  %v3602 = vpop.f32.mrb[0].mxu0
  %v3603 = vpop.f32.mrb[0].mxu0
  %v3604 = vadd.f32 0.0, %v3603
  %v3605 = vpop.f32.mrb[0].mxu0
  %3606 = vmatprep.mubr.bf16.mxu0 0
  %3607 = vmatmul.mubr.bf16.gmra.mrb[0].mxu0 %v3272
  %v3608 = vpop.f32.mrb[0].mxu0
  %v3609 = vadd.f32 0.0, %v3608
  %v3610 = vpop.f32.mrb[0].mxu0
  %v3611 = vpop.f32.mrb[0].mxu0
  %v3612 = vadd.f32 0.0, %v3611
  %v3613 = vpop.f32.mrb[0].mxu0
  %3614 = vmatprep.mubr.bf16.mxu0 0
  %3615 = vmatmul.mubr.bf16.gmra.mrb[0].mxu0 %v3275
  %v3616 = vpop.f32.mrb[0].mxu0
  %v3617 = vadd.f32 0.0, %v3616
  %v3618 = vpop.f32.mrb[0].mxu0
  %v3619 = vpop.f32.mrb[0].mxu0
  %v3620 = vadd.f32 0.0, %v3619
  %v3621 = vpop.f32.mrb[0].mxu0
  %3622 = vmatprep.mubr.bf16.mxu0 0
  %3623 = vmatmul.mubr.bf16.gmra.mrb[0].mxu0 %v3278
  %v3624 = vpop.f32.mrb[0].mxu0
  %v3625 = vadd.f32 0.0, %v3624
  %v3626 = vpop.f32.mrb[0].mxu0
  %v3627 = vpop.f32.mrb[0].mxu0
  %v3628 = vadd.f32 0.0, %v3627
  %v3629 = vpop.f32.mrb[0].mxu0
  %3630 = vmatprep.mubr.bf16.mxu0 0
  %3631 = vmatmul.mubr.bf16.gmra.mrb[0].mxu0 %v3281
  %v3632 = vpop.f32.mrb[0].mxu0
  %v3633 = vadd.f32 0.0, %v3632
  %v3634 = vpop.f32.mrb[0].mxu0
  %v3635 = vpop.f32.mrb[0].mxu0
  %v3636 = vadd.f32 0.0, %v3635
  %v3637 = vpop.f32.mrb[0].mxu0
  %3638 = vmatprep.mubr.bf16.mxu0 0
  %3639 = vmatmul.mubr.bf16.gmra.mrb[0].mxu0 %v3284
  %v3640 = vpop.f32.mrb[0].mxu0
  %v3641 = vadd.f32 0.0, %v3640
  %v3642 = vpop.f32.mrb[0].mxu0
  %v3643 = vpop.f32.mrb[0].mxu0
  %v3644 = vadd.f32 0.0, %v3643
  %v3645 = vpop.f32.mrb[0].mxu0
  %3646 = vmatprep.mubr.bf16.mxu0 0
  %3647 = vmatmul.mubr.bf16.gmra.mrb[0].mxu0 %v3287
  %v3648 = vpop.f32.mrb[0].mxu0
  %v3649 = vadd.f32 0.0, %v3648
  %v3650 = vpop.f32.mrb[0].mxu0
  %v3651 = vpop.f32.mrb[0].mxu0
  %v3652 = vadd.f32 0.0, %v3651
  %v3653 = vpop.f32.mrb[0].mxu0
  %3654 = vmatprep.mubr.bf16.mxu0 0
  %3655 = vmatmul.mubr.bf16.gmra.mrb[0].mxu0 %v3290
  %v3656 = vpop.f32.mrb[0].mxu0
  %v3657 = vadd.f32 0.0, %v3656
  %v3658 = vpop.f32.mrb[0].mxu0
  %v3659 = vpop.f32.mrb[0].mxu0
  %v3660 = vadd.f32 0.0, %v3659
  %v3661 = vpop.f32.mrb[0].mxu0
  %3662 = vmatprep.mubr.bf16.mxu0 0
  %3663 = vmatmul.mubr.bf16.gmra.mrb[0].mxu0 %v3293
  %v3664 = vpop.f32.mrb[0].mxu0
  %v3665 = vadd.f32 0.0, %v3664
  %v3666 = vpop.f32.mrb[0].mxu0
  %v3667 = vpop.f32.mrb[0].mxu0
  %v3668 = vadd.f32 0.0, %v3667
  %v3669 = vpop.f32.mrb[0].mxu0
  %3670 = vmatprep.mubr.bf16.mxu0 0
  %3671 = vmatmul.mubr.bf16.gmra.mrb[0].mxu0 %v3296
  %v3672 = vpop.f32.mrb[0].mxu0
  %v3673 = vadd.f32 0.0, %v3672
  %v3674 = vpop.f32.mrb[0].mxu0
  %v3675 = vpop.f32.mrb[0].mxu0
  %v3676 = vadd.f32 0.0, %v3675
  %v3677 = vpop.f32.mrb[0].mxu0
  %3678 = vmatprep.mubr.bf16.mxu0 0
  %3679 = vmatmul.mubr.bf16.gmra.mrb[0].mxu0 %v3299
  %v3680 = vpop.f32.mrb[0].mxu0
  %v3681 = vadd.f32 0.0, %v3680
  %v3682 = vpop.f32.mrb[0].mxu0
  %v3683 = vpop.f32.mrb[0].mxu0
  %v3684 = vadd.f32 0.0, %v3683
  %v3685 = vpop.f32.mrb[0].mxu0
  %3686 = vmatprep.mubr.bf16.mxu0 0
  %3687 = vmatmul.mubr.bf16.gmra.mrb[0].mxu0 %v3302
  %v3688 = vpop.f32.mrb[0].mxu0
  %v3689 = vadd.f32 0.0, %v3688
  %v3690 = vpop.f32.mrb[0].mxu0
  %v3691 = vpop.f32.mrb[0].mxu0
  %v3692 = vadd.f32 0.0, %v3691
  %v3693 = vpop.f32.mrb[0].mxu0
  %3694 = vmatprep.mubr.bf16.mxu0 0
  %3695 = vmatmul.mubr.bf16.gmra.mrb[0].mxu0 %v3305
  %v3696 = vpop.f32.mrb[0].mxu0
  %v3697 = vadd.f32 0.0, %v3696
  %v3698 = vpop.f32.mrb[0].mxu0
  %v3699 = vpop.f32.mrb[0].mxu0
  %v3700 = vadd.f32 0.0, %v3699
  %v3701 = vpop.f32.mrb[0].mxu0
  %3702 = vdwg.mxu0
  %v3703 = vadd.f32 %v2889, %v3345
  %v3704 = vadd.f32 %v2890, %v3348
  %v3705 = vadd.f32 %v2891, %v3353
  %v3706 = vadd.f32 %v2892, %v3356
  %v3707 = vadd.f32 %v2893, %v3361
  %v3708 = vadd.f32 %v2894, %v3364
  %v3709 = vadd.f32 %v2895, %v3369
  %v3710 = vadd.f32 %v2896, %v3372
  %v3711 = vadd.f32 %v2897, %v3377
  %v3712 = vadd.f32 %v2898, %v3380
  %v3713 = vadd.f32 %v2899, %v3385
  %v3714 = vadd.f32 %v2900, %v3388
  %v3715 = vadd.f32 %v2901, %v3393
  %v3716 = vadd.f32 %v2902, %v3396
  %v3717 = vadd.f32 %v2903, %v3401
  %v3718 = vadd.f32 %v2904, %v3404
  %v3719 = vadd.f32 %v2905, %v3409
  %v3720 = vadd.f32 %v2906, %v3412
  %v3721 = vadd.f32 %v2907, %v3417
  %v3722 = vadd.f32 %v2908, %v3420
  %v3723 = vadd.f32 %v2909, %v3425
  %v3724 = vadd.f32 %v2910, %v3428
  %v3725 = vadd.f32 %v2911, %v3433
  %v3726 = vadd.f32 %v2912, %v3436
  %v3727 = vadd.f32 %v2913, %v3441
  %v3728 = vadd.f32 %v2914, %v3444
  %v3729 = vadd.f32 %v2915, %v3449
  %v3730 = vadd.f32 %v2916, %v3452
  %v3731 = vadd.f32 %v2917, %v3457
  %v3732 = vadd.f32 %v2918, %v3460
  %v3733 = vadd.f32 %v2919, %v3465
  %v3734 = vadd.f32 %v2920, %v3468
  %v3735 = vadd.f32 %v2921, %v3473
  %v3736 = vadd.f32 %v2922, %v3476
  %v3737 = vadd.f32 %v2923, %v3481
  %v3738 = vadd.f32 %v2924, %v3484
  %v3739 = vadd.f32 %v2925, %v3489
  %v3740 = vadd.f32 %v2926, %v3492
  %v3741 = vadd.f32 %v2927, %v3497
  %v3742 = vadd.f32 %v2928, %v3500
  %v3743 = vadd.f32 %v2929, %v3505
  %v3744 = vadd.f32 %v2930, %v3508
  %v3745 = vadd.f32 %v2931, %v3513
  %v3746 = vadd.f32 %v2932, %v3516
  %v3747 = vadd.f32 %v2933, %v3521
  %v3748 = vadd.f32 %v2934, %v3524
  %v3749 = vadd.f32 %v2935, %v3529
  %v3750 = vadd.f32 %v2936, %v3532
  %v3751 = vadd.f32 %v2937, %v3537
  %v3752 = vadd.f32 %v2938, %v3540
  %v3753 = vadd.f32 %v2939, %v3545
  %v3754 = vadd.f32 %v2940, %v3548
  %v3755 = vadd.f32 %v2941, %v3553
  %v3756 = vadd.f32 %v2942, %v3556
  %v3757 = vadd.f32 %v2943, %v3561
  %v3758 = vadd.f32 %v2944, %v3564
  %v3759 = vadd.f32 %v2945, %v3569
  %v3760 = vadd.f32 %v2946, %v3572
  %v3761 = vadd.f32 %v2947, %v3577
  %v3762 = vadd.f32 %v2948, %v3580
  %v3763 = vadd.f32 %v2949, %v3585
  %v3764 = vadd.f32 %v2950, %v3588
  %v3765 = vadd.f32 %v2951, %v3593
  %v3766 = vadd.f32 %v2952, %v3596
  %v3767 = vadd.f32 %v2953, %v3601
  %v3768 = vadd.f32 %v2954, %v3604
  %v3769 = vadd.f32 %v2955, %v3609
  %v3770 = vadd.f32 %v2956, %v3612
  %v3771 = vadd.f32 %v2957, %v3617
  %v3772 = vadd.f32 %v2958, %v3620
  %v3773 = vadd.f32 %v2959, %v3625
  %v3774 = vadd.f32 %v2960, %v3628
  %v3775 = vadd.f32 %v2961, %v3633
  %v3776 = vadd.f32 %v2962, %v3636
  %v3777 = vadd.f32 %v2963, %v3641
  %v3778 = vadd.f32 %v2964, %v3644
  %v3779 = vadd.f32 %v2965, %v3649
  %v3780 = vadd.f32 %v2966, %v3652
  %v3781 = vadd.f32 %v2967, %v3657
  %v3782 = vadd.f32 %v2968, %v3660
  %v3783 = vadd.f32 %v2969, %v3665
  %v3784 = vadd.f32 %v2970, %v3668
  %v3785 = vadd.f32 %v2971, %v3673
  %v3786 = vadd.f32 %v2972, %v3676
  %v3787 = vadd.f32 %v2973, %v3681
  %v3788 = vadd.f32 %v2974, %v3684
  %v3789 = vadd.f32 %v2975, %v3689
  %v3790 = vadd.f32 %v2976, %v3692
  %v3791 = vadd.f32 %v2977, %v3697
  %v3792 = vadd.f32 %v2978, %v3700
  %s3793 = scalar_lea.vmem %s2, 10
  %v3794 = vld [vmem:[%s3793] sm:$0x3]
  %vm3795 = vcmask 1045504
  %v3796 = vrot.slane %v322, 2
  %v3797 = vrot.slane %v323, 2
  %v3798 = vsel %vm3795, %v3796, %v3797
  %v3799 = vrot.slane %v324, 2
  %v3800 = vsel %vm3795, %v3797, %v3799
  %v3801 = vrot.slane %v325, 2
  %v3802 = vsel %vm3795, %v3799, %v3801
  %v3803 = vrot.slane %v326, 2
  %v3804 = vsel %vm3795, %v3801, %v3803
  %v3805 = vrot.slane %v327, 2
  %v3806 = vsel %vm3795, %v3803, %v3805
  %v3807 = vrot.slane %v328, 2
  %v3808 = vsel %vm3795, %v3805, %v3807
  %v3809 = vrot.slane %v329, 2
  %v3810 = vsel %vm3795, %v3807, %v3809
  %v3811 = vrot.slane %v330, 2
  %v3812 = vsel %vm3795, %v3809, %v3811
  %v3813 = vrot.slane %v331, 2
  %v3814 = vsel %vm3795, %v3811, %v3813
  %v3815 = vrot.slane %v332, 2
  %v3816 = vsel %vm3795, %v3813, %v3815
  %v3817 = vrot.slane %v333, 2
  %v3818 = vsel %vm3795, %v3815, %v3817
  %v3819 = vrot.slane %v334, 2
  %v3820 = vsel %vm3795, %v3817, %v3819
  %v3821 = vrot.slane %v335, 2
  %v3822 = vsel %vm3795, %v3819, %v3821
  %v3823 = vrot.slane %v336, 2
  %v3824 = vsel %vm3795, %v3821, %v3823
  %v3825 = vrot.slane %v337, 2
  %v3826 = vsel %vm3795, %v3823, %v3825
  %v3827 = vrot.slane %v338, 2
  %v3828 = vsel %vm3795, %v3825, %v3827
  %v3829 = vrot.slane %v339, 2
  %v3830 = vsel %vm3795, %v3827, %v3829
  %v3831 = vrot.slane %v340, 2
  %v3832 = vsel %vm3795, %v3829, %v3831
  %v3833 = vrot.slane %v341, 2
  %v3834 = vsel %vm3795, %v3831, %v3833
  %v3835 = vrot.slane %v342, 2
  %v3836 = vsel %vm3795, %v3833, %v3835
  %v3837 = vrot.slane %v343, 2
  %v3838 = vsel %vm3795, %v3835, %v3837
  %v3839 = vrot.slane %v344, 2
  %v3840 = vsel %vm3795, %v3837, %v3839
  %v3841 = vrot.slane %v345, 2
  %v3842 = vsel %vm3795, %v3839, %v3841
  %v3843 = vrot.slane %v346, 2
  %v3844 = vsel %vm3795, %v3841, %v3843
  %v3845 = vrot.slane %v347, 2
  %v3846 = vsel %vm3795, %v3843, %v3845
  %v3847 = vrot.slane %v348, 2
  %v3848 = vsel %vm3795, %v3845, %v3847
  %v3849 = vrot.slane %v349, 2
  %v3850 = vsel %vm3795, %v3847, %v3849
  %v3851 = vrot.slane %v350, 2
  %v3852 = vsel %vm3795, %v3849, %v3851
  %v3853 = vrot.slane %v351, 2
  %v3854 = vsel %vm3795, %v3851, %v3853
  %v3855 = vrot.slane %v352, 2
  %v3856 = vsel %vm3795, %v3853, %v3855
  %v3857 = vrot.slane %v353, 2
  %v3858 = vsel %vm3795, %v3855, %v3857
  %v3859 = vrot.slane %v354, 2
  %v3860 = vsel %vm3795, %v3857, %v3859
  %v3861 = vrot.slane %v355, 2
  %v3862 = vsel %vm3795, %v3859, %v3861
  %v3863 = vrot.slane %v356, 2
  %v3864 = vsel %vm3795, %v3861, %v3863
  %v3865 = vrot.slane %v357, 2
  %v3866 = vsel %vm3795, %v3863, %v3865
  %v3867 = vrot.slane %v358, 2
  %v3868 = vsel %vm3795, %v3865, %v3867
  %v3869 = vrot.slane %v359, 2
  %v3870 = vsel %vm3795, %v3867, %v3869
  %v3871 = vrot.slane %v360, 2
  %v3872 = vsel %vm3795, %v3869, %v3871
  %v3873 = vrot.slane %v361, 2
  %v3874 = vsel %vm3795, %v3871, %v3873
  %v3875 = vrot.slane %v362, 2
  %v3876 = vsel %vm3795, %v3873, %v3875
  %v3877 = vrot.slane %v363, 2
  %v3878 = vsel %vm3795, %v3875, %v3877
  %v3879 = vrot.slane %v364, 2
  %v3880 = vsel %vm3795, %v3877, %v3879
  %v3881 = vrot.slane %v365, 2
  %v3882 = vsel %vm3795, %v3879, %v3881
  %v3883 = vrot.slane %v378, 2
  %v3884 = vsel %vm3795, %v3881, %v3883
  %v3885 = vrot.slane %v379, 2
  %v3886 = vsel %vm3795, %v3883, %v3885
  %v3888 = vsel %vm749, %v3798, 0
  %v3891 = vsel %vm749, %v3800, 0
  %v3894 = vsel %vm749, %v3802, 0
  %v3897 = vsel %vm749, %v3804, 0
  %v3900 = vsel %vm749, %v3806, 0
  %v3903 = vsel %vm749, %v3808, 0
  %v3906 = vsel %vm749, %v3810, 0
  %v3909 = vsel %vm749, %v3812, 0
  %v3912 = vsel %vm749, %v3814, 0
  %v3915 = vsel %vm749, %v3816, 0
  %v3918 = vsel %vm749, %v3818, 0
  %v3921 = vsel %vm749, %v3820, 0
  %v3924 = vsel %vm749, %v3822, 0
  %v3927 = vsel %vm749, %v3824, 0
  %v3930 = vsel %vm749, %v3826, 0
  %v3933 = vsel %vm749, %v3828, 0
  %v3936 = vsel %vm749, %v3830, 0
  %v3939 = vsel %vm749, %v3832, 0
  %v3942 = vsel %vm749, %v3834, 0
  %v3945 = vsel %vm749, %v3836, 0
  %v3948 = vsel %vm749, %v3838, 0
  %v3951 = vsel %vm749, %v3840, 0
  %v3954 = vsel %vm749, %v3842, 0
  %v3957 = vsel %vm749, %v3844, 0
  %v3960 = vsel %vm749, %v3846, 0
  %v3963 = vsel %vm749, %v3848, 0
  %v3966 = vsel %vm749, %v3850, 0
  %v3969 = vsel %vm749, %v3852, 0
  %v3972 = vsel %vm749, %v3854, 0
  %v3975 = vsel %vm749, %v3856, 0
  %v3978 = vsel %vm749, %v3858, 0
  %v3981 = vsel %vm749, %v3860, 0
  %v3984 = vsel %vm749, %v3862, 0
  %v3987 = vsel %vm749, %v3864, 0
  %v3990 = vsel %vm749, %v3866, 0
  %v3993 = vsel %vm749, %v3868, 0
  %v3996 = vsel %vm749, %v3870, 0
  %v3999 = vsel %vm749, %v3872, 0
  %v4002 = vsel %vm749, %v3874, 0
  %v4005 = vsel %vm749, %v3876, 0
  %v4008 = vsel %vm749, %v3878, 0
  %v4011 = vsel %vm749, %v3880, 0
  %v4014 = vsel %vm749, %v3882, 0
  %v4017 = vsel %vm749, %v3884, 0
  %v4020 = vsel %vm749, %v3886, 0
  %v4023 = vand.u32 %v3794, %v888
  %4025 = vmatprep.subr.bf16.mxu0 0
  %4026 = vmatpush1.bf16.msra.mxu0 %v4023
  %4027 = vmatprep.subr.bf16.mxu0 0
  %4028 = vmatpush1.bf16.msra.mxu0 0
  %4029 = vmatprep.subr.bf16.mxu0 0
  %4030 = vmatpush1.bf16.msra.mxu0 0
  %4031 = vmatprep.subr.bf16.mxu0 0
  %4032 = vmatpush1.bf16.msra.mxu0 0
  %4033 = vmatprep.subr.bf16.mxu0 0
  %4034 = vmatpush1.bf16.msra.mxu0 0
  %4035 = vmatprep.subr.bf16.mxu0 0
  %4036 = vmatpush1.bf16.msra.mxu0 0
  %4037 = vmatprep.subr.bf16.mxu0 0
  %4038 = vmatpush1.bf16.msra.mxu0 0
  %4039 = vmatprep.subr.bf16.mxu0 0
  %4040 = vmatpush1.bf16.msra.mxu0 0
  %4041 = vmatprep.subr.bf16.mxu0 0
  %4042 = vmatpush1.bf16.msra.mxu0 0
  %4043 = vmatprep.subr.bf16.mxu0 0
  %4044 = vmatpush1.bf16.msra.mxu0 0
  %4045 = vmatprep.subr.bf16.mxu0 0
  %4046 = vmatpush1.bf16.msra.mxu0 0
  %4047 = vmatprep.subr.bf16.mxu0 0
  %4048 = vmatpush1.bf16.msra.mxu0 0
  %4049 = vmatprep.subr.bf16.mxu0 0
  %4050 = vmatpush1.bf16.msra.mxu0 0
  %4051 = vmatprep.subr.bf16.mxu0 0
  %4052 = vmatpush1.bf16.msra.mxu0 0
  %4053 = vmatprep.subr.bf16.mxu0 0
  %4054 = vmatpush1.bf16.msra.mxu0 0
  %4055 = vmatprep.subr.bf16.mxu0 0
  %4056 = vmatpush1.bf16.msra.mxu0 0
  %4057 = vmatprep.mubr.bf16.mxu0 0
  %4058 = vmatmul.mubr.bf16.gmra.mrb[0].mxu0 %v3888
  %v4059 = vpop.f32.mrb[0].mxu0
  %v4060 = vadd.f32 0.0, %v4059
  %v4061 = vpop.f32.mrb[0].mxu0
  %v4062 = vpop.f32.mrb[0].mxu0
  %v4063 = vadd.f32 0.0, %v4062
  %v4064 = vpop.f32.mrb[0].mxu0
  %4065 = vmatprep.mubr.bf16.mxu0 0
  %4066 = vmatmul.mubr.bf16.gmra.mrb[0].mxu0 %v3891
  %v4067 = vpop.f32.mrb[0].mxu0
  %v4068 = vadd.f32 0.0, %v4067
  %v4069 = vpop.f32.mrb[0].mxu0
  %v4070 = vpop.f32.mrb[0].mxu0
  %v4071 = vadd.f32 0.0, %v4070
  %v4072 = vpop.f32.mrb[0].mxu0
  %4073 = vmatprep.mubr.bf16.mxu0 0
  %4074 = vmatmul.mubr.bf16.gmra.mrb[0].mxu0 %v3894
  %v4075 = vpop.f32.mrb[0].mxu0
  %v4076 = vadd.f32 0.0, %v4075
  %v4077 = vpop.f32.mrb[0].mxu0
  %v4078 = vpop.f32.mrb[0].mxu0
  %v4079 = vadd.f32 0.0, %v4078
  %v4080 = vpop.f32.mrb[0].mxu0
  %4081 = vmatprep.mubr.bf16.mxu0 0
  %4082 = vmatmul.mubr.bf16.gmra.mrb[0].mxu0 %v3897
  %v4083 = vpop.f32.mrb[0].mxu0
  %v4084 = vadd.f32 0.0, %v4083
  %v4085 = vpop.f32.mrb[0].mxu0
  %v4086 = vpop.f32.mrb[0].mxu0
  %v4087 = vadd.f32 0.0, %v4086
  %v4088 = vpop.f32.mrb[0].mxu0
  %4089 = vmatprep.mubr.bf16.mxu0 0
  %4090 = vmatmul.mubr.bf16.gmra.mrb[0].mxu0 %v3900
  %v4091 = vpop.f32.mrb[0].mxu0
  %v4092 = vadd.f32 0.0, %v4091
  %v4093 = vpop.f32.mrb[0].mxu0
  %v4094 = vpop.f32.mrb[0].mxu0
  %v4095 = vadd.f32 0.0, %v4094
  %v4096 = vpop.f32.mrb[0].mxu0
  %4097 = vmatprep.mubr.bf16.mxu0 0
  %4098 = vmatmul.mubr.bf16.gmra.mrb[0].mxu0 %v3903
  %v4099 = vpop.f32.mrb[0].mxu0
  %v4100 = vadd.f32 0.0, %v4099
  %v4101 = vpop.f32.mrb[0].mxu0
  %v4102 = vpop.f32.mrb[0].mxu0
  %v4103 = vadd.f32 0.0, %v4102
  %v4104 = vpop.f32.mrb[0].mxu0
  %4105 = vmatprep.mubr.bf16.mxu0 0
  %4106 = vmatmul.mubr.bf16.gmra.mrb[0].mxu0 %v3906
  %v4107 = vpop.f32.mrb[0].mxu0
  %v4108 = vadd.f32 0.0, %v4107
  %v4109 = vpop.f32.mrb[0].mxu0
  %v4110 = vpop.f32.mrb[0].mxu0
  %v4111 = vadd.f32 0.0, %v4110
  %v4112 = vpop.f32.mrb[0].mxu0
  %4113 = vmatprep.mubr.bf16.mxu0 0
  %4114 = vmatmul.mubr.bf16.gmra.mrb[0].mxu0 %v3909
  %v4115 = vpop.f32.mrb[0].mxu0
  %v4116 = vadd.f32 0.0, %v4115
  %v4117 = vpop.f32.mrb[0].mxu0
  %v4118 = vpop.f32.mrb[0].mxu0
  %v4119 = vadd.f32 0.0, %v4118
  %v4120 = vpop.f32.mrb[0].mxu0
  %4121 = vmatprep.mubr.bf16.mxu0 0
  %4122 = vmatmul.mubr.bf16.gmra.mrb[0].mxu0 %v3912
  %v4123 = vpop.f32.mrb[0].mxu0
  %v4124 = vadd.f32 0.0, %v4123
  %v4125 = vpop.f32.mrb[0].mxu0
  %v4126 = vpop.f32.mrb[0].mxu0
  %v4127 = vadd.f32 0.0, %v4126
  %v4128 = vpop.f32.mrb[0].mxu0
  %4129 = vmatprep.mubr.bf16.mxu0 0
  %4130 = vmatmul.mubr.bf16.gmra.mrb[0].mxu0 %v3915
  %v4131 = vpop.f32.mrb[0].mxu0
  %v4132 = vadd.f32 0.0, %v4131
  %v4133 = vpop.f32.mrb[0].mxu0
  %v4134 = vpop.f32.mrb[0].mxu0
  %v4135 = vadd.f32 0.0, %v4134
  %v4136 = vpop.f32.mrb[0].mxu0
  %4137 = vmatprep.mubr.bf16.mxu0 0
  %4138 = vmatmul.mubr.bf16.gmra.mrb[0].mxu0 %v3918
  %v4139 = vpop.f32.mrb[0].mxu0
  %v4140 = vadd.f32 0.0, %v4139
  %v4141 = vpop.f32.mrb[0].mxu0
  %v4142 = vpop.f32.mrb[0].mxu0
  %v4143 = vadd.f32 0.0, %v4142
  %v4144 = vpop.f32.mrb[0].mxu0
  %4145 = vmatprep.mubr.bf16.mxu0 0
  %4146 = vmatmul.mubr.bf16.gmra.mrb[0].mxu0 %v3921
  %v4147 = vpop.f32.mrb[0].mxu0
  %v4148 = vadd.f32 0.0, %v4147
  %v4149 = vpop.f32.mrb[0].mxu0
  %v4150 = vpop.f32.mrb[0].mxu0
  %v4151 = vadd.f32 0.0, %v4150
  %v4152 = vpop.f32.mrb[0].mxu0
  %4153 = vmatprep.mubr.bf16.mxu0 0
  %4154 = vmatmul.mubr.bf16.gmra.mrb[0].mxu0 %v3924
  %v4155 = vpop.f32.mrb[0].mxu0
  %v4156 = vadd.f32 0.0, %v4155
  %v4157 = vpop.f32.mrb[0].mxu0
  %v4158 = vpop.f32.mrb[0].mxu0
  %v4159 = vadd.f32 0.0, %v4158
  %v4160 = vpop.f32.mrb[0].mxu0
  %4161 = vmatprep.mubr.bf16.mxu0 0
  %4162 = vmatmul.mubr.bf16.gmra.mrb[0].mxu0 %v3927
  %v4163 = vpop.f32.mrb[0].mxu0
  %v4164 = vadd.f32 0.0, %v4163
  %v4165 = vpop.f32.mrb[0].mxu0
  %v4166 = vpop.f32.mrb[0].mxu0
  %v4167 = vadd.f32 0.0, %v4166
  %v4168 = vpop.f32.mrb[0].mxu0
  %4169 = vmatprep.mubr.bf16.mxu0 0
  %4170 = vmatmul.mubr.bf16.gmra.mrb[0].mxu0 %v3930
  %v4171 = vpop.f32.mrb[0].mxu0
  %v4172 = vadd.f32 0.0, %v4171
  %v4173 = vpop.f32.mrb[0].mxu0
  %v4174 = vpop.f32.mrb[0].mxu0
  %v4175 = vadd.f32 0.0, %v4174
  %v4176 = vpop.f32.mrb[0].mxu0
  %4177 = vmatprep.mubr.bf16.mxu0 0
  %4178 = vmatmul.mubr.bf16.gmra.mrb[0].mxu0 %v3933
  %v4179 = vpop.f32.mrb[0].mxu0
  %v4180 = vadd.f32 0.0, %v4179
  %v4181 = vpop.f32.mrb[0].mxu0
  %v4182 = vpop.f32.mrb[0].mxu0
  %v4183 = vadd.f32 0.0, %v4182
  %v4184 = vpop.f32.mrb[0].mxu0
  %4185 = vmatprep.mubr.bf16.mxu0 0
  %4186 = vmatmul.mubr.bf16.gmra.mrb[0].mxu0 %v3936
  %v4187 = vpop.f32.mrb[0].mxu0
  %v4188 = vadd.f32 0.0, %v4187
  %v4189 = vpop.f32.mrb[0].mxu0
  %v4190 = vpop.f32.mrb[0].mxu0
  %v4191 = vadd.f32 0.0, %v4190
  %v4192 = vpop.f32.mrb[0].mxu0
  %4193 = vmatprep.mubr.bf16.mxu0 0
  %4194 = vmatmul.mubr.bf16.gmra.mrb[0].mxu0 %v3939
  %v4195 = vpop.f32.mrb[0].mxu0
  %v4196 = vadd.f32 0.0, %v4195
  %v4197 = vpop.f32.mrb[0].mxu0
  %v4198 = vpop.f32.mrb[0].mxu0
  %v4199 = vadd.f32 0.0, %v4198
  %v4200 = vpop.f32.mrb[0].mxu0
  %4201 = vmatprep.mubr.bf16.mxu0 0
  %4202 = vmatmul.mubr.bf16.gmra.mrb[0].mxu0 %v3942
  %v4203 = vpop.f32.mrb[0].mxu0
  %v4204 = vadd.f32 0.0, %v4203
  %v4205 = vpop.f32.mrb[0].mxu0
  %v4206 = vpop.f32.mrb[0].mxu0
  %v4207 = vadd.f32 0.0, %v4206
  %v4208 = vpop.f32.mrb[0].mxu0
  %4209 = vmatprep.mubr.bf16.mxu0 0
  %4210 = vmatmul.mubr.bf16.gmra.mrb[0].mxu0 %v3945
  %v4211 = vpop.f32.mrb[0].mxu0
  %v4212 = vadd.f32 0.0, %v4211
  %v4213 = vpop.f32.mrb[0].mxu0
  %v4214 = vpop.f32.mrb[0].mxu0
  %v4215 = vadd.f32 0.0, %v4214
  %v4216 = vpop.f32.mrb[0].mxu0
  %4217 = vmatprep.mubr.bf16.mxu0 0
  %4218 = vmatmul.mubr.bf16.gmra.mrb[0].mxu0 %v3948
  %v4219 = vpop.f32.mrb[0].mxu0
  %v4220 = vadd.f32 0.0, %v4219
  %v4221 = vpop.f32.mrb[0].mxu0
  %v4222 = vpop.f32.mrb[0].mxu0
  %v4223 = vadd.f32 0.0, %v4222
  %v4224 = vpop.f32.mrb[0].mxu0
  %4225 = vmatprep.mubr.bf16.mxu0 0
  %4226 = vmatmul.mubr.bf16.gmra.mrb[0].mxu0 %v3951
  %v4227 = vpop.f32.mrb[0].mxu0
  %v4228 = vadd.f32 0.0, %v4227
  %v4229 = vpop.f32.mrb[0].mxu0
  %v4230 = vpop.f32.mrb[0].mxu0
  %v4231 = vadd.f32 0.0, %v4230
  %v4232 = vpop.f32.mrb[0].mxu0
  %4233 = vmatprep.mubr.bf16.mxu0 0
  %4234 = vmatmul.mubr.bf16.gmra.mrb[0].mxu0 %v3954
  %v4235 = vpop.f32.mrb[0].mxu0
  %v4236 = vadd.f32 0.0, %v4235
  %v4237 = vpop.f32.mrb[0].mxu0
  %v4238 = vpop.f32.mrb[0].mxu0
  %v4239 = vadd.f32 0.0, %v4238
  %v4240 = vpop.f32.mrb[0].mxu0
  %4241 = vmatprep.mubr.bf16.mxu0 0
  %4242 = vmatmul.mubr.bf16.gmra.mrb[0].mxu0 %v3957
  %v4243 = vpop.f32.mrb[0].mxu0
  %v4244 = vadd.f32 0.0, %v4243
  %v4245 = vpop.f32.mrb[0].mxu0
  %v4246 = vpop.f32.mrb[0].mxu0
  %v4247 = vadd.f32 0.0, %v4246
  %v4248 = vpop.f32.mrb[0].mxu0
  %4249 = vmatprep.mubr.bf16.mxu0 0
  %4250 = vmatmul.mubr.bf16.gmra.mrb[0].mxu0 %v3960
  %v4251 = vpop.f32.mrb[0].mxu0
  %v4252 = vadd.f32 0.0, %v4251
  %v4253 = vpop.f32.mrb[0].mxu0
  %v4254 = vpop.f32.mrb[0].mxu0
  %v4255 = vadd.f32 0.0, %v4254
  %v4256 = vpop.f32.mrb[0].mxu0
  %4257 = vmatprep.mubr.bf16.mxu0 0
  %4258 = vmatmul.mubr.bf16.gmra.mrb[0].mxu0 %v3963
  %v4259 = vpop.f32.mrb[0].mxu0
  %v4260 = vadd.f32 0.0, %v4259
  %v4261 = vpop.f32.mrb[0].mxu0
  %v4262 = vpop.f32.mrb[0].mxu0
  %v4263 = vadd.f32 0.0, %v4262
  %v4264 = vpop.f32.mrb[0].mxu0
  %4265 = vmatprep.mubr.bf16.mxu0 0
  %4266 = vmatmul.mubr.bf16.gmra.mrb[0].mxu0 %v3966
  %v4267 = vpop.f32.mrb[0].mxu0
  %v4268 = vadd.f32 0.0, %v4267
  %v4269 = vpop.f32.mrb[0].mxu0
  %v4270 = vpop.f32.mrb[0].mxu0
  %v4271 = vadd.f32 0.0, %v4270
  %v4272 = vpop.f32.mrb[0].mxu0
  %4273 = vmatprep.mubr.bf16.mxu0 0
  %4274 = vmatmul.mubr.bf16.gmra.mrb[0].mxu0 %v3969
  %v4275 = vpop.f32.mrb[0].mxu0
  %v4276 = vadd.f32 0.0, %v4275
  %v4277 = vpop.f32.mrb[0].mxu0
  %v4278 = vpop.f32.mrb[0].mxu0
  %v4279 = vadd.f32 0.0, %v4278
  %v4280 = vpop.f32.mrb[0].mxu0
  %4281 = vmatprep.mubr.bf16.mxu0 0
  %4282 = vmatmul.mubr.bf16.gmra.mrb[0].mxu0 %v3972
  %v4283 = vpop.f32.mrb[0].mxu0
  %v4284 = vadd.f32 0.0, %v4283
  %v4285 = vpop.f32.mrb[0].mxu0
  %v4286 = vpop.f32.mrb[0].mxu0
  %v4287 = vadd.f32 0.0, %v4286
  %v4288 = vpop.f32.mrb[0].mxu0
  %4289 = vmatprep.mubr.bf16.mxu0 0
  %4290 = vmatmul.mubr.bf16.gmra.mrb[0].mxu0 %v3975
  %v4291 = vpop.f32.mrb[0].mxu0
  %v4292 = vadd.f32 0.0, %v4291
  %v4293 = vpop.f32.mrb[0].mxu0
  %v4294 = vpop.f32.mrb[0].mxu0
  %v4295 = vadd.f32 0.0, %v4294
  %v4296 = vpop.f32.mrb[0].mxu0
  %4297 = vmatprep.mubr.bf16.mxu0 0
  %4298 = vmatmul.mubr.bf16.gmra.mrb[0].mxu0 %v3978
  %v4299 = vpop.f32.mrb[0].mxu0
  %v4300 = vadd.f32 0.0, %v4299
  %v4301 = vpop.f32.mrb[0].mxu0
  %v4302 = vpop.f32.mrb[0].mxu0
  %v4303 = vadd.f32 0.0, %v4302
  %v4304 = vpop.f32.mrb[0].mxu0
  %4305 = vmatprep.mubr.bf16.mxu0 0
  %4306 = vmatmul.mubr.bf16.gmra.mrb[0].mxu0 %v3981
  %v4307 = vpop.f32.mrb[0].mxu0
  %v4308 = vadd.f32 0.0, %v4307
  %v4309 = vpop.f32.mrb[0].mxu0
  %v4310 = vpop.f32.mrb[0].mxu0
  %v4311 = vadd.f32 0.0, %v4310
  %v4312 = vpop.f32.mrb[0].mxu0
  %4313 = vmatprep.mubr.bf16.mxu0 0
  %4314 = vmatmul.mubr.bf16.gmra.mrb[0].mxu0 %v3984
  %v4315 = vpop.f32.mrb[0].mxu0
  %v4316 = vadd.f32 0.0, %v4315
  %v4317 = vpop.f32.mrb[0].mxu0
  %v4318 = vpop.f32.mrb[0].mxu0
  %v4319 = vadd.f32 0.0, %v4318
  %v4320 = vpop.f32.mrb[0].mxu0
  %4321 = vmatprep.mubr.bf16.mxu0 0
  %4322 = vmatmul.mubr.bf16.gmra.mrb[0].mxu0 %v3987
  %v4323 = vpop.f32.mrb[0].mxu0
  %v4324 = vadd.f32 0.0, %v4323
  %v4325 = vpop.f32.mrb[0].mxu0
  %v4326 = vpop.f32.mrb[0].mxu0
  %v4327 = vadd.f32 0.0, %v4326
  %v4328 = vpop.f32.mrb[0].mxu0
  %4329 = vmatprep.mubr.bf16.mxu0 0
  %4330 = vmatmul.mubr.bf16.gmra.mrb[0].mxu0 %v3990
  %v4331 = vpop.f32.mrb[0].mxu0
  %v4332 = vadd.f32 0.0, %v4331
  %v4333 = vpop.f32.mrb[0].mxu0
  %v4334 = vpop.f32.mrb[0].mxu0
  %v4335 = vadd.f32 0.0, %v4334
  %v4336 = vpop.f32.mrb[0].mxu0
  %4337 = vmatprep.mubr.bf16.mxu0 0
  %4338 = vmatmul.mubr.bf16.gmra.mrb[0].mxu0 %v3993
  %v4339 = vpop.f32.mrb[0].mxu0
  %v4340 = vadd.f32 0.0, %v4339
  %v4341 = vpop.f32.mrb[0].mxu0
  %v4342 = vpop.f32.mrb[0].mxu0
  %v4343 = vadd.f32 0.0, %v4342
  %v4344 = vpop.f32.mrb[0].mxu0
  %4345 = vmatprep.mubr.bf16.mxu0 0
  %4346 = vmatmul.mubr.bf16.gmra.mrb[0].mxu0 %v3996
  %v4347 = vpop.f32.mrb[0].mxu0
  %v4348 = vadd.f32 0.0, %v4347
  %v4349 = vpop.f32.mrb[0].mxu0
  %v4350 = vpop.f32.mrb[0].mxu0
  %v4351 = vadd.f32 0.0, %v4350
  %v4352 = vpop.f32.mrb[0].mxu0
  %4353 = vmatprep.mubr.bf16.mxu0 0
  %4354 = vmatmul.mubr.bf16.gmra.mrb[0].mxu0 %v3999
  %v4355 = vpop.f32.mrb[0].mxu0
  %v4356 = vadd.f32 0.0, %v4355
  %v4357 = vpop.f32.mrb[0].mxu0
  %v4358 = vpop.f32.mrb[0].mxu0
  %v4359 = vadd.f32 0.0, %v4358
  %v4360 = vpop.f32.mrb[0].mxu0
  %4361 = vmatprep.mubr.bf16.mxu0 0
  %4362 = vmatmul.mubr.bf16.gmra.mrb[0].mxu0 %v4002
  %v4363 = vpop.f32.mrb[0].mxu0
  %v4364 = vadd.f32 0.0, %v4363
  %v4365 = vpop.f32.mrb[0].mxu0
  %v4366 = vpop.f32.mrb[0].mxu0
  %v4367 = vadd.f32 0.0, %v4366
  %v4368 = vpop.f32.mrb[0].mxu0
  %4369 = vmatprep.mubr.bf16.mxu0 0
  %4370 = vmatmul.mubr.bf16.gmra.mrb[0].mxu0 %v4005
  %v4371 = vpop.f32.mrb[0].mxu0
  %v4372 = vadd.f32 0.0, %v4371
  %v4373 = vpop.f32.mrb[0].mxu0
  %v4374 = vpop.f32.mrb[0].mxu0
  %v4375 = vadd.f32 0.0, %v4374
  %v4376 = vpop.f32.mrb[0].mxu0
  %4377 = vmatprep.mubr.bf16.mxu0 0
  %4378 = vmatmul.mubr.bf16.gmra.mrb[0].mxu0 %v4008
  %v4379 = vpop.f32.mrb[0].mxu0
  %v4380 = vadd.f32 0.0, %v4379
  %v4381 = vpop.f32.mrb[0].mxu0
  %v4382 = vpop.f32.mrb[0].mxu0
  %v4383 = vadd.f32 0.0, %v4382
  %v4384 = vpop.f32.mrb[0].mxu0
  %4385 = vmatprep.mubr.bf16.mxu0 0
  %4386 = vmatmul.mubr.bf16.gmra.mrb[0].mxu0 %v4011
  %v4387 = vpop.f32.mrb[0].mxu0
  %v4388 = vadd.f32 0.0, %v4387
  %v4389 = vpop.f32.mrb[0].mxu0
  %v4390 = vpop.f32.mrb[0].mxu0
  %v4391 = vadd.f32 0.0, %v4390
  %v4392 = vpop.f32.mrb[0].mxu0
  %4393 = vmatprep.mubr.bf16.mxu0 0
  %4394 = vmatmul.mubr.bf16.gmra.mrb[0].mxu0 %v4014
  %v4395 = vpop.f32.mrb[0].mxu0
  %v4396 = vadd.f32 0.0, %v4395
  %v4397 = vpop.f32.mrb[0].mxu0
  %v4398 = vpop.f32.mrb[0].mxu0
  %v4399 = vadd.f32 0.0, %v4398
  %v4400 = vpop.f32.mrb[0].mxu0
  %4401 = vmatprep.mubr.bf16.mxu0 0
  %4402 = vmatmul.mubr.bf16.gmra.mrb[0].mxu0 %v4017
  %v4403 = vpop.f32.mrb[0].mxu0
  %v4404 = vadd.f32 0.0, %v4403
  %v4405 = vpop.f32.mrb[0].mxu0
  %v4406 = vpop.f32.mrb[0].mxu0
  %v4407 = vadd.f32 0.0, %v4406
  %v4408 = vpop.f32.mrb[0].mxu0
  %4409 = vmatprep.mubr.bf16.mxu0 0
  %4410 = vmatmul.mubr.bf16.gmra.mrb[0].mxu0 %v4020
  %v4411 = vpop.f32.mrb[0].mxu0
  %v4412 = vadd.f32 0.0, %v4411
  %v4413 = vpop.f32.mrb[0].mxu0
  %v4414 = vpop.f32.mrb[0].mxu0
  %v4415 = vadd.f32 0.0, %v4414
  %v4416 = vpop.f32.mrb[0].mxu0
  %4417 = vdwg.mxu0
  %v4418 = vadd.f32 %v3703, %v4060
  %v4419 = vadd.f32 %v3704, %v4063
  %v4420 = vadd.f32 %v3705, %v4068
  %v4421 = vadd.f32 %v3706, %v4071
  %v4422 = vadd.f32 %v3707, %v4076
  %v4423 = vadd.f32 %v3708, %v4079
  %v4424 = vadd.f32 %v3709, %v4084
  %v4425 = vadd.f32 %v3710, %v4087
  %v4426 = vadd.f32 %v3711, %v4092
  %v4427 = vadd.f32 %v3712, %v4095
  %v4428 = vadd.f32 %v3713, %v4100
  %v4429 = vadd.f32 %v3714, %v4103
  %v4430 = vadd.f32 %v3715, %v4108
  %v4431 = vadd.f32 %v3716, %v4111
  %v4432 = vadd.f32 %v3717, %v4116
  %v4433 = vadd.f32 %v3718, %v4119
  %v4434 = vadd.f32 %v3719, %v4124
  %v4435 = vadd.f32 %v3720, %v4127
  %v4436 = vadd.f32 %v3721, %v4132
  %v4437 = vadd.f32 %v3722, %v4135
  %v4438 = vadd.f32 %v3723, %v4140
  %v4439 = vadd.f32 %v3724, %v4143
  %v4440 = vadd.f32 %v3725, %v4148
  %v4441 = vadd.f32 %v3726, %v4151
  %v4442 = vadd.f32 %v3727, %v4156
  %v4443 = vadd.f32 %v3728, %v4159
  %v4444 = vadd.f32 %v3729, %v4164
  %v4445 = vadd.f32 %v3730, %v4167
  %v4446 = vadd.f32 %v3731, %v4172
  %v4447 = vadd.f32 %v3732, %v4175
  %v4448 = vadd.f32 %v3733, %v4180
  %v4449 = vadd.f32 %v3734, %v4183
  %v4450 = vadd.f32 %v3735, %v4188
  %v4451 = vadd.f32 %v3736, %v4191
  %v4452 = vadd.f32 %v3737, %v4196
  %v4453 = vadd.f32 %v3738, %v4199
  %v4454 = vadd.f32 %v3739, %v4204
  %v4455 = vadd.f32 %v3740, %v4207
  %v4456 = vadd.f32 %v3741, %v4212
  %v4457 = vadd.f32 %v3742, %v4215
  %v4458 = vadd.f32 %v3743, %v4220
  %v4459 = vadd.f32 %v3744, %v4223
  %v4460 = vadd.f32 %v3745, %v4228
  %v4461 = vadd.f32 %v3746, %v4231
  %v4462 = vadd.f32 %v3747, %v4236
  %v4463 = vadd.f32 %v3748, %v4239
  %v4464 = vadd.f32 %v3749, %v4244
  %v4465 = vadd.f32 %v3750, %v4247
  %v4466 = vadd.f32 %v3751, %v4252
  %v4467 = vadd.f32 %v3752, %v4255
  %v4468 = vadd.f32 %v3753, %v4260
  %v4469 = vadd.f32 %v3754, %v4263
  %v4470 = vadd.f32 %v3755, %v4268
  %v4471 = vadd.f32 %v3756, %v4271
  %v4472 = vadd.f32 %v3757, %v4276
  %v4473 = vadd.f32 %v3758, %v4279
  %v4474 = vadd.f32 %v3759, %v4284
  %v4475 = vadd.f32 %v3760, %v4287
  %v4476 = vadd.f32 %v3761, %v4292
  %v4477 = vadd.f32 %v3762, %v4295
  %v4478 = vadd.f32 %v3763, %v4300
  %v4479 = vadd.f32 %v3764, %v4303
  %v4480 = vadd.f32 %v3765, %v4308
  %v4481 = vadd.f32 %v3766, %v4311
  %v4482 = vadd.f32 %v3767, %v4316
  %v4483 = vadd.f32 %v3768, %v4319
  %v4484 = vadd.f32 %v3769, %v4324
  %v4485 = vadd.f32 %v3770, %v4327
  %v4486 = vadd.f32 %v3771, %v4332
  %v4487 = vadd.f32 %v3772, %v4335
  %v4488 = vadd.f32 %v3773, %v4340
  %v4489 = vadd.f32 %v3774, %v4343
  %v4490 = vadd.f32 %v3775, %v4348
  %v4491 = vadd.f32 %v3776, %v4351
  %v4492 = vadd.f32 %v3777, %v4356
  %v4493 = vadd.f32 %v3778, %v4359
  %v4494 = vadd.f32 %v3779, %v4364
  %v4495 = vadd.f32 %v3780, %v4367
  %v4496 = vadd.f32 %v3781, %v4372
  %v4497 = vadd.f32 %v3782, %v4375
  %v4498 = vadd.f32 %v3783, %v4380
  %v4499 = vadd.f32 %v3784, %v4383
  %v4500 = vadd.f32 %v3785, %v4388
  %v4501 = vadd.f32 %v3786, %v4391
  %v4502 = vadd.f32 %v3787, %v4396
  %v4503 = vadd.f32 %v3788, %v4399
  %v4504 = vadd.f32 %v3789, %v4404
  %v4505 = vadd.f32 %v3790, %v4407
  %v4506 = vadd.f32 %v3791, %v4412
  %v4507 = vadd.f32 %v3792, %v4415
  %s4508 = scalar_lea.vmem %s2, 12
  %v4509 = vld [vmem:[%s4508] sm:$0x3]
  %v4510 = vrot.slane %v380, 2
  %v4511 = vsel %vm3795, %v3885, %v4510
  %v4513 = vsel %vm749, %v4511, 0
  %v4516 = vand.u32 %v4509, %v888
  %4518 = vmatprep.subr.bf16.mxu0 0
  %4519 = vmatpush1.bf16.msra.mxu0 %v4516
  %4520 = vmatprep.subr.bf16.mxu0 0
  %4521 = vmatpush1.bf16.msra.mxu0 0
  %4522 = vmatprep.subr.bf16.mxu0 0
  %4523 = vmatpush1.bf16.msra.mxu0 0
  %4524 = vmatprep.subr.bf16.mxu0 0
  %4525 = vmatpush1.bf16.msra.mxu0 0
  %4526 = vmatprep.subr.bf16.mxu0 0
  %4527 = vmatpush1.bf16.msra.mxu0 0
  %4528 = vmatprep.subr.bf16.mxu0 0
  %4529 = vmatpush1.bf16.msra.mxu0 0
  %4530 = vmatprep.subr.bf16.mxu0 0
  %4531 = vmatpush1.bf16.msra.mxu0 0
  %4532 = vmatprep.subr.bf16.mxu0 0
  %4533 = vmatpush1.bf16.msra.mxu0 0
  %4534 = vmatprep.subr.bf16.mxu0 0
  %4535 = vmatpush1.bf16.msra.mxu0 0
  %4536 = vmatprep.subr.bf16.mxu0 0
  %4537 = vmatpush1.bf16.msra.mxu0 0
  %4538 = vmatprep.subr.bf16.mxu0 0
  %4539 = vmatpush1.bf16.msra.mxu0 0
  %4540 = vmatprep.subr.bf16.mxu0 0
  %4541 = vmatpush1.bf16.msra.mxu0 0
  %4542 = vmatprep.subr.bf16.mxu0 0
  %4543 = vmatpush1.bf16.msra.mxu0 0
  %4544 = vmatprep.subr.bf16.mxu0 0
  %4545 = vmatpush1.bf16.msra.mxu0 0
  %4546 = vmatprep.subr.bf16.mxu0 0
  %4547 = vmatpush1.bf16.msra.mxu0 0
  %4548 = vmatprep.subr.bf16.mxu0 0
  %4549 = vmatpush1.bf16.msra.mxu0 0
  %4550 = vmatprep.mubr.bf16.mxu0 0
  %4551 = vmatmul.mubr.bf16.gmra.mrb[0].mxu0 %v3891
  %v4552 = vpop.f32.mrb[0].mxu0
  %v4553 = vadd.f32 0.0, %v4552
  %v4554 = vpop.f32.mrb[0].mxu0
  %v4555 = vpop.f32.mrb[0].mxu0
  %v4556 = vadd.f32 0.0, %v4555
  %v4557 = vpop.f32.mrb[0].mxu0
  %4558 = vmatprep.mubr.bf16.mxu0 0
  %4559 = vmatmul.mubr.bf16.gmra.mrb[0].mxu0 %v3894
  %v4560 = vpop.f32.mrb[0].mxu0
  %v4561 = vadd.f32 0.0, %v4560
  %v4562 = vpop.f32.mrb[0].mxu0
  %v4563 = vpop.f32.mrb[0].mxu0
  %v4564 = vadd.f32 0.0, %v4563
  %v4565 = vpop.f32.mrb[0].mxu0
  %4566 = vmatprep.mubr.bf16.mxu0 0
  %4567 = vmatmul.mubr.bf16.gmra.mrb[0].mxu0 %v3897
  %v4568 = vpop.f32.mrb[0].mxu0
  %v4569 = vadd.f32 0.0, %v4568
  %v4570 = vpop.f32.mrb[0].mxu0
  %v4571 = vpop.f32.mrb[0].mxu0
  %v4572 = vadd.f32 0.0, %v4571
  %v4573 = vpop.f32.mrb[0].mxu0
  %4574 = vmatprep.mubr.bf16.mxu0 0
  %4575 = vmatmul.mubr.bf16.gmra.mrb[0].mxu0 %v3900
  %v4576 = vpop.f32.mrb[0].mxu0
  %v4577 = vadd.f32 0.0, %v4576
  %v4578 = vpop.f32.mrb[0].mxu0
  %v4579 = vpop.f32.mrb[0].mxu0
  %v4580 = vadd.f32 0.0, %v4579
  %v4581 = vpop.f32.mrb[0].mxu0
  %4582 = vmatprep.mubr.bf16.mxu0 0
  %4583 = vmatmul.mubr.bf16.gmra.mrb[0].mxu0 %v3903
  %v4584 = vpop.f32.mrb[0].mxu0
  %v4585 = vadd.f32 0.0, %v4584
  %v4586 = vpop.f32.mrb[0].mxu0
  %v4587 = vpop.f32.mrb[0].mxu0
  %v4588 = vadd.f32 0.0, %v4587
  %v4589 = vpop.f32.mrb[0].mxu0
  %4590 = vmatprep.mubr.bf16.mxu0 0
  %4591 = vmatmul.mubr.bf16.gmra.mrb[0].mxu0 %v3906
  %v4592 = vpop.f32.mrb[0].mxu0
  %v4593 = vadd.f32 0.0, %v4592
  %v4594 = vpop.f32.mrb[0].mxu0
  %v4595 = vpop.f32.mrb[0].mxu0
  %v4596 = vadd.f32 0.0, %v4595
  %v4597 = vpop.f32.mrb[0].mxu0
  %4598 = vmatprep.mubr.bf16.mxu0 0
  %4599 = vmatmul.mubr.bf16.gmra.mrb[0].mxu0 %v3909
  %v4600 = vpop.f32.mrb[0].mxu0
  %v4601 = vadd.f32 0.0, %v4600
  %v4602 = vpop.f32.mrb[0].mxu0
  %v4603 = vpop.f32.mrb[0].mxu0
  %v4604 = vadd.f32 0.0, %v4603
  %v4605 = vpop.f32.mrb[0].mxu0
  %4606 = vmatprep.mubr.bf16.mxu0 0
  %4607 = vmatmul.mubr.bf16.gmra.mrb[0].mxu0 %v3912
  %v4608 = vpop.f32.mrb[0].mxu0
  %v4609 = vadd.f32 0.0, %v4608
  %v4610 = vpop.f32.mrb[0].mxu0
  %v4611 = vpop.f32.mrb[0].mxu0
  %v4612 = vadd.f32 0.0, %v4611
  %v4613 = vpop.f32.mrb[0].mxu0
  %4614 = vmatprep.mubr.bf16.mxu0 0
  %4615 = vmatmul.mubr.bf16.gmra.mrb[0].mxu0 %v3915
  %v4616 = vpop.f32.mrb[0].mxu0
  %v4617 = vadd.f32 0.0, %v4616
  %v4618 = vpop.f32.mrb[0].mxu0
  %v4619 = vpop.f32.mrb[0].mxu0
  %v4620 = vadd.f32 0.0, %v4619
  %v4621 = vpop.f32.mrb[0].mxu0
  %4622 = vmatprep.mubr.bf16.mxu0 0
  %4623 = vmatmul.mubr.bf16.gmra.mrb[0].mxu0 %v3918
  %v4624 = vpop.f32.mrb[0].mxu0
  %v4625 = vadd.f32 0.0, %v4624
  %v4626 = vpop.f32.mrb[0].mxu0
  %v4627 = vpop.f32.mrb[0].mxu0
  %v4628 = vadd.f32 0.0, %v4627
  %v4629 = vpop.f32.mrb[0].mxu0
  %4630 = vmatprep.mubr.bf16.mxu0 0
  %4631 = vmatmul.mubr.bf16.gmra.mrb[0].mxu0 %v3921
  %v4632 = vpop.f32.mrb[0].mxu0
  %v4633 = vadd.f32 0.0, %v4632
  %v4634 = vpop.f32.mrb[0].mxu0
  %v4635 = vpop.f32.mrb[0].mxu0
  %v4636 = vadd.f32 0.0, %v4635
  %v4637 = vpop.f32.mrb[0].mxu0
  %4638 = vmatprep.mubr.bf16.mxu0 0
  %4639 = vmatmul.mubr.bf16.gmra.mrb[0].mxu0 %v3924
  %v4640 = vpop.f32.mrb[0].mxu0
  %v4641 = vadd.f32 0.0, %v4640
  %v4642 = vpop.f32.mrb[0].mxu0
  %v4643 = vpop.f32.mrb[0].mxu0
  %v4644 = vadd.f32 0.0, %v4643
  %v4645 = vpop.f32.mrb[0].mxu0
  %4646 = vmatprep.mubr.bf16.mxu0 0
  %4647 = vmatmul.mubr.bf16.gmra.mrb[0].mxu0 %v3927
  %v4648 = vpop.f32.mrb[0].mxu0
  %v4649 = vadd.f32 0.0, %v4648
  %v4650 = vpop.f32.mrb[0].mxu0
  %v4651 = vpop.f32.mrb[0].mxu0
  %v4652 = vadd.f32 0.0, %v4651
  %v4653 = vpop.f32.mrb[0].mxu0
  %4654 = vmatprep.mubr.bf16.mxu0 0
  %4655 = vmatmul.mubr.bf16.gmra.mrb[0].mxu0 %v3930
  %v4656 = vpop.f32.mrb[0].mxu0
  %v4657 = vadd.f32 0.0, %v4656
  %v4658 = vpop.f32.mrb[0].mxu0
  %v4659 = vpop.f32.mrb[0].mxu0
  %v4660 = vadd.f32 0.0, %v4659
  %v4661 = vpop.f32.mrb[0].mxu0
  %4662 = vmatprep.mubr.bf16.mxu0 0
  %4663 = vmatmul.mubr.bf16.gmra.mrb[0].mxu0 %v3933
  %v4664 = vpop.f32.mrb[0].mxu0
  %v4665 = vadd.f32 0.0, %v4664
  %v4666 = vpop.f32.mrb[0].mxu0
  %v4667 = vpop.f32.mrb[0].mxu0
  %v4668 = vadd.f32 0.0, %v4667
  %v4669 = vpop.f32.mrb[0].mxu0
  %4670 = vmatprep.mubr.bf16.mxu0 0
  %4671 = vmatmul.mubr.bf16.gmra.mrb[0].mxu0 %v3936
  %v4672 = vpop.f32.mrb[0].mxu0
  %v4673 = vadd.f32 0.0, %v4672
  %v4674 = vpop.f32.mrb[0].mxu0
  %v4675 = vpop.f32.mrb[0].mxu0
  %v4676 = vadd.f32 0.0, %v4675
  %v4677 = vpop.f32.mrb[0].mxu0
  %4678 = vmatprep.mubr.bf16.mxu0 0
  %4679 = vmatmul.mubr.bf16.gmra.mrb[0].mxu0 %v3939
  %v4680 = vpop.f32.mrb[0].mxu0
  %v4681 = vadd.f32 0.0, %v4680
  %v4682 = vpop.f32.mrb[0].mxu0
  %v4683 = vpop.f32.mrb[0].mxu0
  %v4684 = vadd.f32 0.0, %v4683
  %v4685 = vpop.f32.mrb[0].mxu0
  %4686 = vmatprep.mubr.bf16.mxu0 0
  %4687 = vmatmul.mubr.bf16.gmra.mrb[0].mxu0 %v3942
  %v4688 = vpop.f32.mrb[0].mxu0
  %v4689 = vadd.f32 0.0, %v4688
  %v4690 = vpop.f32.mrb[0].mxu0
  %v4691 = vpop.f32.mrb[0].mxu0
  %v4692 = vadd.f32 0.0, %v4691
  %v4693 = vpop.f32.mrb[0].mxu0
  %4694 = vmatprep.mubr.bf16.mxu0 0
  %4695 = vmatmul.mubr.bf16.gmra.mrb[0].mxu0 %v3945
  %v4696 = vpop.f32.mrb[0].mxu0
  %v4697 = vadd.f32 0.0, %v4696
  %v4698 = vpop.f32.mrb[0].mxu0
  %v4699 = vpop.f32.mrb[0].mxu0
  %v4700 = vadd.f32 0.0, %v4699
  %v4701 = vpop.f32.mrb[0].mxu0
  %4702 = vmatprep.mubr.bf16.mxu0 0
  %4703 = vmatmul.mubr.bf16.gmra.mrb[0].mxu0 %v3948
  %v4704 = vpop.f32.mrb[0].mxu0
  %v4705 = vadd.f32 0.0, %v4704
  %v4706 = vpop.f32.mrb[0].mxu0
  %v4707 = vpop.f32.mrb[0].mxu0
  %v4708 = vadd.f32 0.0, %v4707
  %v4709 = vpop.f32.mrb[0].mxu0
  %4710 = vmatprep.mubr.bf16.mxu0 0
  %4711 = vmatmul.mubr.bf16.gmra.mrb[0].mxu0 %v3951
  %v4712 = vpop.f32.mrb[0].mxu0
  %v4713 = vadd.f32 0.0, %v4712
  %v4714 = vpop.f32.mrb[0].mxu0
  %v4715 = vpop.f32.mrb[0].mxu0
  %v4716 = vadd.f32 0.0, %v4715
  %v4717 = vpop.f32.mrb[0].mxu0
  %4718 = vmatprep.mubr.bf16.mxu0 0
  %4719 = vmatmul.mubr.bf16.gmra.mrb[0].mxu0 %v3954
  %v4720 = vpop.f32.mrb[0].mxu0
  %v4721 = vadd.f32 0.0, %v4720
  %v4722 = vpop.f32.mrb[0].mxu0
  %v4723 = vpop.f32.mrb[0].mxu0
  %v4724 = vadd.f32 0.0, %v4723
  %v4725 = vpop.f32.mrb[0].mxu0
  %4726 = vmatprep.mubr.bf16.mxu0 0
  %4727 = vmatmul.mubr.bf16.gmra.mrb[0].mxu0 %v3957
  %v4728 = vpop.f32.mrb[0].mxu0
  %v4729 = vadd.f32 0.0, %v4728
  %v4730 = vpop.f32.mrb[0].mxu0
  %v4731 = vpop.f32.mrb[0].mxu0
  %v4732 = vadd.f32 0.0, %v4731
  %v4733 = vpop.f32.mrb[0].mxu0
  %4734 = vmatprep.mubr.bf16.mxu0 0
  %4735 = vmatmul.mubr.bf16.gmra.mrb[0].mxu0 %v3960
  %v4736 = vpop.f32.mrb[0].mxu0
  %v4737 = vadd.f32 0.0, %v4736
  %v4738 = vpop.f32.mrb[0].mxu0
  %v4739 = vpop.f32.mrb[0].mxu0
  %v4740 = vadd.f32 0.0, %v4739
  %v4741 = vpop.f32.mrb[0].mxu0
  %4742 = vmatprep.mubr.bf16.mxu0 0
  %4743 = vmatmul.mubr.bf16.gmra.mrb[0].mxu0 %v3963
  %v4744 = vpop.f32.mrb[0].mxu0
  %v4745 = vadd.f32 0.0, %v4744
  %v4746 = vpop.f32.mrb[0].mxu0
  %v4747 = vpop.f32.mrb[0].mxu0
  %v4748 = vadd.f32 0.0, %v4747
  %v4749 = vpop.f32.mrb[0].mxu0
  %4750 = vmatprep.mubr.bf16.mxu0 0
  %4751 = vmatmul.mubr.bf16.gmra.mrb[0].mxu0 %v3966
  %v4752 = vpop.f32.mrb[0].mxu0
  %v4753 = vadd.f32 0.0, %v4752
  %v4754 = vpop.f32.mrb[0].mxu0
  %v4755 = vpop.f32.mrb[0].mxu0
  %v4756 = vadd.f32 0.0, %v4755
  %v4757 = vpop.f32.mrb[0].mxu0
  %4758 = vmatprep.mubr.bf16.mxu0 0
  %4759 = vmatmul.mubr.bf16.gmra.mrb[0].mxu0 %v3969
  %v4760 = vpop.f32.mrb[0].mxu0
  %v4761 = vadd.f32 0.0, %v4760
  %v4762 = vpop.f32.mrb[0].mxu0
  %v4763 = vpop.f32.mrb[0].mxu0
  %v4764 = vadd.f32 0.0, %v4763
  %v4765 = vpop.f32.mrb[0].mxu0
  %4766 = vmatprep.mubr.bf16.mxu0 0
  %4767 = vmatmul.mubr.bf16.gmra.mrb[0].mxu0 %v3972
  %v4768 = vpop.f32.mrb[0].mxu0
  %v4769 = vadd.f32 0.0, %v4768
  %v4770 = vpop.f32.mrb[0].mxu0
  %v4771 = vpop.f32.mrb[0].mxu0
  %v4772 = vadd.f32 0.0, %v4771
  %v4773 = vpop.f32.mrb[0].mxu0
  %4774 = vmatprep.mubr.bf16.mxu0 0
  %4775 = vmatmul.mubr.bf16.gmra.mrb[0].mxu0 %v3975
  %v4776 = vpop.f32.mrb[0].mxu0
  %v4777 = vadd.f32 0.0, %v4776
  %v4778 = vpop.f32.mrb[0].mxu0
  %v4779 = vpop.f32.mrb[0].mxu0
  %v4780 = vadd.f32 0.0, %v4779
  %v4781 = vpop.f32.mrb[0].mxu0
  %4782 = vmatprep.mubr.bf16.mxu0 0
  %4783 = vmatmul.mubr.bf16.gmra.mrb[0].mxu0 %v3978
  %v4784 = vpop.f32.mrb[0].mxu0
  %v4785 = vadd.f32 0.0, %v4784
  %v4786 = vpop.f32.mrb[0].mxu0
  %v4787 = vpop.f32.mrb[0].mxu0
  %v4788 = vadd.f32 0.0, %v4787
  %v4789 = vpop.f32.mrb[0].mxu0
  %4790 = vmatprep.mubr.bf16.mxu0 0
  %4791 = vmatmul.mubr.bf16.gmra.mrb[0].mxu0 %v3981
  %v4792 = vpop.f32.mrb[0].mxu0
  %v4793 = vadd.f32 0.0, %v4792
  %v4794 = vpop.f32.mrb[0].mxu0
  %v4795 = vpop.f32.mrb[0].mxu0
  %v4796 = vadd.f32 0.0, %v4795
  %v4797 = vpop.f32.mrb[0].mxu0
  %4798 = vmatprep.mubr.bf16.mxu0 0
  %4799 = vmatmul.mubr.bf16.gmra.mrb[0].mxu0 %v3984
  %v4800 = vpop.f32.mrb[0].mxu0
  %v4801 = vadd.f32 0.0, %v4800
  %v4802 = vpop.f32.mrb[0].mxu0
  %v4803 = vpop.f32.mrb[0].mxu0
  %v4804 = vadd.f32 0.0, %v4803
  %v4805 = vpop.f32.mrb[0].mxu0
  %4806 = vmatprep.mubr.bf16.mxu0 0
  %4807 = vmatmul.mubr.bf16.gmra.mrb[0].mxu0 %v3987
  %v4808 = vpop.f32.mrb[0].mxu0
  %v4809 = vadd.f32 0.0, %v4808
  %v4810 = vpop.f32.mrb[0].mxu0
  %v4811 = vpop.f32.mrb[0].mxu0
  %v4812 = vadd.f32 0.0, %v4811
  %v4813 = vpop.f32.mrb[0].mxu0
  %4814 = vmatprep.mubr.bf16.mxu0 0
  %4815 = vmatmul.mubr.bf16.gmra.mrb[0].mxu0 %v3990
  %v4816 = vpop.f32.mrb[0].mxu0
  %v4817 = vadd.f32 0.0, %v4816
  %v4818 = vpop.f32.mrb[0].mxu0
  %v4819 = vpop.f32.mrb[0].mxu0
  %v4820 = vadd.f32 0.0, %v4819
  %v4821 = vpop.f32.mrb[0].mxu0
  %4822 = vmatprep.mubr.bf16.mxu0 0
  %4823 = vmatmul.mubr.bf16.gmra.mrb[0].mxu0 %v3993
  %v4824 = vpop.f32.mrb[0].mxu0
  %v4825 = vadd.f32 0.0, %v4824
  %v4826 = vpop.f32.mrb[0].mxu0
  %v4827 = vpop.f32.mrb[0].mxu0
  %v4828 = vadd.f32 0.0, %v4827
  %v4829 = vpop.f32.mrb[0].mxu0
  %4830 = vmatprep.mubr.bf16.mxu0 0
  %4831 = vmatmul.mubr.bf16.gmra.mrb[0].mxu0 %v3996
  %v4832 = vpop.f32.mrb[0].mxu0
  %v4833 = vadd.f32 0.0, %v4832
  %v4834 = vpop.f32.mrb[0].mxu0
  %v4835 = vpop.f32.mrb[0].mxu0
  %v4836 = vadd.f32 0.0, %v4835
  %v4837 = vpop.f32.mrb[0].mxu0
  %4838 = vmatprep.mubr.bf16.mxu0 0
  %4839 = vmatmul.mubr.bf16.gmra.mrb[0].mxu0 %v3999
  %v4840 = vpop.f32.mrb[0].mxu0
  %v4841 = vadd.f32 0.0, %v4840
  %v4842 = vpop.f32.mrb[0].mxu0
  %v4843 = vpop.f32.mrb[0].mxu0
  %v4844 = vadd.f32 0.0, %v4843
  %v4845 = vpop.f32.mrb[0].mxu0
  %4846 = vmatprep.mubr.bf16.mxu0 0
  %4847 = vmatmul.mubr.bf16.gmra.mrb[0].mxu0 %v4002
  %v4848 = vpop.f32.mrb[0].mxu0
  %v4849 = vadd.f32 0.0, %v4848
  %v4850 = vpop.f32.mrb[0].mxu0
  %v4851 = vpop.f32.mrb[0].mxu0
  %v4852 = vadd.f32 0.0, %v4851
  %v4853 = vpop.f32.mrb[0].mxu0
  %4854 = vmatprep.mubr.bf16.mxu0 0
  %4855 = vmatmul.mubr.bf16.gmra.mrb[0].mxu0 %v4005
  %v4856 = vpop.f32.mrb[0].mxu0
  %v4857 = vadd.f32 0.0, %v4856
  %v4858 = vpop.f32.mrb[0].mxu0
  %v4859 = vpop.f32.mrb[0].mxu0
  %v4860 = vadd.f32 0.0, %v4859
  %v4861 = vpop.f32.mrb[0].mxu0
  %4862 = vmatprep.mubr.bf16.mxu0 0
  %4863 = vmatmul.mubr.bf16.gmra.mrb[0].mxu0 %v4008
  %v4864 = vpop.f32.mrb[0].mxu0
  %v4865 = vadd.f32 0.0, %v4864
  %v4866 = vpop.f32.mrb[0].mxu0
  %v4867 = vpop.f32.mrb[0].mxu0
  %v4868 = vadd.f32 0.0, %v4867
  %v4869 = vpop.f32.mrb[0].mxu0
  %4870 = vmatprep.mubr.bf16.mxu0 0
  %4871 = vmatmul.mubr.bf16.gmra.mrb[0].mxu0 %v4011
  %v4872 = vpop.f32.mrb[0].mxu0
  %v4873 = vadd.f32 0.0, %v4872
  %v4874 = vpop.f32.mrb[0].mxu0
  %v4875 = vpop.f32.mrb[0].mxu0
  %v4876 = vadd.f32 0.0, %v4875
  %v4877 = vpop.f32.mrb[0].mxu0
  %4878 = vmatprep.mubr.bf16.mxu0 0
  %4879 = vmatmul.mubr.bf16.gmra.mrb[0].mxu0 %v4014
  %v4880 = vpop.f32.mrb[0].mxu0
  %v4881 = vadd.f32 0.0, %v4880
  %v4882 = vpop.f32.mrb[0].mxu0
  %v4883 = vpop.f32.mrb[0].mxu0
  %v4884 = vadd.f32 0.0, %v4883
  %v4885 = vpop.f32.mrb[0].mxu0
  %4886 = vmatprep.mubr.bf16.mxu0 0
  %4887 = vmatmul.mubr.bf16.gmra.mrb[0].mxu0 %v4017
  %v4888 = vpop.f32.mrb[0].mxu0
  %v4889 = vadd.f32 0.0, %v4888
  %v4890 = vpop.f32.mrb[0].mxu0
  %v4891 = vpop.f32.mrb[0].mxu0
  %v4892 = vadd.f32 0.0, %v4891
  %v4893 = vpop.f32.mrb[0].mxu0
  %4894 = vmatprep.mubr.bf16.mxu0 0
  %4895 = vmatmul.mubr.bf16.gmra.mrb[0].mxu0 %v4020
  %v4896 = vpop.f32.mrb[0].mxu0
  %v4897 = vadd.f32 0.0, %v4896
  %v4898 = vpop.f32.mrb[0].mxu0
  %v4899 = vpop.f32.mrb[0].mxu0
  %v4900 = vadd.f32 0.0, %v4899
  %v4901 = vpop.f32.mrb[0].mxu0
  %4902 = vmatprep.mubr.bf16.mxu0 0
  %4903 = vmatmul.mubr.bf16.gmra.mrb[0].mxu0 %v4513
  %v4904 = vpop.f32.mrb[0].mxu0
  %v4905 = vadd.f32 0.0, %v4904
  %v4906 = vpop.f32.mrb[0].mxu0
  %v4907 = vpop.f32.mrb[0].mxu0
  %v4908 = vadd.f32 0.0, %v4907
  %v4909 = vpop.f32.mrb[0].mxu0
  %4910 = vdwg.mxu0
  %v4911 = vadd.f32 %v4418, %v4553
  %v4912 = vadd.f32 %v4419, %v4556
  %v4913 = vadd.f32 %v4420, %v4561
  %v4914 = vadd.f32 %v4421, %v4564
  %v4915 = vadd.f32 %v4422, %v4569
  %v4916 = vadd.f32 %v4423, %v4572
  %v4917 = vadd.f32 %v4424, %v4577
  %v4918 = vadd.f32 %v4425, %v4580
  %v4919 = vadd.f32 %v4426, %v4585
  %v4920 = vadd.f32 %v4427, %v4588
  %v4921 = vadd.f32 %v4428, %v4593
  %v4922 = vadd.f32 %v4429, %v4596
  %v4923 = vadd.f32 %v4430, %v4601
  %v4924 = vadd.f32 %v4431, %v4604
  %v4925 = vadd.f32 %v4432, %v4609
  %v4926 = vadd.f32 %v4433, %v4612
  %v4927 = vadd.f32 %v4434, %v4617
  %v4928 = vadd.f32 %v4435, %v4620
  %v4929 = vadd.f32 %v4436, %v4625
  %v4930 = vadd.f32 %v4437, %v4628
  %v4931 = vadd.f32 %v4438, %v4633
  %v4932 = vadd.f32 %v4439, %v4636
  %v4933 = vadd.f32 %v4440, %v4641
  %v4934 = vadd.f32 %v4441, %v4644
  %v4935 = vadd.f32 %v4442, %v4649
  %v4936 = vadd.f32 %v4443, %v4652
  %v4937 = vadd.f32 %v4444, %v4657
  %v4938 = vadd.f32 %v4445, %v4660
  %v4939 = vadd.f32 %v4446, %v4665
  %v4940 = vadd.f32 %v4447, %v4668
  %v4941 = vadd.f32 %v4448, %v4673
  %v4942 = vadd.f32 %v4449, %v4676
  %v4943 = vadd.f32 %v4450, %v4681
  %v4944 = vadd.f32 %v4451, %v4684
  %v4945 = vadd.f32 %v4452, %v4689
  %v4946 = vadd.f32 %v4453, %v4692
  %v4947 = vadd.f32 %v4454, %v4697
  %v4948 = vadd.f32 %v4455, %v4700
  %v4949 = vadd.f32 %v4456, %v4705
  %v4950 = vadd.f32 %v4457, %v4708
  %v4951 = vadd.f32 %v4458, %v4713
  %v4952 = vadd.f32 %v4459, %v4716
  %v4953 = vadd.f32 %v4460, %v4721
  %v4954 = vadd.f32 %v4461, %v4724
  %v4955 = vadd.f32 %v4462, %v4729
  %v4956 = vadd.f32 %v4463, %v4732
  %v4957 = vadd.f32 %v4464, %v4737
  %v4958 = vadd.f32 %v4465, %v4740
  %v4959 = vadd.f32 %v4466, %v4745
  %v4960 = vadd.f32 %v4467, %v4748
  %v4961 = vadd.f32 %v4468, %v4753
  %v4962 = vadd.f32 %v4469, %v4756
  %v4963 = vadd.f32 %v4470, %v4761
  %v4964 = vadd.f32 %v4471, %v4764
  %v4965 = vadd.f32 %v4472, %v4769
  %v4966 = vadd.f32 %v4473, %v4772
  %v4967 = vadd.f32 %v4474, %v4777
  %v4968 = vadd.f32 %v4475, %v4780
  %v4969 = vadd.f32 %v4476, %v4785
  %v4970 = vadd.f32 %v4477, %v4788
  %v4971 = vadd.f32 %v4478, %v4793
  %v4972 = vadd.f32 %v4479, %v4796
  %v4973 = vadd.f32 %v4480, %v4801
  %v4974 = vadd.f32 %v4481, %v4804
  %v4975 = vadd.f32 %v4482, %v4809
  %v4976 = vadd.f32 %v4483, %v4812
  %v4977 = vadd.f32 %v4484, %v4817
  %v4978 = vadd.f32 %v4485, %v4820
  %v4979 = vadd.f32 %v4486, %v4825
  %v4980 = vadd.f32 %v4487, %v4828
  %v4981 = vadd.f32 %v4488, %v4833
  %v4982 = vadd.f32 %v4489, %v4836
  %v4983 = vadd.f32 %v4490, %v4841
  %v4984 = vadd.f32 %v4491, %v4844
  %v4985 = vadd.f32 %v4492, %v4849
  %v4986 = vadd.f32 %v4493, %v4852
  %v4987 = vadd.f32 %v4494, %v4857
  %v4988 = vadd.f32 %v4495, %v4860
  %v4989 = vadd.f32 %v4496, %v4865
  %v4990 = vadd.f32 %v4497, %v4868
  %v4991 = vadd.f32 %v4498, %v4873
  %v4992 = vadd.f32 %v4499, %v4876
  %v4993 = vadd.f32 %v4500, %v4881
  %v4994 = vadd.f32 %v4501, %v4884
  %v4995 = vadd.f32 %v4502, %v4889
  %v4996 = vadd.f32 %v4503, %v4892
  %v4997 = vadd.f32 %v4504, %v4897
  %v4998 = vadd.f32 %v4505, %v4900
  %v4999 = vadd.f32 %v4506, %v4905
  %v5000 = vadd.f32 %v4507, %v4908
  %s5001 = scalar_lea.vmem %s2, 14
  %v5002 = vld [vmem:[%s5001] sm:$0x3]
  %vm5003 = vsmask.f32 5376
  %v5004 = vrot.slane %v405, 2
  %v5005 = vrot.slane %v401, 3
  %v5006 = vor.u32 %v5004, %v5005
  %v5007 = vrot.slane %v413, 2
  %v5008 = vrot.slane %v409, 3
  %v5009 = vor.u32 %v5007, %v5008
  %v5010 = vsel %vm5003, %v5006, %v5009
  %v5011 = vrot.slane %v421, 2
  %v5012 = vrot.slane %v417, 3
  %v5013 = vor.u32 %v5011, %v5012
  %v5014 = vsel %vm5003, %v5009, %v5013
  %v5015 = vrot.slane %v429, 2
  %v5016 = vrot.slane %v425, 3
  %v5017 = vor.u32 %v5015, %v5016
  %v5018 = vsel %vm5003, %v5013, %v5017
  %v5019 = vrot.slane %v437, 2
  %v5020 = vrot.slane %v433, 3
  %v5021 = vor.u32 %v5019, %v5020
  %v5022 = vsel %vm5003, %v5017, %v5021
  %v5023 = vrot.slane %v445, 2
  %v5024 = vrot.slane %v441, 3
  %v5025 = vor.u32 %v5023, %v5024
  %v5026 = vsel %vm5003, %v5021, %v5025
  %v5027 = vrot.slane %v453, 2
  %v5028 = vrot.slane %v449, 3
  %v5029 = vor.u32 %v5027, %v5028
  %v5030 = vsel %vm5003, %v5025, %v5029
  %v5031 = vrot.slane %v461, 2
  %v5032 = vrot.slane %v457, 3
  %v5033 = vor.u32 %v5031, %v5032
  %v5034 = vsel %vm5003, %v5029, %v5033
  %v5035 = vrot.slane %v469, 2
  %v5036 = vrot.slane %v465, 3
  %v5037 = vor.u32 %v5035, %v5036
  %v5038 = vsel %vm5003, %v5033, %v5037
  %v5039 = vrot.slane %v477, 2
  %v5040 = vrot.slane %v473, 3
  %v5041 = vor.u32 %v5039, %v5040
  %v5042 = vsel %vm5003, %v5037, %v5041
  %v5043 = vrot.slane %v485, 2
  %v5044 = vrot.slane %v481, 3
  %v5045 = vor.u32 %v5043, %v5044
  %v5046 = vsel %vm5003, %v5041, %v5045
  %v5047 = vrot.slane %v493, 2
  %v5048 = vrot.slane %v489, 3
  %v5049 = vor.u32 %v5047, %v5048
  %v5050 = vsel %vm5003, %v5045, %v5049
  %v5051 = vrot.slane %v501, 2
  %v5052 = vrot.slane %v497, 3
  %v5053 = vor.u32 %v5051, %v5052
  %v5054 = vsel %vm5003, %v5049, %v5053
  %v5055 = vrot.slane %v509, 2
  %v5056 = vrot.slane %v505, 3
  %v5057 = vor.u32 %v5055, %v5056
  %v5058 = vsel %vm5003, %v5053, %v5057
  %v5059 = vrot.slane %v517, 2
  %v5060 = vrot.slane %v513, 3
  %v5061 = vor.u32 %v5059, %v5060
  %v5062 = vsel %vm5003, %v5057, %v5061
  %v5063 = vrot.slane %v525, 2
  %v5064 = vrot.slane %v521, 3
  %v5065 = vor.u32 %v5063, %v5064
  %v5066 = vsel %vm5003, %v5061, %v5065
  %v5067 = vrot.slane %v533, 2
  %v5068 = vrot.slane %v529, 3
  %v5069 = vor.u32 %v5067, %v5068
  %v5070 = vsel %vm5003, %v5065, %v5069
  %v5071 = vrot.slane %v541, 2
  %v5072 = vrot.slane %v537, 3
  %v5073 = vor.u32 %v5071, %v5072
  %v5074 = vsel %vm5003, %v5069, %v5073
  %v5075 = vrot.slane %v549, 2
  %v5076 = vrot.slane %v545, 3
  %v5077 = vor.u32 %v5075, %v5076
  %v5078 = vsel %vm5003, %v5073, %v5077
  %v5079 = vrot.slane %v557, 2
  %v5080 = vrot.slane %v553, 3
  %v5081 = vor.u32 %v5079, %v5080
  %v5082 = vsel %vm5003, %v5077, %v5081
  %v5083 = vrot.slane %v565, 2
  %v5084 = vrot.slane %v561, 3
  %v5085 = vor.u32 %v5083, %v5084
  %v5086 = vsel %vm5003, %v5081, %v5085
  %v5087 = vrot.slane %v573, 2
  %v5088 = vrot.slane %v569, 3
  %v5089 = vor.u32 %v5087, %v5088
  %v5090 = vsel %vm5003, %v5085, %v5089
  %v5091 = vrot.slane %v581, 2
  %v5092 = vrot.slane %v577, 3
  %v5093 = vor.u32 %v5091, %v5092
  %v5094 = vsel %vm5003, %v5089, %v5093
  %v5095 = vrot.slane %v589, 2
  %v5096 = vrot.slane %v585, 3
  %v5097 = vor.u32 %v5095, %v5096
  %v5098 = vsel %vm5003, %v5093, %v5097
  %v5099 = vrot.slane %v597, 2
  %v5100 = vrot.slane %v593, 3
  %v5101 = vor.u32 %v5099, %v5100
  %v5102 = vsel %vm5003, %v5097, %v5101
  %v5103 = vrot.slane %v605, 2
  %v5104 = vrot.slane %v601, 3
  %v5105 = vor.u32 %v5103, %v5104
  %v5106 = vsel %vm5003, %v5101, %v5105
  %v5107 = vrot.slane %v613, 2
  %v5108 = vrot.slane %v609, 3
  %v5109 = vor.u32 %v5107, %v5108
  %v5110 = vsel %vm5003, %v5105, %v5109
  %v5111 = vrot.slane %v621, 2
  %v5112 = vrot.slane %v617, 3
  %v5113 = vor.u32 %v5111, %v5112
  %v5114 = vsel %vm5003, %v5109, %v5113
  %v5115 = vrot.slane %v629, 2
  %v5116 = vrot.slane %v625, 3
  %v5117 = vor.u32 %v5115, %v5116
  %v5118 = vsel %vm5003, %v5113, %v5117
  %v5119 = vrot.slane %v637, 2
  %v5120 = vrot.slane %v633, 3
  %v5121 = vor.u32 %v5119, %v5120
  %v5122 = vsel %vm5003, %v5117, %v5121
  %v5123 = vrot.slane %v645, 2
  %v5124 = vrot.slane %v641, 3
  %v5125 = vor.u32 %v5123, %v5124
  %v5126 = vsel %vm5003, %v5121, %v5125
  %v5127 = vrot.slane %v653, 2
  %v5128 = vrot.slane %v649, 3
  %v5129 = vor.u32 %v5127, %v5128
  %v5130 = vsel %vm5003, %v5125, %v5129
  %v5131 = vrot.slane %v661, 2
  %v5132 = vrot.slane %v657, 3
  %v5133 = vor.u32 %v5131, %v5132
  %v5134 = vsel %vm5003, %v5129, %v5133
  %v5135 = vrot.slane %v669, 2
  %v5136 = vrot.slane %v665, 3
  %v5137 = vor.u32 %v5135, %v5136
  %v5138 = vsel %vm5003, %v5133, %v5137
  %v5139 = vrot.slane %v677, 2
  %v5140 = vrot.slane %v673, 3
  %v5141 = vor.u32 %v5139, %v5140
  %v5142 = vsel %vm5003, %v5137, %v5141
  %v5143 = vrot.slane %v685, 2
  %v5144 = vrot.slane %v681, 3
  %v5145 = vor.u32 %v5143, %v5144
  %v5146 = vsel %vm5003, %v5141, %v5145
  %v5147 = vrot.slane %v693, 2
  %v5148 = vrot.slane %v689, 3
  %v5149 = vor.u32 %v5147, %v5148
  %v5150 = vsel %vm5003, %v5145, %v5149
  %v5151 = vrot.slane %v701, 2
  %v5152 = vrot.slane %v697, 3
  %v5153 = vor.u32 %v5151, %v5152
  %v5154 = vsel %vm5003, %v5149, %v5153
  %v5155 = vrot.slane %v709, 2
  %v5156 = vrot.slane %v705, 3
  %v5157 = vor.u32 %v5155, %v5156
  %v5158 = vsel %vm5003, %v5153, %v5157
  %v5159 = vrot.slane %v717, 2
  %v5160 = vrot.slane %v713, 3
  %v5161 = vor.u32 %v5159, %v5160
  %v5162 = vsel %vm5003, %v5157, %v5161
  %v5163 = vrot.slane %v725, 2
  %v5164 = vrot.slane %v721, 3
  %v5165 = vor.u32 %v5163, %v5164
  %v5166 = vsel %vm5003, %v5161, %v5165
  %v5167 = vrot.slane %v733, 2
  %v5168 = vrot.slane %v729, 3
  %v5169 = vor.u32 %v5167, %v5168
  %v5170 = vsel %vm5003, %v5165, %v5169
  %v5171 = vrot.slane %v741, 2
  %v5172 = vrot.slane %v737, 3
  %v5173 = vor.u32 %v5171, %v5172
  %v5174 = vsel %vm5003, %v5169, %v5173
  %v5175 = vrot.slane %v3157, 2
  %v5176 = vrot.slane %v745, 3
  %v5177 = vor.u32 %v5175, %v5176
  %v5178 = vsel %vm5003, %v5173, %v5177
  %v5179 = vrot.slane %v3164, 2
  %v5180 = vrot.slane %v3167, 3
  %v5181 = vor.u32 %v5179, %v5180
  %v5182 = vsel %vm5003, %v5177, %v5181
  %v5184 = vshrl.u32 %v380, 16
  %v5186 = vrot.slane %v5184, 2
  %v5187 = vshll.u32 %v380, 16
  %v5189 = vrot.slane %v5187, 3
  %v5190 = vor.u32 %v5186, %v5189
  %v5191 = vsel %vm5003, %v5181, %v5190
  %v5193 = vsel %vm749, %v5010, 0
  %v5196 = vsel %vm749, %v5014, 0
  %v5199 = vsel %vm749, %v5018, 0
  %v5202 = vsel %vm749, %v5022, 0
  %v5205 = vsel %vm749, %v5026, 0
  %v5208 = vsel %vm749, %v5030, 0
  %v5211 = vsel %vm749, %v5034, 0
  %v5214 = vsel %vm749, %v5038, 0
  %v5217 = vsel %vm749, %v5042, 0
  %v5220 = vsel %vm749, %v5046, 0
  %v5223 = vsel %vm749, %v5050, 0
  %v5226 = vsel %vm749, %v5054, 0
  %v5229 = vsel %vm749, %v5058, 0
  %v5232 = vsel %vm749, %v5062, 0
  %v5235 = vsel %vm749, %v5066, 0
  %v5238 = vsel %vm749, %v5070, 0
  %v5241 = vsel %vm749, %v5074, 0
  %v5244 = vsel %vm749, %v5078, 0
  %v5247 = vsel %vm749, %v5082, 0
  %v5250 = vsel %vm749, %v5086, 0
  %v5253 = vsel %vm749, %v5090, 0
  %v5256 = vsel %vm749, %v5094, 0
  %v5259 = vsel %vm749, %v5098, 0
  %v5262 = vsel %vm749, %v5102, 0
  %v5265 = vsel %vm749, %v5106, 0
  %v5268 = vsel %vm749, %v5110, 0
  %v5271 = vsel %vm749, %v5114, 0
  %v5274 = vsel %vm749, %v5118, 0
  %v5277 = vsel %vm749, %v5122, 0
  %v5280 = vsel %vm749, %v5126, 0
  %v5283 = vsel %vm749, %v5130, 0
  %v5286 = vsel %vm749, %v5134, 0
  %v5289 = vsel %vm749, %v5138, 0
  %v5292 = vsel %vm749, %v5142, 0
  %v5295 = vsel %vm749, %v5146, 0
  %v5298 = vsel %vm749, %v5150, 0
  %v5301 = vsel %vm749, %v5154, 0
  %v5304 = vsel %vm749, %v5158, 0
  %v5307 = vsel %vm749, %v5162, 0
  %v5310 = vsel %vm749, %v5166, 0
  %v5313 = vsel %vm749, %v5170, 0
  %v5316 = vsel %vm749, %v5174, 0
  %v5319 = vsel %vm749, %v5178, 0
  %v5322 = vsel %vm749, %v5182, 0
  %v5325 = vsel %vm749, %v5191, 0
  %v5328 = vand.u32 %v5002, %v888
  %5330 = vmatprep.subr.bf16.mxu0 0
  %5331 = vmatpush1.bf16.msra.mxu0 %v5328
  %5332 = vmatprep.subr.bf16.mxu0 0
  %5333 = vmatpush1.bf16.msra.mxu0 0
  %5334 = vmatprep.subr.bf16.mxu0 0
  %5335 = vmatpush1.bf16.msra.mxu0 0
  %5336 = vmatprep.subr.bf16.mxu0 0
  %5337 = vmatpush1.bf16.msra.mxu0 0
  %5338 = vmatprep.subr.bf16.mxu0 0
  %5339 = vmatpush1.bf16.msra.mxu0 0
  %5340 = vmatprep.subr.bf16.mxu0 0
  %5341 = vmatpush1.bf16.msra.mxu0 0
  %5342 = vmatprep.subr.bf16.mxu0 0
  %5343 = vmatpush1.bf16.msra.mxu0 0
  %5344 = vmatprep.subr.bf16.mxu0 0
  %5345 = vmatpush1.bf16.msra.mxu0 0
  %5346 = vmatprep.subr.bf16.mxu0 0
  %5347 = vmatpush1.bf16.msra.mxu0 0
  %5348 = vmatprep.subr.bf16.mxu0 0
  %5349 = vmatpush1.bf16.msra.mxu0 0
  %5350 = vmatprep.subr.bf16.mxu0 0
  %5351 = vmatpush1.bf16.msra.mxu0 0
  %5352 = vmatprep.subr.bf16.mxu0 0
  %5353 = vmatpush1.bf16.msra.mxu0 0
  %5354 = vmatprep.subr.bf16.mxu0 0
  %5355 = vmatpush1.bf16.msra.mxu0 0
  %5356 = vmatprep.subr.bf16.mxu0 0
  %5357 = vmatpush1.bf16.msra.mxu0 0
  %5358 = vmatprep.subr.bf16.mxu0 0
  %5359 = vmatpush1.bf16.msra.mxu0 0
  %5360 = vmatprep.subr.bf16.mxu0 0
  %5361 = vmatpush1.bf16.msra.mxu0 0
  %5362 = vmatprep.mubr.bf16.mxu0 0
  %5363 = vmatmul.mubr.bf16.gmra.mrb[0].mxu0 %v5193
  %v5364 = vpop.f32.mrb[0].mxu0
  %v5365 = vadd.f32 0.0, %v5364
  %v5366 = vpop.f32.mrb[0].mxu0
  %v5367 = vpop.f32.mrb[0].mxu0
  %v5368 = vadd.f32 0.0, %v5367
  %v5369 = vpop.f32.mrb[0].mxu0
  %5370 = vmatprep.mubr.bf16.mxu0 0
  %5371 = vmatmul.mubr.bf16.gmra.mrb[0].mxu0 %v5196
  %v5372 = vpop.f32.mrb[0].mxu0
  %v5373 = vadd.f32 0.0, %v5372
  %v5374 = vpop.f32.mrb[0].mxu0
  %v5375 = vpop.f32.mrb[0].mxu0
  %v5376 = vadd.f32 0.0, %v5375
  %v5377 = vpop.f32.mrb[0].mxu0
  %5378 = vmatprep.mubr.bf16.mxu0 0
  %5379 = vmatmul.mubr.bf16.gmra.mrb[0].mxu0 %v5199
  %v5380 = vpop.f32.mrb[0].mxu0
  %v5381 = vadd.f32 0.0, %v5380
  %v5382 = vpop.f32.mrb[0].mxu0
  %v5383 = vpop.f32.mrb[0].mxu0
  %v5384 = vadd.f32 0.0, %v5383
  %v5385 = vpop.f32.mrb[0].mxu0
  %5386 = vmatprep.mubr.bf16.mxu0 0
  %5387 = vmatmul.mubr.bf16.gmra.mrb[0].mxu0 %v5202
  %v5388 = vpop.f32.mrb[0].mxu0
  %v5389 = vadd.f32 0.0, %v5388
  %v5390 = vpop.f32.mrb[0].mxu0
  %v5391 = vpop.f32.mrb[0].mxu0
  %v5392 = vadd.f32 0.0, %v5391
  %v5393 = vpop.f32.mrb[0].mxu0
  %5394 = vmatprep.mubr.bf16.mxu0 0
  %5395 = vmatmul.mubr.bf16.gmra.mrb[0].mxu0 %v5205
  %v5396 = vpop.f32.mrb[0].mxu0
  %v5397 = vadd.f32 0.0, %v5396
  %v5398 = vpop.f32.mrb[0].mxu0
  %v5399 = vpop.f32.mrb[0].mxu0
  %v5400 = vadd.f32 0.0, %v5399
  %v5401 = vpop.f32.mrb[0].mxu0
  %5402 = vmatprep.mubr.bf16.mxu0 0
  %5403 = vmatmul.mubr.bf16.gmra.mrb[0].mxu0 %v5208
  %v5404 = vpop.f32.mrb[0].mxu0
  %v5405 = vadd.f32 0.0, %v5404
  %v5406 = vpop.f32.mrb[0].mxu0
  %v5407 = vpop.f32.mrb[0].mxu0
  %v5408 = vadd.f32 0.0, %v5407
  %v5409 = vpop.f32.mrb[0].mxu0
  %5410 = vmatprep.mubr.bf16.mxu0 0
  %5411 = vmatmul.mubr.bf16.gmra.mrb[0].mxu0 %v5211
  %v5412 = vpop.f32.mrb[0].mxu0
  %v5413 = vadd.f32 0.0, %v5412
  %v5414 = vpop.f32.mrb[0].mxu0
  %v5415 = vpop.f32.mrb[0].mxu0
  %v5416 = vadd.f32 0.0, %v5415
  %v5417 = vpop.f32.mrb[0].mxu0
  %5418 = vmatprep.mubr.bf16.mxu0 0
  %5419 = vmatmul.mubr.bf16.gmra.mrb[0].mxu0 %v5214
  %v5420 = vpop.f32.mrb[0].mxu0
  %v5421 = vadd.f32 0.0, %v5420
  %v5422 = vpop.f32.mrb[0].mxu0
  %v5423 = vpop.f32.mrb[0].mxu0
  %v5424 = vadd.f32 0.0, %v5423
  %v5425 = vpop.f32.mrb[0].mxu0
  %5426 = vmatprep.mubr.bf16.mxu0 0
  %5427 = vmatmul.mubr.bf16.gmra.mrb[0].mxu0 %v5217
  %v5428 = vpop.f32.mrb[0].mxu0
  %v5429 = vadd.f32 0.0, %v5428
  %v5430 = vpop.f32.mrb[0].mxu0
  %v5431 = vpop.f32.mrb[0].mxu0
  %v5432 = vadd.f32 0.0, %v5431
  %v5433 = vpop.f32.mrb[0].mxu0
  %5434 = vmatprep.mubr.bf16.mxu0 0
  %5435 = vmatmul.mubr.bf16.gmra.mrb[0].mxu0 %v5220
  %v5436 = vpop.f32.mrb[0].mxu0
  %v5437 = vadd.f32 0.0, %v5436
  %v5438 = vpop.f32.mrb[0].mxu0
  %v5439 = vpop.f32.mrb[0].mxu0
  %v5440 = vadd.f32 0.0, %v5439
  %v5441 = vpop.f32.mrb[0].mxu0
  %5442 = vmatprep.mubr.bf16.mxu0 0
  %5443 = vmatmul.mubr.bf16.gmra.mrb[0].mxu0 %v5223
  %v5444 = vpop.f32.mrb[0].mxu0
  %v5445 = vadd.f32 0.0, %v5444
  %v5446 = vpop.f32.mrb[0].mxu0
  %v5447 = vpop.f32.mrb[0].mxu0
  %v5448 = vadd.f32 0.0, %v5447
  %v5449 = vpop.f32.mrb[0].mxu0
  %5450 = vmatprep.mubr.bf16.mxu0 0
  %5451 = vmatmul.mubr.bf16.gmra.mrb[0].mxu0 %v5226
  %v5452 = vpop.f32.mrb[0].mxu0
  %v5453 = vadd.f32 0.0, %v5452
  %v5454 = vpop.f32.mrb[0].mxu0
  %v5455 = vpop.f32.mrb[0].mxu0
  %v5456 = vadd.f32 0.0, %v5455
  %v5457 = vpop.f32.mrb[0].mxu0
  %5458 = vmatprep.mubr.bf16.mxu0 0
  %5459 = vmatmul.mubr.bf16.gmra.mrb[0].mxu0 %v5229
  %v5460 = vpop.f32.mrb[0].mxu0
  %v5461 = vadd.f32 0.0, %v5460
  %v5462 = vpop.f32.mrb[0].mxu0
  %v5463 = vpop.f32.mrb[0].mxu0
  %v5464 = vadd.f32 0.0, %v5463
  %v5465 = vpop.f32.mrb[0].mxu0
  %5466 = vmatprep.mubr.bf16.mxu0 0
  %5467 = vmatmul.mubr.bf16.gmra.mrb[0].mxu0 %v5232
  %v5468 = vpop.f32.mrb[0].mxu0
  %v5469 = vadd.f32 0.0, %v5468
  %v5470 = vpop.f32.mrb[0].mxu0
  %v5471 = vpop.f32.mrb[0].mxu0
  %v5472 = vadd.f32 0.0, %v5471
  %v5473 = vpop.f32.mrb[0].mxu0
  %5474 = vmatprep.mubr.bf16.mxu0 0
  %5475 = vmatmul.mubr.bf16.gmra.mrb[0].mxu0 %v5235
  %v5476 = vpop.f32.mrb[0].mxu0
  %v5477 = vadd.f32 0.0, %v5476
  %v5478 = vpop.f32.mrb[0].mxu0
  %v5479 = vpop.f32.mrb[0].mxu0
  %v5480 = vadd.f32 0.0, %v5479
  %v5481 = vpop.f32.mrb[0].mxu0
  %5482 = vmatprep.mubr.bf16.mxu0 0
  %5483 = vmatmul.mubr.bf16.gmra.mrb[0].mxu0 %v5238
  %v5484 = vpop.f32.mrb[0].mxu0
  %v5485 = vadd.f32 0.0, %v5484
  %v5486 = vpop.f32.mrb[0].mxu0
  %v5487 = vpop.f32.mrb[0].mxu0
  %v5488 = vadd.f32 0.0, %v5487
  %v5489 = vpop.f32.mrb[0].mxu0
  %5490 = vmatprep.mubr.bf16.mxu0 0
  %5491 = vmatmul.mubr.bf16.gmra.mrb[0].mxu0 %v5241
  %v5492 = vpop.f32.mrb[0].mxu0
  %v5493 = vadd.f32 0.0, %v5492
  %v5494 = vpop.f32.mrb[0].mxu0
  %v5495 = vpop.f32.mrb[0].mxu0
  %v5496 = vadd.f32 0.0, %v5495
  %v5497 = vpop.f32.mrb[0].mxu0
  %5498 = vmatprep.mubr.bf16.mxu0 0
  %5499 = vmatmul.mubr.bf16.gmra.mrb[0].mxu0 %v5244
  %v5500 = vpop.f32.mrb[0].mxu0
  %v5501 = vadd.f32 0.0, %v5500
  %v5502 = vpop.f32.mrb[0].mxu0
  %v5503 = vpop.f32.mrb[0].mxu0
  %v5504 = vadd.f32 0.0, %v5503
  %v5505 = vpop.f32.mrb[0].mxu0
  %5506 = vmatprep.mubr.bf16.mxu0 0
  %5507 = vmatmul.mubr.bf16.gmra.mrb[0].mxu0 %v5247
  %v5508 = vpop.f32.mrb[0].mxu0
  %v5509 = vadd.f32 0.0, %v5508
  %v5510 = vpop.f32.mrb[0].mxu0
  %v5511 = vpop.f32.mrb[0].mxu0
  %v5512 = vadd.f32 0.0, %v5511
  %v5513 = vpop.f32.mrb[0].mxu0
  %5514 = vmatprep.mubr.bf16.mxu0 0
  %5515 = vmatmul.mubr.bf16.gmra.mrb[0].mxu0 %v5250
  %v5516 = vpop.f32.mrb[0].mxu0
  %v5517 = vadd.f32 0.0, %v5516
  %v5518 = vpop.f32.mrb[0].mxu0
  %v5519 = vpop.f32.mrb[0].mxu0
  %v5520 = vadd.f32 0.0, %v5519
  %v5521 = vpop.f32.mrb[0].mxu0
  %5522 = vmatprep.mubr.bf16.mxu0 0
  %5523 = vmatmul.mubr.bf16.gmra.mrb[0].mxu0 %v5253
  %v5524 = vpop.f32.mrb[0].mxu0
  %v5525 = vadd.f32 0.0, %v5524
  %v5526 = vpop.f32.mrb[0].mxu0
  %v5527 = vpop.f32.mrb[0].mxu0
  %v5528 = vadd.f32 0.0, %v5527
  %v5529 = vpop.f32.mrb[0].mxu0
  %5530 = vmatprep.mubr.bf16.mxu0 0
  %5531 = vmatmul.mubr.bf16.gmra.mrb[0].mxu0 %v5256
  %v5532 = vpop.f32.mrb[0].mxu0
  %v5533 = vadd.f32 0.0, %v5532
  %v5534 = vpop.f32.mrb[0].mxu0
  %v5535 = vpop.f32.mrb[0].mxu0
  %v5536 = vadd.f32 0.0, %v5535
  %v5537 = vpop.f32.mrb[0].mxu0
  %5538 = vmatprep.mubr.bf16.mxu0 0
  %5539 = vmatmul.mubr.bf16.gmra.mrb[0].mxu0 %v5259
  %v5540 = vpop.f32.mrb[0].mxu0
  %v5541 = vadd.f32 0.0, %v5540
  %v5542 = vpop.f32.mrb[0].mxu0
  %v5543 = vpop.f32.mrb[0].mxu0
  %v5544 = vadd.f32 0.0, %v5543
  %v5545 = vpop.f32.mrb[0].mxu0
  %5546 = vmatprep.mubr.bf16.mxu0 0
  %5547 = vmatmul.mubr.bf16.gmra.mrb[0].mxu0 %v5262
  %v5548 = vpop.f32.mrb[0].mxu0
  %v5549 = vadd.f32 0.0, %v5548
  %v5550 = vpop.f32.mrb[0].mxu0
  %v5551 = vpop.f32.mrb[0].mxu0
  %v5552 = vadd.f32 0.0, %v5551
  %v5553 = vpop.f32.mrb[0].mxu0
  %5554 = vmatprep.mubr.bf16.mxu0 0
  %5555 = vmatmul.mubr.bf16.gmra.mrb[0].mxu0 %v5265
  %v5556 = vpop.f32.mrb[0].mxu0
  %v5557 = vadd.f32 0.0, %v5556
  %v5558 = vpop.f32.mrb[0].mxu0
  %v5559 = vpop.f32.mrb[0].mxu0
  %v5560 = vadd.f32 0.0, %v5559
  %v5561 = vpop.f32.mrb[0].mxu0
  %5562 = vmatprep.mubr.bf16.mxu0 0
  %5563 = vmatmul.mubr.bf16.gmra.mrb[0].mxu0 %v5268
  %v5564 = vpop.f32.mrb[0].mxu0
  %v5565 = vadd.f32 0.0, %v5564
  %v5566 = vpop.f32.mrb[0].mxu0
  %v5567 = vpop.f32.mrb[0].mxu0
  %v5568 = vadd.f32 0.0, %v5567
  %v5569 = vpop.f32.mrb[0].mxu0
  %5570 = vmatprep.mubr.bf16.mxu0 0
  %5571 = vmatmul.mubr.bf16.gmra.mrb[0].mxu0 %v5271
  %v5572 = vpop.f32.mrb[0].mxu0
  %v5573 = vadd.f32 0.0, %v5572
  %v5574 = vpop.f32.mrb[0].mxu0
  %v5575 = vpop.f32.mrb[0].mxu0
  %v5576 = vadd.f32 0.0, %v5575
  %v5577 = vpop.f32.mrb[0].mxu0
  %5578 = vmatprep.mubr.bf16.mxu0 0
  %5579 = vmatmul.mubr.bf16.gmra.mrb[0].mxu0 %v5274
  %v5580 = vpop.f32.mrb[0].mxu0
  %v5581 = vadd.f32 0.0, %v5580
  %v5582 = vpop.f32.mrb[0].mxu0
  %v5583 = vpop.f32.mrb[0].mxu0
  %v5584 = vadd.f32 0.0, %v5583
  %v5585 = vpop.f32.mrb[0].mxu0
  %5586 = vmatprep.mubr.bf16.mxu0 0
  %5587 = vmatmul.mubr.bf16.gmra.mrb[0].mxu0 %v5277
  %v5588 = vpop.f32.mrb[0].mxu0
  %v5589 = vadd.f32 0.0, %v5588
  %v5590 = vpop.f32.mrb[0].mxu0
  %v5591 = vpop.f32.mrb[0].mxu0
  %v5592 = vadd.f32 0.0, %v5591
  %v5593 = vpop.f32.mrb[0].mxu0
  %5594 = vmatprep.mubr.bf16.mxu0 0
  %5595 = vmatmul.mubr.bf16.gmra.mrb[0].mxu0 %v5280
  %v5596 = vpop.f32.mrb[0].mxu0
  %v5597 = vadd.f32 0.0, %v5596
  %v5598 = vpop.f32.mrb[0].mxu0
  %v5599 = vpop.f32.mrb[0].mxu0
  %v5600 = vadd.f32 0.0, %v5599
  %v5601 = vpop.f32.mrb[0].mxu0
  %5602 = vmatprep.mubr.bf16.mxu0 0
  %5603 = vmatmul.mubr.bf16.gmra.mrb[0].mxu0 %v5283
  %v5604 = vpop.f32.mrb[0].mxu0
  %v5605 = vadd.f32 0.0, %v5604
  %v5606 = vpop.f32.mrb[0].mxu0
  %v5607 = vpop.f32.mrb[0].mxu0
  %v5608 = vadd.f32 0.0, %v5607
  %v5609 = vpop.f32.mrb[0].mxu0
  %5610 = vmatprep.mubr.bf16.mxu0 0
  %5611 = vmatmul.mubr.bf16.gmra.mrb[0].mxu0 %v5286
  %v5612 = vpop.f32.mrb[0].mxu0
  %v5613 = vadd.f32 0.0, %v5612
  %v5614 = vpop.f32.mrb[0].mxu0
  %v5615 = vpop.f32.mrb[0].mxu0
  %v5616 = vadd.f32 0.0, %v5615
  %v5617 = vpop.f32.mrb[0].mxu0
  %5618 = vmatprep.mubr.bf16.mxu0 0
  %5619 = vmatmul.mubr.bf16.gmra.mrb[0].mxu0 %v5289
  %v5620 = vpop.f32.mrb[0].mxu0
  %v5621 = vadd.f32 0.0, %v5620
  %v5622 = vpop.f32.mrb[0].mxu0
  %v5623 = vpop.f32.mrb[0].mxu0
  %v5624 = vadd.f32 0.0, %v5623
  %v5625 = vpop.f32.mrb[0].mxu0
  %5626 = vmatprep.mubr.bf16.mxu0 0
  %5627 = vmatmul.mubr.bf16.gmra.mrb[0].mxu0 %v5292
  %v5628 = vpop.f32.mrb[0].mxu0
  %v5629 = vadd.f32 0.0, %v5628
  %v5630 = vpop.f32.mrb[0].mxu0
  %v5631 = vpop.f32.mrb[0].mxu0
  %v5632 = vadd.f32 0.0, %v5631
  %v5633 = vpop.f32.mrb[0].mxu0
  %5634 = vmatprep.mubr.bf16.mxu0 0
  %5635 = vmatmul.mubr.bf16.gmra.mrb[0].mxu0 %v5295
  %v5636 = vpop.f32.mrb[0].mxu0
  %v5637 = vadd.f32 0.0, %v5636
  %v5638 = vpop.f32.mrb[0].mxu0
  %v5639 = vpop.f32.mrb[0].mxu0
  %v5640 = vadd.f32 0.0, %v5639
  %v5641 = vpop.f32.mrb[0].mxu0
  %5642 = vmatprep.mubr.bf16.mxu0 0
  %5643 = vmatmul.mubr.bf16.gmra.mrb[0].mxu0 %v5298
  %v5644 = vpop.f32.mrb[0].mxu0
  %v5645 = vadd.f32 0.0, %v5644
  %v5646 = vpop.f32.mrb[0].mxu0
  %v5647 = vpop.f32.mrb[0].mxu0
  %v5648 = vadd.f32 0.0, %v5647
  %v5649 = vpop.f32.mrb[0].mxu0
  %5650 = vmatprep.mubr.bf16.mxu0 0
  %5651 = vmatmul.mubr.bf16.gmra.mrb[0].mxu0 %v5301
  %v5652 = vpop.f32.mrb[0].mxu0
  %v5653 = vadd.f32 0.0, %v5652
  %v5654 = vpop.f32.mrb[0].mxu0
  %v5655 = vpop.f32.mrb[0].mxu0
  %v5656 = vadd.f32 0.0, %v5655
  %v5657 = vpop.f32.mrb[0].mxu0
  %5658 = vmatprep.mubr.bf16.mxu0 0
  %5659 = vmatmul.mubr.bf16.gmra.mrb[0].mxu0 %v5304
  %v5660 = vpop.f32.mrb[0].mxu0
  %v5661 = vadd.f32 0.0, %v5660
  %v5662 = vpop.f32.mrb[0].mxu0
  %v5663 = vpop.f32.mrb[0].mxu0
  %v5664 = vadd.f32 0.0, %v5663
  %v5665 = vpop.f32.mrb[0].mxu0
  %5666 = vmatprep.mubr.bf16.mxu0 0
  %5667 = vmatmul.mubr.bf16.gmra.mrb[0].mxu0 %v5307
  %v5668 = vpop.f32.mrb[0].mxu0
  %v5669 = vadd.f32 0.0, %v5668
  %v5670 = vpop.f32.mrb[0].mxu0
  %v5671 = vpop.f32.mrb[0].mxu0
  %v5672 = vadd.f32 0.0, %v5671
  %v5673 = vpop.f32.mrb[0].mxu0
  %5674 = vmatprep.mubr.bf16.mxu0 0
  %5675 = vmatmul.mubr.bf16.gmra.mrb[0].mxu0 %v5310
  %v5676 = vpop.f32.mrb[0].mxu0
  %v5677 = vadd.f32 0.0, %v5676
  %v5678 = vpop.f32.mrb[0].mxu0
  %v5679 = vpop.f32.mrb[0].mxu0
  %v5680 = vadd.f32 0.0, %v5679
  %v5681 = vpop.f32.mrb[0].mxu0
  %5682 = vmatprep.mubr.bf16.mxu0 0
  %5683 = vmatmul.mubr.bf16.gmra.mrb[0].mxu0 %v5313
  %v5684 = vpop.f32.mrb[0].mxu0
  %v5685 = vadd.f32 0.0, %v5684
  %v5686 = vpop.f32.mrb[0].mxu0
  %v5687 = vpop.f32.mrb[0].mxu0
  %v5688 = vadd.f32 0.0, %v5687
  %v5689 = vpop.f32.mrb[0].mxu0
  %5690 = vmatprep.mubr.bf16.mxu0 0
  %5691 = vmatmul.mubr.bf16.gmra.mrb[0].mxu0 %v5316
  %v5692 = vpop.f32.mrb[0].mxu0
  %v5693 = vadd.f32 0.0, %v5692
  %v5694 = vpop.f32.mrb[0].mxu0
  %v5695 = vpop.f32.mrb[0].mxu0
  %v5696 = vadd.f32 0.0, %v5695
  %v5697 = vpop.f32.mrb[0].mxu0
  %5698 = vmatprep.mubr.bf16.mxu0 0
  %5699 = vmatmul.mubr.bf16.gmra.mrb[0].mxu0 %v5319
  %v5700 = vpop.f32.mrb[0].mxu0
  %v5701 = vadd.f32 0.0, %v5700
  %v5702 = vpop.f32.mrb[0].mxu0
  %v5703 = vpop.f32.mrb[0].mxu0
  %v5704 = vadd.f32 0.0, %v5703
  %v5705 = vpop.f32.mrb[0].mxu0
  %5706 = vmatprep.mubr.bf16.mxu0 0
  %5707 = vmatmul.mubr.bf16.gmra.mrb[0].mxu0 %v5322
  %v5708 = vpop.f32.mrb[0].mxu0
  %v5709 = vadd.f32 0.0, %v5708
  %v5710 = vpop.f32.mrb[0].mxu0
  %v5711 = vpop.f32.mrb[0].mxu0
  %v5712 = vadd.f32 0.0, %v5711
  %v5713 = vpop.f32.mrb[0].mxu0
  %5714 = vmatprep.mubr.bf16.mxu0 0
  %5715 = vmatmul.mubr.bf16.gmra.mrb[0].mxu0 %v5325
  %v5716 = vpop.f32.mrb[0].mxu0
  %v5717 = vadd.f32 0.0, %v5716
  %v5718 = vpop.f32.mrb[0].mxu0
  %v5719 = vpop.f32.mrb[0].mxu0
  %v5720 = vadd.f32 0.0, %v5719
  %v5721 = vpop.f32.mrb[0].mxu0
  %5722 = vdwg.mxu0
  %v5723 = vadd.f32 %v4911, %v5365
  %v5724 = vadd.f32 %v4912, %v5368
  %v5725 = vadd.f32 %v4913, %v5373
  %v5726 = vadd.f32 %v4914, %v5376
  %v5727 = vadd.f32 %v4915, %v5381
  %v5728 = vadd.f32 %v4916, %v5384
  %v5729 = vadd.f32 %v4917, %v5389
  %v5730 = vadd.f32 %v4918, %v5392
  %v5731 = vadd.f32 %v4919, %v5397
  %v5732 = vadd.f32 %v4920, %v5400
  %v5733 = vadd.f32 %v4921, %v5405
  %v5734 = vadd.f32 %v4922, %v5408
  %v5735 = vadd.f32 %v4923, %v5413
  %v5736 = vadd.f32 %v4924, %v5416
  %v5737 = vadd.f32 %v4925, %v5421
  %v5738 = vadd.f32 %v4926, %v5424
  %v5739 = vadd.f32 %v4927, %v5429
  %v5740 = vadd.f32 %v4928, %v5432
  %v5741 = vadd.f32 %v4929, %v5437
  %v5742 = vadd.f32 %v4930, %v5440
  %v5743 = vadd.f32 %v4931, %v5445
  %v5744 = vadd.f32 %v4932, %v5448
  %v5745 = vadd.f32 %v4933, %v5453
  %v5746 = vadd.f32 %v4934, %v5456
  %v5747 = vadd.f32 %v4935, %v5461
  %v5748 = vadd.f32 %v4936, %v5464
  %v5749 = vadd.f32 %v4937, %v5469
  %v5750 = vadd.f32 %v4938, %v5472
  %v5751 = vadd.f32 %v4939, %v5477
  %v5752 = vadd.f32 %v4940, %v5480
  %v5753 = vadd.f32 %v4941, %v5485
  %v5754 = vadd.f32 %v4942, %v5488
  %v5755 = vadd.f32 %v4943, %v5493
  %v5756 = vadd.f32 %v4944, %v5496
  %v5757 = vadd.f32 %v4945, %v5501
  %v5758 = vadd.f32 %v4946, %v5504
  %v5759 = vadd.f32 %v4947, %v5509
  %v5760 = vadd.f32 %v4948, %v5512
  %v5761 = vadd.f32 %v4949, %v5517
  %v5762 = vadd.f32 %v4950, %v5520
  %v5763 = vadd.f32 %v4951, %v5525
  %v5764 = vadd.f32 %v4952, %v5528
  %v5765 = vadd.f32 %v4953, %v5533
  %v5766 = vadd.f32 %v4954, %v5536
  %v5767 = vadd.f32 %v4955, %v5541
  %v5768 = vadd.f32 %v4956, %v5544
  %v5769 = vadd.f32 %v4957, %v5549
  %v5770 = vadd.f32 %v4958, %v5552
  %v5771 = vadd.f32 %v4959, %v5557
  %v5772 = vadd.f32 %v4960, %v5560
  %v5773 = vadd.f32 %v4961, %v5565
  %v5774 = vadd.f32 %v4962, %v5568
  %v5775 = vadd.f32 %v4963, %v5573
  %v5776 = vadd.f32 %v4964, %v5576
  %v5777 = vadd.f32 %v4965, %v5581
  %v5778 = vadd.f32 %v4966, %v5584
  %v5779 = vadd.f32 %v4967, %v5589
  %v5780 = vadd.f32 %v4968, %v5592
  %v5781 = vadd.f32 %v4969, %v5597
  %v5782 = vadd.f32 %v4970, %v5600
  %v5783 = vadd.f32 %v4971, %v5605
  %v5784 = vadd.f32 %v4972, %v5608
  %v5785 = vadd.f32 %v4973, %v5613
  %v5786 = vadd.f32 %v4974, %v5616
  %v5787 = vadd.f32 %v4975, %v5621
  %v5788 = vadd.f32 %v4976, %v5624
  %v5789 = vadd.f32 %v4977, %v5629
  %v5790 = vadd.f32 %v4978, %v5632
  %v5791 = vadd.f32 %v4979, %v5637
  %v5792 = vadd.f32 %v4980, %v5640
  %v5793 = vadd.f32 %v4981, %v5645
  %v5794 = vadd.f32 %v4982, %v5648
  %v5795 = vadd.f32 %v4983, %v5653
  %v5796 = vadd.f32 %v4984, %v5656
  %v5797 = vadd.f32 %v4985, %v5661
  %v5798 = vadd.f32 %v4986, %v5664
  %v5799 = vadd.f32 %v4987, %v5669
  %v5800 = vadd.f32 %v4988, %v5672
  %v5801 = vadd.f32 %v4989, %v5677
  %v5802 = vadd.f32 %v4990, %v5680
  %v5803 = vadd.f32 %v4991, %v5685
  %v5804 = vadd.f32 %v4992, %v5688
  %v5805 = vadd.f32 %v4993, %v5693
  %v5806 = vadd.f32 %v4994, %v5696
  %v5807 = vadd.f32 %v4995, %v5701
  %v5808 = vadd.f32 %v4996, %v5704
  %v5809 = vadd.f32 %v4997, %v5709
  %v5810 = vadd.f32 %v4998, %v5712
  %v5811 = vadd.f32 %v4999, %v5717
  %v5812 = vadd.f32 %v5000, %v5720
  %s5813 = scalar_lea.vmem %s2, 16
  %v5814 = vld [vmem:[%s5813] sm:$0x3]
  %vm5815 = vcmask 1044480
  %v5816 = vrot.slane %v323, 3
  %v5817 = vrot.slane %v324, 3
  %v5818 = vsel %vm5815, %v5816, %v5817
  %v5819 = vrot.slane %v325, 3
  %v5820 = vsel %vm5815, %v5817, %v5819
  %v5821 = vrot.slane %v326, 3
  %v5822 = vsel %vm5815, %v5819, %v5821
  %v5823 = vrot.slane %v327, 3
  %v5824 = vsel %vm5815, %v5821, %v5823
  %v5825 = vrot.slane %v328, 3
  %v5826 = vsel %vm5815, %v5823, %v5825
  %v5827 = vrot.slane %v329, 3
  %v5828 = vsel %vm5815, %v5825, %v5827
  %v5829 = vrot.slane %v330, 3
  %v5830 = vsel %vm5815, %v5827, %v5829
  %v5831 = vrot.slane %v331, 3
  %v5832 = vsel %vm5815, %v5829, %v5831
  %v5833 = vrot.slane %v332, 3
  %v5834 = vsel %vm5815, %v5831, %v5833
  %v5835 = vrot.slane %v333, 3
  %v5836 = vsel %vm5815, %v5833, %v5835
  %v5837 = vrot.slane %v334, 3
  %v5838 = vsel %vm5815, %v5835, %v5837
  %v5839 = vrot.slane %v335, 3
  %v5840 = vsel %vm5815, %v5837, %v5839
  %v5841 = vrot.slane %v336, 3
  %v5842 = vsel %vm5815, %v5839, %v5841
  %v5843 = vrot.slane %v337, 3
  %v5844 = vsel %vm5815, %v5841, %v5843
  %v5845 = vrot.slane %v338, 3
  %v5846 = vsel %vm5815, %v5843, %v5845
  %v5847 = vrot.slane %v339, 3
  %v5848 = vsel %vm5815, %v5845, %v5847
  %v5849 = vrot.slane %v340, 3
  %v5850 = vsel %vm5815, %v5847, %v5849
  %v5851 = vrot.slane %v341, 3
  %v5852 = vsel %vm5815, %v5849, %v5851
  %v5853 = vrot.slane %v342, 3
  %v5854 = vsel %vm5815, %v5851, %v5853
  %v5855 = vrot.slane %v343, 3
  %v5856 = vsel %vm5815, %v5853, %v5855
  %v5857 = vrot.slane %v344, 3
  %v5858 = vsel %vm5815, %v5855, %v5857
  %v5859 = vrot.slane %v345, 3
  %v5860 = vsel %vm5815, %v5857, %v5859
  %v5861 = vrot.slane %v346, 3
  %v5862 = vsel %vm5815, %v5859, %v5861
  %v5863 = vrot.slane %v347, 3
  %v5864 = vsel %vm5815, %v5861, %v5863
  %v5865 = vrot.slane %v348, 3
  %v5866 = vsel %vm5815, %v5863, %v5865
  %v5867 = vrot.slane %v349, 3
  %v5868 = vsel %vm5815, %v5865, %v5867
  %v5869 = vrot.slane %v350, 3
  %v5870 = vsel %vm5815, %v5867, %v5869
  %v5871 = vrot.slane %v351, 3
  %v5872 = vsel %vm5815, %v5869, %v5871
  %v5873 = vrot.slane %v352, 3
  %v5874 = vsel %vm5815, %v5871, %v5873
  %v5875 = vrot.slane %v353, 3
  %v5876 = vsel %vm5815, %v5873, %v5875
  %v5877 = vrot.slane %v354, 3
  %v5878 = vsel %vm5815, %v5875, %v5877
  %v5879 = vrot.slane %v355, 3
  %v5880 = vsel %vm5815, %v5877, %v5879
  %v5881 = vrot.slane %v356, 3
  %v5882 = vsel %vm5815, %v5879, %v5881
  %v5883 = vrot.slane %v357, 3
  %v5884 = vsel %vm5815, %v5881, %v5883
  %v5885 = vrot.slane %v358, 3
  %v5886 = vsel %vm5815, %v5883, %v5885
  %v5887 = vrot.slane %v359, 3
  %v5888 = vsel %vm5815, %v5885, %v5887
  %v5889 = vrot.slane %v360, 3
  %v5890 = vsel %vm5815, %v5887, %v5889
  %v5891 = vrot.slane %v361, 3
  %v5892 = vsel %vm5815, %v5889, %v5891
  %v5893 = vrot.slane %v362, 3
  %v5894 = vsel %vm5815, %v5891, %v5893
  %v5895 = vrot.slane %v363, 3
  %v5896 = vsel %vm5815, %v5893, %v5895
  %v5897 = vrot.slane %v364, 3
  %v5898 = vsel %vm5815, %v5895, %v5897
  %v5899 = vrot.slane %v365, 3
  %v5900 = vsel %vm5815, %v5897, %v5899
  %v5901 = vrot.slane %v378, 3
  %v5902 = vsel %vm5815, %v5899, %v5901
  %v5903 = vrot.slane %v379, 3
  %v5904 = vsel %vm5815, %v5901, %v5903
  %v5905 = vrot.slane %v380, 3
  %v5906 = vsel %vm5815, %v5903, %v5905
  %v5908 = vsel %vm749, %v5818, 0
  %v5911 = vsel %vm749, %v5820, 0
  %v5914 = vsel %vm749, %v5822, 0
  %v5917 = vsel %vm749, %v5824, 0
  %v5920 = vsel %vm749, %v5826, 0
  %v5923 = vsel %vm749, %v5828, 0
  %v5926 = vsel %vm749, %v5830, 0
  %v5929 = vsel %vm749, %v5832, 0
  %v5932 = vsel %vm749, %v5834, 0
  %v5935 = vsel %vm749, %v5836, 0
  %v5938 = vsel %vm749, %v5838, 0
  %v5941 = vsel %vm749, %v5840, 0
  %v5944 = vsel %vm749, %v5842, 0
  %v5947 = vsel %vm749, %v5844, 0
  %v5950 = vsel %vm749, %v5846, 0
  %v5953 = vsel %vm749, %v5848, 0
  %v5956 = vsel %vm749, %v5850, 0
  %v5959 = vsel %vm749, %v5852, 0
  %v5962 = vsel %vm749, %v5854, 0
  %v5965 = vsel %vm749, %v5856, 0
  %v5968 = vsel %vm749, %v5858, 0
  %v5971 = vsel %vm749, %v5860, 0
  %v5974 = vsel %vm749, %v5862, 0
  %v5977 = vsel %vm749, %v5864, 0
  %v5980 = vsel %vm749, %v5866, 0
  %v5983 = vsel %vm749, %v5868, 0
  %v5986 = vsel %vm749, %v5870, 0
  %v5989 = vsel %vm749, %v5872, 0
  %v5992 = vsel %vm749, %v5874, 0
  %v5995 = vsel %vm749, %v5876, 0
  %v5998 = vsel %vm749, %v5878, 0
  %v6001 = vsel %vm749, %v5880, 0
  %v6004 = vsel %vm749, %v5882, 0
  %v6007 = vsel %vm749, %v5884, 0
  %v6010 = vsel %vm749, %v5886, 0
  %v6013 = vsel %vm749, %v5888, 0
  %v6016 = vsel %vm749, %v5890, 0
  %v6019 = vsel %vm749, %v5892, 0
  %v6022 = vsel %vm749, %v5894, 0
  %v6025 = vsel %vm749, %v5896, 0
  %v6028 = vsel %vm749, %v5898, 0
  %v6031 = vsel %vm749, %v5900, 0
  %v6034 = vsel %vm749, %v5902, 0
  %v6037 = vsel %vm749, %v5904, 0
  %v6040 = vsel %vm749, %v5906, 0
  %v6043 = vand.u32 %v5814, %v888
  %6045 = vmatprep.subr.bf16.mxu0 0
  %6046 = vmatpush1.bf16.msra.mxu0 %v6043
  %6047 = vmatprep.subr.bf16.mxu0 0
  %6048 = vmatpush1.bf16.msra.mxu0 0
  %6049 = vmatprep.subr.bf16.mxu0 0
  %6050 = vmatpush1.bf16.msra.mxu0 0
  %6051 = vmatprep.subr.bf16.mxu0 0
  %6052 = vmatpush1.bf16.msra.mxu0 0
  %6053 = vmatprep.subr.bf16.mxu0 0
  %6054 = vmatpush1.bf16.msra.mxu0 0
  %6055 = vmatprep.subr.bf16.mxu0 0
  %6056 = vmatpush1.bf16.msra.mxu0 0
  %6057 = vmatprep.subr.bf16.mxu0 0
  %6058 = vmatpush1.bf16.msra.mxu0 0
  %6059 = vmatprep.subr.bf16.mxu0 0
  %6060 = vmatpush1.bf16.msra.mxu0 0
  %6061 = vmatprep.subr.bf16.mxu0 0
  %6062 = vmatpush1.bf16.msra.mxu0 0
  %6063 = vmatprep.subr.bf16.mxu0 0
  %6064 = vmatpush1.bf16.msra.mxu0 0
  %6065 = vmatprep.subr.bf16.mxu0 0
  %6066 = vmatpush1.bf16.msra.mxu0 0
  %6067 = vmatprep.subr.bf16.mxu0 0
  %6068 = vmatpush1.bf16.msra.mxu0 0
  %6069 = vmatprep.subr.bf16.mxu0 0
  %6070 = vmatpush1.bf16.msra.mxu0 0
  %6071 = vmatprep.subr.bf16.mxu0 0
  %6072 = vmatpush1.bf16.msra.mxu0 0
  %6073 = vmatprep.subr.bf16.mxu0 0
  %6074 = vmatpush1.bf16.msra.mxu0 0
  %6075 = vmatprep.subr.bf16.mxu0 0
  %6076 = vmatpush1.bf16.msra.mxu0 0
  %6077 = vmatprep.mubr.bf16.mxu0 0
  %6078 = vmatmul.mubr.bf16.gmra.mrb[0].mxu0 %v5908
  %v6079 = vpop.f32.mrb[0].mxu0
  %v6080 = vadd.f32 0.0, %v6079
  %v6081 = vpop.f32.mrb[0].mxu0
  %v6082 = vpop.f32.mrb[0].mxu0
  %v6083 = vadd.f32 0.0, %v6082
  %v6084 = vpop.f32.mrb[0].mxu0
  %6085 = vmatprep.mubr.bf16.mxu0 0
  %6086 = vmatmul.mubr.bf16.gmra.mrb[0].mxu0 %v5911
  %v6087 = vpop.f32.mrb[0].mxu0
  %v6088 = vadd.f32 0.0, %v6087
  %v6089 = vpop.f32.mrb[0].mxu0
  %v6090 = vpop.f32.mrb[0].mxu0
  %v6091 = vadd.f32 0.0, %v6090
  %v6092 = vpop.f32.mrb[0].mxu0
  %6093 = vmatprep.mubr.bf16.mxu0 0
  %6094 = vmatmul.mubr.bf16.gmra.mrb[0].mxu0 %v5914
  %v6095 = vpop.f32.mrb[0].mxu0
  %v6096 = vadd.f32 0.0, %v6095
  %v6097 = vpop.f32.mrb[0].mxu0
  %v6098 = vpop.f32.mrb[0].mxu0
  %v6099 = vadd.f32 0.0, %v6098
  %v6100 = vpop.f32.mrb[0].mxu0
  %6101 = vmatprep.mubr.bf16.mxu0 0
  %6102 = vmatmul.mubr.bf16.gmra.mrb[0].mxu0 %v5917
  %v6103 = vpop.f32.mrb[0].mxu0
  %v6104 = vadd.f32 0.0, %v6103
  %v6105 = vpop.f32.mrb[0].mxu0
  %v6106 = vpop.f32.mrb[0].mxu0
  %v6107 = vadd.f32 0.0, %v6106
  %v6108 = vpop.f32.mrb[0].mxu0
  %6109 = vmatprep.mubr.bf16.mxu0 0
  %6110 = vmatmul.mubr.bf16.gmra.mrb[0].mxu0 %v5920
  %v6111 = vpop.f32.mrb[0].mxu0
  %v6112 = vadd.f32 0.0, %v6111
  %v6113 = vpop.f32.mrb[0].mxu0
  %v6114 = vpop.f32.mrb[0].mxu0
  %v6115 = vadd.f32 0.0, %v6114
  %v6116 = vpop.f32.mrb[0].mxu0
  %6117 = vmatprep.mubr.bf16.mxu0 0
  %6118 = vmatmul.mubr.bf16.gmra.mrb[0].mxu0 %v5923
  %v6119 = vpop.f32.mrb[0].mxu0
  %v6120 = vadd.f32 0.0, %v6119
  %v6121 = vpop.f32.mrb[0].mxu0
  %v6122 = vpop.f32.mrb[0].mxu0
  %v6123 = vadd.f32 0.0, %v6122
  %v6124 = vpop.f32.mrb[0].mxu0
  %6125 = vmatprep.mubr.bf16.mxu0 0
  %6126 = vmatmul.mubr.bf16.gmra.mrb[0].mxu0 %v5926
  %v6127 = vpop.f32.mrb[0].mxu0
  %v6128 = vadd.f32 0.0, %v6127
  %v6129 = vpop.f32.mrb[0].mxu0
  %v6130 = vpop.f32.mrb[0].mxu0
  %v6131 = vadd.f32 0.0, %v6130
  %v6132 = vpop.f32.mrb[0].mxu0
  %6133 = vmatprep.mubr.bf16.mxu0 0
  %6134 = vmatmul.mubr.bf16.gmra.mrb[0].mxu0 %v5929
  %v6135 = vpop.f32.mrb[0].mxu0
  %v6136 = vadd.f32 0.0, %v6135
  %v6137 = vpop.f32.mrb[0].mxu0
  %v6138 = vpop.f32.mrb[0].mxu0
  %v6139 = vadd.f32 0.0, %v6138
  %v6140 = vpop.f32.mrb[0].mxu0
  %6141 = vmatprep.mubr.bf16.mxu0 0
  %6142 = vmatmul.mubr.bf16.gmra.mrb[0].mxu0 %v5932
  %v6143 = vpop.f32.mrb[0].mxu0
  %v6144 = vadd.f32 0.0, %v6143
  %v6145 = vpop.f32.mrb[0].mxu0
  %v6146 = vpop.f32.mrb[0].mxu0
  %v6147 = vadd.f32 0.0, %v6146
  %v6148 = vpop.f32.mrb[0].mxu0
  %6149 = vmatprep.mubr.bf16.mxu0 0
  %6150 = vmatmul.mubr.bf16.gmra.mrb[0].mxu0 %v5935
  %v6151 = vpop.f32.mrb[0].mxu0
  %v6152 = vadd.f32 0.0, %v6151
  %v6153 = vpop.f32.mrb[0].mxu0
  %v6154 = vpop.f32.mrb[0].mxu0
  %v6155 = vadd.f32 0.0, %v6154
  %v6156 = vpop.f32.mrb[0].mxu0
  %6157 = vmatprep.mubr.bf16.mxu0 0
  %6158 = vmatmul.mubr.bf16.gmra.mrb[0].mxu0 %v5938
  %v6159 = vpop.f32.mrb[0].mxu0
  %v6160 = vadd.f32 0.0, %v6159
  %v6161 = vpop.f32.mrb[0].mxu0
  %v6162 = vpop.f32.mrb[0].mxu0
  %v6163 = vadd.f32 0.0, %v6162
  %v6164 = vpop.f32.mrb[0].mxu0
  %6165 = vmatprep.mubr.bf16.mxu0 0
  %6166 = vmatmul.mubr.bf16.gmra.mrb[0].mxu0 %v5941
  %v6167 = vpop.f32.mrb[0].mxu0
  %v6168 = vadd.f32 0.0, %v6167
  %v6169 = vpop.f32.mrb[0].mxu0
  %v6170 = vpop.f32.mrb[0].mxu0
  %v6171 = vadd.f32 0.0, %v6170
  %v6172 = vpop.f32.mrb[0].mxu0
  %6173 = vmatprep.mubr.bf16.mxu0 0
  %6174 = vmatmul.mubr.bf16.gmra.mrb[0].mxu0 %v5944
  %v6175 = vpop.f32.mrb[0].mxu0
  %v6176 = vadd.f32 0.0, %v6175
  %v6177 = vpop.f32.mrb[0].mxu0
  %v6178 = vpop.f32.mrb[0].mxu0
  %v6179 = vadd.f32 0.0, %v6178
  %v6180 = vpop.f32.mrb[0].mxu0
  %6181 = vmatprep.mubr.bf16.mxu0 0
  %6182 = vmatmul.mubr.bf16.gmra.mrb[0].mxu0 %v5947
  %v6183 = vpop.f32.mrb[0].mxu0
  %v6184 = vadd.f32 0.0, %v6183
  %v6185 = vpop.f32.mrb[0].mxu0
  %v6186 = vpop.f32.mrb[0].mxu0
  %v6187 = vadd.f32 0.0, %v6186
  %v6188 = vpop.f32.mrb[0].mxu0
  %6189 = vmatprep.mubr.bf16.mxu0 0
  %6190 = vmatmul.mubr.bf16.gmra.mrb[0].mxu0 %v5950
  %v6191 = vpop.f32.mrb[0].mxu0
  %v6192 = vadd.f32 0.0, %v6191
  %v6193 = vpop.f32.mrb[0].mxu0
  %v6194 = vpop.f32.mrb[0].mxu0
  %v6195 = vadd.f32 0.0, %v6194
  %v6196 = vpop.f32.mrb[0].mxu0
  %6197 = vmatprep.mubr.bf16.mxu0 0
  %6198 = vmatmul.mubr.bf16.gmra.mrb[0].mxu0 %v5953
  %v6199 = vpop.f32.mrb[0].mxu0
  %v6200 = vadd.f32 0.0, %v6199
  %v6201 = vpop.f32.mrb[0].mxu0
  %v6202 = vpop.f32.mrb[0].mxu0
  %v6203 = vadd.f32 0.0, %v6202
  %v6204 = vpop.f32.mrb[0].mxu0
  %6205 = vmatprep.mubr.bf16.mxu0 0
  %6206 = vmatmul.mubr.bf16.gmra.mrb[0].mxu0 %v5956
  %v6207 = vpop.f32.mrb[0].mxu0
  %v6208 = vadd.f32 0.0, %v6207
  %v6209 = vpop.f32.mrb[0].mxu0
  %v6210 = vpop.f32.mrb[0].mxu0
  %v6211 = vadd.f32 0.0, %v6210
  %v6212 = vpop.f32.mrb[0].mxu0
  %6213 = vmatprep.mubr.bf16.mxu0 0
  %6214 = vmatmul.mubr.bf16.gmra.mrb[0].mxu0 %v5959
  %v6215 = vpop.f32.mrb[0].mxu0
  %v6216 = vadd.f32 0.0, %v6215
  %v6217 = vpop.f32.mrb[0].mxu0
  %v6218 = vpop.f32.mrb[0].mxu0
  %v6219 = vadd.f32 0.0, %v6218
  %v6220 = vpop.f32.mrb[0].mxu0
  %6221 = vmatprep.mubr.bf16.mxu0 0
  %6222 = vmatmul.mubr.bf16.gmra.mrb[0].mxu0 %v5962
  %v6223 = vpop.f32.mrb[0].mxu0
  %v6224 = vadd.f32 0.0, %v6223
  %v6225 = vpop.f32.mrb[0].mxu0
  %v6226 = vpop.f32.mrb[0].mxu0
  %v6227 = vadd.f32 0.0, %v6226
  %v6228 = vpop.f32.mrb[0].mxu0
  %6229 = vmatprep.mubr.bf16.mxu0 0
  %6230 = vmatmul.mubr.bf16.gmra.mrb[0].mxu0 %v5965
  %v6231 = vpop.f32.mrb[0].mxu0
  %v6232 = vadd.f32 0.0, %v6231
  %v6233 = vpop.f32.mrb[0].mxu0
  %v6234 = vpop.f32.mrb[0].mxu0
  %v6235 = vadd.f32 0.0, %v6234
  %v6236 = vpop.f32.mrb[0].mxu0
  %6237 = vmatprep.mubr.bf16.mxu0 0
  %6238 = vmatmul.mubr.bf16.gmra.mrb[0].mxu0 %v5968
  %v6239 = vpop.f32.mrb[0].mxu0
  %v6240 = vadd.f32 0.0, %v6239
  %v6241 = vpop.f32.mrb[0].mxu0
  %v6242 = vpop.f32.mrb[0].mxu0
  %v6243 = vadd.f32 0.0, %v6242
  %v6244 = vpop.f32.mrb[0].mxu0
  %6245 = vmatprep.mubr.bf16.mxu0 0
  %6246 = vmatmul.mubr.bf16.gmra.mrb[0].mxu0 %v5971
  %v6247 = vpop.f32.mrb[0].mxu0
  %v6248 = vadd.f32 0.0, %v6247
  %v6249 = vpop.f32.mrb[0].mxu0
  %v6250 = vpop.f32.mrb[0].mxu0
  %v6251 = vadd.f32 0.0, %v6250
  %v6252 = vpop.f32.mrb[0].mxu0
  %6253 = vmatprep.mubr.bf16.mxu0 0
  %6254 = vmatmul.mubr.bf16.gmra.mrb[0].mxu0 %v5974
  %v6255 = vpop.f32.mrb[0].mxu0
  %v6256 = vadd.f32 0.0, %v6255
  %v6257 = vpop.f32.mrb[0].mxu0
  %v6258 = vpop.f32.mrb[0].mxu0
  %v6259 = vadd.f32 0.0, %v6258
  %v6260 = vpop.f32.mrb[0].mxu0
  %6261 = vmatprep.mubr.bf16.mxu0 0
  %6262 = vmatmul.mubr.bf16.gmra.mrb[0].mxu0 %v5977
  %v6263 = vpop.f32.mrb[0].mxu0
  %v6264 = vadd.f32 0.0, %v6263
  %v6265 = vpop.f32.mrb[0].mxu0
  %v6266 = vpop.f32.mrb[0].mxu0
  %v6267 = vadd.f32 0.0, %v6266
  %v6268 = vpop.f32.mrb[0].mxu0
  %6269 = vmatprep.mubr.bf16.mxu0 0
  %6270 = vmatmul.mubr.bf16.gmra.mrb[0].mxu0 %v5980
  %v6271 = vpop.f32.mrb[0].mxu0
  %v6272 = vadd.f32 0.0, %v6271
  %v6273 = vpop.f32.mrb[0].mxu0
  %v6274 = vpop.f32.mrb[0].mxu0
  %v6275 = vadd.f32 0.0, %v6274
  %v6276 = vpop.f32.mrb[0].mxu0
  %6277 = vmatprep.mubr.bf16.mxu0 0
  %6278 = vmatmul.mubr.bf16.gmra.mrb[0].mxu0 %v5983
  %v6279 = vpop.f32.mrb[0].mxu0
  %v6280 = vadd.f32 0.0, %v6279
  %v6281 = vpop.f32.mrb[0].mxu0
  %v6282 = vpop.f32.mrb[0].mxu0
  %v6283 = vadd.f32 0.0, %v6282
  %v6284 = vpop.f32.mrb[0].mxu0
  %6285 = vmatprep.mubr.bf16.mxu0 0
  %6286 = vmatmul.mubr.bf16.gmra.mrb[0].mxu0 %v5986
  %v6287 = vpop.f32.mrb[0].mxu0
  %v6288 = vadd.f32 0.0, %v6287
  %v6289 = vpop.f32.mrb[0].mxu0
  %v6290 = vpop.f32.mrb[0].mxu0
  %v6291 = vadd.f32 0.0, %v6290
  %v6292 = vpop.f32.mrb[0].mxu0
  %6293 = vmatprep.mubr.bf16.mxu0 0
  %6294 = vmatmul.mubr.bf16.gmra.mrb[0].mxu0 %v5989
  %v6295 = vpop.f32.mrb[0].mxu0
  %v6296 = vadd.f32 0.0, %v6295
  %v6297 = vpop.f32.mrb[0].mxu0
  %v6298 = vpop.f32.mrb[0].mxu0
  %v6299 = vadd.f32 0.0, %v6298
  %v6300 = vpop.f32.mrb[0].mxu0
  %6301 = vmatprep.mubr.bf16.mxu0 0
  %6302 = vmatmul.mubr.bf16.gmra.mrb[0].mxu0 %v5992
  %v6303 = vpop.f32.mrb[0].mxu0
  %v6304 = vadd.f32 0.0, %v6303
  %v6305 = vpop.f32.mrb[0].mxu0
  %v6306 = vpop.f32.mrb[0].mxu0
  %v6307 = vadd.f32 0.0, %v6306
  %v6308 = vpop.f32.mrb[0].mxu0
  %6309 = vmatprep.mubr.bf16.mxu0 0
  %6310 = vmatmul.mubr.bf16.gmra.mrb[0].mxu0 %v5995
  %v6311 = vpop.f32.mrb[0].mxu0
  %v6312 = vadd.f32 0.0, %v6311
  %v6313 = vpop.f32.mrb[0].mxu0
  %v6314 = vpop.f32.mrb[0].mxu0
  %v6315 = vadd.f32 0.0, %v6314
  %v6316 = vpop.f32.mrb[0].mxu0
  %6317 = vmatprep.mubr.bf16.mxu0 0
  %6318 = vmatmul.mubr.bf16.gmra.mrb[0].mxu0 %v5998
  %v6319 = vpop.f32.mrb[0].mxu0
  %v6320 = vadd.f32 0.0, %v6319
  %v6321 = vpop.f32.mrb[0].mxu0
  %v6322 = vpop.f32.mrb[0].mxu0
  %v6323 = vadd.f32 0.0, %v6322
  %v6324 = vpop.f32.mrb[0].mxu0
  %6325 = vmatprep.mubr.bf16.mxu0 0
  %6326 = vmatmul.mubr.bf16.gmra.mrb[0].mxu0 %v6001
  %v6327 = vpop.f32.mrb[0].mxu0
  %v6328 = vadd.f32 0.0, %v6327
  %v6329 = vpop.f32.mrb[0].mxu0
  %v6330 = vpop.f32.mrb[0].mxu0
  %v6331 = vadd.f32 0.0, %v6330
  %v6332 = vpop.f32.mrb[0].mxu0
  %6333 = vmatprep.mubr.bf16.mxu0 0
  %6334 = vmatmul.mubr.bf16.gmra.mrb[0].mxu0 %v6004
  %v6335 = vpop.f32.mrb[0].mxu0
  %v6336 = vadd.f32 0.0, %v6335
  %v6337 = vpop.f32.mrb[0].mxu0
  %v6338 = vpop.f32.mrb[0].mxu0
  %v6339 = vadd.f32 0.0, %v6338
  %v6340 = vpop.f32.mrb[0].mxu0
  %6341 = vmatprep.mubr.bf16.mxu0 0
  %6342 = vmatmul.mubr.bf16.gmra.mrb[0].mxu0 %v6007
  %v6343 = vpop.f32.mrb[0].mxu0
  %v6344 = vadd.f32 0.0, %v6343
  %v6345 = vpop.f32.mrb[0].mxu0
  %v6346 = vpop.f32.mrb[0].mxu0
  %v6347 = vadd.f32 0.0, %v6346
  %v6348 = vpop.f32.mrb[0].mxu0
  %6349 = vmatprep.mubr.bf16.mxu0 0
  %6350 = vmatmul.mubr.bf16.gmra.mrb[0].mxu0 %v6010
  %v6351 = vpop.f32.mrb[0].mxu0
  %v6352 = vadd.f32 0.0, %v6351
  %v6353 = vpop.f32.mrb[0].mxu0
  %v6354 = vpop.f32.mrb[0].mxu0
  %v6355 = vadd.f32 0.0, %v6354
  %v6356 = vpop.f32.mrb[0].mxu0
  %6357 = vmatprep.mubr.bf16.mxu0 0
  %6358 = vmatmul.mubr.bf16.gmra.mrb[0].mxu0 %v6013
  %v6359 = vpop.f32.mrb[0].mxu0
  %v6360 = vadd.f32 0.0, %v6359
  %v6361 = vpop.f32.mrb[0].mxu0
  %v6362 = vpop.f32.mrb[0].mxu0
  %v6363 = vadd.f32 0.0, %v6362
  %v6364 = vpop.f32.mrb[0].mxu0
  %6365 = vmatprep.mubr.bf16.mxu0 0
  %6366 = vmatmul.mubr.bf16.gmra.mrb[0].mxu0 %v6016
  %v6367 = vpop.f32.mrb[0].mxu0
  %v6368 = vadd.f32 0.0, %v6367
  %v6369 = vpop.f32.mrb[0].mxu0
  %v6370 = vpop.f32.mrb[0].mxu0
  %v6371 = vadd.f32 0.0, %v6370
  %v6372 = vpop.f32.mrb[0].mxu0
  %6373 = vmatprep.mubr.bf16.mxu0 0
  %6374 = vmatmul.mubr.bf16.gmra.mrb[0].mxu0 %v6019
  %v6375 = vpop.f32.mrb[0].mxu0
  %v6376 = vadd.f32 0.0, %v6375
  %v6377 = vpop.f32.mrb[0].mxu0
  %v6378 = vpop.f32.mrb[0].mxu0
  %v6379 = vadd.f32 0.0, %v6378
  %v6380 = vpop.f32.mrb[0].mxu0
  %6381 = vmatprep.mubr.bf16.mxu0 0
  %6382 = vmatmul.mubr.bf16.gmra.mrb[0].mxu0 %v6022
  %v6383 = vpop.f32.mrb[0].mxu0
  %v6384 = vadd.f32 0.0, %v6383
  %v6385 = vpop.f32.mrb[0].mxu0
  %v6386 = vpop.f32.mrb[0].mxu0
  %v6387 = vadd.f32 0.0, %v6386
  %v6388 = vpop.f32.mrb[0].mxu0
  %6389 = vmatprep.mubr.bf16.mxu0 0
  %6390 = vmatmul.mubr.bf16.gmra.mrb[0].mxu0 %v6025
  %v6391 = vpop.f32.mrb[0].mxu0
  %v6392 = vadd.f32 0.0, %v6391
  %v6393 = vpop.f32.mrb[0].mxu0
  %v6394 = vpop.f32.mrb[0].mxu0
  %v6395 = vadd.f32 0.0, %v6394
  %v6396 = vpop.f32.mrb[0].mxu0
  %6397 = vmatprep.mubr.bf16.mxu0 0
  %6398 = vmatmul.mubr.bf16.gmra.mrb[0].mxu0 %v6028
  %v6399 = vpop.f32.mrb[0].mxu0
  %v6400 = vadd.f32 0.0, %v6399
  %v6401 = vpop.f32.mrb[0].mxu0
  %v6402 = vpop.f32.mrb[0].mxu0
  %v6403 = vadd.f32 0.0, %v6402
  %v6404 = vpop.f32.mrb[0].mxu0
  %6405 = vmatprep.mubr.bf16.mxu0 0
  %6406 = vmatmul.mubr.bf16.gmra.mrb[0].mxu0 %v6031
  %v6407 = vpop.f32.mrb[0].mxu0
  %v6408 = vadd.f32 0.0, %v6407
  %v6409 = vpop.f32.mrb[0].mxu0
  %v6410 = vpop.f32.mrb[0].mxu0
  %v6411 = vadd.f32 0.0, %v6410
  %v6412 = vpop.f32.mrb[0].mxu0
  %6413 = vmatprep.mubr.bf16.mxu0 0
  %6414 = vmatmul.mubr.bf16.gmra.mrb[0].mxu0 %v6034
  %v6415 = vpop.f32.mrb[0].mxu0
  %v6416 = vadd.f32 0.0, %v6415
  %v6417 = vpop.f32.mrb[0].mxu0
  %v6418 = vpop.f32.mrb[0].mxu0
  %v6419 = vadd.f32 0.0, %v6418
  %v6420 = vpop.f32.mrb[0].mxu0
  %6421 = vmatprep.mubr.bf16.mxu0 0
  %6422 = vmatmul.mubr.bf16.gmra.mrb[0].mxu0 %v6037
  %v6423 = vpop.f32.mrb[0].mxu0
  %v6424 = vadd.f32 0.0, %v6423
  %v6425 = vpop.f32.mrb[0].mxu0
  %v6426 = vpop.f32.mrb[0].mxu0
  %v6427 = vadd.f32 0.0, %v6426
  %v6428 = vpop.f32.mrb[0].mxu0
  %6429 = vmatprep.mubr.bf16.mxu0 0
  %6430 = vmatmul.mubr.bf16.gmra.mrb[0].mxu0 %v6040
  %v6431 = vpop.f32.mrb[0].mxu0
  %v6432 = vadd.f32 0.0, %v6431
  %v6433 = vpop.f32.mrb[0].mxu0
  %v6434 = vpop.f32.mrb[0].mxu0
  %v6435 = vadd.f32 0.0, %v6434
  %v6436 = vpop.f32.mrb[0].mxu0
  %6437 = vdwg.mxu0
  %v6438 = vadd.f32 %v5723, %v6080
  %v6439 = vadd.f32 %v5724, %v6083
  %v6440 = vadd.f32 %v5725, %v6088
  %v6441 = vadd.f32 %v5726, %v6091
  %v6442 = vadd.f32 %v5727, %v6096
  %v6443 = vadd.f32 %v5728, %v6099
  %v6444 = vadd.f32 %v5729, %v6104
  %v6445 = vadd.f32 %v5730, %v6107
  %v6446 = vadd.f32 %v5731, %v6112
  %v6447 = vadd.f32 %v5732, %v6115
  %v6448 = vadd.f32 %v5733, %v6120
  %v6449 = vadd.f32 %v5734, %v6123
  %v6450 = vadd.f32 %v5735, %v6128
  %v6451 = vadd.f32 %v5736, %v6131
  %v6452 = vadd.f32 %v5737, %v6136
  %v6453 = vadd.f32 %v5738, %v6139
  %v6454 = vadd.f32 %v5739, %v6144
  %v6455 = vadd.f32 %v5740, %v6147
  %v6456 = vadd.f32 %v5741, %v6152
  %v6457 = vadd.f32 %v5742, %v6155
  %v6458 = vadd.f32 %v5743, %v6160
  %v6459 = vadd.f32 %v5744, %v6163
  %v6460 = vadd.f32 %v5745, %v6168
  %v6461 = vadd.f32 %v5746, %v6171
  %v6462 = vadd.f32 %v5747, %v6176
  %v6463 = vadd.f32 %v5748, %v6179
  %v6464 = vadd.f32 %v5749, %v6184
  %v6465 = vadd.f32 %v5750, %v6187
  %v6466 = vadd.f32 %v5751, %v6192
  %v6467 = vadd.f32 %v5752, %v6195
  %v6468 = vadd.f32 %v5753, %v6200
  %v6469 = vadd.f32 %v5754, %v6203
  %v6470 = vadd.f32 %v5755, %v6208
  %v6471 = vadd.f32 %v5756, %v6211
  %v6472 = vadd.f32 %v5757, %v6216
  %v6473 = vadd.f32 %v5758, %v6219
  %v6474 = vadd.f32 %v5759, %v6224
  %v6475 = vadd.f32 %v5760, %v6227
  %v6476 = vadd.f32 %v5761, %v6232
  %v6477 = vadd.f32 %v5762, %v6235
  %v6478 = vadd.f32 %v5763, %v6240
  %v6479 = vadd.f32 %v5764, %v6243
  %v6480 = vadd.f32 %v5765, %v6248
  %v6481 = vadd.f32 %v5766, %v6251
  %v6482 = vadd.f32 %v5767, %v6256
  %v6483 = vadd.f32 %v5768, %v6259
  %v6484 = vadd.f32 %v5769, %v6264
  %v6485 = vadd.f32 %v5770, %v6267
  %v6486 = vadd.f32 %v5771, %v6272
  %v6487 = vadd.f32 %v5772, %v6275
  %v6488 = vadd.f32 %v5773, %v6280
  %v6489 = vadd.f32 %v5774, %v6283
  %v6490 = vadd.f32 %v5775, %v6288
  %v6491 = vadd.f32 %v5776, %v6291
  %v6492 = vadd.f32 %v5777, %v6296
  %v6493 = vadd.f32 %v5778, %v6299
  %v6494 = vadd.f32 %v5779, %v6304
  %v6495 = vadd.f32 %v5780, %v6307
  %v6496 = vadd.f32 %v5781, %v6312
  %v6497 = vadd.f32 %v5782, %v6315
  %v6498 = vadd.f32 %v5783, %v6320
  %v6499 = vadd.f32 %v5784, %v6323
  %v6500 = vadd.f32 %v5785, %v6328
  %v6501 = vadd.f32 %v5786, %v6331
  %v6502 = vadd.f32 %v5787, %v6336
  %v6503 = vadd.f32 %v5788, %v6339
  %v6504 = vadd.f32 %v5789, %v6344
  %v6505 = vadd.f32 %v5790, %v6347
  %v6506 = vadd.f32 %v5791, %v6352
  %v6507 = vadd.f32 %v5792, %v6355
  %v6508 = vadd.f32 %v5793, %v6360
  %v6509 = vadd.f32 %v5794, %v6363
  %v6510 = vadd.f32 %v5795, %v6368
  %v6511 = vadd.f32 %v5796, %v6371
  %v6512 = vadd.f32 %v5797, %v6376
  %v6513 = vadd.f32 %v5798, %v6379
  %v6514 = vadd.f32 %v5799, %v6384
  %v6515 = vadd.f32 %v5800, %v6387
  %v6516 = vadd.f32 %v5801, %v6392
  %v6517 = vadd.f32 %v5802, %v6395
  %v6518 = vadd.f32 %v5803, %v6400
  %v6519 = vadd.f32 %v5804, %v6403
  %v6520 = vadd.f32 %v5805, %v6408
  %v6521 = vadd.f32 %v5806, %v6411
  %v6522 = vadd.f32 %v5807, %v6416
  %v6523 = vadd.f32 %v5808, %v6419
  %v6524 = vadd.f32 %v5809, %v6424
  %v6525 = vadd.f32 %v5810, %v6427
  %v6526 = vadd.f32 %v5811, %v6432
  %v6527 = vadd.f32 %v5812, %v6435
  %v6528 = vld [vmem:[%s3] sm:$0x1]
  %v6530 = vlaneseq
  %v6531 = vshrl.u32 %v6530, 7
  %v6532 = vsub.s32 0, %v6531
  %v6533 = vrot.slane %v6528, %v6532
  %v6535 = vadd.f32 %v6438, %v6533
  %v6536 = vadd.f32 %v6439, %v6533
  %v6537 = vadd.f32 %v6440, %v6533
  %v6538 = vadd.f32 %v6441, %v6533
  %v6539 = vadd.f32 %v6442, %v6533
  %v6540 = vadd.f32 %v6443, %v6533
  %v6541 = vadd.f32 %v6444, %v6533
  %v6542 = vadd.f32 %v6445, %v6533
  %v6543 = vadd.f32 %v6446, %v6533
  %v6544 = vadd.f32 %v6447, %v6533
  %v6545 = vadd.f32 %v6448, %v6533
  %v6546 = vadd.f32 %v6449, %v6533
  %v6547 = vadd.f32 %v6450, %v6533
  %v6548 = vadd.f32 %v6451, %v6533
  %v6549 = vadd.f32 %v6452, %v6533
  %v6550 = vadd.f32 %v6453, %v6533
  %v6551 = vadd.f32 %v6454, %v6533
  %v6552 = vadd.f32 %v6455, %v6533
  %v6553 = vadd.f32 %v6456, %v6533
  %v6554 = vadd.f32 %v6457, %v6533
  %v6555 = vadd.f32 %v6458, %v6533
  %v6556 = vadd.f32 %v6459, %v6533
  %v6557 = vadd.f32 %v6460, %v6533
  %v6558 = vadd.f32 %v6461, %v6533
  %v6559 = vadd.f32 %v6462, %v6533
  %v6560 = vadd.f32 %v6463, %v6533
  %v6561 = vadd.f32 %v6464, %v6533
  %v6562 = vadd.f32 %v6465, %v6533
  %v6563 = vadd.f32 %v6466, %v6533
  %v6564 = vadd.f32 %v6467, %v6533
  %v6565 = vadd.f32 %v6468, %v6533
  %v6566 = vadd.f32 %v6469, %v6533
  %v6567 = vadd.f32 %v6470, %v6533
  %v6568 = vadd.f32 %v6471, %v6533
  %v6569 = vadd.f32 %v6472, %v6533
  %v6570 = vadd.f32 %v6473, %v6533
  %v6571 = vadd.f32 %v6474, %v6533
  %v6572 = vadd.f32 %v6475, %v6533
  %v6573 = vadd.f32 %v6476, %v6533
  %v6574 = vadd.f32 %v6477, %v6533
  %v6575 = vadd.f32 %v6478, %v6533
  %v6576 = vadd.f32 %v6479, %v6533
  %v6577 = vadd.f32 %v6480, %v6533
  %v6578 = vadd.f32 %v6481, %v6533
  %v6579 = vadd.f32 %v6482, %v6533
  %v6580 = vadd.f32 %v6483, %v6533
  %v6581 = vadd.f32 %v6484, %v6533
  %v6582 = vadd.f32 %v6485, %v6533
  %v6583 = vadd.f32 %v6486, %v6533
  %v6584 = vadd.f32 %v6487, %v6533
  %v6585 = vadd.f32 %v6488, %v6533
  %v6586 = vadd.f32 %v6489, %v6533
  %v6587 = vadd.f32 %v6490, %v6533
  %v6588 = vadd.f32 %v6491, %v6533
  %v6589 = vadd.f32 %v6492, %v6533
  %v6590 = vadd.f32 %v6493, %v6533
  %v6591 = vadd.f32 %v6494, %v6533
  %v6592 = vadd.f32 %v6495, %v6533
  %v6593 = vadd.f32 %v6496, %v6533
  %v6594 = vadd.f32 %v6497, %v6533
  %v6595 = vadd.f32 %v6498, %v6533
  %v6596 = vadd.f32 %v6499, %v6533
  %v6597 = vadd.f32 %v6500, %v6533
  %v6598 = vadd.f32 %v6501, %v6533
  %v6599 = vadd.f32 %v6502, %v6533
  %v6600 = vadd.f32 %v6503, %v6533
  %v6601 = vadd.f32 %v6504, %v6533
  %v6602 = vadd.f32 %v6505, %v6533
  %v6603 = vadd.f32 %v6506, %v6533
  %v6604 = vadd.f32 %v6507, %v6533
  %v6605 = vadd.f32 %v6508, %v6533
  %v6606 = vadd.f32 %v6509, %v6533
  %v6607 = vadd.f32 %v6510, %v6533
  %v6608 = vadd.f32 %v6511, %v6533
  %v6609 = vadd.f32 %v6512, %v6533
  %v6610 = vadd.f32 %v6513, %v6533
  %v6611 = vadd.f32 %v6514, %v6533
  %v6612 = vadd.f32 %v6515, %v6533
  %v6613 = vadd.f32 %v6516, %v6533
  %v6614 = vadd.f32 %v6517, %v6533
  %v6615 = vadd.f32 %v6518, %v6533
  %v6616 = vadd.f32 %v6519, %v6533
  %v6617 = vadd.f32 %v6520, %v6533
  %v6618 = vadd.f32 %v6521, %v6533
  %v6619 = vadd.f32 %v6522, %v6533
  %v6620 = vadd.f32 %v6523, %v6533
  %v6621 = vadd.f32 %v6524, %v6533
  %v6622 = vadd.f32 %v6525, %v6533
  %v6623 = vadd.f32 %v6526, %v6533
  %v6624 = vadd.f32 %v6527, %v6533
  %v6625 = vmax.f32 %v6535, 0.0
  %v6626 = vmax.f32 %v6536, 0.0
  %v6627 = vmax.f32 %v6537, 0.0
  %v6628 = vmax.f32 %v6538, 0.0
  %v6629 = vmax.f32 %v6539, 0.0
  %v6630 = vmax.f32 %v6540, 0.0
  %v6631 = vmax.f32 %v6541, 0.0
  %v6632 = vmax.f32 %v6542, 0.0
  %v6633 = vmax.f32 %v6543, 0.0
  %v6634 = vmax.f32 %v6544, 0.0
  %v6635 = vmax.f32 %v6545, 0.0
  %v6636 = vmax.f32 %v6546, 0.0
  %v6637 = vmax.f32 %v6547, 0.0
  %v6638 = vmax.f32 %v6548, 0.0
  %v6639 = vmax.f32 %v6549, 0.0
  %v6640 = vmax.f32 %v6550, 0.0
  %v6641 = vmax.f32 %v6551, 0.0
  %v6642 = vmax.f32 %v6552, 0.0
  %v6643 = vmax.f32 %v6553, 0.0
  %v6644 = vmax.f32 %v6554, 0.0
  %v6645 = vmax.f32 %v6555, 0.0
  %v6646 = vmax.f32 %v6556, 0.0
  %v6647 = vmax.f32 %v6557, 0.0
  %v6648 = vmax.f32 %v6558, 0.0
  %v6649 = vmax.f32 %v6559, 0.0
  %v6650 = vmax.f32 %v6560, 0.0
  %v6651 = vmax.f32 %v6561, 0.0
  %v6652 = vmax.f32 %v6562, 0.0
  %v6653 = vmax.f32 %v6563, 0.0
  %v6654 = vmax.f32 %v6564, 0.0
  %v6655 = vmax.f32 %v6565, 0.0
  %v6656 = vmax.f32 %v6566, 0.0
  %v6657 = vmax.f32 %v6567, 0.0
  %v6658 = vmax.f32 %v6568, 0.0
  %v6659 = vmax.f32 %v6569, 0.0
  %v6660 = vmax.f32 %v6570, 0.0
  %v6661 = vmax.f32 %v6571, 0.0
  %v6662 = vmax.f32 %v6572, 0.0
  %v6663 = vmax.f32 %v6573, 0.0
  %v6664 = vmax.f32 %v6574, 0.0
  %v6665 = vmax.f32 %v6575, 0.0
  %v6666 = vmax.f32 %v6576, 0.0
  %v6667 = vmax.f32 %v6577, 0.0
  %v6668 = vmax.f32 %v6578, 0.0
  %v6669 = vmax.f32 %v6579, 0.0
  %v6670 = vmax.f32 %v6580, 0.0
  %v6671 = vmax.f32 %v6581, 0.0
  %v6672 = vmax.f32 %v6582, 0.0
  %v6673 = vmax.f32 %v6583, 0.0
  %v6674 = vmax.f32 %v6584, 0.0
  %v6675 = vmax.f32 %v6585, 0.0
  %v6676 = vmax.f32 %v6586, 0.0
  %v6677 = vmax.f32 %v6587, 0.0
  %v6678 = vmax.f32 %v6588, 0.0
  %v6679 = vmax.f32 %v6589, 0.0
  %v6680 = vmax.f32 %v6590, 0.0
  %v6681 = vmax.f32 %v6591, 0.0
  %v6682 = vmax.f32 %v6592, 0.0
  %v6683 = vmax.f32 %v6593, 0.0
  %v6684 = vmax.f32 %v6594, 0.0
  %v6685 = vmax.f32 %v6595, 0.0
  %v6686 = vmax.f32 %v6596, 0.0
  %v6687 = vmax.f32 %v6597, 0.0
  %v6688 = vmax.f32 %v6598, 0.0
  %v6689 = vmax.f32 %v6599, 0.0
  %v6690 = vmax.f32 %v6600, 0.0
  %v6691 = vmax.f32 %v6601, 0.0
  %v6692 = vmax.f32 %v6602, 0.0
  %v6693 = vmax.f32 %v6603, 0.0
  %v6694 = vmax.f32 %v6604, 0.0
  %v6695 = vmax.f32 %v6605, 0.0
  %v6696 = vmax.f32 %v6606, 0.0
  %v6697 = vmax.f32 %v6607, 0.0
  %v6698 = vmax.f32 %v6608, 0.0
  %v6699 = vmax.f32 %v6609, 0.0
  %v6700 = vmax.f32 %v6610, 0.0
  %v6701 = vmax.f32 %v6611, 0.0
  %v6702 = vmax.f32 %v6612, 0.0
  %v6703 = vmax.f32 %v6613, 0.0
  %v6704 = vmax.f32 %v6614, 0.0
  %v6705 = vmax.f32 %v6615, 0.0
  %v6706 = vmax.f32 %v6616, 0.0
  %v6707 = vmax.f32 %v6617, 0.0
  %v6708 = vmax.f32 %v6618, 0.0
  %v6709 = vmax.f32 %v6619, 0.0
  %v6710 = vmax.f32 %v6620, 0.0
  %v6711 = vmax.f32 %v6621, 0.0
  %v6712 = vmax.f32 %v6622, 0.0
  %v6713 = vmax.f32 %v6623, 0.0
  %v6714 = vmax.f32 %v6624, 0.0
  %v6715 = vpack.c.bf16 %v6626, %v6625
  %v6716 = vpack.c.bf16 %v6628, %v6627
  %v6717 = vpack.c.bf16 %v6630, %v6629
  %v6718 = vpack.c.bf16 %v6632, %v6631
  %v6719 = vpack.c.bf16 %v6634, %v6633
  %v6720 = vpack.c.bf16 %v6636, %v6635
  %v6721 = vpack.c.bf16 %v6638, %v6637
  %v6722 = vpack.c.bf16 %v6640, %v6639
  %v6723 = vpack.c.bf16 %v6642, %v6641
  %v6724 = vpack.c.bf16 %v6644, %v6643
  %v6725 = vpack.c.bf16 %v6646, %v6645
  %v6726 = vpack.c.bf16 %v6648, %v6647
  %v6727 = vpack.c.bf16 %v6650, %v6649
  %v6728 = vpack.c.bf16 %v6652, %v6651
  %v6729 = vpack.c.bf16 %v6654, %v6653
  %v6730 = vpack.c.bf16 %v6656, %v6655
  %v6731 = vpack.c.bf16 %v6658, %v6657
  %v6732 = vpack.c.bf16 %v6660, %v6659
  %v6733 = vpack.c.bf16 %v6662, %v6661
  %v6734 = vpack.c.bf16 %v6664, %v6663
  %v6735 = vpack.c.bf16 %v6666, %v6665
  %v6736 = vpack.c.bf16 %v6668, %v6667
  %v6737 = vpack.c.bf16 %v6670, %v6669
  %v6738 = vpack.c.bf16 %v6672, %v6671
  %v6739 = vpack.c.bf16 %v6674, %v6673
  %v6740 = vpack.c.bf16 %v6676, %v6675
  %v6741 = vpack.c.bf16 %v6678, %v6677
  %v6742 = vpack.c.bf16 %v6680, %v6679
  %v6743 = vpack.c.bf16 %v6682, %v6681
  %v6744 = vpack.c.bf16 %v6684, %v6683
  %v6745 = vpack.c.bf16 %v6686, %v6685
  %v6746 = vpack.c.bf16 %v6688, %v6687
  %v6747 = vpack.c.bf16 %v6690, %v6689
  %v6748 = vpack.c.bf16 %v6692, %v6691
  %v6749 = vpack.c.bf16 %v6694, %v6693
  %v6750 = vpack.c.bf16 %v6696, %v6695
  %v6751 = vpack.c.bf16 %v6698, %v6697
  %v6752 = vpack.c.bf16 %v6700, %v6699
  %v6753 = vpack.c.bf16 %v6702, %v6701
  %v6754 = vpack.c.bf16 %v6704, %v6703
  %v6755 = vpack.c.bf16 %v6706, %v6705
  %v6756 = vpack.c.bf16 %v6708, %v6707
  %v6757 = vpack.c.bf16 %v6710, %v6709
  %v6758 = vpack.c.bf16 %v6712, %v6711
  %v6759 = vpack.c.bf16 %v6714, %v6713
  %v6805 = vunpack.c.l.b16 %v6715
  %v6806 = vunpack.c.h.b16 %v6715
  %v6807 = vunpack.c.l.b16 %v6716
  %v6808 = vunpack.c.h.b16 %v6716
  %v6809 = vunpack.c.l.b16 %v6717
  %v6810 = vunpack.c.h.b16 %v6717
  %v6811 = vunpack.c.l.b16 %v6718
  %v6812 = vunpack.c.h.b16 %v6718
  %v6813 = vunpack.c.l.b16 %v6719
  %v6814 = vunpack.c.h.b16 %v6719
  %v6815 = vunpack.c.l.b16 %v6720
  %v6816 = vunpack.c.h.b16 %v6720
  %v6817 = vunpack.c.l.b16 %v6721
  %v6818 = vunpack.c.h.b16 %v6721
  %v6819 = vunpack.c.l.b16 %v6722
  %v6820 = vunpack.c.h.b16 %v6722
  %v6821 = vunpack.c.l.b16 %v6723
  %v6822 = vunpack.c.h.b16 %v6723
  %v6823 = vunpack.c.l.b16 %v6724
  %v6824 = vunpack.c.h.b16 %v6724
  %v6825 = vunpack.c.l.b16 %v6725
  %v6826 = vunpack.c.h.b16 %v6725
  %v6827 = vunpack.c.l.b16 %v6726
  %v6828 = vunpack.c.h.b16 %v6726
  %v6829 = vunpack.c.l.b16 %v6727
  %v6830 = vunpack.c.h.b16 %v6727
  %v6831 = vunpack.c.l.b16 %v6728
  %v6832 = vunpack.c.h.b16 %v6728
  %v6833 = vunpack.c.l.b16 %v6729
  %v6834 = vunpack.c.h.b16 %v6729
  %v6835 = vunpack.c.l.b16 %v6730
  %v6836 = vunpack.c.h.b16 %v6730
  %v6837 = vunpack.c.l.b16 %v6731
  %v6838 = vunpack.c.h.b16 %v6731
  %v6839 = vunpack.c.l.b16 %v6732
  %v6840 = vunpack.c.h.b16 %v6732
  %v6841 = vunpack.c.l.b16 %v6733
  %v6842 = vunpack.c.h.b16 %v6733
  %v6843 = vunpack.c.l.b16 %v6734
  %v6844 = vunpack.c.h.b16 %v6734
  %v6845 = vunpack.c.l.b16 %v6735
  %v6846 = vunpack.c.h.b16 %v6735
  %v6847 = vunpack.c.l.b16 %v6736
  %v6848 = vunpack.c.h.b16 %v6736
  %v6849 = vunpack.c.l.b16 %v6737
  %v6850 = vunpack.c.h.b16 %v6737
  %v6851 = vunpack.c.l.b16 %v6738
  %v6852 = vunpack.c.h.b16 %v6738
  %v6853 = vunpack.c.l.b16 %v6739
  %v6854 = vunpack.c.h.b16 %v6739
  %v6855 = vunpack.c.l.b16 %v6740
  %v6856 = vunpack.c.h.b16 %v6740
  %v6857 = vunpack.c.l.b16 %v6741
  %v6858 = vunpack.c.h.b16 %v6741
  %v6859 = vunpack.c.l.b16 %v6742
  %v6860 = vunpack.c.h.b16 %v6742
  %v6861 = vunpack.c.l.b16 %v6743
  %v6862 = vunpack.c.h.b16 %v6743
  %v6863 = vunpack.c.l.b16 %v6744
  %v6864 = vunpack.c.h.b16 %v6744
  %v6865 = vunpack.c.l.b16 %v6745
  %v6866 = vunpack.c.h.b16 %v6745
  %v6867 = vunpack.c.l.b16 %v6746
  %v6868 = vunpack.c.h.b16 %v6746
  %v6869 = vunpack.c.l.b16 %v6747
  %v6870 = vunpack.c.h.b16 %v6747
  %v6871 = vunpack.c.l.b16 %v6748
  %v6872 = vunpack.c.h.b16 %v6748
  %v6873 = vunpack.c.l.b16 %v6749
  %v6874 = vunpack.c.h.b16 %v6749
  %v6875 = vunpack.c.l.b16 %v6750
  %v6876 = vunpack.c.h.b16 %v6750
  %v6877 = vunpack.c.l.b16 %v6751
  %v6878 = vunpack.c.h.b16 %v6751
  %v6879 = vunpack.c.l.b16 %v6752
  %v6880 = vunpack.c.h.b16 %v6752
  %v6881 = vunpack.c.l.b16 %v6753
  %v6882 = vunpack.c.h.b16 %v6753
  %v6883 = vunpack.c.l.b16 %v6754
  %v6884 = vunpack.c.h.b16 %v6754
  %v6885 = vunpack.c.l.b16 %v6755
  %v6886 = vunpack.c.h.b16 %v6755
  %v6887 = vunpack.c.l.b16 %v6756
  %v6888 = vunpack.c.h.b16 %v6756
  %v6889 = vunpack.c.l.b16 %v6757
  %v6890 = vunpack.c.h.b16 %v6757
  %v6891 = vunpack.c.l.b16 %v6758
  %v6892 = vunpack.c.h.b16 %v6758
  %v6893 = vunpack.c.l.b16 %v6759
  %v6894 = vunpack.c.h.b16 %v6759
  %v6895 = vpack.c.b16 %v6805, %v6805
  %v6896 = vpack.c.b16 %v6806, %v6806
  %v6897 = vpack.c.b16 %v6807, %v6807
  %v6898 = vpack.c.b16 %v6808, %v6808
  %v6899 = vpack.c.b16 %v6809, %v6809
  %v6900 = vpack.c.b16 %v6810, %v6810
  %v6901 = vpack.c.b16 %v6811, %v6811
  %v6902 = vpack.c.b16 %v6812, %v6812
  %v6903 = vpack.c.b16 %v6813, %v6813
  %v6904 = vpack.c.b16 %v6814, %v6814
  %v6905 = vpack.c.b16 %v6815, %v6815
  %v6906 = vpack.c.b16 %v6816, %v6816
  %v6907 = vpack.c.b16 %v6817, %v6817
  %v6908 = vpack.c.b16 %v6818, %v6818
  %v6909 = vpack.c.b16 %v6819, %v6819
  %v6910 = vpack.c.b16 %v6820, %v6820
  %v6911 = vpack.c.b16 %v6821, %v6821
  %v6912 = vpack.c.b16 %v6822, %v6822
  %v6913 = vpack.c.b16 %v6823, %v6823
  %v6914 = vpack.c.b16 %v6824, %v6824
  %v6915 = vpack.c.b16 %v6825, %v6825
  %v6916 = vpack.c.b16 %v6826, %v6826
  %v6917 = vpack.c.b16 %v6827, %v6827
  %v6918 = vpack.c.b16 %v6828, %v6828
  %v6919 = vpack.c.b16 %v6829, %v6829
  %v6920 = vpack.c.b16 %v6830, %v6830
  %v6921 = vpack.c.b16 %v6831, %v6831
  %v6922 = vpack.c.b16 %v6832, %v6832
  %v6923 = vpack.c.b16 %v6833, %v6833
  %v6924 = vpack.c.b16 %v6834, %v6834
  %v6925 = vpack.c.b16 %v6835, %v6835
  %v6926 = vpack.c.b16 %v6836, %v6836
  %v6927 = vpack.c.b16 %v6837, %v6837
  %v6928 = vpack.c.b16 %v6838, %v6838
  %v6929 = vpack.c.b16 %v6839, %v6839
  %v6930 = vpack.c.b16 %v6840, %v6840
  %v6931 = vpack.c.b16 %v6841, %v6841
  %v6932 = vpack.c.b16 %v6842, %v6842
  %v6933 = vpack.c.b16 %v6843, %v6843
  %v6934 = vpack.c.b16 %v6844, %v6844
  %v6935 = vpack.c.b16 %v6845, %v6845
  %v6936 = vpack.c.b16 %v6846, %v6846
  %v6937 = vpack.c.b16 %v6847, %v6847
  %v6938 = vpack.c.b16 %v6848, %v6848
  %v6939 = vpack.c.b16 %v6849, %v6849
  %v6940 = vpack.c.b16 %v6850, %v6850
  %v6941 = vpack.c.b16 %v6851, %v6851
  %v6942 = vpack.c.b16 %v6852, %v6852
  %v6943 = vpack.c.b16 %v6853, %v6853
  %v6944 = vpack.c.b16 %v6854, %v6854
  %v6945 = vpack.c.b16 %v6855, %v6855
  %v6946 = vpack.c.b16 %v6856, %v6856
  %v6947 = vpack.c.b16 %v6857, %v6857
  %v6948 = vpack.c.b16 %v6858, %v6858
  %v6949 = vpack.c.b16 %v6859, %v6859
  %v6950 = vpack.c.b16 %v6860, %v6860
  %v6951 = vpack.c.b16 %v6861, %v6861
  %v6952 = vpack.c.b16 %v6862, %v6862
  %v6953 = vpack.c.b16 %v6863, %v6863
  %v6954 = vpack.c.b16 %v6864, %v6864
  %v6955 = vpack.c.b16 %v6865, %v6865
  %v6956 = vpack.c.b16 %v6866, %v6866
  %v6957 = vpack.c.b16 %v6867, %v6867
  %v6958 = vpack.c.b16 %v6868, %v6868
  %v6959 = vpack.c.b16 %v6869, %v6869
  %v6960 = vpack.c.b16 %v6870, %v6870
  %v6961 = vpack.c.b16 %v6871, %v6871
  %v6962 = vpack.c.b16 %v6872, %v6872
  %v6963 = vpack.c.b16 %v6873, %v6873
  %v6964 = vpack.c.b16 %v6874, %v6874
  %v6965 = vpack.c.b16 %v6875, %v6875
  %v6966 = vpack.c.b16 %v6876, %v6876
  %v6967 = vpack.c.b16 %v6877, %v6877
  %v6968 = vpack.c.b16 %v6878, %v6878
  %v6969 = vpack.c.b16 %v6879, %v6879
  %v6970 = vpack.c.b16 %v6880, %v6880
  %v6971 = vpack.c.b16 %v6881, %v6881
  %v6972 = vpack.c.b16 %v6882, %v6882
  %v6973 = vpack.c.b16 %v6883, %v6883
  %v6974 = vpack.c.b16 %v6884, %v6884
  %v6975 = vpack.c.b16 %v6885, %v6885
  %v6976 = vpack.c.b16 %v6886, %v6886
  %v6977 = vpack.c.b16 %v6887, %v6887
  %v6978 = vpack.c.b16 %v6888, %v6888
  %v6979 = vpack.c.b16 %v6889, %v6889
  %v6980 = vpack.c.b16 %v6890, %v6890
  %v6981 = vpack.c.b16 %v6891, %v6891
  %v6982 = vpack.c.b16 %v6892, %v6892
  %v6983 = vpack.c.b16 %v6893, %v6893
  %v6984 = vpack.c.b16 %v6894, %v6894
  %vm7075 = vcmask 519168
  %7076 = vst.msk [vmem:[%s4] sm:$0xf] %vm7075, %v6895
  %7077 = vst.msk [vmem:[%s4 + $0x4] sm:$0xf] %vm7075, %v6896
  %7078 = vst.msk [vmem:[%s4 + $0x8] sm:$0xf] %vm7075, %v6897
  %7079 = vst.msk [vmem:[%s4 + $0xc] sm:$0xf] %vm7075, %v6898
  %7080 = vst.msk [vmem:[%s4 + $0x10] sm:$0xf] %vm7075, %v6899
  %7081 = vst.msk [vmem:[%s4 + $0x14] sm:$0xf] %vm7075, %v6900
  %7082 = vst.msk [vmem:[%s4 + $0x18] sm:$0xf] %vm7075, %v6901
  %7083 = vst.msk [vmem:[%s4 + $0x1c] sm:$0xf] %vm7075, %v6902
  %7084 = vst.msk [vmem:[%s4 + $0x20] sm:$0xf] %vm7075, %v6903
  %7085 = vst.msk [vmem:[%s4 + $0x24] sm:$0xf] %vm7075, %v6904
  %7086 = vst.msk [vmem:[%s4 + $0x28] sm:$0xf] %vm7075, %v6905
  %7087 = vst.msk [vmem:[%s4 + $0x2c] sm:$0xf] %vm7075, %v6906
  %7088 = vst.msk [vmem:[%s4 + $0x30] sm:$0xf] %vm7075, %v6907
  %7089 = vst.msk [vmem:[%s4 + $0x34] sm:$0xf] %vm7075, %v6908
  %7090 = vst.msk [vmem:[%s4 + $0x38] sm:$0xf] %vm7075, %v6909
  %7091 = vst.msk [vmem:[%s4 + $0x3c] sm:$0xf] %vm7075, %v6910
  %7092 = vst.msk [vmem:[%s4 + $0x40] sm:$0xf] %vm7075, %v6911
  %7093 = vst.msk [vmem:[%s4 + $0x44] sm:$0xf] %vm7075, %v6912
  %7094 = vst.msk [vmem:[%s4 + $0x48] sm:$0xf] %vm7075, %v6913
  %7095 = vst.msk [vmem:[%s4 + $0x4c] sm:$0xf] %vm7075, %v6914
  %7096 = vst.msk [vmem:[%s4 + $0x50] sm:$0xf] %vm7075, %v6915
  %7097 = vst.msk [vmem:[%s4 + $0x54] sm:$0xf] %vm7075, %v6916
  %7098 = vst.msk [vmem:[%s4 + $0x58] sm:$0xf] %vm7075, %v6917
  %7099 = vst.msk [vmem:[%s4 + $0x5c] sm:$0xf] %vm7075, %v6918
  %7100 = vst.msk [vmem:[%s4 + $0x60] sm:$0xf] %vm7075, %v6919
  %7101 = vst.msk [vmem:[%s4 + $0x64] sm:$0xf] %vm7075, %v6920
  %7102 = vst.msk [vmem:[%s4 + $0x68] sm:$0xf] %vm7075, %v6921
  %7103 = vst.msk [vmem:[%s4 + $0x6c] sm:$0xf] %vm7075, %v6922
  %7104 = vst.msk [vmem:[%s4 + $0x70] sm:$0xf] %vm7075, %v6923
  %7105 = vst.msk [vmem:[%s4 + $0x74] sm:$0xf] %vm7075, %v6924
  %7106 = vst.msk [vmem:[%s4 + $0x78] sm:$0xf] %vm7075, %v6925
  %7107 = vst.msk [vmem:[%s4 + $0x7c] sm:$0xf] %vm7075, %v6926
  %7108 = vst.msk [vmem:[%s4 + $0x80] sm:$0xf] %vm7075, %v6927
  %7109 = vst.msk [vmem:[%s4 + $0x84] sm:$0xf] %vm7075, %v6928
  %7110 = vst.msk [vmem:[%s4 + $0x88] sm:$0xf] %vm7075, %v6929
  %7111 = vst.msk [vmem:[%s4 + $0x8c] sm:$0xf] %vm7075, %v6930
  %7112 = vst.msk [vmem:[%s4 + $0x90] sm:$0xf] %vm7075, %v6931
  %7113 = vst.msk [vmem:[%s4 + $0x94] sm:$0xf] %vm7075, %v6932
  %7114 = vst.msk [vmem:[%s4 + $0x98] sm:$0xf] %vm7075, %v6933
  %7115 = vst.msk [vmem:[%s4 + $0x9c] sm:$0xf] %vm7075, %v6934
  %7116 = vst.msk [vmem:[%s4 + $0xa0] sm:$0xf] %vm7075, %v6935
  %7117 = vst.msk [vmem:[%s4 + $0xa4] sm:$0xf] %vm7075, %v6936
  %7118 = vst.msk [vmem:[%s4 + $0xa8] sm:$0xf] %vm7075, %v6937
  %7119 = vst.msk [vmem:[%s4 + $0xac] sm:$0xf] %vm7075, %v6938
  %7120 = vst.msk [vmem:[%s4 + $0xb0] sm:$0xf] %vm7075, %v6939
  %7121 = vst.msk [vmem:[%s4 + $0xb4] sm:$0xf] %vm7075, %v6940
  %7122 = vst.msk [vmem:[%s4 + $0xb8] sm:$0xf] %vm7075, %v6941
  %7123 = vst.msk [vmem:[%s4 + $0xbc] sm:$0xf] %vm7075, %v6942
  %7124 = vst.msk [vmem:[%s4 + $0xc0] sm:$0xf] %vm7075, %v6943
  %7125 = vst.msk [vmem:[%s4 + $0xc4] sm:$0xf] %vm7075, %v6944
  %7126 = vst.msk [vmem:[%s4 + $0xc8] sm:$0xf] %vm7075, %v6945
  %7127 = vst.msk [vmem:[%s4 + $0xcc] sm:$0xf] %vm7075, %v6946
  %7128 = vst.msk [vmem:[%s4 + $0xd0] sm:$0xf] %vm7075, %v6947
  %7129 = vst.msk [vmem:[%s4 + $0xd4] sm:$0xf] %vm7075, %v6948
  %7130 = vst.msk [vmem:[%s4 + $0xd8] sm:$0xf] %vm7075, %v6949
  %7131 = vst.msk [vmem:[%s4 + $0xdc] sm:$0xf] %vm7075, %v6950
  %7132 = vst.msk [vmem:[%s4 + $0xe0] sm:$0xf] %vm7075, %v6951
  %7133 = vst.msk [vmem:[%s4 + $0xe4] sm:$0xf] %vm7075, %v6952
  %7134 = vst.msk [vmem:[%s4 + $0xe8] sm:$0xf] %vm7075, %v6953
  %7135 = vst.msk [vmem:[%s4 + $0xec] sm:$0xf] %vm7075, %v6954
  %7136 = vst.msk [vmem:[%s4 + $0xf0] sm:$0xf] %vm7075, %v6955
  %7137 = vst.msk [vmem:[%s4 + $0xf4] sm:$0xf] %vm7075, %v6956
  %7138 = vst.msk [vmem:[%s4 + $0xf8] sm:$0xf] %vm7075, %v6957
  %7139 = vst.msk [vmem:[%s4 + $0xfc] sm:$0xf] %vm7075, %v6958
  %7140 = vst.msk [vmem:[%s4 + $0x100] sm:$0xf] %vm7075, %v6959
  %7141 = vst.msk [vmem:[%s4 + $0x104] sm:$0xf] %vm7075, %v6960
  %7142 = vst.msk [vmem:[%s4 + $0x108] sm:$0xf] %vm7075, %v6961
  %7143 = vst.msk [vmem:[%s4 + $0x10c] sm:$0xf] %vm7075, %v6962
  %7144 = vst.msk [vmem:[%s4 + $0x110] sm:$0xf] %vm7075, %v6963
  %7145 = vst.msk [vmem:[%s4 + $0x114] sm:$0xf] %vm7075, %v6964
  %7146 = vst.msk [vmem:[%s4 + $0x118] sm:$0xf] %vm7075, %v6965
  %7147 = vst.msk [vmem:[%s4 + $0x11c] sm:$0xf] %vm7075, %v6966
  %7148 = vst.msk [vmem:[%s4 + $0x120] sm:$0xf] %vm7075, %v6967
  %7149 = vst.msk [vmem:[%s4 + $0x124] sm:$0xf] %vm7075, %v6968
  %7150 = vst.msk [vmem:[%s4 + $0x128] sm:$0xf] %vm7075, %v6969
  %7151 = vst.msk [vmem:[%s4 + $0x12c] sm:$0xf] %vm7075, %v6970
  %7152 = vst.msk [vmem:[%s4 + $0x130] sm:$0xf] %vm7075, %v6971
  %7153 = vst.msk [vmem:[%s4 + $0x134] sm:$0xf] %vm7075, %v6972
  %7154 = vst.msk [vmem:[%s4 + $0x138] sm:$0xf] %vm7075, %v6973
  %7155 = vst.msk [vmem:[%s4 + $0x13c] sm:$0xf] %vm7075, %v6974
  %7156 = vst.msk [vmem:[%s4 + $0x140] sm:$0xf] %vm7075, %v6975
  %7157 = vst.msk [vmem:[%s4 + $0x144] sm:$0xf] %vm7075, %v6976
  %7158 = vst.msk [vmem:[%s4 + $0x148] sm:$0xf] %vm7075, %v6977
  %7159 = vst.msk [vmem:[%s4 + $0x14c] sm:$0xf] %vm7075, %v6978
  %7160 = vst.msk [vmem:[%s4 + $0x150] sm:$0xf] %vm7075, %v6979
  %7161 = vst.msk [vmem:[%s4 + $0x154] sm:$0xf] %vm7075, %v6980
  %7162 = vst.msk [vmem:[%s4 + $0x158] sm:$0xf] %vm7075, %v6981
  %7163 = vst.msk [vmem:[%s4 + $0x15c] sm:$0xf] %vm7075, %v6982
  %7164 = vst.msk [vmem:[%s4 + $0x160] sm:$0xf] %vm7075, %v6983
  %7165 = vst.msk [vmem:[%s4 + $0x164] sm:$0xf] %vm7075, %v6984
  // Predicated region
  $region18: #{tpu_custom_call.1} parent=0 // pred_check
    _
  $region19: #{tpu_custom_call.1} parent=0 // pred_check_branch
    %7167 = sbr.rel (0) target = $region21
  $region20: #{tpu_custom_call.1} parent=0 // pred_region
    _
  $region21: #{tpu_custom_call.1} parent=0 // pred_fallthru
    _
  // Predicated region
  $region22: #{tpu_custom_call.1} parent=0 // pred_check
    _
  $region23: #{tpu_custom_call.1} parent=0 // pred_check_branch
    %7169 = sbr.rel (0) target = $region25
  $region24: #{tpu_custom_call.1} parent=0 // pred_region
    _
  $region25: #{tpu_custom_call.1} parent=0 // pred_fallthru
    _

</llo_original>
